<compile_context>
chip_gen: v7x
topology: tpu7x:2x2x1
jax: 0.10.0
libtpu: 0.0.40
codegen_flags: <defaults>
</compile_context>

<pallas_src>
import functools

import jax
import jax.numpy as jnp
from jax.experimental import pallas as pl
from jax.experimental.pallas import tpu as pltpu


def _round_up(x, m):
    return (x + m - 1) // m * m


# ----------------------------- Pallas kernels ------------------------------ #

def _conv1_pool_kernel(p_ref, w_ref, b_ref, o_ref, *, G, npool):
    """conv1 (as one matmul) + 2x2 maxpool + bias + relu for G images per step.

    p_ref: (G, 4*npool, K) bf16  im2col patches, rows grouped by pool quadrant
    w_ref: (K, C)          bf16  flattened conv weights, rows ordered (kh, kw, cin)
    b_ref: (1, C)          f32
    o_ref: (G, npool, C)   bf16  pooled activation, rows in (ph, pw) raster order
    """
    K = p_ref.shape[-1]
    C = w_ref.shape[-1]
    p = p_ref[...].reshape(G * 4 * npool, K)                 # leading-dim merge
    acc = jnp.dot(p, w_ref[...], preferred_element_type=jnp.float32)
    a = acc.reshape(G, 4, npool, C)                          # leading-dim split
    pooled = jnp.maximum(jnp.maximum(a[:, 0], a[:, 1]),
                         jnp.maximum(a[:, 2], a[:, 3]))      # fused 2x2 maxpool
    out = jnp.maximum(pooled + b_ref[...], 0.0)              # bias commutes with max
    o_ref[...] = out.astype(o_ref.dtype)


def _conv2_pool_kernel(s_ref, w_ref, b_ref, o_ref, *, G):
    """conv2 + 2x2 maxpool + bias + relu with the im2col built in VMEM.

    s_ref: (G, 576, Cin) bf16  phase slabs: row (rh*6+rw)*16 + ph*4+pw holds
                               y1[g, 2*ph+rh, 2*pw+rw, :]  (rh, rw in 0..5).
    w_ref: (25*Cin, C)   bf16  conv2 weights flattened (kh, kw, cin)-major (HWIO).
    b_ref: (1, C)        f32
    o_ref: (G, 16, C)    bf16  pooled activation, rows = ph*4 + pw.
    """
    cin = s_ref.shape[-1]
    C = w_ref.shape[-1]
    top, bot = [], []            # output-row quadrant dh = 0 / dh = 1
    for kh in range(5):
        for kw in range(5):
            base = (kh * 6 + kw) * 16
            # 32 contiguous rows = the two dw phases for this tap.  All offsets are
            # multiples of 16, so every slice is sublane-aligned and contiguous.
            top.append(s_ref[:, base:base + 32, :].reshape(G * 32, cin))
            bot.append(s_ref[:, base + 96:base + 128, :].reshape(G * 32, cin))
    w = w_ref[...]
    acc0 = jnp.dot(jnp.concatenate(top, axis=1), w,
                   preferred_element_type=jnp.float32)       # rows (g, dw, ph, pw)
    acc1 = jnp.dot(jnp.concatenate(bot, axis=1), w,
                   preferred_element_type=jnp.float32)
    m = jnp.maximum(acc0, acc1)                              # max over dh
    m = m.reshape(G, 2, 16, C)                               # leading-dim split
    m = jnp.maximum(m[:, 0], m[:, 1])                        # max over dw -> (G,16,C)
    out = jnp.maximum(m + b_ref[...], 0.0)
    o_ref[...] = out.astype(o_ref.dtype)


def _mlp_kernel(x_ref, w1_ref, b1_ref, w2_ref, b2_ref, o_ref):
    """Fused fc1 + relu + fc2 for one block of batch rows; weights stay in VMEM."""
    h = jnp.dot(x_ref[...], w1_ref[...], preferred_element_type=jnp.float32)
    h = jnp.maximum(h + b1_ref[...], 0.0)
    out = jnp.dot(h.astype(w2_ref.dtype), w2_ref[...],
                  preferred_element_type=jnp.float32)
    o_ref[...] = (out + b2_ref[...]).astype(o_ref.dtype)


# ------------------------------ Pallas wrappers ----------------------------- #

def conv1_pool_relu(patches, w_flat, b, npool, G):
    B, M4, K = patches.shape
    C = w_flat.shape[1]
    return pl.pallas_call(
        functools.partial(_conv1_pool_kernel, G=G, npool=npool),
        out_shape=jax.ShapeDtypeStruct((B, npool, C), jnp.bfloat16),
        grid=(B // G,),
        in_specs=[
            pl.BlockSpec((G, M4, K), lambda i: (i, 0, 0)),   # G images per step
            pl.BlockSpec((K, C), lambda i: (0, 0)),          # weights VMEM-resident
            pl.BlockSpec((1, C), lambda i: (0, 0)),
        ],
        out_specs=pl.BlockSpec((G, npool, C), lambda i: (i, 0, 0)),
        compiler_params=pltpu.CompilerParams(dimension_semantics=("parallel",)),
    )(patches, w_flat, b)


def conv2_pool_relu(slabs, w_flat, b, G):
    B, S, cin = slabs.shape                                  # S = 576
    C = w_flat.shape[1]
    return pl.pallas_call(
        functools.partial(_conv2_pool_kernel, G=G),
        out_shape=jax.ShapeDtypeStruct((B, 16, C), jnp.bfloat16),
        grid=(B // G,),
        in_specs=[
            pl.BlockSpec((G, S, cin), lambda i: (i, 0, 0)),
            pl.BlockSpec((25 * cin, C), lambda i: (0, 0)),   # weights VMEM-resident
            pl.BlockSpec((1, C), lambda i: (0, 0)),
        ],
        out_specs=pl.BlockSpec((G, 16, C), lambda i: (i, 0, 0)),
        compiler_params=pltpu.CompilerParams(dimension_semantics=("parallel",)),
    )(slabs, w_flat, b)


def mlp_fused(flat, w1, b1, w2p, b2p, num_classes):
    """out = relu(flat @ w1 + b1) @ w2p + b2p, gridded over batch rows."""
    B, D = flat.shape
    H = w1.shape[1]
    NP = w2p.shape[1]                                        # padded to 128 (lane-dense)
    TB = min(256, _round_up(B, 8))                           # use 128 on v5e if VMEM-tight
    Bp = _round_up(B, TB)
    if Bp != B:
        flat = jnp.pad(flat, ((0, Bp - B), (0, 0)))
    out = pl.pallas_call(
        _mlp_kernel,
        out_shape=jax.ShapeDtypeStruct((Bp, NP), jnp.float32),
        grid=(Bp // TB,),
        in_specs=[
            pl.BlockSpec((TB, D), lambda i: (i, 0)),         # batch rows pipelined
            pl.BlockSpec((D, H), lambda i: (0, 0)),          # fc1 weights resident
            pl.BlockSpec((1, H), lambda i: (0, 0)),
            pl.BlockSpec((H, NP), lambda i: (0, 0)),         # fc2 weights resident
            pl.BlockSpec((1, NP), lambda i: (0, 0)),
        ],
        out_specs=pl.BlockSpec((TB, NP), lambda i: (i, 0)),
        compiler_params=pltpu.CompilerParams(dimension_semantics=("parallel",)),
    )(flat, w1, b1, w2p, b2p)
    return out[:B, :num_classes]


# ------------------------------- JAX glue ---------------------------------- #

def im2col_pooled(x, k):
    """x: (B, H, W, C) -> (patches, (PH, PW)); rows grouped by 2x2-pool quadrant.

    Feature order within a row is (kh, kw, c), matching w.reshape(k*k*C, Cout)
    from HWIO weights.  Used only for conv1 (input is tiny).
    """
    B, H, W, C = x.shape
    OH, OW = H - k + 1, W - k + 1
    assert OH % 2 == 0 and OW % 2 == 0, "pooling needs even conv output dims"
    PH, PW = OH // 2, OW // 2
    cols = []
    for kh in range(k):
        for kw in range(k):
            cols.append(x[:, kh:kh + OH, kw:kw + OW, :])
    patches = jnp.stack(cols, axis=3).reshape(B, OH, OW, k * k * C)
    quads = [patches[:, dh::2, dw::2, :].reshape(B, PH * PW, k * k * C)
             for dh in (0, 1) for dw in (0, 1)]
    return jnp.concatenate(quads, axis=1), (PH, PW)


def conv2_phase_slabs(y1):
    """y1: (B, 12, 12, C) -> (B, 576, C) phase slabs for the in-kernel im2col.

    Slab (rh, rw), rh, rw in 0..5, holds the stride-2 4x4 grid starting at (rh, rw):
    row (rh*6+rw)*16 + ph*4+pw = y1[b, 2*ph+rh, 2*pw+rw, :].  This is only a 4x
    duplication of y1 (~74 KB/image); the full 25x im2col duplication happens inside
    the conv2 kernel with aligned VMEM slices instead of round-tripping HBM.
    """
    B, H, W, C = y1.shape
    slabs = [y1[:, rh:rh + 8:2, rw:rw + 8:2, :].reshape(B, 16, C)
             for rh in range(6) for rw in range(6)]
    return jnp.concatenate(slabs, axis=1)


def init_params(key):
    ks = jax.random.split(key, 8)

    def nrm(k, shape, scale):
        return scale * jax.random.normal(k, shape, jnp.float32)

    return {
        "w1": nrm(ks[0], (5, 5, 1, 64), 0.10),     # conv1, HWIO
        "b1": nrm(ks[1], (64,), 0.10),
        "w2": nrm(ks[2], (5, 5, 64, 64), 0.05),    # conv2, HWIO
        "b2": nrm(ks[3], (64,), 0.05),
        "fc1_w": nrm(ks[4], (1024, 1024), 0.03),   # (in, out)
        "fc1_b": nrm(ks[5], (1024,), 0.03),
        "fc2_w": nrm(ks[6], (1024, 10), 0.03),     # (in, out)
        "fc2_b": nrm(ks[7], (10,), 0.03),
    }


def pack_params(params, num_classes=10):
    """One-time parameter packing (outside the hot path)."""
    bf = jnp.bfloat16
    f32 = jnp.float32
    # fc1 rows are pre-permuted so the kernel flatten order (h, w, c) matches the
    # PyTorch NCHW flatten (c, h, w): new row j reads original row (j%64)*16 + j//64.
    j = jnp.arange(1024)
    perm = (j % 64) * 16 + j // 64
    n_pad = _round_up(num_classes, 128)
    return {
        "w1": params["w1"].astype(bf).reshape(25, 64),
        "b1": params["b1"].reshape(1, 64).astype(f32),
        "w2": params["w2"].astype(bf).reshape(25 * 64, 64),
        "b2": params["b2"].reshape(1, 64).astype(f32),
        "fc1_w": params["fc1_w"][perm, :].astype(bf),
        "fc1_b": params["fc1_b"].reshape(1, -1).astype(f32),
        "fc2_w": jnp.pad(params["fc2_w"],
                         ((0, 0), (0, n_pad - num_classes))).astype(bf),
        "fc2_b": jnp.pad(params["fc2_b"],
                         (0, n_pad - num_classes)).reshape(1, -1).astype(f32),
    }


def lenet_forward(x_nchw, packed, *, conv_batch=8, num_classes=10):
    """Pallas implementation. x_nchw: (B, 1, 28, 28) float32 (PyTorch layout)."""
    bf = jnp.bfloat16
    x = jnp.transpose(x_nchw, (0, 2, 3, 1)).astype(bf)       # NHWC bf16 for the MXU
    B = x.shape[0]

    # G images per conv grid step; batch zero-padded to a multiple of G.
    # (v7x: keep B/G >= 2 so dimension_semantics=("parallel",) can span both cores.)
    G = min(conv_batch, B)
    Bp = _round_up(B, G)
    if Bp != B:
        x = jnp.pad(x, ((0, Bp - B), (0, 0), (0, 0), (0, 0)))

    # conv1 (5x5, 1->64) + maxpool(2) + relu (wrapper im2col: only ~29 KB/image)
    p1, (ph1, pw1) = im2col_pooled(x, 5)                      # (Bp, 576, 25)
    y1 = conv1_pool_relu(p1, packed["w1"], packed["b1"], ph1 * pw1, G)  # (Bp, 144, 64)
    y1 = y1.reshape(Bp, ph1, pw1, 64)                         # (Bp, 12, 12, 64)

    # conv2 (5x5, 64->64) + maxpool(2) + relu -- im2col built inside the kernel
    slabs = conv2_phase_slabs(y1)                             # (Bp, 576, 64)
    y2 = conv2_pool_relu(slabs, packed["w2"], packed["b2"], G)          # (Bp, 16, 64)

    # flatten in (h, w, c) order; packed fc1_w rows are pre-permuted so this matches
    # PyTorch's NCHW flatten with no transpose here.
    flat = y2.reshape(Bp, 16 * 64)

    # fc1 + relu + fc2 fused; dropout(p=0.5) is identity at inference.
    # TODO(synk): training-mode dropout (pltpu.prng_random_bits mask) not implemented.
    out = mlp_fused(flat, packed["fc1_w"], packed["fc1_b"],
                    packed["fc2_w"], packed["fc2_b"], num_classes)
    return out[:B]


def lenet_reference(x_nchw, params):
    """Pure-JAX reference with matching numerics: bf16 matmul/conv inputs,
    f32 accumulation and f32 epilogues (same boundaries as the Pallas path)."""
    bf = jnp.bfloat16
    x = jnp.transpose(x_nchw, (0, 2, 3, 1)).astype(bf)

    def conv(v, w, b):
        y = jax.lax.conv_general_dilated(
            v.astype(bf), w.astype(bf), (1, 1), "VALID",
            dimension_numbers=("NHWC", "HWIO", "NHWC"),
            preferred_element_type=jnp.float32)
        return y + b

    def pool_relu(v):
        B, H, W, C = v.shape
        v = v.reshape(B, H // 2, 2, W // 2, 2, C).max(axis=(2, 4))
        return jnp.maximum(v, 0.0)

    y = pool_relu(conv(x, params["w1"], params["b1"])).astype(bf)
    y = pool_relu(conv(y, params["w2"], params["b2"])).astype(bf)
    flat = jnp.transpose(y, (0, 3, 1, 2)).reshape(x.shape[0], -1)
    h = jnp.maximum(
        jnp.dot(flat, params["fc1_w"].astype(bf),
                preferred_element_type=jnp.float32) + params["fc1_b"], 0.0)
    return jnp.dot(h.astype(bf), params["fc2_w"].astype(bf),
                   preferred_element_type=jnp.float32) + params["fc2_b"]


if __name__ == "__main__":
    key = jax.random.PRNGKey(0)
    kx, kp = jax.random.split(key)

    B = 2
    x = jax.random.normal(kx, (B, 1, 28, 28), jnp.float32)    # NCHW, like PyTorch
    params = init_params(kp)
    packed = pack_params(params)      # one-time packing, outside the hot path

    fwd = jax.jit(lenet_forward)
    out = jax.block_until_ready(fwd(x, packed))
    assert out.shape == (B, 10), out.shape

    ref = jax.block_until_ready(lenet_reference(x, params))
    max_err = float(jnp.max(jnp.abs(out - ref)))
    assert jnp.allclose(out, ref, rtol=2e-2, atol=2e-2), f"max abs err {max_err}"

    print("KERNEL_OK")
</pallas_src>

<mosaic_0001>
module attributes {stable_mosaic.version = 11 : i64} {
  func.func @_conv1_pool_kernel(%arg0: i32, %arg1: memref<2x576x25xbf16, #tpu.memory_space<vmem>>, %arg2: memref<25x64xbf16, #tpu.memory_space<vmem>>, %arg3: memref<1x64xf32, #tpu.memory_space<vmem>>, %arg4: memref<2x144x64xbf16, #tpu.memory_space<vmem>>) attributes {dimension_semantics = [#tpu.dimension_semantics<parallel>], iteration_bounds = array<i64: 1>, scalar_prefetch = 0 : i64, scratch_operands = 0 : i64, tpu.core_type = #tpu.core_type<tc>, window_params = [{transform_indices = @transform_0, window_bounds = array<i64: 2, 576, 25>}, {pipeline_mode = #tpu.pipeline_mode<synchronous>, transform_indices = @transform_1, window_bounds = array<i64: 25, 64>}, {pipeline_mode = #tpu.pipeline_mode<synchronous>, transform_indices = @transform_2, window_bounds = array<i64: 1, 64>}, {transform_indices = @transform_3, window_bounds = array<i64: 2, 144, 64>}]} {
    %c0 = arith.constant 0 : index
    %c0_0 = arith.constant 0 : index
    %c0_1 = arith.constant 0 : index
    %0 = vector.load %arg1[%c0, %c0_0, %c0_1] : memref<2x576x25xbf16, #tpu.memory_space<vmem>>, vector<2x576x25xbf16>
    %1 = vector.shape_cast %0 : vector<2x576x25xbf16> to vector<1152x25xbf16>
    %c0_2 = arith.constant 0 : index
    %c0_3 = arith.constant 0 : index
    %2 = vector.load %arg2[%c0_2, %c0_3] : memref<25x64xbf16, #tpu.memory_space<vmem>>, vector<25x64xbf16>
    %cst = arith.constant dense<0.000000e+00> : vector<1152x64xf32>
    %3 = tpu.matmul %1, %2, %cst {dimension_numbers = #tpu.dot_dimension_numbers<[1], [0], [0], [1], [0, 0, 1, 1], [], []>} : vector<1152x25xbf16>, vector<25x64xbf16>, vector<1152x64xf32> -> vector<1152x64xf32>
    %4 = vector.shape_cast %3 : vector<1152x64xf32> to vector<2x4x144x64xf32>
    %5 = vector.extract_strided_slice %4 {offsets = [0, 0, 0, 0], sizes = [2, 1, 144, 64], strides = [1, 1, 1, 1]} : vector<2x4x144x64xf32> to vector<2x1x144x64xf32>
    %6 = vector.shape_cast %5 : vector<2x1x144x64xf32> to vector<2x144x64xf32>
    %7 = vector.extract_strided_slice %4 {offsets = [0, 1, 0, 0], sizes = [2, 1, 144, 64], strides = [1, 1, 1, 1]} : vector<2x4x144x64xf32> to vector<2x1x144x64xf32>
    %8 = vector.shape_cast %7 : vector<2x1x144x64xf32> to vector<2x144x64xf32>
    %9 = arith.maximumf %6, %8 : vector<2x144x64xf32>
    %10 = vector.extract_strided_slice %4 {offsets = [0, 2, 0, 0], sizes = [2, 1, 144, 64], strides = [1, 1, 1, 1]} : vector<2x4x144x64xf32> to vector<2x1x144x64xf32>
    %11 = vector.shape_cast %10 : vector<2x1x144x64xf32> to vector<2x144x64xf32>
    %12 = vector.extract_strided_slice %4 {offsets = [0, 3, 0, 0], sizes = [2, 1, 144, 64], strides = [1, 1, 1, 1]} : vector<2x4x144x64xf32> to vector<2x1x144x64xf32>
    %13 = vector.shape_cast %12 : vector<2x1x144x64xf32> to vector<2x144x64xf32>
    %14 = arith.maximumf %11, %13 : vector<2x144x64xf32>
    %15 = arith.maximumf %9, %14 : vector<2x144x64xf32>
    %c0_4 = arith.constant 0 : index
    %c0_5 = arith.constant 0 : index
    %16 = vector.load %arg3[%c0_4, %c0_5] : memref<1x64xf32, #tpu.memory_space<vmem>>, vector<1x64xf32>
    %17 = vector.shape_cast %16 : vector<1x64xf32> to vector<1x1x64xf32>
    %18 = vector.broadcast %17 : vector<1x1x64xf32> to vector<2x144x64xf32>
    %19 = arith.addf %15, %18 : vector<2x144x64xf32>
    %cst_6 = arith.constant 0.000000e+00 : f32
    %20 = vector.broadcast %cst_6 : f32 to vector<2x144x64xf32>
    %21 = arith.maximumf %19, %20 : vector<2x144x64xf32>
    %22 = arith.truncf %21 : vector<2x144x64xf32> to vector<2x144x64xbf16>
    %c0_7 = arith.constant 0 : index
    %c0_8 = arith.constant 0 : index
    %c0_9 = arith.constant 0 : index
    %23 = vector.load %arg4[%c0_7, %c0_8, %c0_9] : memref<2x144x64xbf16, #tpu.memory_space<vmem>>, vector<2x144x64xbf16>
    tpu.vector_store %arg4[%c0_7, %c0_8, %c0_9], %22 {strides = array<i32>} : memref<2x144x64xbf16, #tpu.memory_space<vmem>>, vector<2x144x64xbf16>,
    return
  }
  func.func @transform_0(%arg0: i32) -> (i32, i32, i32) {
    %c0_i32 = arith.constant 0 : i32
    %c0_i32_0 = arith.constant 0 : i32
    %c0_i32_1 = arith.constant 0 : i32
    return %arg0, %c0_i32, %c0_i32_0 : i32, i32, i32
  }
  func.func @transform_1(%arg0: i32) -> (i32, i32) {
    %c0_i32 = arith.constant 0 : i32
    %c0_i32_0 = arith.constant 0 : i32
    %c0_i32_1 = arith.constant 0 : i32
    return %c0_i32, %c0_i32_0 : i32, i32
  }
  func.func @transform_2(%arg0: i32) -> (i32, i32) {
    %c0_i32 = arith.constant 0 : i32
    %c0_i32_0 = arith.constant 0 : i32
    %c0_i32_1 = arith.constant 0 : i32
    return %c0_i32, %c0_i32_0 : i32, i32
  }
  func.func @transform_3(%arg0: i32) -> (i32, i32, i32) {
    %c0_i32 = arith.constant 0 : i32
    %c0_i32_0 = arith.constant 0 : i32
    %c0_i32_1 = arith.constant 0 : i32
    return %arg0, %c0_i32, %c0_i32_0 : i32, i32, i32
  }
}

module attributes {stable_mosaic.version = 11 : i64} {
  func.func @_conv2_pool_kernel(%arg0: i32, %arg1: memref<2x576x64xbf16, #tpu.memory_space<vmem>>, %arg2: memref<1600x64xbf16, #tpu.memory_space<vmem>>, %arg3: memref<1x64xf32, #tpu.memory_space<vmem>>, %arg4: memref<2x16x64xbf16, #tpu.memory_space<vmem>>) attributes {dimension_semantics = [#tpu.dimension_semantics<parallel>], iteration_bounds = array<i64: 1>, scalar_prefetch = 0 : i64, scratch_operands = 0 : i64, tpu.core_type = #tpu.core_type<tc>, window_params = [{transform_indices = @transform_0, window_bounds = array<i64: 2, 576, 64>}, {pipeline_mode = #tpu.pipeline_mode<synchronous>, transform_indices = @transform_1, window_bounds = array<i64: 1600, 64>}, {pipeline_mode = #tpu.pipeline_mode<synchronous>, transform_indices = @transform_2, window_bounds = array<i64: 1, 64>}, {transform_indices = @transform_3, window_bounds = array<i64: 2, 16, 64>}]} {
    %c0 = arith.constant 0 : index
    %c0_0 = arith.constant 0 : index
    %c0_1 = arith.constant 0 : index
    %0 = vector.load %arg1[%c0, %c0_0, %c0_1] : memref<2x576x64xbf16, #tpu.memory_space<vmem>>, vector<2x32x64xbf16>
    %1 = vector.shape_cast %0 : vector<2x32x64xbf16> to vector<64x64xbf16>
    %c0_2 = arith.constant 0 : index
    %c96 = arith.constant 96 : index
    %c0_3 = arith.constant 0 : index
    %2 = vector.load %arg1[%c0_2, %c96, %c0_3] : memref<2x576x64xbf16, #tpu.memory_space<vmem>>, vector<2x32x64xbf16>
    %3 = vector.shape_cast %2 : vector<2x32x64xbf16> to vector<64x64xbf16>
    %c0_4 = arith.constant 0 : index
    %c16 = arith.constant 16 : index
    %c0_5 = arith.constant 0 : index
    %4 = vector.load %arg1[%c0_4, %c16, %c0_5] : memref<2x576x64xbf16, #tpu.memory_space<vmem>>, vector<2x32x64xbf16>
    %5 = vector.shape_cast %4 : vector<2x32x64xbf16> to vector<64x64xbf16>
    %c0_6 = arith.constant 0 : index
    %c112 = arith.constant 112 : index
    %c0_7 = arith.constant 0 : index
    %6 = vector.load %arg1[%c0_6, %c112, %c0_7] : memref<2x576x64xbf16, #tpu.memory_space<vmem>>, vector<2x32x64xbf16>
    %7 = vector.shape_cast %6 : vector<2x32x64xbf16> to vector<64x64xbf16>
    %c0_8 = arith.constant 0 : index
    %c32 = arith.constant 32 : index
    %c0_9 = arith.constant 0 : index
    %8 = vector.load %arg1[%c0_8, %c32, %c0_9] : memref<2x576x64xbf16, #tpu.memory_space<vmem>>, vector<2x32x64xbf16>
    %9 = vector.shape_cast %8 : vector<2x32x64xbf16> to vector<64x64xbf16>
    %c0_10 = arith.constant 0 : index
    %c128 = arith.constant 128 : index
    %c0_11 = arith.constant 0 : index
    %10 = vector.load %arg1[%c0_10, %c128, %c0_11] : memref<2x576x64xbf16, #tpu.memory_space<vmem>>, vector<2x32x64xbf16>
    %11 = vector.shape_cast %10 : vector<2x32x64xbf16> to vector<64x64xbf16>
    %c0_12 = arith.constant 0 : index
    %c48 = arith.constant 48 : index
    %c0_13 = arith.constant 0 : index
    %12 = vector.load %arg1[%c0_12, %c48, %c0_13] : memref<2x576x64xbf16, #tpu.memory_space<vmem>>, vector<2x32x64xbf16>
    %13 = vector.shape_cast %12 : vector<2x32x64xbf16> to vector<64x64xbf16>
    %c0_14 = arith.constant 0 : index
    %c144 = arith.constant 144 : index
    %c0_15 = arith.constant 0 : index
    %14 = vector.load %arg1[%c0_14, %c144, %c0_15] : memref<2x576x64xbf16, #tpu.memory_space<vmem>>, vector<2x32x64xbf16>
    %15 = vector.shape_cast %14 : vector<2x32x64xbf16> to vector<64x64xbf16>
    %c0_16 = arith.constant 0 : index
    %c64 = arith.constant 64 : index
    %c0_17 = arith.constant 0 : index
    %16 = vector.load %arg1[%c0_16, %c64, %c0_17] : memref<2x576x64xbf16, #tpu.memory_space<vmem>>, vector<2x32x64xbf16>
    %17 = vector.shape_cast %16 : vector<2x32x64xbf16> to vector<64x64xbf16>
    %c0_18 = arith.constant 0 : index
    %c160 = arith.constant 160 : index
    %c0_19 = arith.constant 0 : index
    %18 = vector.load %arg1[%c0_18, %c160, %c0_19] : memref<2x576x64xbf16, #tpu.memory_space<vmem>>, vector<2x32x64xbf16>
    %19 = vector.shape_cast %18 : vector<2x32x64xbf16> to vector<64x64xbf16>
    %c0_20 = arith.constant 0 : index
    %c96_21 = arith.constant 96 : index
    %c0_22 = arith.constant 0 : index
    %20 = vector.load %arg1[%c0_20, %c96_21, %c0_22] : memref<2x576x64xbf16, #tpu.memory_space<vmem>>, vector<2x32x64xbf16>
    %21 = vector.shape_cast %20 : vector<2x32x64xbf16> to vector<64x64xbf16>
    %c0_23 = arith.constant 0 : index
    %c192 = arith.constant 192 : index
    %c0_24 = arith.constant 0 : index
    %22 = vector.load %arg1[%c0_23, %c192, %c0_24] : memref<2x576x64xbf16, #tpu.memory_space<vmem>>, vector<2x32x64xbf16>
    %23 = vector.shape_cast %22 : vector<2x32x64xbf16> to vector<64x64xbf16>
    %c0_25 = arith.constant 0 : index
    %c112_26 = arith.constant 112 : index
    %c0_27 = arith.constant 0 : index
    %24 = vector.load %arg1[%c0_25, %c112_26, %c0_27] : memref<2x576x64xbf16, #tpu.memory_space<vmem>>, vector<2x32x64xbf16>
    %25 = vector.shape_cast %24 : vector<2x32x64xbf16> to vector<64x64xbf16>
    %c0_28 = arith.constant 0 : index
    %c208 = arith.constant 208 : index
    %c0_29 = arith.constant 0 : index
    %26 = vector.load %arg1[%c0_28, %c208, %c0_29] : memref<2x576x64xbf16, #tpu.memory_space<vmem>>, vector<2x32x64xbf16>
    %27 = vector.shape_cast %26 : vector<2x32x64xbf16> to vector<64x64xbf16>
    %c0_30 = arith.constant 0 : index
    %c128_31 = arith.constant 128 : index
    %c0_32 = arith.constant 0 : index
    %28 = vector.load %arg1[%c0_30, %c128_31, %c0_32] : memref<2x576x64xbf16, #tpu.memory_space<vmem>>, vector<2x32x64xbf16>
    %29 = vector.shape_cast %28 : vector<2x32x64xbf16> to vector<64x64xbf16>
    %c0_33 = arith.constant 0 : index
    %c224 = arith.constant 224 : index
    %c0_34 = arith.constant 0 : index
    %30 = vector.load %arg1[%c0_33, %c224, %c0_34] : memref<2x576x64xbf16, #tpu.memory_space<vmem>>, vector<2x32x64xbf16>
    %31 = vector.shape_cast %30 : vector<2x32x64xbf16> to vector<64x64xbf16>
    %c0_35 = arith.constant 0 : index
    %c144_36 = arith.constant 144 : index
    %c0_37 = arith.constant 0 : index
    %32 = vector.load %arg1[%c0_35, %c144_36, %c0_37] : memref<2x576x64xbf16, #tpu.memory_space<vmem>>, vector<2x32x64xbf16>
    %33 = vector.shape_cast %32 : vector<2x32x64xbf16> to vector<64x64xbf16>
    %c0_38 = arith.constant 0 : index
    %c240 = arith.constant 240 : index
    %c0_39 = arith.constant 0 : index
    %34 = vector.load %arg1[%c0_38, %c240, %c0_39] : memref<2x576x64xbf16, #tpu.memory_space<vmem>>, vector<2x32x64xbf16>
    %35 = vector.shape_cast %34 : vector<2x32x64xbf16> to vector<64x64xbf16>
    %c0_40 = arith.constant 0 : index
    %c160_41 = arith.constant 160 : index
    %c0_42 = arith.constant 0 : index
    %36 = vector.load %arg1[%c0_40, %c160_41, %c0_42] : memref<2x576x64xbf16, #tpu.memory_space<vmem>>, vector<2x32x64xbf16>
    %37 = vector.shape_cast %36 : vector<2x32x64xbf16> to vector<64x64xbf16>
    %c0_43 = arith.constant 0 : index
    %c256 = arith.constant 256 : index
    %c0_44 = arith.constant 0 : index
    %38 = vector.load %arg1[%c0_43, %c256, %c0_44] : memref<2x576x64xbf16, #tpu.memory_space<vmem>>, vector<2x32x64xbf16>
    %39 = vector.shape_cast %38 : vector<2x32x64xbf16> to vector<64x64xbf16>
    %c0_45 = arith.constant 0 : index
    %c192_46 = arith.constant 192 : index
    %c0_47 = arith.constant 0 : index
    %40 = vector.load %arg1[%c0_45, %c192_46, %c0_47] : memref<2x576x64xbf16, #tpu.memory_space<vmem>>, vector<2x32x64xbf16>
    %41 = vector.shape_cast %40 : vector<2x32x64xbf16> to vector<64x64xbf16>
    %c0_48 = arith.constant 0 : index
    %c288 = arith.constant 288 : index
    %c0_49 = arith.constant 0 : index
    %42 = vector.load %arg1[%c0_48, %c288, %c0_49] : memref<2x576x64xbf16, #tpu.memory_space<vmem>>, vector<2x32x64xbf16>
    %43 = vector.shape_cast %42 : vector<2x32x64xbf16> to vector<64x64xbf16>
    %c0_50 = arith.constant 0 : index
    %c208_51 = arith.constant 208 : index
    %c0_52 = arith.constant 0 : index
    %44 = vector.load %arg1[%c0_50, %c208_51, %c0_52] : memref<2x576x64xbf16, #tpu.memory_space<vmem>>, vector<2x32x64xbf16>
    %45 = vector.shape_cast %44 : vector<2x32x64xbf16> to vector<64x64xbf16>
    %c0_53 = arith.constant 0 : index
    %c304 = arith.constant 304 : index
    %c0_54 = arith.constant 0 : index
    %46 = vector.load %arg1[%c0_53, %c304, %c0_54] : memref<2x576x64xbf16, #tpu.memory_space<vmem>>, vector<2x32x64xbf16>
    %47 = vector.shape_cast %46 : vector<2x32x64xbf16> to vector<64x64xbf16>
    %c0_55 = arith.constant 0 : index
    %c224_56 = arith.constant 224 : index
    %c0_57 = arith.constant 0 : index
    %48 = vector.load %arg1[%c0_55, %c224_56, %c0_57] : memref<2x576x64xbf16, #tpu.memory_space<vmem>>, vector<2x32x64xbf16>
    %49 = vector.shape_cast %48 : vector<2x32x64xbf16> to vector<64x64xbf16>
    %c0_58 = arith.constant 0 : index
    %c320 = arith.constant 320 : index
    %c0_59 = arith.constant 0 : index
    %50 = vector.load %arg1[%c0_58, %c320, %c0_59] : memref<2x576x64xbf16, #tpu.memory_space<vmem>>, vector<2x32x64xbf16>
    %51 = vector.shape_cast %50 : vector<2x32x64xbf16> to vector<64x64xbf16>
    %c0_60 = arith.constant 0 : index
    %c240_61 = arith.constant 240 : index
    %c0_62 = arith.constant 0 : index
    %52 = vector.load %arg1[%c0_60, %c240_61, %c0_62] : memref<2x576x64xbf16, #tpu.memory_space<vmem>>, vector<2x32x64xbf16>
    %53 = vector.shape_cast %52 : vector<2x32x64xbf16> to vector<64x64xbf16>
    %c0_63 = arith.constant 0 : index
    %c336 = arith.constant 336 : index
    %c0_64 = arith.constant 0 : index
    %54 = vector.load %arg1[%c0_63, %c336, %c0_64] : memref<2x576x64xbf16, #tpu.memory_space<vmem>>, vector<2x32x64xbf16>
    %55 = vector.shape_cast %54 : vector<2x32x64xbf16> to vector<64x64xbf16>
    %c0_65 = arith.constant 0 : index
    %c256_66 = arith.constant 256 : index
    %c0_67 = arith.constant 0 : index
    %56 = vector.load %arg1[%c0_65, %c256_66, %c0_67] : memref<2x576x64xbf16, #tpu.memory_space<vmem>>, vector<2x32x64xbf16>
    %57 = vector.shape_cast %56 : vector<2x32x64xbf16> to vector<64x64xbf16>
    %c0_68 = arith.constant 0 : index
    %c352 = arith.constant 352 : index
    %c0_69 = arith.constant 0 : index
    %58 = vector.load %arg1[%c0_68, %c352, %c0_69] : memref<2x576x64xbf16, #tpu.memory_space<vmem>>, vector<2x32x64xbf16>
    %59 = vector.shape_cast %58 : vector<2x32x64xbf16> to vector<64x64xbf16>
    %c0_70 = arith.constant 0 : index
    %c288_71 = arith.constant 288 : index
    %c0_72 = arith.constant 0 : index
    %60 = vector.load %arg1[%c0_70, %c288_71, %c0_72] : memref<2x576x64xbf16, #tpu.memory_space<vmem>>, vector<2x32x64xbf16>
    %61 = vector.shape_cast %60 : vector<2x32x64xbf16> to vector<64x64xbf16>
    %c0_73 = arith.constant 0 : index
    %c384 = arith.constant 384 : index
    %c0_74 = arith.constant 0 : index
    %62 = vector.load %arg1[%c0_73, %c384, %c0_74] : memref<2x576x64xbf16, #tpu.memory_space<vmem>>, vector<2x32x64xbf16>
    %63 = vector.shape_cast %62 : vector<2x32x64xbf16> to vector<64x64xbf16>
    %c0_75 = arith.constant 0 : index
    %c304_76 = arith.constant 304 : index
    %c0_77 = arith.constant 0 : index
    %64 = vector.load %arg1[%c0_75, %c304_76, %c0_77] : memref<2x576x64xbf16, #tpu.memory_space<vmem>>, vector<2x32x64xbf16>
    %65 = vector.shape_cast %64 : vector<2x32x64xbf16> to vector<64x64xbf16>
    %c0_78 = arith.constant 0 : index
    %c400 = arith.constant 400 : index
    %c0_79 = arith.constant 0 : index
    %66 = vector.load %arg1[%c0_78, %c400, %c0_79] : memref<2x576x64xbf16, #tpu.memory_space<vmem>>, vector<2x32x64xbf16>
    %67 = vector.shape_cast %66 : vector<2x32x64xbf16> to vector<64x64xbf16>
    %c0_80 = arith.constant 0 : index
    %c320_81 = arith.constant 320 : index
    %c0_82 = arith.constant 0 : index
    %68 = vector.load %arg1[%c0_80, %c320_81, %c0_82] : memref<2x576x64xbf16, #tpu.memory_space<vmem>>, vector<2x32x64xbf16>
    %69 = vector.shape_cast %68 : vector<2x32x64xbf16> to vector<64x64xbf16>
    %c0_83 = arith.constant 0 : index
    %c416 = arith.constant 416 : index
    %c0_84 = arith.constant 0 : index
    %70 = vector.load %arg1[%c0_83, %c416, %c0_84] : memref<2x576x64xbf16, #tpu.memory_space<vmem>>, vector<2x32x64xbf16>
    %71 = vector.shape_cast %70 : vector<2x32x64xbf16> to vector<64x64xbf16>
    %c0_85 = arith.constant 0 : index
    %c336_86 = arith.constant 336 : index
    %c0_87 = arith.constant 0 : index
    %72 = vector.load %arg1[%c0_85, %c336_86, %c0_87] : memref<2x576x64xbf16, #tpu.memory_space<vmem>>, vector<2x32x64xbf16>
    %73 = vector.shape_cast %72 : vector<2x32x64xbf16> to vector<64x64xbf16>
    %c0_88 = arith.constant 0 : index
    %c432 = arith.constant 432 : index
    %c0_89 = arith.constant 0 : index
    %74 = vector.load %arg1[%c0_88, %c432, %c0_89] : memref<2x576x64xbf16, #tpu.memory_space<vmem>>, vector<2x32x64xbf16>
    %75 = vector.shape_cast %74 : vector<2x32x64xbf16> to vector<64x64xbf16>
    %c0_90 = arith.constant 0 : index
    %c352_91 = arith.constant 352 : index
    %c0_92 = arith.constant 0 : index
    %76 = vector.load %arg1[%c0_90, %c352_91, %c0_92] : memref<2x576x64xbf16, #tpu.memory_space<vmem>>, vector<2x32x64xbf16>
    %77 = vector.shape_cast %76 : vector<2x32x64xbf16> to vector<64x64xbf16>
    %c0_93 = arith.constant 0 : index
    %c448 = arith.constant 448 : index
    %c0_94 = arith.constant 0 : index
    %78 = vector.load %arg1[%c0_93, %c448, %c0_94] : memref<2x576x64xbf16, #tpu.memory_space<vmem>>, vector<2x32x64xbf16>
    %79 = vector.shape_cast %78 : vector<2x32x64xbf16> to vector<64x64xbf16>
    %c0_95 = arith.constant 0 : index
    %c384_96 = arith.constant 384 : index
    %c0_97 = arith.constant 0 : index
    %80 = vector.load %arg1[%c0_95, %c384_96, %c0_97] : memref<2x576x64xbf16, #tpu.memory_space<vmem>>, vector<2x32x64xbf16>
    %81 = vector.shape_cast %80 : vector<2x32x64xbf16> to vector<64x64xbf16>
    %c0_98 = arith.constant 0 : index
    %c480 = arith.constant 480 : index
    %c0_99 = arith.constant 0 : index
    %82 = vector.load %arg1[%c0_98, %c480, %c0_99] : memref<2x576x64xbf16, #tpu.memory_space<vmem>>, vector<2x32x64xbf16>
    %83 = vector.shape_cast %82 : vector<2x32x64xbf16> to vector<64x64xbf16>
    %c0_100 = arith.constant 0 : index
    %c400_101 = arith.constant 400 : index
    %c0_102 = arith.constant 0 : index
    %84 = vector.load %arg1[%c0_100, %c400_101, %c0_102] : memref<2x576x64xbf16, #tpu.memory_space<vmem>>, vector<2x32x64xbf16>
    %85 = vector.shape_cast %84 : vector<2x32x64xbf16> to vector<64x64xbf16>
    %c0_103 = arith.constant 0 : index
    %c496 = arith.constant 496 : index
    %c0_104 = arith.constant 0 : index
    %86 = vector.load %arg1[%c0_103, %c496, %c0_104] : memref<2x576x64xbf16, #tpu.memory_space<vmem>>, vector<2x32x64xbf16>
    %87 = vector.shape_cast %86 : vector<2x32x64xbf16> to vector<64x64xbf16>
    %c0_105 = arith.constant 0 : index
    %c416_106 = arith.constant 416 : index
    %c0_107 = arith.constant 0 : index
    %88 = vector.load %arg1[%c0_105, %c416_106, %c0_107] : memref<2x576x64xbf16, #tpu.memory_space<vmem>>, vector<2x32x64xbf16>
    %89 = vector.shape_cast %88 : vector<2x32x64xbf16> to vector<64x64xbf16>
    %c0_108 = arith.constant 0 : index
    %c512 = arith.constant 512 : index
    %c0_109 = arith.constant 0 : index
    %90 = vector.load %arg1[%c0_108, %c512, %c0_109] : memref<2x576x64xbf16, #tpu.memory_space<vmem>>, vector<2x32x64xbf16>
    %91 = vector.shape_cast %90 : vector<2x32x64xbf16> to vector<64x64xbf16>
    %c0_110 = arith.constant 0 : index
    %c432_111 = arith.constant 432 : index
    %c0_112 = arith.constant 0 : index
    %92 = vector.load %arg1[%c0_110, %c432_111, %c0_112] : memref<2x576x64xbf16, #tpu.memory_space<vmem>>, vector<2x32x64xbf16>
    %93 = vector.shape_cast %92 : vector<2x32x64xbf16> to vector<64x64xbf16>
    %c0_113 = arith.constant 0 : index
    %c528 = arith.constant 528 : index
    %c0_114 = arith.constant 0 : index
    %94 = vector.load %arg1[%c0_113, %c528, %c0_114] : memref<2x576x64xbf16, #tpu.memory_space<vmem>>, vector<2x32x64xbf16>
    %95 = vector.shape_cast %94 : vector<2x32x64xbf16> to vector<64x64xbf16>
    %c0_115 = arith.constant 0 : index
    %c448_116 = arith.constant 448 : index
    %c0_117 = arith.constant 0 : index
    %96 = vector.load %arg1[%c0_115, %c448_116, %c0_117] : memref<2x576x64xbf16, #tpu.memory_space<vmem>>, vector<2x32x64xbf16>
    %97 = vector.shape_cast %96 : vector<2x32x64xbf16> to vector<64x64xbf16>
    %c0_118 = arith.constant 0 : index
    %c544 = arith.constant 544 : index
    %c0_119 = arith.constant 0 : index
    %98 = vector.load %arg1[%c0_118, %c544, %c0_119] : memref<2x576x64xbf16, #tpu.memory_space<vmem>>, vector<2x32x64xbf16>
    %99 = vector.shape_cast %98 : vector<2x32x64xbf16> to vector<64x64xbf16>
    %c0_120 = arith.constant 0 : index
    %c0_121 = arith.constant 0 : index
    %100 = vector.load %arg2[%c0_120, %c0_121] : memref<1600x64xbf16, #tpu.memory_space<vmem>>, vector<1600x64xbf16>
    %101 = tpu.concatenate %1, %5, %9, %13, %17, %21, %25, %29, %33, %37, %41, %45, %49, %53, %57, %61 in 1 : vector<64x64xbf16>, vector<64x64xbf16>, vector<64x64xbf16>, vector<64x64xbf16>, vector<64x64xbf16>, vector<64x64xbf16>, vector<64x64xbf16>, vector<64x64xbf16>, vector<64x64xbf16>, vector<64x64xbf16>, vector<64x64xbf16>, vector<64x64xbf16>, vector<64x64xbf16>, vector<64x64xbf16>, vector<64x64xbf16>, vector<64x64xbf16> -> vector<64x1024xbf16>
    %102 = tpu.concatenate %65, %69, %73, %77, %81, %85, %89, %93, %97 in 1 : vector<64x64xbf16>, vector<64x64xbf16>, vector<64x64xbf16>, vector<64x64xbf16>, vector<64x64xbf16>, vector<64x64xbf16>, vector<64x64xbf16>, vector<64x64xbf16>, vector<64x64xbf16> -> vector<64x576xbf16>
    %103 = tpu.concatenate %101, %102 in 1 : vector<64x1024xbf16>, vector<64x576xbf16> -> vector<64x1600xbf16>
    %cst = arith.constant dense<0.000000e+00> : vector<64x64xf32>
    %104 = tpu.matmul %103, %100, %cst {dimension_numbers = #tpu.dot_dimension_numbers<[1], [0], [0], [1], [0, 0, 1, 1], [], []>} : vector<64x1600xbf16>, vector<1600x64xbf16>, vector<64x64xf32> -> vector<64x64xf32>
    %105 = tpu.concatenate %3, %7, %11, %15, %19, %23, %27, %31, %35, %39, %43, %47, %51, %55, %59, %63 in 1 : vector<64x64xbf16>, vector<64x64xbf16>, vector<64x64xbf16>, vector<64x64xbf16>, vector<64x64xbf16>, vector<64x64xbf16>, vector<64x64xbf16>, vector<64x64xbf16>, vector<64x64xbf16>, vector<64x64xbf16>, vector<64x64xbf16>, vector<64x64xbf16>, vector<64x64xbf16>, vector<64x64xbf16>, vector<64x64xbf16>, vector<64x64xbf16> -> vector<64x1024xbf16>
    %106 = tpu.concatenate %67, %71, %75, %79, %83, %87, %91, %95, %99 in 1 : vector<64x64xbf16>, vector<64x64xbf16>, vector<64x64xbf16>, vector<64x64xbf16>, vector<64x64xbf16>, vector<64x64xbf16>, vector<64x64xbf16>, vector<64x64xbf16>, vector<64x64xbf16> -> vector<64x576xbf16>
    %107 = tpu.concatenate %105, %106 in 1 : vector<64x1024xbf16>, vector<64x576xbf16> -> vector<64x1600xbf16>
    %cst_122 = arith.constant dense<0.000000e+00> : vector<64x64xf32>
    %108 = tpu.matmul %107, %100, %cst_122 {dimension_numbers = #tpu.dot_dimension_numbers<[1], [0], [0], [1], [0, 0, 1, 1], [], []>} : vector<64x1600xbf16>, vector<1600x64xbf16>, vector<64x64xf32> -> vector<64x64xf32>
    %109 = arith.maximumf %104, %108 : vector<64x64xf32>
    %110 = vector.shape_cast %109 : vector<64x64xf32> to vector<2x2x16x64xf32>
    %111 = vector.extract_strided_slice %110 {offsets = [0, 0, 0, 0], sizes = [2, 1, 16, 64], strides = [1, 1, 1, 1]} : vector<2x2x16x64xf32> to vector<2x1x16x64xf32>
    %112 = vector.shape_cast %111 : vector<2x1x16x64xf32> to vector<2x16x64xf32>
    %113 = vector.extract_strided_slice %110 {offsets = [0, 1, 0, 0], sizes = [2, 1, 16, 64], strides = [1, 1, 1, 1]} : vector<2x2x16x64xf32> to vector<2x1x16x64xf32>
    %114 = vector.shape_cast %113 : vector<2x1x16x64xf32> to vector<2x16x64xf32>
    %115 = arith.maximumf %112, %114 : vector<2x16x64xf32>
    %c0_123 = arith.constant 0 : index
    %c0_124 = arith.constant 0 : index
    %116 = vector.load %arg3[%c0_123, %c0_124] : memref<1x64xf32, #tpu.memory_space<vmem>>, vector<1x64xf32>
    %117 = vector.shape_cast %116 : vector<1x64xf32> to vector<1x1x64xf32>
    %118 = vector.broadcast %117 : vector<1x1x64xf32> to vector<2x16x64xf32>
    %119 = arith.addf %115, %118 : vector<2x16x64xf32>
    %cst_125 = arith.constant 0.000000e+00 : f32
    %120 = vector.broadcast %cst_125 : f32 to vector<2x16x64xf32>
    %121 = arith.maximumf %119, %120 : vector<2x16x64xf32>
    %122 = arith.truncf %121 : vector<2x16x64xf32> to vector<2x16x64xbf16>
    %c0_126 = arith.constant 0 : index
    %c0_127 = arith.constant 0 : index
    %c0_128 = arith.constant 0 : index
    %123 = vector.load %arg4[%c0_126, %c0_127, %c0_128] : memref<2x16x64xbf16, #tpu.memory_space<vmem>>, vector<2x16x64xbf16>
    tpu.vector_store %arg4[%c0_126, %c0_127, %c0_128], %122 {strides = array<i32>} : memref<2x16x64xbf16, #tpu.memory_space<vmem>>, vector<2x16x64xbf16>,
    return
  }
  func.func @transform_0(%arg0: i32) -> (i32, i32, i32) {
    %c0_i32 = arith.constant 0 : i32
    %c0_i32_0 = arith.constant 0 : i32
    %c0_i32_1 = arith.constant 0 : i32
    return %arg0, %c0_i32, %c0_i32_0 : i32, i32, i32
  }
  func.func @transform_1(%arg0: i32) -> (i32, i32) {
    %c0_i32 = arith.constant 0 : i32
    %c0_i32_0 = arith.constant 0 : i32
    %c0_i32_1 = arith.constant 0 : i32
    return %c0_i32, %c0_i32_0 : i32, i32
  }
  func.func @transform_2(%arg0: i32) -> (i32, i32) {
    %c0_i32 = arith.constant 0 : i32
    %c0_i32_0 = arith.constant 0 : i32
    %c0_i32_1 = arith.constant 0 : i32
    return %c0_i32, %c0_i32_0 : i32, i32
  }
  func.func @transform_3(%arg0: i32) -> (i32, i32, i32) {
    %c0_i32 = arith.constant 0 : i32
    %c0_i32_0 = arith.constant 0 : i32
    %c0_i32_1 = arith.constant 0 : i32
    return %arg0, %c0_i32, %c0_i32_0 : i32, i32, i32
  }
}

module attributes {stable_mosaic.version = 11 : i64} {
  func.func @_mlp_kernel(%arg0: i32, %arg1: memref<8x1024xbf16, #tpu.memory_space<vmem>>, %arg2: memref<1024x1024xbf16, #tpu.memory_space<vmem>>, %arg3: memref<1x1024xf32, #tpu.memory_space<vmem>>, %arg4: memref<1024x128xbf16, #tpu.memory_space<vmem>>, %arg5: memref<1x128xf32, #tpu.memory_space<vmem>>, %arg6: memref<8x128xf32, #tpu.memory_space<vmem>>) attributes {dimension_semantics = [#tpu.dimension_semantics<parallel>], iteration_bounds = array<i64: 1>, scalar_prefetch = 0 : i64, scratch_operands = 0 : i64, tpu.core_type = #tpu.core_type<tc>, window_params = [{transform_indices = @transform_0, window_bounds = array<i64: 8, 1024>}, {pipeline_mode = #tpu.pipeline_mode<synchronous>, transform_indices = @transform_1, window_bounds = array<i64: 1024, 1024>}, {pipeline_mode = #tpu.pipeline_mode<synchronous>, transform_indices = @transform_2, window_bounds = array<i64: 1, 1024>}, {pipeline_mode = #tpu.pipeline_mode<synchronous>, transform_indices = @transform_3, window_bounds = array<i64: 1024, 128>}, {pipeline_mode = #tpu.pipeline_mode<synchronous>, transform_indices = @transform_4, window_bounds = array<i64: 1, 128>}, {transform_indices = @transform_5, window_bounds = array<i64: 8, 128>}]} {
    %c0 = arith.constant 0 : index
    %c0_0 = arith.constant 0 : index
    %0 = vector.load %arg1[%c0, %c0_0] : memref<8x1024xbf16, #tpu.memory_space<vmem>>, vector<8x1024xbf16>
    %c0_1 = arith.constant 0 : index
    %c0_2 = arith.constant 0 : index
    %1 = vector.load %arg2[%c0_1, %c0_2] : memref<1024x1024xbf16, #tpu.memory_space<vmem>>, vector<1024x1024xbf16>
    %cst = arith.constant dense<0.000000e+00> : vector<8x1024xf32>
    %2 = tpu.matmul %0, %1, %cst {dimension_numbers = #tpu.dot_dimension_numbers<[1], [0], [0], [1], [0, 0, 1, 1], [], []>} : vector<8x1024xbf16>, vector<1024x1024xbf16>, vector<8x1024xf32> -> vector<8x1024xf32>
    %c0_3 = arith.constant 0 : index
    %c0_4 = arith.constant 0 : index
    %3 = vector.load %arg3[%c0_3, %c0_4] : memref<1x1024xf32, #tpu.memory_space<vmem>>, vector<1x1024xf32>
    %4 = vector.broadcast %3 : vector<1x1024xf32> to vector<8x1024xf32>
    %5 = arith.addf %2, %4 : vector<8x1024xf32>
    %cst_5 = arith.constant 0.000000e+00 : f32
    %6 = vector.broadcast %cst_5 : f32 to vector<8x1024xf32>
    %7 = arith.maximumf %5, %6 : vector<8x1024xf32>
    %8 = arith.truncf %7 : vector<8x1024xf32> to vector<8x1024xbf16>
    %c0_6 = arith.constant 0 : index
    %c0_7 = arith.constant 0 : index
    %9 = vector.load %arg4[%c0_6, %c0_7] : memref<1024x128xbf16, #tpu.memory_space<vmem>>, vector<1024x128xbf16>
    %cst_8 = arith.constant dense<0.000000e+00> : vector<8x128xf32>
    %10 = tpu.matmul %8, %9, %cst_8 {dimension_numbers = #tpu.dot_dimension_numbers<[1], [0], [0], [1], [0, 0, 1, 1], [], []>} : vector<8x1024xbf16>, vector<1024x128xbf16>, vector<8x128xf32> -> vector<8x128xf32>
    %c0_9 = arith.constant 0 : index
    %c0_10 = arith.constant 0 : index
    %11 = vector.load %arg5[%c0_9, %c0_10] : memref<1x128xf32, #tpu.memory_space<vmem>>, vector<1x128xf32>
    %12 = vector.broadcast %11 : vector<1x128xf32> to vector<8x128xf32>
    %13 = arith.addf %10, %12 : vector<8x128xf32>
    %c0_11 = arith.constant 0 : index
    %c0_12 = arith.constant 0 : index
    %14 = vector.load %arg6[%c0_11, %c0_12] : memref<8x128xf32, #tpu.memory_space<vmem>>, vector<8x128xf32>
    tpu.vector_store %arg6[%c0_11, %c0_12], %13 {strides = array<i32>} : memref<8x128xf32, #tpu.memory_space<vmem>>, vector<8x128xf32>,
    return
  }
  func.func @transform_0(%arg0: i32) -> (i32, i32) {
    %c0_i32 = arith.constant 0 : i32
    %c0_i32_0 = arith.constant 0 : i32
    return %arg0, %c0_i32 : i32, i32
  }
  func.func @transform_1(%arg0: i32) -> (i32, i32) {
    %c0_i32 = arith.constant 0 : i32
    %c0_i32_0 = arith.constant 0 : i32
    %c0_i32_1 = arith.constant 0 : i32
    return %c0_i32, %c0_i32_0 : i32, i32
  }
  func.func @transform_2(%arg0: i32) -> (i32, i32) {
    %c0_i32 = arith.constant 0 : i32
    %c0_i32_0 = arith.constant 0 : i32
    %c0_i32_1 = arith.constant 0 : i32
    return %c0_i32, %c0_i32_0 : i32, i32
  }
  func.func @transform_3(%arg0: i32) -> (i32, i32) {
    %c0_i32 = arith.constant 0 : i32
    %c0_i32_0 = arith.constant 0 : i32
    %c0_i32_1 = arith.constant 0 : i32
    return %c0_i32, %c0_i32_0 : i32, i32
  }
  func.func @transform_4(%arg0: i32) -> (i32, i32) {
    %c0_i32 = arith.constant 0 : i32
    %c0_i32_0 = arith.constant 0 : i32
    %c0_i32_1 = arith.constant 0 : i32
    return %c0_i32, %c0_i32_0 : i32, i32
  }
  func.func @transform_5(%arg0: i32) -> (i32, i32) {
    %c0_i32 = arith.constant 0 : i32
    %c0_i32_0 = arith.constant 0 : i32
    return %arg0, %c0_i32 : i32, i32
  }
}

</mosaic_0001>

<llo_original>
// kernel: lenet_forward.3
$region0: #{lenet_forward.3}
  #allocation0 [shape = 'u32[]', space=smem, size = 0x4, offset = 0x4, fixed_abs, tag = 'smem constant byte address 0x4 - core index']
  #allocation1 [shape = 'u32[144,128]{1,0:T(1,128)}', space=vmem, size = 0x12000, scoped, tag = 'internal scratch']
  %s0 = inlined_call_operand.vmem [shape: bf16[2,576,25], index: 0, kind: input, shape index: {}]
  %s1 = inlined_call_operand.vmem [shape: bf16[25,64], index: 1, kind: input, shape index: {}]
  %s2 = inlined_call_operand.vmem [shape: f32[1,64], index: 2, kind: input, shape index: {}]
  %s3 = inlined_call_operand.vmem [shape: bf16[2,144,64], index: 3, kind: output, shape index: {}]
  %s4 = sld [smem:[#allocation0]]
  $region22: #{lenet_forward.3} parent=0
    _
  %s6 = ssub.s32 1, %s4
  %s7 = scalar_select 0, %s6, %s4
  // Predicated region
  $region2: #{lenet_forward.3} parent=0 // pred_check
    _
  $region3: #{lenet_forward.3} parent=0 // pred_check_branch
    %9 = sbr.rel (0) target = $region5
  $region4: #{lenet_forward.3} parent=0 // pred_region
    _
  $region5: #{lenet_forward.3} parent=0 // pred_fallthru
    _
  // Predicated region
  $region6: #{lenet_forward.3} parent=0 // pred_check
    _
  $region7: #{lenet_forward.3} parent=0 // pred_check_branch
    %11 = sbr.rel (0) target = $region9
  $region8: #{lenet_forward.3} parent=0 // pred_region
    _
  $region9: #{lenet_forward.3} parent=0 // pred_fallthru
    _
  // Predicated region
  $region10: #{lenet_forward.3} parent=0 // pred_check
    _
  $region11: #{lenet_forward.3} parent=0 // pred_check_branch
    %13 = sbr.rel (0) target = $region13
  $region12: #{lenet_forward.3} parent=0 // pred_region
    _
  $region13: #{lenet_forward.3} parent=0 // pred_fallthru
    _
  %v15 = vld [vmem:[%s0] sm:$0xf]
  %v16 = vld [vmem:[%s0 + $0x4] sm:$0xf]
  %v17 = vld [vmem:[%s0 + $0x8] sm:$0xf]
  %v18 = vld [vmem:[%s0 + $0xc] sm:$0xf]
  %v19 = vld [vmem:[%s0 + $0x10] sm:$0xf]
  %v20 = vld [vmem:[%s0 + $0x14] sm:$0xf]
  %v21 = vld [vmem:[%s0 + $0x18] sm:$0xf]
  %v22 = vld [vmem:[%s0 + $0x1c] sm:$0xf]
  %v23 = vld [vmem:[%s0 + $0x20] sm:$0xf]
  %v24 = vld [vmem:[%s0 + $0x24] sm:$0xf]
  %v25 = vld [vmem:[%s0 + $0x28] sm:$0xf]
  %v26 = vld [vmem:[%s0 + $0x2c] sm:$0xf]
  %v27 = vld [vmem:[%s0 + $0x30] sm:$0xf]
  %v28 = vld [vmem:[%s0 + $0x34] sm:$0xf]
  %v29 = vld [vmem:[%s0 + $0x38] sm:$0xf]
  %v30 = vld [vmem:[%s0 + $0x3c] sm:$0xf]
  %v31 = vld [vmem:[%s0 + $0x40] sm:$0xf]
  %v32 = vld [vmem:[%s0 + $0x44] sm:$0xf]
  %v33 = vld [vmem:[%s0 + $0x48] sm:$0xf]
  %v34 = vld [vmem:[%s0 + $0x4c] sm:$0xf]
  %v35 = vld [vmem:[%s0 + $0x50] sm:$0xf]
  %v36 = vld [vmem:[%s0 + $0x54] sm:$0xf]
  %v37 = vld [vmem:[%s0 + $0x58] sm:$0xf]
  %v38 = vld [vmem:[%s0 + $0x5c] sm:$0xf]
  %v39 = vld [vmem:[%s0 + $0x60] sm:$0xf]
  %v40 = vld [vmem:[%s0 + $0x64] sm:$0xf]
  %v41 = vld [vmem:[%s0 + $0x68] sm:$0xf]
  %v42 = vld [vmem:[%s0 + $0x6c] sm:$0xf]
  %v43 = vld [vmem:[%s0 + $0x70] sm:$0xf]
  %v44 = vld [vmem:[%s0 + $0x74] sm:$0xf]
  %v45 = vld [vmem:[%s0 + $0x78] sm:$0xf]
  %v46 = vld [vmem:[%s0 + $0x7c] sm:$0xf]
  %v47 = vld [vmem:[%s0 + $0x80] sm:$0xf]
  %v48 = vld [vmem:[%s0 + $0x84] sm:$0xf]
  %v49 = vld [vmem:[%s0 + $0x88] sm:$0xf]
  %v50 = vld [vmem:[%s0 + $0x8c] sm:$0xf]
  %v51 = vld [vmem:[%s0 + $0x90] sm:$0xf]
  %v52 = vld [vmem:[%s0 + $0x94] sm:$0xf]
  %v53 = vld [vmem:[%s0 + $0x98] sm:$0xf]
  %v54 = vld [vmem:[%s0 + $0x9c] sm:$0xf]
  %v55 = vld [vmem:[%s0 + $0xa0] sm:$0xf]
  %v56 = vld [vmem:[%s0 + $0xa4] sm:$0xf]
  %v57 = vld [vmem:[%s0 + $0xa8] sm:$0xf]
  %v58 = vld [vmem:[%s0 + $0xac] sm:$0xf]
  %v59 = vld [vmem:[%s0 + $0xb0] sm:$0xf]
  %v60 = vld [vmem:[%s0 + $0xb4] sm:$0xf]
  %v61 = vld [vmem:[%s0 + $0xb8] sm:$0xf]
  %v62 = vld [vmem:[%s0 + $0xbc] sm:$0xf]
  %v63 = vld [vmem:[%s0 + $0xc0] sm:$0xf]
  %v64 = vld [vmem:[%s0 + $0xc4] sm:$0xf]
  %v65 = vld [vmem:[%s0 + $0xc8] sm:$0xf]
  %v66 = vld [vmem:[%s0 + $0xcc] sm:$0xf]
  %v67 = vld [vmem:[%s0 + $0xd0] sm:$0xf]
  %v68 = vld [vmem:[%s0 + $0xd4] sm:$0xf]
  %v69 = vld [vmem:[%s0 + $0xd8] sm:$0xf]
  %v70 = vld [vmem:[%s0 + $0xdc] sm:$0xf]
  %v71 = vld [vmem:[%s0 + $0xe0] sm:$0xf]
  %v72 = vld [vmem:[%s0 + $0xe4] sm:$0xf]
  %v73 = vld [vmem:[%s0 + $0xe8] sm:$0xf]
  %v74 = vld [vmem:[%s0 + $0xec] sm:$0xf]
  %v75 = vld [vmem:[%s0 + $0xf0] sm:$0xf]
  %v76 = vld [vmem:[%s0 + $0xf4] sm:$0xf]
  %v77 = vld [vmem:[%s0 + $0xf8] sm:$0xf]
  %v78 = vld [vmem:[%s0 + $0xfc] sm:$0xf]
  %v79 = vld [vmem:[%s0 + $0x100] sm:$0xf]
  %v80 = vld [vmem:[%s0 + $0x104] sm:$0xf]
  %v81 = vld [vmem:[%s0 + $0x108] sm:$0xf]
  %v82 = vld [vmem:[%s0 + $0x10c] sm:$0xf]
  %v83 = vld [vmem:[%s0 + $0x110] sm:$0xf]
  %v84 = vld [vmem:[%s0 + $0x114] sm:$0xf]
  %v85 = vld [vmem:[%s0 + $0x118] sm:$0xf]
  %v86 = vld [vmem:[%s0 + $0x11c] sm:$0xf]
  %v87 = vld [vmem:[%s0 + $0x120] sm:$0xf]
  %v88 = vld [vmem:[%s0 + $0x124] sm:$0xf]
  %v89 = vld [vmem:[%s0 + $0x128] sm:$0xf]
  %v90 = vld [vmem:[%s0 + $0x12c] sm:$0xf]
  %v91 = vld [vmem:[%s0 + $0x130] sm:$0xf]
  %v92 = vld [vmem:[%s0 + $0x134] sm:$0xf]
  %v93 = vld [vmem:[%s0 + $0x138] sm:$0xf]
  %v94 = vld [vmem:[%s0 + $0x13c] sm:$0xf]
  %v95 = vld [vmem:[%s0 + $0x140] sm:$0xf]
  %v96 = vld [vmem:[%s0 + $0x144] sm:$0xf]
  %v97 = vld [vmem:[%s0 + $0x148] sm:$0xf]
  %v98 = vld [vmem:[%s0 + $0x14c] sm:$0xf]
  %v99 = vld [vmem:[%s0 + $0x150] sm:$0xf]
  %v100 = vld [vmem:[%s0 + $0x154] sm:$0xf]
  %v101 = vld [vmem:[%s0 + $0x158] sm:$0xf]
  %v102 = vld [vmem:[%s0 + $0x15c] sm:$0xf]
  %v103 = vld [vmem:[%s0 + $0x160] sm:$0xf]
  %v104 = vld [vmem:[%s0 + $0x164] sm:$0xf]
  %v105 = vld [vmem:[%s0 + $0x168] sm:$0xf]
  %v106 = vld [vmem:[%s0 + $0x16c] sm:$0xf]
  %v107 = vld [vmem:[%s0 + $0x170] sm:$0xf]
  %v108 = vld [vmem:[%s0 + $0x174] sm:$0xf]
  %v109 = vld [vmem:[%s0 + $0x178] sm:$0xf]
  %v110 = vld [vmem:[%s0 + $0x17c] sm:$0xf]
  %v111 = vld [vmem:[%s0 + $0x180] sm:$0xf]
  %v112 = vld [vmem:[%s0 + $0x184] sm:$0xf]
  %v113 = vld [vmem:[%s0 + $0x188] sm:$0xf]
  %v114 = vld [vmem:[%s0 + $0x18c] sm:$0xf]
  %v115 = vld [vmem:[%s0 + $0x190] sm:$0xf]
  %v116 = vld [vmem:[%s0 + $0x194] sm:$0xf]
  %v117 = vld [vmem:[%s0 + $0x198] sm:$0xf]
  %v118 = vld [vmem:[%s0 + $0x19c] sm:$0xf]
  %v119 = vld [vmem:[%s0 + $0x1a0] sm:$0xf]
  %v120 = vld [vmem:[%s0 + $0x1a4] sm:$0xf]
  %v121 = vld [vmem:[%s0 + $0x1a8] sm:$0xf]
  %v122 = vld [vmem:[%s0 + $0x1ac] sm:$0xf]
  %v123 = vld [vmem:[%s0 + $0x1b0] sm:$0xf]
  %v124 = vld [vmem:[%s0 + $0x1b4] sm:$0xf]
  %v125 = vld [vmem:[%s0 + $0x1b8] sm:$0xf]
  %v126 = vld [vmem:[%s0 + $0x1bc] sm:$0xf]
  %v127 = vld [vmem:[%s0 + $0x1c0] sm:$0xf]
  %v128 = vld [vmem:[%s0 + $0x1c4] sm:$0xf]
  %v129 = vld [vmem:[%s0 + $0x1c8] sm:$0xf]
  %v130 = vld [vmem:[%s0 + $0x1cc] sm:$0xf]
  %v131 = vld [vmem:[%s0 + $0x1d0] sm:$0xf]
  %v132 = vld [vmem:[%s0 + $0x1d4] sm:$0xf]
  %v133 = vld [vmem:[%s0 + $0x1d8] sm:$0xf]
  %v134 = vld [vmem:[%s0 + $0x1dc] sm:$0xf]
  %v135 = vld [vmem:[%s0 + $0x1e0] sm:$0xf]
  %v136 = vld [vmem:[%s0 + $0x1e4] sm:$0xf]
  %v137 = vld [vmem:[%s0 + $0x1e8] sm:$0xf]
  %v138 = vld [vmem:[%s0 + $0x1ec] sm:$0xf]
  %v139 = vld [vmem:[%s0 + $0x1f0] sm:$0xf]
  %v140 = vld [vmem:[%s0 + $0x1f4] sm:$0xf]
  %v141 = vld [vmem:[%s0 + $0x1f8] sm:$0xf]
  %v142 = vld [vmem:[%s0 + $0x1fc] sm:$0xf]
  %v143 = vld [vmem:[%s0 + $0x200] sm:$0xf]
  %v144 = vld [vmem:[%s0 + $0x204] sm:$0xf]
  %v145 = vld [vmem:[%s0 + $0x208] sm:$0xf]
  %v146 = vld [vmem:[%s0 + $0x20c] sm:$0xf]
  %v147 = vld [vmem:[%s0 + $0x210] sm:$0xf]
  %v148 = vld [vmem:[%s0 + $0x214] sm:$0xf]
  %v149 = vld [vmem:[%s0 + $0x218] sm:$0xf]
  %v150 = vld [vmem:[%s0 + $0x21c] sm:$0xf]
  %v151 = vld [vmem:[%s0 + $0x220] sm:$0xf]
  %v152 = vld [vmem:[%s0 + $0x224] sm:$0xf]
  %v153 = vld [vmem:[%s0 + $0x228] sm:$0xf]
  %v154 = vld [vmem:[%s0 + $0x22c] sm:$0xf]
  %v155 = vld [vmem:[%s0 + $0x230] sm:$0xf]
  %v156 = vld [vmem:[%s0 + $0x234] sm:$0xf]
  %v157 = vld [vmem:[%s0 + $0x238] sm:$0xf]
  %v158 = vld [vmem:[%s0 + $0x23c] sm:$0xf]
  %v159 = vld [vmem:[%s1] sm:$0xf]
  %v160 = vld [vmem:[%s1 + $0x4] sm:$0xf]
  %v161 = vld [vmem:[%s1 + $0x8] sm:$0xf]
  %v162 = vld [vmem:[%s1 + $0xc] sm:$0x1]
  %v307 = vunpack.c.l.b16 %v15
  %v308 = vunpack.c.l.b16 %v16
  %v309 = vunpack.c.l.b16 %v17
  %v310 = vunpack.c.l.b16 %v18
  %v311 = vunpack.c.l.b16 %v19
  %v312 = vunpack.c.l.b16 %v20
  %v313 = vunpack.c.l.b16 %v21
  %v314 = vunpack.c.l.b16 %v22
  %v315 = vunpack.c.l.b16 %v23
  %v316 = vunpack.c.l.b16 %v24
  %v317 = vunpack.c.l.b16 %v25
  %v318 = vunpack.c.l.b16 %v26
  %v319 = vunpack.c.l.b16 %v27
  %v320 = vunpack.c.l.b16 %v28
  %v321 = vunpack.c.l.b16 %v29
  %v322 = vunpack.c.l.b16 %v30
  %v323 = vunpack.c.l.b16 %v31
  %v324 = vunpack.c.l.b16 %v32
  %v325 = vunpack.c.l.b16 %v33
  %v326 = vunpack.c.l.b16 %v34
  %v327 = vunpack.c.l.b16 %v35
  %v328 = vunpack.c.l.b16 %v36
  %v329 = vunpack.c.l.b16 %v37
  %v330 = vunpack.c.l.b16 %v38
  %v331 = vunpack.c.l.b16 %v39
  %v332 = vunpack.c.l.b16 %v40
  %v333 = vunpack.c.l.b16 %v41
  %v334 = vunpack.c.l.b16 %v42
  %v335 = vunpack.c.l.b16 %v43
  %v336 = vunpack.c.l.b16 %v44
  %v337 = vunpack.c.l.b16 %v45
  %v338 = vunpack.c.l.b16 %v46
  %v339 = vunpack.c.l.b16 %v47
  %v340 = vunpack.c.l.b16 %v48
  %v341 = vunpack.c.l.b16 %v49
  %v342 = vunpack.c.l.b16 %v50
  %v343 = vunpack.c.l.b16 %v51
  %v344 = vunpack.c.l.b16 %v52
  %v345 = vunpack.c.l.b16 %v53
  %v346 = vunpack.c.l.b16 %v54
  %v347 = vunpack.c.l.b16 %v55
  %v348 = vunpack.c.l.b16 %v56
  %v349 = vunpack.c.l.b16 %v57
  %v350 = vunpack.c.l.b16 %v58
  %v351 = vunpack.c.l.b16 %v59
  %v352 = vunpack.c.l.b16 %v60
  %v353 = vunpack.c.l.b16 %v61
  %v354 = vunpack.c.l.b16 %v62
  %v355 = vunpack.c.l.b16 %v63
  %v356 = vunpack.c.l.b16 %v64
  %v357 = vunpack.c.l.b16 %v65
  %v358 = vunpack.c.l.b16 %v66
  %v359 = vunpack.c.l.b16 %v67
  %v360 = vunpack.c.l.b16 %v68
  %v361 = vunpack.c.l.b16 %v69
  %v362 = vunpack.c.l.b16 %v70
  %v363 = vunpack.c.l.b16 %v71
  %v364 = vunpack.c.l.b16 %v72
  %v365 = vunpack.c.l.b16 %v73
  %v366 = vunpack.c.l.b16 %v74
  %v367 = vunpack.c.l.b16 %v75
  %v368 = vunpack.c.l.b16 %v76
  %v369 = vunpack.c.l.b16 %v77
  %v370 = vunpack.c.l.b16 %v78
  %v371 = vunpack.c.l.b16 %v79
  %v372 = vunpack.c.l.b16 %v80
  %v373 = vunpack.c.l.b16 %v81
  %v374 = vunpack.c.l.b16 %v82
  %v375 = vunpack.c.l.b16 %v83
  %v376 = vunpack.c.l.b16 %v84
  %v377 = vunpack.c.l.b16 %v85
  %v378 = vunpack.c.l.b16 %v86
  %v379 = vunpack.c.l.b16 %v87
  %v380 = vunpack.c.l.b16 %v88
  %v381 = vunpack.c.l.b16 %v89
  %v382 = vunpack.c.l.b16 %v90
  %v383 = vunpack.c.l.b16 %v91
  %v384 = vunpack.c.l.b16 %v92
  %v385 = vunpack.c.l.b16 %v93
  %v386 = vunpack.c.l.b16 %v94
  %v387 = vunpack.c.l.b16 %v95
  %v388 = vunpack.c.l.b16 %v96
  %v389 = vunpack.c.l.b16 %v97
  %v390 = vunpack.c.l.b16 %v98
  %v391 = vunpack.c.l.b16 %v99
  %v392 = vunpack.c.l.b16 %v100
  %v393 = vunpack.c.l.b16 %v101
  %v394 = vunpack.c.l.b16 %v102
  %v395 = vunpack.c.l.b16 %v103
  %v396 = vunpack.c.l.b16 %v104
  %v397 = vunpack.c.l.b16 %v105
  %v398 = vunpack.c.l.b16 %v106
  %v399 = vunpack.c.l.b16 %v107
  %v400 = vunpack.c.l.b16 %v108
  %v401 = vunpack.c.l.b16 %v109
  %v402 = vunpack.c.l.b16 %v110
  %v403 = vunpack.c.l.b16 %v111
  %v404 = vunpack.c.l.b16 %v112
  %v405 = vunpack.c.l.b16 %v113
  %v406 = vunpack.c.l.b16 %v114
  %v407 = vunpack.c.l.b16 %v115
  %v408 = vunpack.c.l.b16 %v116
  %v409 = vunpack.c.l.b16 %v117
  %v410 = vunpack.c.l.b16 %v118
  %v411 = vunpack.c.l.b16 %v119
  %v412 = vunpack.c.l.b16 %v120
  %v413 = vunpack.c.l.b16 %v121
  %v414 = vunpack.c.l.b16 %v122
  %v415 = vunpack.c.l.b16 %v123
  %v416 = vunpack.c.l.b16 %v124
  %v417 = vunpack.c.l.b16 %v125
  %v418 = vunpack.c.l.b16 %v126
  %v419 = vunpack.c.l.b16 %v127
  %v420 = vunpack.c.l.b16 %v128
  %v421 = vunpack.c.l.b16 %v129
  %v422 = vunpack.c.l.b16 %v130
  %v423 = vunpack.c.l.b16 %v131
  %v424 = vunpack.c.l.b16 %v132
  %v425 = vunpack.c.l.b16 %v133
  %v426 = vunpack.c.l.b16 %v134
  %v427 = vunpack.c.l.b16 %v135
  %v428 = vunpack.c.l.b16 %v136
  %v429 = vunpack.c.l.b16 %v137
  %v430 = vunpack.c.l.b16 %v138
  %v431 = vunpack.c.l.b16 %v139
  %v432 = vunpack.c.l.b16 %v140
  %v433 = vunpack.c.l.b16 %v141
  %v434 = vunpack.c.l.b16 %v142
  %v435 = vunpack.c.l.b16 %v143
  %v436 = vunpack.c.l.b16 %v144
  %v437 = vunpack.c.l.b16 %v145
  %v438 = vunpack.c.l.b16 %v146
  %v439 = vunpack.c.l.b16 %v147
  %v440 = vunpack.c.l.b16 %v148
  %v441 = vunpack.c.l.b16 %v149
  %v442 = vunpack.c.l.b16 %v150
  %v443 = vunpack.c.l.b16 %v151
  %v444 = vunpack.c.l.b16 %v152
  %v445 = vunpack.c.l.b16 %v153
  %v446 = vunpack.c.l.b16 %v154
  %v447 = vunpack.c.l.b16 %v155
  %v448 = vunpack.c.l.b16 %v156
  %v449 = vunpack.c.l.b16 %v157
  %v450 = vunpack.c.l.b16 %v158
  %v451 = vpack.c.b16 %v308, %v307
  %v452 = vpack.c.b16 %v310, %v309
  %v453 = vpack.c.b16 %v312, %v311
  %v454 = vpack.c.b16 %v314, %v313
  %v455 = vpack.c.b16 %v316, %v315
  %v456 = vpack.c.b16 %v318, %v317
  %v457 = vpack.c.b16 %v320, %v319
  %v458 = vpack.c.b16 %v322, %v321
  %v459 = vpack.c.b16 %v324, %v323
  %v460 = vpack.c.b16 %v326, %v325
  %v461 = vpack.c.b16 %v328, %v327
  %v462 = vpack.c.b16 %v330, %v329
  %v463 = vpack.c.b16 %v332, %v331
  %v464 = vpack.c.b16 %v334, %v333
  %v465 = vpack.c.b16 %v336, %v335
  %v466 = vpack.c.b16 %v338, %v337
  %v467 = vpack.c.b16 %v340, %v339
  %v468 = vpack.c.b16 %v342, %v341
  %v469 = vpack.c.b16 %v344, %v343
  %v470 = vpack.c.b16 %v346, %v345
  %v471 = vpack.c.b16 %v348, %v347
  %v472 = vpack.c.b16 %v350, %v349
  %v473 = vpack.c.b16 %v352, %v351
  %v474 = vpack.c.b16 %v354, %v353
  %v475 = vpack.c.b16 %v356, %v355
  %v476 = vpack.c.b16 %v358, %v357
  %v477 = vpack.c.b16 %v360, %v359
  %v478 = vpack.c.b16 %v362, %v361
  %v479 = vpack.c.b16 %v364, %v363
  %v480 = vpack.c.b16 %v366, %v365
  %v481 = vpack.c.b16 %v368, %v367
  %v482 = vpack.c.b16 %v370, %v369
  %v483 = vpack.c.b16 %v372, %v371
  %v484 = vpack.c.b16 %v374, %v373
  %v485 = vpack.c.b16 %v376, %v375
  %v486 = vpack.c.b16 %v378, %v377
  %v487 = vpack.c.b16 %v380, %v379
  %v488 = vpack.c.b16 %v382, %v381
  %v489 = vpack.c.b16 %v384, %v383
  %v490 = vpack.c.b16 %v386, %v385
  %v491 = vpack.c.b16 %v388, %v387
  %v492 = vpack.c.b16 %v390, %v389
  %v493 = vpack.c.b16 %v392, %v391
  %v494 = vpack.c.b16 %v394, %v393
  %v495 = vpack.c.b16 %v396, %v395
  %v496 = vpack.c.b16 %v398, %v397
  %v497 = vpack.c.b16 %v400, %v399
  %v498 = vpack.c.b16 %v402, %v401
  %v499 = vpack.c.b16 %v404, %v403
  %v500 = vpack.c.b16 %v406, %v405
  %v501 = vpack.c.b16 %v408, %v407
  %v502 = vpack.c.b16 %v410, %v409
  %v503 = vpack.c.b16 %v412, %v411
  %v504 = vpack.c.b16 %v414, %v413
  %v505 = vpack.c.b16 %v416, %v415
  %v506 = vpack.c.b16 %v418, %v417
  %v507 = vpack.c.b16 %v420, %v419
  %v508 = vpack.c.b16 %v422, %v421
  %v509 = vpack.c.b16 %v424, %v423
  %v510 = vpack.c.b16 %v426, %v425
  %v511 = vpack.c.b16 %v428, %v427
  %v512 = vpack.c.b16 %v430, %v429
  %v513 = vpack.c.b16 %v432, %v431
  %v514 = vpack.c.b16 %v434, %v433
  %v515 = vpack.c.b16 %v436, %v435
  %v516 = vpack.c.b16 %v438, %v437
  %v517 = vpack.c.b16 %v440, %v439
  %v518 = vpack.c.b16 %v442, %v441
  %v519 = vpack.c.b16 %v444, %v443
  %v520 = vpack.c.b16 %v446, %v445
  %v521 = vpack.c.b16 %v448, %v447
  %v522 = vpack.c.b16 %v450, %v449
  %v527 = vunpack.c.l.b16 %v159
  %v528 = vunpack.c.l.b16 %v160
  %v529 = vunpack.c.l.b16 %v161
  %v530 = vunpack.c.l.b16 %v162
  %v531 = vpack.c.b16 %v528, %v527
  %v532 = vpack.c.b16 %v530, %v529
  %vm534 = vcmask 203776
  %v536 = vsel %vm534, %v451, 0
  %v539 = vsel %vm534, %v452, 0
  %v542 = vsel %vm534, %v453, 0
  %v545 = vsel %vm534, %v454, 0
  %v548 = vsel %vm534, %v455, 0
  %v551 = vsel %vm534, %v456, 0
  %v554 = vsel %vm534, %v457, 0
  %v557 = vsel %vm534, %v458, 0
  %v560 = vsel %vm534, %v459, 0
  %v563 = vsel %vm534, %v460, 0
  %v566 = vsel %vm534, %v461, 0
  %v569 = vsel %vm534, %v462, 0
  %v572 = vsel %vm534, %v463, 0
  %v575 = vsel %vm534, %v464, 0
  %v578 = vsel %vm534, %v465, 0
  %v581 = vsel %vm534, %v466, 0
  %v584 = vsel %vm534, %v467, 0
  %v587 = vsel %vm534, %v468, 0
  %v590 = vsel %vm534, %v469, 0
  %v593 = vsel %vm534, %v470, 0
  %v596 = vsel %vm534, %v471, 0
  %v599 = vsel %vm534, %v472, 0
  %v602 = vsel %vm534, %v473, 0
  %v605 = vsel %vm534, %v474, 0
  %v608 = vsel %vm534, %v475, 0
  %v611 = vsel %vm534, %v476, 0
  %v614 = vsel %vm534, %v477, 0
  %v617 = vsel %vm534, %v478, 0
  %v620 = vsel %vm534, %v479, 0
  %v623 = vsel %vm534, %v480, 0
  %v626 = vsel %vm534, %v481, 0
  %v629 = vsel %vm534, %v482, 0
  %v632 = vsel %vm534, %v483, 0
  %v635 = vsel %vm534, %v484, 0
  %v638 = vsel %vm534, %v485, 0
  %v641 = vsel %vm534, %v486, 0
  %v644 = vsel %vm534, %v487, 0
  %v647 = vsel %vm534, %v488, 0
  %v650 = vsel %vm534, %v489, 0
  %v653 = vsel %vm534, %v490, 0
  %v656 = vsel %vm534, %v491, 0
  %v659 = vsel %vm534, %v492, 0
  %v662 = vsel %vm534, %v493, 0
  %v665 = vsel %vm534, %v494, 0
  %v668 = vsel %vm534, %v495, 0
  %v671 = vsel %vm534, %v496, 0
  %v674 = vsel %vm534, %v497, 0
  %v677 = vsel %vm534, %v498, 0
  %v680 = vsel %vm534, %v499, 0
  %v683 = vsel %vm534, %v500, 0
  %v686 = vsel %vm534, %v501, 0
  %v689 = vsel %vm534, %v502, 0
  %v692 = vsel %vm534, %v503, 0
  %v695 = vsel %vm534, %v504, 0
  %v698 = vsel %vm534, %v505, 0
  %v701 = vsel %vm534, %v506, 0
  %v704 = vsel %vm534, %v507, 0
  %v707 = vsel %vm534, %v508, 0
  %v710 = vsel %vm534, %v509, 0
  %v713 = vsel %vm534, %v510, 0
  %v716 = vsel %vm534, %v511, 0
  %v719 = vsel %vm534, %v512, 0
  %v722 = vsel %vm534, %v513, 0
  %v725 = vsel %vm534, %v514, 0
  %v728 = vsel %vm534, %v515, 0
  %v731 = vsel %vm534, %v516, 0
  %v734 = vsel %vm534, %v517, 0
  %v737 = vsel %vm534, %v518, 0
  %v740 = vsel %vm534, %v519, 0
  %v743 = vsel %vm534, %v520, 0
  %v746 = vsel %vm534, %v521, 0
  %v749 = vsel %vm534, %v522, 0
  %vm751 = vcmask 1043456
  %vm752 = vcmask 1044480
  %v753 = vsel %vm751, 4294967295, 65535
  %v754 = vsel %vm752, %v753, 0
  %v756 = vand.u32 %v532, %v754
  %758 = vmatprep.subr.bf16.mxu0 0
  %759 = vmatpush1.bf16.msra.mxu0 %v531
  %760 = vmatprep.subr.bf16.mxu0 0
  %761 = vmatpush1.bf16.msra.mxu0 %v756
  %762 = vmatprep.subr.bf16.mxu0 0
  %763 = vmatpush1.bf16.msra.mxu0 0
  %764 = vmatprep.subr.bf16.mxu0 0
  %765 = vmatpush1.bf16.msra.mxu0 0
  %766 = vmatprep.subr.bf16.mxu0 0
  %767 = vmatpush1.bf16.msra.mxu0 0
  %768 = vmatprep.subr.bf16.mxu0 0
  %769 = vmatpush1.bf16.msra.mxu0 0
  %770 = vmatprep.subr.bf16.mxu0 0
  %771 = vmatpush1.bf16.msra.mxu0 0
  %772 = vmatprep.subr.bf16.mxu0 0
  %773 = vmatpush1.bf16.msra.mxu0 0
  %774 = vmatprep.subr.bf16.mxu0 0
  %775 = vmatpush1.bf16.msra.mxu0 0
  %776 = vmatprep.subr.bf16.mxu0 0
  %777 = vmatpush1.bf16.msra.mxu0 0
  %778 = vmatprep.subr.bf16.mxu0 0
  %779 = vmatpush1.bf16.msra.mxu0 0
  %780 = vmatprep.subr.bf16.mxu0 0
  %781 = vmatpush1.bf16.msra.mxu0 0
  %782 = vmatprep.subr.bf16.mxu0 0
  %783 = vmatpush1.bf16.msra.mxu0 0
  %784 = vmatprep.subr.bf16.mxu0 0
  %785 = vmatpush1.bf16.msra.mxu0 0
  %786 = vmatprep.subr.bf16.mxu0 0
  %787 = vmatpush1.bf16.msra.mxu0 0
  %788 = vmatprep.subr.bf16.mxu0 0
  %789 = vmatpush1.bf16.msra.mxu0 0
  %790 = vmatprep.mubr.bf16.mxu0 0
  %791 = vmatmul.mubr.bf16.gmra.mrb[0].mxu0 %v536
  %v792 = vpop.f32.mrb[0].mxu0
  %v793 = vadd.f32 0.0, %v792
  %v794 = vpop.f32.mrb[0].mxu0
  %v795 = vpop.f32.mrb[0].mxu0
  %v796 = vadd.f32 0.0, %v795
  %v797 = vpop.f32.mrb[0].mxu0
  %798 = vmatprep.mubr.bf16.mxu0 0
  %799 = vmatmul.mubr.bf16.gmra.mrb[0].mxu0 %v539
  %v800 = vpop.f32.mrb[0].mxu0
  %v801 = vadd.f32 0.0, %v800
  %v802 = vpop.f32.mrb[0].mxu0
  %v803 = vpop.f32.mrb[0].mxu0
  %v804 = vadd.f32 0.0, %v803
  %v805 = vpop.f32.mrb[0].mxu0
  %806 = vmatprep.mubr.bf16.mxu0 0
  %807 = vmatmul.mubr.bf16.gmra.mrb[0].mxu0 %v542
  %v808 = vpop.f32.mrb[0].mxu0
  %v809 = vadd.f32 0.0, %v808
  %v810 = vpop.f32.mrb[0].mxu0
  %v811 = vpop.f32.mrb[0].mxu0
  %v812 = vadd.f32 0.0, %v811
  %v813 = vpop.f32.mrb[0].mxu0
  %814 = vmatprep.mubr.bf16.mxu0 0
  %815 = vmatmul.mubr.bf16.gmra.mrb[0].mxu0 %v545
  %v816 = vpop.f32.mrb[0].mxu0
  %v817 = vadd.f32 0.0, %v816
  %v818 = vpop.f32.mrb[0].mxu0
  %v819 = vpop.f32.mrb[0].mxu0
  %v820 = vadd.f32 0.0, %v819
  %v821 = vpop.f32.mrb[0].mxu0
  %822 = vmatprep.mubr.bf16.mxu0 0
  %823 = vmatmul.mubr.bf16.gmra.mrb[0].mxu0 %v548
  %v824 = vpop.f32.mrb[0].mxu0
  %v825 = vadd.f32 0.0, %v824
  %v826 = vpop.f32.mrb[0].mxu0
  %v827 = vpop.f32.mrb[0].mxu0
  %v828 = vadd.f32 0.0, %v827
  %v829 = vpop.f32.mrb[0].mxu0
  %830 = vmatprep.mubr.bf16.mxu0 0
  %831 = vmatmul.mubr.bf16.gmra.mrb[0].mxu0 %v551
  %v832 = vpop.f32.mrb[0].mxu0
  %v833 = vadd.f32 0.0, %v832
  %v834 = vpop.f32.mrb[0].mxu0
  %v835 = vpop.f32.mrb[0].mxu0
  %v836 = vadd.f32 0.0, %v835
  %v837 = vpop.f32.mrb[0].mxu0
  %838 = vmatprep.mubr.bf16.mxu0 0
  %839 = vmatmul.mubr.bf16.gmra.mrb[0].mxu0 %v554
  %v840 = vpop.f32.mrb[0].mxu0
  %v841 = vadd.f32 0.0, %v840
  %v842 = vpop.f32.mrb[0].mxu0
  %v843 = vpop.f32.mrb[0].mxu0
  %v844 = vadd.f32 0.0, %v843
  %v845 = vpop.f32.mrb[0].mxu0
  %846 = vmatprep.mubr.bf16.mxu0 0
  %847 = vmatmul.mubr.bf16.gmra.mrb[0].mxu0 %v557
  %v848 = vpop.f32.mrb[0].mxu0
  %v849 = vadd.f32 0.0, %v848
  %v850 = vpop.f32.mrb[0].mxu0
  %v851 = vpop.f32.mrb[0].mxu0
  %v852 = vadd.f32 0.0, %v851
  %v853 = vpop.f32.mrb[0].mxu0
  %854 = vmatprep.mubr.bf16.mxu0 0
  %855 = vmatmul.mubr.bf16.gmra.mrb[0].mxu0 %v560
  %v856 = vpop.f32.mrb[0].mxu0
  %v857 = vadd.f32 0.0, %v856
  %v858 = vpop.f32.mrb[0].mxu0
  %v859 = vpop.f32.mrb[0].mxu0
  %v860 = vadd.f32 0.0, %v859
  %v861 = vpop.f32.mrb[0].mxu0
  %862 = vmatprep.mubr.bf16.mxu0 0
  %863 = vmatmul.mubr.bf16.gmra.mrb[0].mxu0 %v563
  %v864 = vpop.f32.mrb[0].mxu0
  %v865 = vadd.f32 0.0, %v864
  %v866 = vpop.f32.mrb[0].mxu0
  %v867 = vpop.f32.mrb[0].mxu0
  %v868 = vadd.f32 0.0, %v867
  %v869 = vpop.f32.mrb[0].mxu0
  %870 = vmatprep.mubr.bf16.mxu0 0
  %871 = vmatmul.mubr.bf16.gmra.mrb[0].mxu0 %v566
  %v872 = vpop.f32.mrb[0].mxu0
  %v873 = vadd.f32 0.0, %v872
  %v874 = vpop.f32.mrb[0].mxu0
  %v875 = vpop.f32.mrb[0].mxu0
  %v876 = vadd.f32 0.0, %v875
  %v877 = vpop.f32.mrb[0].mxu0
  %878 = vmatprep.mubr.bf16.mxu0 0
  %879 = vmatmul.mubr.bf16.gmra.mrb[0].mxu0 %v569
  %v880 = vpop.f32.mrb[0].mxu0
  %v881 = vadd.f32 0.0, %v880
  %v882 = vpop.f32.mrb[0].mxu0
  %v883 = vpop.f32.mrb[0].mxu0
  %v884 = vadd.f32 0.0, %v883
  %v885 = vpop.f32.mrb[0].mxu0
  %886 = vmatprep.mubr.bf16.mxu0 0
  %887 = vmatmul.mubr.bf16.gmra.mrb[0].mxu0 %v572
  %v888 = vpop.f32.mrb[0].mxu0
  %v889 = vadd.f32 0.0, %v888
  %v890 = vpop.f32.mrb[0].mxu0
  %v891 = vpop.f32.mrb[0].mxu0
  %v892 = vadd.f32 0.0, %v891
  %v893 = vpop.f32.mrb[0].mxu0
  %894 = vmatprep.mubr.bf16.mxu0 0
  %895 = vmatmul.mubr.bf16.gmra.mrb[0].mxu0 %v575
  %v896 = vpop.f32.mrb[0].mxu0
  %v897 = vadd.f32 0.0, %v896
  %v898 = vpop.f32.mrb[0].mxu0
  %v899 = vpop.f32.mrb[0].mxu0
  %v900 = vadd.f32 0.0, %v899
  %v901 = vpop.f32.mrb[0].mxu0
  %902 = vmatprep.mubr.bf16.mxu0 0
  %903 = vmatmul.mubr.bf16.gmra.mrb[0].mxu0 %v578
  %v904 = vpop.f32.mrb[0].mxu0
  %v905 = vadd.f32 0.0, %v904
  %v906 = vpop.f32.mrb[0].mxu0
  %v907 = vpop.f32.mrb[0].mxu0
  %v908 = vadd.f32 0.0, %v907
  %v909 = vpop.f32.mrb[0].mxu0
  %910 = vmatprep.mubr.bf16.mxu0 0
  %911 = vmatmul.mubr.bf16.gmra.mrb[0].mxu0 %v581
  %v912 = vpop.f32.mrb[0].mxu0
  %v913 = vadd.f32 0.0, %v912
  %v914 = vpop.f32.mrb[0].mxu0
  %v915 = vpop.f32.mrb[0].mxu0
  %v916 = vadd.f32 0.0, %v915
  %v917 = vpop.f32.mrb[0].mxu0
  %918 = vmatprep.mubr.bf16.mxu0 0
  %919 = vmatmul.mubr.bf16.gmra.mrb[0].mxu0 %v584
  %v920 = vpop.f32.mrb[0].mxu0
  %v921 = vadd.f32 0.0, %v920
  %v922 = vpop.f32.mrb[0].mxu0
  %v923 = vpop.f32.mrb[0].mxu0
  %v924 = vadd.f32 0.0, %v923
  %v925 = vpop.f32.mrb[0].mxu0
  %926 = vmatprep.mubr.bf16.mxu0 0
  %927 = vmatmul.mubr.bf16.gmra.mrb[0].mxu0 %v587
  %v928 = vpop.f32.mrb[0].mxu0
  %v929 = vadd.f32 0.0, %v928
  %v930 = vpop.f32.mrb[0].mxu0
  %v931 = vpop.f32.mrb[0].mxu0
  %v932 = vadd.f32 0.0, %v931
  %v933 = vpop.f32.mrb[0].mxu0
  %934 = vmatprep.mubr.bf16.mxu0 0
  %935 = vmatmul.mubr.bf16.gmra.mrb[0].mxu0 %v590
  %v936 = vpop.f32.mrb[0].mxu0
  %v937 = vadd.f32 0.0, %v936
  %v938 = vpop.f32.mrb[0].mxu0
  %v939 = vpop.f32.mrb[0].mxu0
  %v940 = vadd.f32 0.0, %v939
  %v941 = vpop.f32.mrb[0].mxu0
  %942 = vmatprep.mubr.bf16.mxu0 0
  %943 = vmatmul.mubr.bf16.gmra.mrb[0].mxu0 %v593
  %v944 = vpop.f32.mrb[0].mxu0
  %v945 = vadd.f32 0.0, %v944
  %v946 = vpop.f32.mrb[0].mxu0
  %v947 = vpop.f32.mrb[0].mxu0
  %v948 = vadd.f32 0.0, %v947
  %v949 = vpop.f32.mrb[0].mxu0
  %950 = vmatprep.mubr.bf16.mxu0 0
  %951 = vmatmul.mubr.bf16.gmra.mrb[0].mxu0 %v596
  %v952 = vpop.f32.mrb[0].mxu0
  %v953 = vadd.f32 0.0, %v952
  %v954 = vpop.f32.mrb[0].mxu0
  %v955 = vpop.f32.mrb[0].mxu0
  %v956 = vadd.f32 0.0, %v955
  %v957 = vpop.f32.mrb[0].mxu0
  %958 = vmatprep.mubr.bf16.mxu0 0
  %959 = vmatmul.mubr.bf16.gmra.mrb[0].mxu0 %v599
  %v960 = vpop.f32.mrb[0].mxu0
  %v961 = vadd.f32 0.0, %v960
  %v962 = vpop.f32.mrb[0].mxu0
  %v963 = vpop.f32.mrb[0].mxu0
  %v964 = vadd.f32 0.0, %v963
  %v965 = vpop.f32.mrb[0].mxu0
  %966 = vmatprep.mubr.bf16.mxu0 0
  %967 = vmatmul.mubr.bf16.gmra.mrb[0].mxu0 %v602
  %v968 = vpop.f32.mrb[0].mxu0
  %v969 = vadd.f32 0.0, %v968
  %v970 = vpop.f32.mrb[0].mxu0
  %v971 = vpop.f32.mrb[0].mxu0
  %v972 = vadd.f32 0.0, %v971
  %v973 = vpop.f32.mrb[0].mxu0
  %974 = vmatprep.mubr.bf16.mxu0 0
  %975 = vmatmul.mubr.bf16.gmra.mrb[0].mxu0 %v605
  %v976 = vpop.f32.mrb[0].mxu0
  %v977 = vadd.f32 0.0, %v976
  %v978 = vpop.f32.mrb[0].mxu0
  %v979 = vpop.f32.mrb[0].mxu0
  %v980 = vadd.f32 0.0, %v979
  %v981 = vpop.f32.mrb[0].mxu0
  %982 = vmatprep.mubr.bf16.mxu0 0
  %983 = vmatmul.mubr.bf16.gmra.mrb[0].mxu0 %v608
  %v984 = vpop.f32.mrb[0].mxu0
  %v985 = vadd.f32 0.0, %v984
  %v986 = vpop.f32.mrb[0].mxu0
  %v987 = vpop.f32.mrb[0].mxu0
  %v988 = vadd.f32 0.0, %v987
  %v989 = vpop.f32.mrb[0].mxu0
  %990 = vmatprep.mubr.bf16.mxu0 0
  %991 = vmatmul.mubr.bf16.gmra.mrb[0].mxu0 %v611
  %v992 = vpop.f32.mrb[0].mxu0
  %v993 = vadd.f32 0.0, %v992
  %v994 = vpop.f32.mrb[0].mxu0
  %v995 = vpop.f32.mrb[0].mxu0
  %v996 = vadd.f32 0.0, %v995
  %v997 = vpop.f32.mrb[0].mxu0
  %998 = vmatprep.mubr.bf16.mxu0 0
  %999 = vmatmul.mubr.bf16.gmra.mrb[0].mxu0 %v614
  %v1000 = vpop.f32.mrb[0].mxu0
  %v1001 = vadd.f32 0.0, %v1000
  %v1002 = vpop.f32.mrb[0].mxu0
  %v1003 = vpop.f32.mrb[0].mxu0
  %v1004 = vadd.f32 0.0, %v1003
  %v1005 = vpop.f32.mrb[0].mxu0
  %1006 = vmatprep.mubr.bf16.mxu0 0
  %1007 = vmatmul.mubr.bf16.gmra.mrb[0].mxu0 %v617
  %v1008 = vpop.f32.mrb[0].mxu0
  %v1009 = vadd.f32 0.0, %v1008
  %v1010 = vpop.f32.mrb[0].mxu0
  %v1011 = vpop.f32.mrb[0].mxu0
  %v1012 = vadd.f32 0.0, %v1011
  %v1013 = vpop.f32.mrb[0].mxu0
  %1014 = vmatprep.mubr.bf16.mxu0 0
  %1015 = vmatmul.mubr.bf16.gmra.mrb[0].mxu0 %v620
  %v1016 = vpop.f32.mrb[0].mxu0
  %v1017 = vadd.f32 0.0, %v1016
  %v1018 = vpop.f32.mrb[0].mxu0
  %v1019 = vpop.f32.mrb[0].mxu0
  %v1020 = vadd.f32 0.0, %v1019
  %v1021 = vpop.f32.mrb[0].mxu0
  %1022 = vmatprep.mubr.bf16.mxu0 0
  %1023 = vmatmul.mubr.bf16.gmra.mrb[0].mxu0 %v623
  %v1024 = vpop.f32.mrb[0].mxu0
  %v1025 = vadd.f32 0.0, %v1024
  %v1026 = vpop.f32.mrb[0].mxu0
  %v1027 = vpop.f32.mrb[0].mxu0
  %v1028 = vadd.f32 0.0, %v1027
  %v1029 = vpop.f32.mrb[0].mxu0
  %1030 = vmatprep.mubr.bf16.mxu0 0
  %1031 = vmatmul.mubr.bf16.gmra.mrb[0].mxu0 %v626
  %v1032 = vpop.f32.mrb[0].mxu0
  %v1033 = vadd.f32 0.0, %v1032
  %v1034 = vpop.f32.mrb[0].mxu0
  %v1035 = vpop.f32.mrb[0].mxu0
  %v1036 = vadd.f32 0.0, %v1035
  %v1037 = vpop.f32.mrb[0].mxu0
  %1038 = vmatprep.mubr.bf16.mxu0 0
  %1039 = vmatmul.mubr.bf16.gmra.mrb[0].mxu0 %v629
  %v1040 = vpop.f32.mrb[0].mxu0
  %v1041 = vadd.f32 0.0, %v1040
  %v1042 = vpop.f32.mrb[0].mxu0
  %v1043 = vpop.f32.mrb[0].mxu0
  %v1044 = vadd.f32 0.0, %v1043
  %v1045 = vpop.f32.mrb[0].mxu0
  %1046 = vmatprep.mubr.bf16.mxu0 0
  %1047 = vmatmul.mubr.bf16.gmra.mrb[0].mxu0 %v632
  %v1048 = vpop.f32.mrb[0].mxu0
  %v1049 = vadd.f32 0.0, %v1048
  %v1050 = vpop.f32.mrb[0].mxu0
  %v1051 = vpop.f32.mrb[0].mxu0
  %v1052 = vadd.f32 0.0, %v1051
  %v1053 = vpop.f32.mrb[0].mxu0
  %1054 = vmatprep.mubr.bf16.mxu0 0
  %1055 = vmatmul.mubr.bf16.gmra.mrb[0].mxu0 %v635
  %v1056 = vpop.f32.mrb[0].mxu0
  %v1057 = vadd.f32 0.0, %v1056
  %v1058 = vpop.f32.mrb[0].mxu0
  %v1059 = vpop.f32.mrb[0].mxu0
  %v1060 = vadd.f32 0.0, %v1059
  %v1061 = vpop.f32.mrb[0].mxu0
  %1062 = vmatprep.mubr.bf16.mxu0 0
  %1063 = vmatmul.mubr.bf16.gmra.mrb[0].mxu0 %v638
  %v1064 = vpop.f32.mrb[0].mxu0
  %v1065 = vadd.f32 0.0, %v1064
  %v1066 = vpop.f32.mrb[0].mxu0
  %v1067 = vpop.f32.mrb[0].mxu0
  %v1068 = vadd.f32 0.0, %v1067
  %v1069 = vpop.f32.mrb[0].mxu0
  %1070 = vmatprep.mubr.bf16.mxu0 0
  %1071 = vmatmul.mubr.bf16.gmra.mrb[0].mxu0 %v641
  %v1072 = vpop.f32.mrb[0].mxu0
  %v1073 = vadd.f32 0.0, %v1072
  %v1074 = vpop.f32.mrb[0].mxu0
  %v1075 = vpop.f32.mrb[0].mxu0
  %v1076 = vadd.f32 0.0, %v1075
  %v1077 = vpop.f32.mrb[0].mxu0
  %1078 = vmatprep.mubr.bf16.mxu0 0
  %1079 = vmatmul.mubr.bf16.gmra.mrb[0].mxu0 %v644
  %v1080 = vpop.f32.mrb[0].mxu0
  %v1081 = vadd.f32 0.0, %v1080
  %v1082 = vpop.f32.mrb[0].mxu0
  %v1083 = vpop.f32.mrb[0].mxu0
  %v1084 = vadd.f32 0.0, %v1083
  %v1085 = vpop.f32.mrb[0].mxu0
  %1086 = vmatprep.mubr.bf16.mxu0 0
  %1087 = vmatmul.mubr.bf16.gmra.mrb[0].mxu0 %v647
  %v1088 = vpop.f32.mrb[0].mxu0
  %v1089 = vadd.f32 0.0, %v1088
  %v1090 = vpop.f32.mrb[0].mxu0
  %v1091 = vpop.f32.mrb[0].mxu0
  %v1092 = vadd.f32 0.0, %v1091
  %v1093 = vpop.f32.mrb[0].mxu0
  %1094 = vmatprep.mubr.bf16.mxu0 0
  %1095 = vmatmul.mubr.bf16.gmra.mrb[0].mxu0 %v650
  %v1096 = vpop.f32.mrb[0].mxu0
  %v1097 = vadd.f32 0.0, %v1096
  %v1098 = vpop.f32.mrb[0].mxu0
  %v1099 = vpop.f32.mrb[0].mxu0
  %v1100 = vadd.f32 0.0, %v1099
  %v1101 = vpop.f32.mrb[0].mxu0
  %1102 = vmatprep.mubr.bf16.mxu0 0
  %1103 = vmatmul.mubr.bf16.gmra.mrb[0].mxu0 %v653
  %v1104 = vpop.f32.mrb[0].mxu0
  %v1105 = vadd.f32 0.0, %v1104
  %v1106 = vpop.f32.mrb[0].mxu0
  %v1107 = vpop.f32.mrb[0].mxu0
  %v1108 = vadd.f32 0.0, %v1107
  %v1109 = vpop.f32.mrb[0].mxu0
  %1110 = vmatprep.mubr.bf16.mxu0 0
  %1111 = vmatmul.mubr.bf16.gmra.mrb[0].mxu0 %v656
  %v1112 = vpop.f32.mrb[0].mxu0
  %v1113 = vadd.f32 0.0, %v1112
  %v1114 = vpop.f32.mrb[0].mxu0
  %v1115 = vpop.f32.mrb[0].mxu0
  %v1116 = vadd.f32 0.0, %v1115
  %v1117 = vpop.f32.mrb[0].mxu0
  %1118 = vmatprep.mubr.bf16.mxu0 0
  %1119 = vmatmul.mubr.bf16.gmra.mrb[0].mxu0 %v659
  %v1120 = vpop.f32.mrb[0].mxu0
  %v1121 = vadd.f32 0.0, %v1120
  %v1122 = vpop.f32.mrb[0].mxu0
  %v1123 = vpop.f32.mrb[0].mxu0
  %v1124 = vadd.f32 0.0, %v1123
  %v1125 = vpop.f32.mrb[0].mxu0
  %1126 = vmatprep.mubr.bf16.mxu0 0
  %1127 = vmatmul.mubr.bf16.gmra.mrb[0].mxu0 %v662
  %v1128 = vpop.f32.mrb[0].mxu0
  %v1129 = vadd.f32 0.0, %v1128
  %v1130 = vpop.f32.mrb[0].mxu0
  %v1131 = vpop.f32.mrb[0].mxu0
  %v1132 = vadd.f32 0.0, %v1131
  %v1133 = vpop.f32.mrb[0].mxu0
  %1134 = vmatprep.mubr.bf16.mxu0 0
  %1135 = vmatmul.mubr.bf16.gmra.mrb[0].mxu0 %v665
  %v1136 = vpop.f32.mrb[0].mxu0
  %v1137 = vadd.f32 0.0, %v1136
  %v1138 = vpop.f32.mrb[0].mxu0
  %v1139 = vpop.f32.mrb[0].mxu0
  %v1140 = vadd.f32 0.0, %v1139
  %v1141 = vpop.f32.mrb[0].mxu0
  %1142 = vmatprep.mubr.bf16.mxu0 0
  %1143 = vmatmul.mubr.bf16.gmra.mrb[0].mxu0 %v668
  %v1144 = vpop.f32.mrb[0].mxu0
  %v1145 = vadd.f32 0.0, %v1144
  %v1146 = vpop.f32.mrb[0].mxu0
  %v1147 = vpop.f32.mrb[0].mxu0
  %v1148 = vadd.f32 0.0, %v1147
  %v1149 = vpop.f32.mrb[0].mxu0
  %1150 = vmatprep.mubr.bf16.mxu0 0
  %1151 = vmatmul.mubr.bf16.gmra.mrb[0].mxu0 %v671
  %v1152 = vpop.f32.mrb[0].mxu0
  %v1153 = vadd.f32 0.0, %v1152
  %v1154 = vpop.f32.mrb[0].mxu0
  %v1155 = vpop.f32.mrb[0].mxu0
  %v1156 = vadd.f32 0.0, %v1155
  %v1157 = vpop.f32.mrb[0].mxu0
  %1158 = vmatprep.mubr.bf16.mxu0 0
  %1159 = vmatmul.mubr.bf16.gmra.mrb[0].mxu0 %v674
  %v1160 = vpop.f32.mrb[0].mxu0
  %v1161 = vadd.f32 0.0, %v1160
  %v1162 = vpop.f32.mrb[0].mxu0
  %v1163 = vpop.f32.mrb[0].mxu0
  %v1164 = vadd.f32 0.0, %v1163
  %v1165 = vpop.f32.mrb[0].mxu0
  %1166 = vmatprep.mubr.bf16.mxu0 0
  %1167 = vmatmul.mubr.bf16.gmra.mrb[0].mxu0 %v677
  %v1168 = vpop.f32.mrb[0].mxu0
  %v1169 = vadd.f32 0.0, %v1168
  %v1170 = vpop.f32.mrb[0].mxu0
  %v1171 = vpop.f32.mrb[0].mxu0
  %v1172 = vadd.f32 0.0, %v1171
  %v1173 = vpop.f32.mrb[0].mxu0
  %1174 = vmatprep.mubr.bf16.mxu0 0
  %1175 = vmatmul.mubr.bf16.gmra.mrb[0].mxu0 %v680
  %v1176 = vpop.f32.mrb[0].mxu0
  %v1177 = vadd.f32 0.0, %v1176
  %v1178 = vpop.f32.mrb[0].mxu0
  %v1179 = vpop.f32.mrb[0].mxu0
  %v1180 = vadd.f32 0.0, %v1179
  %v1181 = vpop.f32.mrb[0].mxu0
  %1182 = vmatprep.mubr.bf16.mxu0 0
  %1183 = vmatmul.mubr.bf16.gmra.mrb[0].mxu0 %v683
  %v1184 = vpop.f32.mrb[0].mxu0
  %v1185 = vadd.f32 0.0, %v1184
  %v1186 = vpop.f32.mrb[0].mxu0
  %v1187 = vpop.f32.mrb[0].mxu0
  %v1188 = vadd.f32 0.0, %v1187
  %v1189 = vpop.f32.mrb[0].mxu0
  %1190 = vmatprep.mubr.bf16.mxu0 0
  %1191 = vmatmul.mubr.bf16.gmra.mrb[0].mxu0 %v686
  %v1192 = vpop.f32.mrb[0].mxu0
  %v1193 = vadd.f32 0.0, %v1192
  %v1194 = vpop.f32.mrb[0].mxu0
  %v1195 = vpop.f32.mrb[0].mxu0
  %v1196 = vadd.f32 0.0, %v1195
  %v1197 = vpop.f32.mrb[0].mxu0
  %1198 = vmatprep.mubr.bf16.mxu0 0
  %1199 = vmatmul.mubr.bf16.gmra.mrb[0].mxu0 %v689
  %v1200 = vpop.f32.mrb[0].mxu0
  %v1201 = vadd.f32 0.0, %v1200
  %v1202 = vpop.f32.mrb[0].mxu0
  %v1203 = vpop.f32.mrb[0].mxu0
  %v1204 = vadd.f32 0.0, %v1203
  %v1205 = vpop.f32.mrb[0].mxu0
  %1206 = vmatprep.mubr.bf16.mxu0 0
  %1207 = vmatmul.mubr.bf16.gmra.mrb[0].mxu0 %v692
  %v1208 = vpop.f32.mrb[0].mxu0
  %v1209 = vadd.f32 0.0, %v1208
  %v1210 = vpop.f32.mrb[0].mxu0
  %v1211 = vpop.f32.mrb[0].mxu0
  %v1212 = vadd.f32 0.0, %v1211
  %v1213 = vpop.f32.mrb[0].mxu0
  %1214 = vmatprep.mubr.bf16.mxu0 0
  %1215 = vmatmul.mubr.bf16.gmra.mrb[0].mxu0 %v695
  %v1216 = vpop.f32.mrb[0].mxu0
  %v1217 = vadd.f32 0.0, %v1216
  %v1218 = vpop.f32.mrb[0].mxu0
  %v1219 = vpop.f32.mrb[0].mxu0
  %v1220 = vadd.f32 0.0, %v1219
  %v1221 = vpop.f32.mrb[0].mxu0
  %1222 = vmatprep.mubr.bf16.mxu0 0
  %1223 = vmatmul.mubr.bf16.gmra.mrb[0].mxu0 %v698
  %v1224 = vpop.f32.mrb[0].mxu0
  %v1225 = vadd.f32 0.0, %v1224
  %v1226 = vpop.f32.mrb[0].mxu0
  %v1227 = vpop.f32.mrb[0].mxu0
  %v1228 = vadd.f32 0.0, %v1227
  %v1229 = vpop.f32.mrb[0].mxu0
  %1230 = vmatprep.mubr.bf16.mxu0 0
  %1231 = vmatmul.mubr.bf16.gmra.mrb[0].mxu0 %v701
  %v1232 = vpop.f32.mrb[0].mxu0
  %v1233 = vadd.f32 0.0, %v1232
  %v1234 = vpop.f32.mrb[0].mxu0
  %v1235 = vpop.f32.mrb[0].mxu0
  %v1236 = vadd.f32 0.0, %v1235
  %v1237 = vpop.f32.mrb[0].mxu0
  %1238 = vmatprep.mubr.bf16.mxu0 0
  %1239 = vmatmul.mubr.bf16.gmra.mrb[0].mxu0 %v704
  %v1240 = vpop.f32.mrb[0].mxu0
  %v1241 = vadd.f32 0.0, %v1240
  %v1242 = vpop.f32.mrb[0].mxu0
  %v1243 = vpop.f32.mrb[0].mxu0
  %v1244 = vadd.f32 0.0, %v1243
  %v1245 = vpop.f32.mrb[0].mxu0
  %1246 = vmatprep.mubr.bf16.mxu0 0
  %1247 = vmatmul.mubr.bf16.gmra.mrb[0].mxu0 %v707
  %v1248 = vpop.f32.mrb[0].mxu0
  %v1249 = vadd.f32 0.0, %v1248
  %v1250 = vpop.f32.mrb[0].mxu0
  %v1251 = vpop.f32.mrb[0].mxu0
  %v1252 = vadd.f32 0.0, %v1251
  %v1253 = vpop.f32.mrb[0].mxu0
  %1254 = vmatprep.mubr.bf16.mxu0 0
  %1255 = vmatmul.mubr.bf16.gmra.mrb[0].mxu0 %v710
  %v1256 = vpop.f32.mrb[0].mxu0
  %v1257 = vadd.f32 0.0, %v1256
  %v1258 = vpop.f32.mrb[0].mxu0
  %v1259 = vpop.f32.mrb[0].mxu0
  %v1260 = vadd.f32 0.0, %v1259
  %v1261 = vpop.f32.mrb[0].mxu0
  %1262 = vmatprep.mubr.bf16.mxu0 0
  %1263 = vmatmul.mubr.bf16.gmra.mrb[0].mxu0 %v713
  %v1264 = vpop.f32.mrb[0].mxu0
  %v1265 = vadd.f32 0.0, %v1264
  %v1266 = vpop.f32.mrb[0].mxu0
  %v1267 = vpop.f32.mrb[0].mxu0
  %v1268 = vadd.f32 0.0, %v1267
  %v1269 = vpop.f32.mrb[0].mxu0
  %1270 = vmatprep.mubr.bf16.mxu0 0
  %1271 = vmatmul.mubr.bf16.gmra.mrb[0].mxu0 %v716
  %v1272 = vpop.f32.mrb[0].mxu0
  %v1273 = vadd.f32 0.0, %v1272
  %v1274 = vpop.f32.mrb[0].mxu0
  %v1275 = vpop.f32.mrb[0].mxu0
  %v1276 = vadd.f32 0.0, %v1275
  %v1277 = vpop.f32.mrb[0].mxu0
  %1278 = vmatprep.mubr.bf16.mxu0 0
  %1279 = vmatmul.mubr.bf16.gmra.mrb[0].mxu0 %v719
  %v1280 = vpop.f32.mrb[0].mxu0
  %v1281 = vadd.f32 0.0, %v1280
  %v1282 = vpop.f32.mrb[0].mxu0
  %v1283 = vpop.f32.mrb[0].mxu0
  %v1284 = vadd.f32 0.0, %v1283
  %v1285 = vpop.f32.mrb[0].mxu0
  %1286 = vmatprep.mubr.bf16.mxu0 0
  %1287 = vmatmul.mubr.bf16.gmra.mrb[0].mxu0 %v722
  %v1288 = vpop.f32.mrb[0].mxu0
  %v1289 = vadd.f32 0.0, %v1288
  %v1290 = vpop.f32.mrb[0].mxu0
  %v1291 = vpop.f32.mrb[0].mxu0
  %v1292 = vadd.f32 0.0, %v1291
  %v1293 = vpop.f32.mrb[0].mxu0
  %1294 = vmatprep.mubr.bf16.mxu0 0
  %1295 = vmatmul.mubr.bf16.gmra.mrb[0].mxu0 %v725
  %v1296 = vpop.f32.mrb[0].mxu0
  %v1297 = vadd.f32 0.0, %v1296
  %v1298 = vpop.f32.mrb[0].mxu0
  %v1299 = vpop.f32.mrb[0].mxu0
  %v1300 = vadd.f32 0.0, %v1299
  %v1301 = vpop.f32.mrb[0].mxu0
  %1302 = vmatprep.mubr.bf16.mxu0 0
  %1303 = vmatmul.mubr.bf16.gmra.mrb[0].mxu0 %v728
  %v1304 = vpop.f32.mrb[0].mxu0
  %v1305 = vadd.f32 0.0, %v1304
  %v1306 = vpop.f32.mrb[0].mxu0
  %v1307 = vpop.f32.mrb[0].mxu0
  %v1308 = vadd.f32 0.0, %v1307
  %v1309 = vpop.f32.mrb[0].mxu0
  %1310 = vmatprep.mubr.bf16.mxu0 0
  %1311 = vmatmul.mubr.bf16.gmra.mrb[0].mxu0 %v731
  %v1312 = vpop.f32.mrb[0].mxu0
  %v1313 = vadd.f32 0.0, %v1312
  %v1314 = vpop.f32.mrb[0].mxu0
  %v1315 = vpop.f32.mrb[0].mxu0
  %v1316 = vadd.f32 0.0, %v1315
  %v1317 = vpop.f32.mrb[0].mxu0
  %1318 = vmatprep.mubr.bf16.mxu0 0
  %1319 = vmatmul.mubr.bf16.gmra.mrb[0].mxu0 %v734
  %v1320 = vpop.f32.mrb[0].mxu0
  %v1321 = vadd.f32 0.0, %v1320
  %v1322 = vpop.f32.mrb[0].mxu0
  %v1323 = vpop.f32.mrb[0].mxu0
  %v1324 = vadd.f32 0.0, %v1323
  %v1325 = vpop.f32.mrb[0].mxu0
  %1326 = vmatprep.mubr.bf16.mxu0 0
  %1327 = vmatmul.mubr.bf16.gmra.mrb[0].mxu0 %v737
  %v1328 = vpop.f32.mrb[0].mxu0
  %v1329 = vadd.f32 0.0, %v1328
  %v1330 = vpop.f32.mrb[0].mxu0
  %v1331 = vpop.f32.mrb[0].mxu0
  %v1332 = vadd.f32 0.0, %v1331
  %v1333 = vpop.f32.mrb[0].mxu0
  %1334 = vmatprep.mubr.bf16.mxu0 0
  %1335 = vmatmul.mubr.bf16.gmra.mrb[0].mxu0 %v740
  %v1336 = vpop.f32.mrb[0].mxu0
  %v1337 = vadd.f32 0.0, %v1336
  %v1338 = vpop.f32.mrb[0].mxu0
  %v1339 = vpop.f32.mrb[0].mxu0
  %v1340 = vadd.f32 0.0, %v1339
  %v1341 = vpop.f32.mrb[0].mxu0
  %1342 = vmatprep.mubr.bf16.mxu0 0
  %1343 = vmatmul.mubr.bf16.gmra.mrb[0].mxu0 %v743
  %v1344 = vpop.f32.mrb[0].mxu0
  %v1345 = vadd.f32 0.0, %v1344
  %v1346 = vpop.f32.mrb[0].mxu0
  %v1347 = vpop.f32.mrb[0].mxu0
  %v1348 = vadd.f32 0.0, %v1347
  %v1349 = vpop.f32.mrb[0].mxu0
  %1350 = vmatprep.mubr.bf16.mxu0 0
  %1351 = vmatmul.mubr.bf16.gmra.mrb[0].mxu0 %v746
  %v1352 = vpop.f32.mrb[0].mxu0
  %v1353 = vadd.f32 0.0, %v1352
  %v1354 = vpop.f32.mrb[0].mxu0
  %v1355 = vpop.f32.mrb[0].mxu0
  %v1356 = vadd.f32 0.0, %v1355
  %v1357 = vpop.f32.mrb[0].mxu0
  %1358 = vmatprep.mubr.bf16.mxu0 0
  %1359 = vmatmul.mubr.bf16.gmra.mrb[0].mxu0 %v749
  %v1360 = vpop.f32.mrb[0].mxu0
  %v1361 = vadd.f32 0.0, %v1360
  %v1362 = vpop.f32.mrb[0].mxu0
  %v1363 = vpop.f32.mrb[0].mxu0
  %v1364 = vadd.f32 0.0, %v1363
  %v1365 = vpop.f32.mrb[0].mxu0
  %1366 = vdwg.mxu0
  %v1367 = vmax.f32 %v793, %v865
  %v1368 = vmax.f32 %v796, %v868
  %v1369 = vmax.f32 %v801, %v873
  %v1370 = vmax.f32 %v804, %v876
  %v1371 = vmax.f32 %v809, %v881
  %v1372 = vmax.f32 %v812, %v884
  %v1373 = vmax.f32 %v817, %v889
  %v1374 = vmax.f32 %v820, %v892
  %v1375 = vmax.f32 %v825, %v897
  %v1376 = vmax.f32 %v828, %v900
  %v1377 = vmax.f32 %v833, %v905
  %v1378 = vmax.f32 %v836, %v908
  %v1379 = vmax.f32 %v841, %v913
  %v1380 = vmax.f32 %v844, %v916
  %v1381 = vmax.f32 %v849, %v921
  %v1382 = vmax.f32 %v852, %v924
  %v1383 = vmax.f32 %v857, %v929
  %v1384 = vmax.f32 %v860, %v932
  %v1385 = vmax.f32 %v1081, %v1153
  %v1386 = vmax.f32 %v1084, %v1156
  %v1387 = vmax.f32 %v1089, %v1161
  %v1388 = vmax.f32 %v1092, %v1164
  %v1389 = vmax.f32 %v1097, %v1169
  %v1390 = vmax.f32 %v1100, %v1172
  %v1391 = vmax.f32 %v1105, %v1177
  %v1392 = vmax.f32 %v1108, %v1180
  %v1393 = vmax.f32 %v1113, %v1185
  %v1394 = vmax.f32 %v1116, %v1188
  %v1395 = vmax.f32 %v1121, %v1193
  %v1396 = vmax.f32 %v1124, %v1196
  %v1397 = vmax.f32 %v1129, %v1201
  %v1398 = vmax.f32 %v1132, %v1204
  %v1399 = vmax.f32 %v1137, %v1209
  %v1400 = vmax.f32 %v1140, %v1212
  %v1401 = vmax.f32 %v1145, %v1217
  %v1402 = vmax.f32 %v1148, %v1220
  %v1403 = vmax.f32 %v937, %v1009
  %v1404 = vmax.f32 %v940, %v1012
  %v1405 = vmax.f32 %v945, %v1017
  %v1406 = vmax.f32 %v948, %v1020
  %v1407 = vmax.f32 %v953, %v1025
  %v1408 = vmax.f32 %v956, %v1028
  %v1409 = vmax.f32 %v961, %v1033
  %v1410 = vmax.f32 %v964, %v1036
  %v1411 = vmax.f32 %v969, %v1041
  %v1412 = vmax.f32 %v972, %v1044
  %v1413 = vmax.f32 %v977, %v1049
  %v1414 = vmax.f32 %v980, %v1052
  %v1415 = vmax.f32 %v985, %v1057
  %v1416 = vmax.f32 %v988, %v1060
  %v1417 = vmax.f32 %v993, %v1065
  %v1418 = vmax.f32 %v996, %v1068
  %v1419 = vmax.f32 %v1001, %v1073
  %v1420 = vmax.f32 %v1004, %v1076
  %v1421 = vmax.f32 %v1225, %v1297
  %v1422 = vmax.f32 %v1228, %v1300
  %v1423 = vmax.f32 %v1233, %v1305
  %v1424 = vmax.f32 %v1236, %v1308
  %v1425 = vmax.f32 %v1241, %v1313
  %v1426 = vmax.f32 %v1244, %v1316
  %v1427 = vmax.f32 %v1249, %v1321
  %v1428 = vmax.f32 %v1252, %v1324
  %v1429 = vmax.f32 %v1257, %v1329
  %v1430 = vmax.f32 %v1260, %v1332
  %v1431 = vmax.f32 %v1265, %v1337
  %v1432 = vmax.f32 %v1268, %v1340
  %v1433 = vmax.f32 %v1273, %v1345
  %v1434 = vmax.f32 %v1276, %v1348
  %v1435 = vmax.f32 %v1281, %v1353
  %v1436 = vmax.f32 %v1284, %v1356
  %v1437 = vmax.f32 %v1289, %v1361
  %v1438 = vmax.f32 %v1292, %v1364
  %v1439 = vmax.f32 %v1367, %v1403
  %v1440 = vmax.f32 %v1368, %v1404
  %v1441 = vmax.f32 %v1369, %v1405
  %v1442 = vmax.f32 %v1370, %v1406
  %v1443 = vmax.f32 %v1371, %v1407
  %v1444 = vmax.f32 %v1372, %v1408
  %v1445 = vmax.f32 %v1373, %v1409
  %v1446 = vmax.f32 %v1374, %v1410
  %v1447 = vmax.f32 %v1375, %v1411
  %v1448 = vmax.f32 %v1376, %v1412
  %v1449 = vmax.f32 %v1377, %v1413
  %v1450 = vmax.f32 %v1378, %v1414
  %v1451 = vmax.f32 %v1379, %v1415
  %v1452 = vmax.f32 %v1380, %v1416
  %v1453 = vmax.f32 %v1381, %v1417
  %v1454 = vmax.f32 %v1382, %v1418
  %v1455 = vmax.f32 %v1383, %v1419
  %v1456 = vmax.f32 %v1384, %v1420
  %v1457 = vmax.f32 %v1385, %v1421
  %v1458 = vmax.f32 %v1386, %v1422
  %v1459 = vmax.f32 %v1387, %v1423
  %v1460 = vmax.f32 %v1388, %v1424
  %v1461 = vmax.f32 %v1389, %v1425
  %v1462 = vmax.f32 %v1390, %v1426
  %v1463 = vmax.f32 %v1391, %v1427
  %v1464 = vmax.f32 %v1392, %v1428
  %v1465 = vmax.f32 %v1393, %v1429
  %v1466 = vmax.f32 %v1394, %v1430
  %v1467 = vmax.f32 %v1395, %v1431
  %v1468 = vmax.f32 %v1396, %v1432
  %v1469 = vmax.f32 %v1397, %v1433
  %v1470 = vmax.f32 %v1398, %v1434
  %v1471 = vmax.f32 %v1399, %v1435
  %v1472 = vmax.f32 %v1400, %v1436
  %v1473 = vmax.f32 %v1401, %v1437
  %v1474 = vmax.f32 %v1402, %v1438
  %v1475 = vld [vmem:[%s2] sm:$0x1]
  %v1477 = vlaneseq
  %v1478 = vshrl.u32 %v1477, 7
  %v1479 = vsub.s32 0, %v1478
  %v1480 = vrot.slane %v1475, %v1479
  %v1482 = vadd.f32 %v1439, %v1480
  %v1483 = vadd.f32 %v1440, %v1480
  %v1484 = vadd.f32 %v1441, %v1480
  %v1485 = vadd.f32 %v1442, %v1480
  %v1486 = vadd.f32 %v1443, %v1480
  %v1487 = vadd.f32 %v1444, %v1480
  %v1488 = vadd.f32 %v1445, %v1480
  %v1489 = vadd.f32 %v1446, %v1480
  %v1490 = vadd.f32 %v1447, %v1480
  %v1491 = vadd.f32 %v1448, %v1480
  %v1492 = vadd.f32 %v1449, %v1480
  %v1493 = vadd.f32 %v1450, %v1480
  %v1494 = vadd.f32 %v1451, %v1480
  %v1495 = vadd.f32 %v1452, %v1480
  %v1496 = vadd.f32 %v1453, %v1480
  %v1497 = vadd.f32 %v1454, %v1480
  %v1498 = vadd.f32 %v1455, %v1480
  %v1499 = vadd.f32 %v1456, %v1480
  %v1500 = vadd.f32 %v1457, %v1480
  %v1501 = vadd.f32 %v1458, %v1480
  %v1502 = vadd.f32 %v1459, %v1480
  %v1503 = vadd.f32 %v1460, %v1480
  %v1504 = vadd.f32 %v1461, %v1480
  %v1505 = vadd.f32 %v1462, %v1480
  %v1506 = vadd.f32 %v1463, %v1480
  %v1507 = vadd.f32 %v1464, %v1480
  %v1508 = vadd.f32 %v1465, %v1480
  %v1509 = vadd.f32 %v1466, %v1480
  %v1510 = vadd.f32 %v1467, %v1480
  %v1511 = vadd.f32 %v1468, %v1480
  %v1512 = vadd.f32 %v1469, %v1480
  %v1513 = vadd.f32 %v1470, %v1480
  %v1514 = vadd.f32 %v1471, %v1480
  %v1515 = vadd.f32 %v1472, %v1480
  %v1516 = vadd.f32 %v1473, %v1480
  %v1517 = vadd.f32 %v1474, %v1480
  %v1518 = vmax.f32 %v1482, 0.0
  %v1519 = vmax.f32 %v1483, 0.0
  %v1520 = vmax.f32 %v1484, 0.0
  %v1521 = vmax.f32 %v1485, 0.0
  %v1522 = vmax.f32 %v1486, 0.0
  %v1523 = vmax.f32 %v1487, 0.0
  %v1524 = vmax.f32 %v1488, 0.0
  %v1525 = vmax.f32 %v1489, 0.0
  %v1526 = vmax.f32 %v1490, 0.0
  %v1527 = vmax.f32 %v1491, 0.0
  %v1528 = vmax.f32 %v1492, 0.0
  %v1529 = vmax.f32 %v1493, 0.0
  %v1530 = vmax.f32 %v1494, 0.0
  %v1531 = vmax.f32 %v1495, 0.0
  %v1532 = vmax.f32 %v1496, 0.0
  %v1533 = vmax.f32 %v1497, 0.0
  %v1534 = vmax.f32 %v1498, 0.0
  %v1535 = vmax.f32 %v1499, 0.0
  %v1536 = vmax.f32 %v1500, 0.0
  %v1537 = vmax.f32 %v1501, 0.0
  %v1538 = vmax.f32 %v1502, 0.0
  %v1539 = vmax.f32 %v1503, 0.0
  %v1540 = vmax.f32 %v1504, 0.0
  %v1541 = vmax.f32 %v1505, 0.0
  %v1542 = vmax.f32 %v1506, 0.0
  %v1543 = vmax.f32 %v1507, 0.0
  %v1544 = vmax.f32 %v1508, 0.0
  %v1545 = vmax.f32 %v1509, 0.0
  %v1546 = vmax.f32 %v1510, 0.0
  %v1547 = vmax.f32 %v1511, 0.0
  %v1548 = vmax.f32 %v1512, 0.0
  %v1549 = vmax.f32 %v1513, 0.0
  %v1550 = vmax.f32 %v1514, 0.0
  %v1551 = vmax.f32 %v1515, 0.0
  %v1552 = vmax.f32 %v1516, 0.0
  %v1553 = vmax.f32 %v1517, 0.0
  %v1554 = vpack.c.bf16 %v1519, %v1518
  %v1555 = vpack.c.bf16 %v1521, %v1520
  %v1556 = vpack.c.bf16 %v1523, %v1522
  %v1557 = vpack.c.bf16 %v1525, %v1524
  %v1558 = vpack.c.bf16 %v1527, %v1526
  %v1559 = vpack.c.bf16 %v1529, %v1528
  %v1560 = vpack.c.bf16 %v1531, %v1530
  %v1561 = vpack.c.bf16 %v1533, %v1532
  %v1562 = vpack.c.bf16 %v1535, %v1534
  %v1563 = vpack.c.bf16 %v1537, %v1536
  %v1564 = vpack.c.bf16 %v1539, %v1538
  %v1565 = vpack.c.bf16 %v1541, %v1540
  %v1566 = vpack.c.bf16 %v1543, %v1542
  %v1567 = vpack.c.bf16 %v1545, %v1544
  %v1568 = vpack.c.bf16 %v1547, %v1546
  %v1569 = vpack.c.bf16 %v1549, %v1548
  %v1570 = vpack.c.bf16 %v1551, %v1550
  %v1571 = vpack.c.bf16 %v1553, %v1552
  %v1590 = vunpack.c.l.b16 %v1554
  %v1591 = vunpack.c.h.b16 %v1554
  %v1592 = vunpack.c.l.b16 %v1555
  %v1593 = vunpack.c.h.b16 %v1555
  %v1594 = vunpack.c.l.b16 %v1556
  %v1595 = vunpack.c.h.b16 %v1556
  %v1596 = vunpack.c.l.b16 %v1557
  %v1597 = vunpack.c.h.b16 %v1557
  %v1598 = vunpack.c.l.b16 %v1558
  %v1599 = vunpack.c.h.b16 %v1558
  %v1600 = vunpack.c.l.b16 %v1559
  %v1601 = vunpack.c.h.b16 %v1559
  %v1602 = vunpack.c.l.b16 %v1560
  %v1603 = vunpack.c.h.b16 %v1560
  %v1604 = vunpack.c.l.b16 %v1561
  %v1605 = vunpack.c.h.b16 %v1561
  %v1606 = vunpack.c.l.b16 %v1562
  %v1607 = vunpack.c.h.b16 %v1562
  %v1608 = vunpack.c.l.b16 %v1563
  %v1609 = vunpack.c.h.b16 %v1563
  %v1610 = vunpack.c.l.b16 %v1564
  %v1611 = vunpack.c.h.b16 %v1564
  %v1612 = vunpack.c.l.b16 %v1565
  %v1613 = vunpack.c.h.b16 %v1565
  %v1614 = vunpack.c.l.b16 %v1566
  %v1615 = vunpack.c.h.b16 %v1566
  %v1616 = vunpack.c.l.b16 %v1567
  %v1617 = vunpack.c.h.b16 %v1567
  %v1618 = vunpack.c.l.b16 %v1568
  %v1619 = vunpack.c.h.b16 %v1568
  %v1620 = vunpack.c.l.b16 %v1569
  %v1621 = vunpack.c.h.b16 %v1569
  %v1622 = vunpack.c.l.b16 %v1570
  %v1623 = vunpack.c.h.b16 %v1570
  %v1624 = vunpack.c.l.b16 %v1571
  %v1625 = vunpack.c.h.b16 %v1571
  %v1626 = vpack.c.b16 %v1590, %v1590
  %v1627 = vpack.c.b16 %v1591, %v1591
  %v1628 = vpack.c.b16 %v1592, %v1592
  %v1629 = vpack.c.b16 %v1593, %v1593
  %v1630 = vpack.c.b16 %v1594, %v1594
  %v1631 = vpack.c.b16 %v1595, %v1595
  %v1632 = vpack.c.b16 %v1596, %v1596
  %v1633 = vpack.c.b16 %v1597, %v1597
  %v1634 = vpack.c.b16 %v1598, %v1598
  %v1635 = vpack.c.b16 %v1599, %v1599
  %v1636 = vpack.c.b16 %v1600, %v1600
  %v1637 = vpack.c.b16 %v1601, %v1601
  %v1638 = vpack.c.b16 %v1602, %v1602
  %v1639 = vpack.c.b16 %v1603, %v1603
  %v1640 = vpack.c.b16 %v1604, %v1604
  %v1641 = vpack.c.b16 %v1605, %v1605
  %v1642 = vpack.c.b16 %v1606, %v1606
  %v1643 = vpack.c.b16 %v1607, %v1607
  %v1644 = vpack.c.b16 %v1608, %v1608
  %v1645 = vpack.c.b16 %v1609, %v1609
  %v1646 = vpack.c.b16 %v1610, %v1610
  %v1647 = vpack.c.b16 %v1611, %v1611
  %v1648 = vpack.c.b16 %v1612, %v1612
  %v1649 = vpack.c.b16 %v1613, %v1613
  %v1650 = vpack.c.b16 %v1614, %v1614
  %v1651 = vpack.c.b16 %v1615, %v1615
  %v1652 = vpack.c.b16 %v1616, %v1616
  %v1653 = vpack.c.b16 %v1617, %v1617
  %v1654 = vpack.c.b16 %v1618, %v1618
  %v1655 = vpack.c.b16 %v1619, %v1619
  %v1656 = vpack.c.b16 %v1620, %v1620
  %v1657 = vpack.c.b16 %v1621, %v1621
  %v1658 = vpack.c.b16 %v1622, %v1622
  %v1659 = vpack.c.b16 %v1623, %v1623
  %v1660 = vpack.c.b16 %v1624, %v1624
  %v1661 = vpack.c.b16 %v1625, %v1625
  %vm1698 = vcmask 519168
  %1699 = vst.msk [vmem:[%s3] sm:$0xf] %vm1698, %v1626
  %1700 = vst.msk [vmem:[%s3 + $0x4] sm:$0xf] %vm1698, %v1627
  %1701 = vst.msk [vmem:[%s3 + $0x8] sm:$0xf] %vm1698, %v1628
  %1702 = vst.msk [vmem:[%s3 + $0xc] sm:$0xf] %vm1698, %v1629
  %1703 = vst.msk [vmem:[%s3 + $0x10] sm:$0xf] %vm1698, %v1630
  %1704 = vst.msk [vmem:[%s3 + $0x14] sm:$0xf] %vm1698, %v1631
  %1705 = vst.msk [vmem:[%s3 + $0x18] sm:$0xf] %vm1698, %v1632
  %1706 = vst.msk [vmem:[%s3 + $0x1c] sm:$0xf] %vm1698, %v1633
  %1707 = vst.msk [vmem:[%s3 + $0x20] sm:$0xf] %vm1698, %v1634
  %1708 = vst.msk [vmem:[%s3 + $0x24] sm:$0xf] %vm1698, %v1635
  %1709 = vst.msk [vmem:[%s3 + $0x28] sm:$0xf] %vm1698, %v1636
  %1710 = vst.msk [vmem:[%s3 + $0x2c] sm:$0xf] %vm1698, %v1637
  %1711 = vst.msk [vmem:[%s3 + $0x30] sm:$0xf] %vm1698, %v1638
  %1712 = vst.msk [vmem:[%s3 + $0x34] sm:$0xf] %vm1698, %v1639
  %1713 = vst.msk [vmem:[%s3 + $0x38] sm:$0xf] %vm1698, %v1640
  %1714 = vst.msk [vmem:[%s3 + $0x3c] sm:$0xf] %vm1698, %v1641
  %1715 = vst.msk [vmem:[%s3 + $0x40] sm:$0xf] %vm1698, %v1642
  %1716 = vst.msk [vmem:[%s3 + $0x44] sm:$0xf] %vm1698, %v1643
  %1717 = vst.msk [vmem:[%s3 + $0x48] sm:$0xf] %vm1698, %v1644
  %1718 = vst.msk [vmem:[%s3 + $0x4c] sm:$0xf] %vm1698, %v1645
  %1719 = vst.msk [vmem:[%s3 + $0x50] sm:$0xf] %vm1698, %v1646
  %1720 = vst.msk [vmem:[%s3 + $0x54] sm:$0xf] %vm1698, %v1647
  %1721 = vst.msk [vmem:[%s3 + $0x58] sm:$0xf] %vm1698, %v1648
  %1722 = vst.msk [vmem:[%s3 + $0x5c] sm:$0xf] %vm1698, %v1649
  %1723 = vst.msk [vmem:[%s3 + $0x60] sm:$0xf] %vm1698, %v1650
  %1724 = vst.msk [vmem:[%s3 + $0x64] sm:$0xf] %vm1698, %v1651
  %1725 = vst.msk [vmem:[%s3 + $0x68] sm:$0xf] %vm1698, %v1652
  %1726 = vst.msk [vmem:[%s3 + $0x6c] sm:$0xf] %vm1698, %v1653
  %1727 = vst.msk [vmem:[%s3 + $0x70] sm:$0xf] %vm1698, %v1654
  %1728 = vst.msk [vmem:[%s3 + $0x74] sm:$0xf] %vm1698, %v1655
  %1729 = vst.msk [vmem:[%s3 + $0x78] sm:$0xf] %vm1698, %v1656
  %1730 = vst.msk [vmem:[%s3 + $0x7c] sm:$0xf] %vm1698, %v1657
  %1731 = vst.msk [vmem:[%s3 + $0x80] sm:$0xf] %vm1698, %v1658
  %1732 = vst.msk [vmem:[%s3 + $0x84] sm:$0xf] %vm1698, %v1659
  %1733 = vst.msk [vmem:[%s3 + $0x88] sm:$0xf] %vm1698, %v1660
  %1734 = vst.msk [vmem:[%s3 + $0x8c] sm:$0xf] %vm1698, %v1661
  // Predicated region
  $region14: #{lenet_forward.3} parent=0 // pred_check
    _
  $region15: #{lenet_forward.3} parent=0 // pred_check_branch
    %1736 = sbr.rel (0) target = $region17
  $region16: #{lenet_forward.3} parent=0 // pred_region
    _
  $region17: #{lenet_forward.3} parent=0 // pred_fallthru
    _
  // Predicated region
  $region18: #{lenet_forward.3} parent=0 // pred_check
    _
  $region19: #{lenet_forward.3} parent=0 // pred_check_branch
    %1738 = sbr.rel (0) target = $region21
  $region20: #{lenet_forward.3} parent=0 // pred_region
    _
  $region21: #{lenet_forward.3} parent=0 // pred_fallthru
    _

// kernel: lenet_forward.4
$region0: #{lenet_forward.4}
  #allocation0 [shape = 'u32[]', space=smem, size = 0x4, offset = 0x4, fixed_abs, tag = 'smem constant byte address 0x4 - core index']
  #allocation1 [shape = 'u32[144,128]{1,0:T(1,128)}', space=vmem, size = 0x12000, scoped, tag = 'internal scratch']
  %s0 = inlined_call_operand.vmem [shape: bf16[2,576,64], index: 0, kind: input, shape index: {}]
  %s1 = inlined_call_operand.vmem [shape: bf16[1600,64], index: 1, kind: input, shape index: {}]
  %s2 = inlined_call_operand.vmem [shape: f32[1,64], index: 2, kind: input, shape index: {}]
  %s3 = inlined_call_operand.vmem [shape: bf16[2,16,64], index: 3, kind: output, shape index: {}]
  %s4 = sld [smem:[#allocation0]]
  $region22: #{lenet_forward.4} parent=0
    _
  %s6 = ssub.s32 1, %s4
  %s7 = scalar_select 0, %s6, %s4
  // Predicated region
  $region2: #{lenet_forward.4} parent=0 // pred_check
    _
  $region3: #{lenet_forward.4} parent=0 // pred_check_branch
    %9 = sbr.rel (0) target = $region5
  $region4: #{lenet_forward.4} parent=0 // pred_region
    _
  $region5: #{lenet_forward.4} parent=0 // pred_fallthru
    _
  // Predicated region
  $region6: #{lenet_forward.4} parent=0 // pred_check
    _
  $region7: #{lenet_forward.4} parent=0 // pred_check_branch
    %11 = sbr.rel (0) target = $region9
  $region8: #{lenet_forward.4} parent=0 // pred_region
    _
  $region9: #{lenet_forward.4} parent=0 // pred_fallthru
    _
  // Predicated region
  $region10: #{lenet_forward.4} parent=0 // pred_check
    _
  $region11: #{lenet_forward.4} parent=0 // pred_check_branch
    %13 = sbr.rel (0) target = $region13
  $region12: #{lenet_forward.4} parent=0 // pred_region
    _
  $region13: #{lenet_forward.4} parent=0 // pred_fallthru
    _
  %v15 = vld [vmem:[%s0] sm:$0xf]
  %v16 = vld [vmem:[%s0 + $0x4] sm:$0xf]
  %v17 = vld [vmem:[%s0 + $0x8] sm:$0xf]
  %v18 = vld [vmem:[%s0 + $0xc] sm:$0xf]
  %v19 = vld [vmem:[%s0 + $0x120] sm:$0xf]
  %v20 = vld [vmem:[%s0 + $0x124] sm:$0xf]
  %v21 = vld [vmem:[%s0 + $0x128] sm:$0xf]
  %v22 = vld [vmem:[%s0 + $0x12c] sm:$0xf]
  %v23 = vld [vmem:[%s0 + $0x30] sm:$0xf]
  %v24 = vld [vmem:[%s0 + $0x34] sm:$0xf]
  %v25 = vld [vmem:[%s0 + $0x38] sm:$0xf]
  %v26 = vld [vmem:[%s0 + $0x3c] sm:$0xf]
  %v27 = vld [vmem:[%s0 + $0x150] sm:$0xf]
  %v28 = vld [vmem:[%s0 + $0x154] sm:$0xf]
  %v29 = vld [vmem:[%s0 + $0x158] sm:$0xf]
  %v30 = vld [vmem:[%s0 + $0x15c] sm:$0xf]
  %v31 = vld [vmem:[%s0 + $0x10] sm:$0xf]
  %v32 = vld [vmem:[%s0 + $0x14] sm:$0xf]
  %v33 = vld [vmem:[%s0 + $0x130] sm:$0xf]
  %v34 = vld [vmem:[%s0 + $0x134] sm:$0xf]
  %v35 = vld [vmem:[%s0 + $0x40] sm:$0xf]
  %v36 = vld [vmem:[%s0 + $0x44] sm:$0xf]
  %v37 = vld [vmem:[%s0 + $0x160] sm:$0xf]
  %v38 = vld [vmem:[%s0 + $0x164] sm:$0xf]
  %v39 = vld [vmem:[%s0 + $0x18] sm:$0xf]
  %v40 = vld [vmem:[%s0 + $0x1c] sm:$0xf]
  %v41 = vld [vmem:[%s0 + $0x138] sm:$0xf]
  %v42 = vld [vmem:[%s0 + $0x13c] sm:$0xf]
  %v43 = vld [vmem:[%s0 + $0x48] sm:$0xf]
  %v44 = vld [vmem:[%s0 + $0x4c] sm:$0xf]
  %v45 = vld [vmem:[%s0 + $0x168] sm:$0xf]
  %v46 = vld [vmem:[%s0 + $0x16c] sm:$0xf]
  %v47 = vld [vmem:[%s0 + $0x20] sm:$0xf]
  %v48 = vld [vmem:[%s0 + $0x24] sm:$0xf]
  %v49 = vld [vmem:[%s0 + $0x140] sm:$0xf]
  %v50 = vld [vmem:[%s0 + $0x144] sm:$0xf]
  %v51 = vld [vmem:[%s0 + $0x50] sm:$0xf]
  %v52 = vld [vmem:[%s0 + $0x54] sm:$0xf]
  %v53 = vld [vmem:[%s0 + $0x170] sm:$0xf]
  %v54 = vld [vmem:[%s0 + $0x174] sm:$0xf]
  %v55 = vld [vmem:[%s0 + $0x28] sm:$0xf]
  %v56 = vld [vmem:[%s0 + $0x2c] sm:$0xf]
  %v57 = vld [vmem:[%s0 + $0x148] sm:$0xf]
  %v58 = vld [vmem:[%s0 + $0x14c] sm:$0xf]
  %v59 = vld [vmem:[%s0 + $0x58] sm:$0xf]
  %v60 = vld [vmem:[%s0 + $0x5c] sm:$0xf]
  %v61 = vld [vmem:[%s0 + $0x178] sm:$0xf]
  %v62 = vld [vmem:[%s0 + $0x17c] sm:$0xf]
  %v63 = vld [vmem:[%s0 + $0x60] sm:$0xf]
  %v64 = vld [vmem:[%s0 + $0x64] sm:$0xf]
  %v65 = vld [vmem:[%s0 + $0x68] sm:$0xf]
  %v66 = vld [vmem:[%s0 + $0x6c] sm:$0xf]
  %v67 = vld [vmem:[%s0 + $0x180] sm:$0xf]
  %v68 = vld [vmem:[%s0 + $0x184] sm:$0xf]
  %v69 = vld [vmem:[%s0 + $0x188] sm:$0xf]
  %v70 = vld [vmem:[%s0 + $0x18c] sm:$0xf]
  %v71 = vld [vmem:[%s0 + $0x70] sm:$0xf]
  %v72 = vld [vmem:[%s0 + $0x74] sm:$0xf]
  %v73 = vld [vmem:[%s0 + $0x190] sm:$0xf]
  %v74 = vld [vmem:[%s0 + $0x194] sm:$0xf]
  %v75 = vld [vmem:[%s0 + $0x78] sm:$0xf]
  %v76 = vld [vmem:[%s0 + $0x7c] sm:$0xf]
  %v77 = vld [vmem:[%s0 + $0x198] sm:$0xf]
  %v78 = vld [vmem:[%s0 + $0x19c] sm:$0xf]
  %v79 = vld [vmem:[%s0 + $0x80] sm:$0xf]
  %v80 = vld [vmem:[%s0 + $0x84] sm:$0xf]
  %v81 = vld [vmem:[%s0 + $0x1a0] sm:$0xf]
  %v82 = vld [vmem:[%s0 + $0x1a4] sm:$0xf]
  %v83 = vld [vmem:[%s0 + $0x88] sm:$0xf]
  %v84 = vld [vmem:[%s0 + $0x8c] sm:$0xf]
  %v85 = vld [vmem:[%s0 + $0x1a8] sm:$0xf]
  %v86 = vld [vmem:[%s0 + $0x1ac] sm:$0xf]
  %v87 = vld [vmem:[%s0 + $0x90] sm:$0xf]
  %v88 = vld [vmem:[%s0 + $0x94] sm:$0xf]
  %v89 = vld [vmem:[%s0 + $0x98] sm:$0xf]
  %v90 = vld [vmem:[%s0 + $0x9c] sm:$0xf]
  %v91 = vld [vmem:[%s0 + $0x1b0] sm:$0xf]
  %v92 = vld [vmem:[%s0 + $0x1b4] sm:$0xf]
  %v93 = vld [vmem:[%s0 + $0x1b8] sm:$0xf]
  %v94 = vld [vmem:[%s0 + $0x1bc] sm:$0xf]
  %v95 = vld [vmem:[%s0 + $0xa0] sm:$0xf]
  %v96 = vld [vmem:[%s0 + $0xa4] sm:$0xf]
  %v97 = vld [vmem:[%s0 + $0x1c0] sm:$0xf]
  %v98 = vld [vmem:[%s0 + $0x1c4] sm:$0xf]
  %v99 = vld [vmem:[%s0 + $0xa8] sm:$0xf]
  %v100 = vld [vmem:[%s0 + $0xac] sm:$0xf]
  %v101 = vld [vmem:[%s0 + $0x1c8] sm:$0xf]
  %v102 = vld [vmem:[%s0 + $0x1cc] sm:$0xf]
  %v103 = vld [vmem:[%s0 + $0xb0] sm:$0xf]
  %v104 = vld [vmem:[%s0 + $0xb4] sm:$0xf]
  %v105 = vld [vmem:[%s0 + $0x1d0] sm:$0xf]
  %v106 = vld [vmem:[%s0 + $0x1d4] sm:$0xf]
  %v107 = vld [vmem:[%s0 + $0xb8] sm:$0xf]
  %v108 = vld [vmem:[%s0 + $0xbc] sm:$0xf]
  %v109 = vld [vmem:[%s0 + $0x1d8] sm:$0xf]
  %v110 = vld [vmem:[%s0 + $0x1dc] sm:$0xf]
  %v111 = vld [vmem:[%s0 + $0xc0] sm:$0xf]
  %v112 = vld [vmem:[%s0 + $0xc4] sm:$0xf]
  %v113 = vld [vmem:[%s0 + $0xc8] sm:$0xf]
  %v114 = vld [vmem:[%s0 + $0xcc] sm:$0xf]
  %v115 = vld [vmem:[%s0 + $0x1e0] sm:$0xf]
  %v116 = vld [vmem:[%s0 + $0x1e4] sm:$0xf]
  %v117 = vld [vmem:[%s0 + $0x1e8] sm:$0xf]
  %v118 = vld [vmem:[%s0 + $0x1ec] sm:$0xf]
  %v119 = vld [vmem:[%s0 + $0xd0] sm:$0xf]
  %v120 = vld [vmem:[%s0 + $0xd4] sm:$0xf]
  %v121 = vld [vmem:[%s0 + $0x1f0] sm:$0xf]
  %v122 = vld [vmem:[%s0 + $0x1f4] sm:$0xf]
  %v123 = vld [vmem:[%s0 + $0xd8] sm:$0xf]
  %v124 = vld [vmem:[%s0 + $0xdc] sm:$0xf]
  %v125 = vld [vmem:[%s0 + $0x1f8] sm:$0xf]
  %v126 = vld [vmem:[%s0 + $0x1fc] sm:$0xf]
  %v127 = vld [vmem:[%s0 + $0xe0] sm:$0xf]
  %v128 = vld [vmem:[%s0 + $0xe4] sm:$0xf]
  %v129 = vld [vmem:[%s0 + $0x200] sm:$0xf]
  %v130 = vld [vmem:[%s0 + $0x204] sm:$0xf]
  %v131 = vld [vmem:[%s0 + $0xe8] sm:$0xf]
  %v132 = vld [vmem:[%s0 + $0xec] sm:$0xf]
  %v133 = vld [vmem:[%s0 + $0x208] sm:$0xf]
  %v134 = vld [vmem:[%s0 + $0x20c] sm:$0xf]
  %v135 = vld [vmem:[%s0 + $0xf0] sm:$0xf]
  %v136 = vld [vmem:[%s0 + $0xf4] sm:$0xf]
  %v137 = vld [vmem:[%s0 + $0xf8] sm:$0xf]
  %v138 = vld [vmem:[%s0 + $0xfc] sm:$0xf]
  %v139 = vld [vmem:[%s0 + $0x210] sm:$0xf]
  %v140 = vld [vmem:[%s0 + $0x214] sm:$0xf]
  %v141 = vld [vmem:[%s0 + $0x218] sm:$0xf]
  %v142 = vld [vmem:[%s0 + $0x21c] sm:$0xf]
  %v143 = vld [vmem:[%s0 + $0x100] sm:$0xf]
  %v144 = vld [vmem:[%s0 + $0x104] sm:$0xf]
  %v145 = vld [vmem:[%s0 + $0x220] sm:$0xf]
  %v146 = vld [vmem:[%s0 + $0x224] sm:$0xf]
  %v147 = vld [vmem:[%s0 + $0x108] sm:$0xf]
  %v148 = vld [vmem:[%s0 + $0x10c] sm:$0xf]
  %v149 = vld [vmem:[%s0 + $0x228] sm:$0xf]
  %v150 = vld [vmem:[%s0 + $0x22c] sm:$0xf]
  %v151 = vld [vmem:[%s0 + $0x110] sm:$0xf]
  %v152 = vld [vmem:[%s0 + $0x114] sm:$0xf]
  %v153 = vld [vmem:[%s0 + $0x230] sm:$0xf]
  %v154 = vld [vmem:[%s0 + $0x234] sm:$0xf]
  %v155 = vld [vmem:[%s0 + $0x118] sm:$0xf]
  %v156 = vld [vmem:[%s0 + $0x11c] sm:$0xf]
  %v157 = vld [vmem:[%s0 + $0x238] sm:$0xf]
  %v158 = vld [vmem:[%s0 + $0x23c] sm:$0xf]
  %v159 = vld [vmem:[%s1] sm:$0xf]
  %v160 = vld [vmem:[%s1 + $0x4] sm:$0xf]
  %v161 = vld [vmem:[%s1 + $0x8] sm:$0xf]
  %v162 = vld [vmem:[%s1 + $0xc] sm:$0xf]
  %v163 = vld [vmem:[%s1 + $0x10] sm:$0xf]
  %v164 = vld [vmem:[%s1 + $0x14] sm:$0xf]
  %v165 = vld [vmem:[%s1 + $0x18] sm:$0xf]
  %v166 = vld [vmem:[%s1 + $0x1c] sm:$0xf]
  %v167 = vld [vmem:[%s1 + $0x20] sm:$0xf]
  %v168 = vld [vmem:[%s1 + $0x24] sm:$0xf]
  %v169 = vld [vmem:[%s1 + $0x28] sm:$0xf]
  %v170 = vld [vmem:[%s1 + $0x2c] sm:$0xf]
  %v171 = vld [vmem:[%s1 + $0x30] sm:$0xf]
  %v172 = vld [vmem:[%s1 + $0x34] sm:$0xf]
  %v173 = vld [vmem:[%s1 + $0x38] sm:$0xf]
  %v174 = vld [vmem:[%s1 + $0x3c] sm:$0xf]
  %v175 = vld [vmem:[%s1 + $0x40] sm:$0xf]
  %v176 = vld [vmem:[%s1 + $0x44] sm:$0xf]
  %v177 = vld [vmem:[%s1 + $0x48] sm:$0xf]
  %v178 = vld [vmem:[%s1 + $0x4c] sm:$0xf]
  %v179 = vld [vmem:[%s1 + $0x50] sm:$0xf]
  %v180 = vld [vmem:[%s1 + $0x54] sm:$0xf]
  %v181 = vld [vmem:[%s1 + $0x58] sm:$0xf]
  %v182 = vld [vmem:[%s1 + $0x5c] sm:$0xf]
  %v183 = vld [vmem:[%s1 + $0x60] sm:$0xf]
  %v184 = vld [vmem:[%s1 + $0x64] sm:$0xf]
  %v185 = vld [vmem:[%s1 + $0x68] sm:$0xf]
  %v186 = vld [vmem:[%s1 + $0x6c] sm:$0xf]
  %v187 = vld [vmem:[%s1 + $0x70] sm:$0xf]
  %v188 = vld [vmem:[%s1 + $0x74] sm:$0xf]
  %v189 = vld [vmem:[%s1 + $0x78] sm:$0xf]
  %v190 = vld [vmem:[%s1 + $0x7c] sm:$0xf]
  %v191 = vld [vmem:[%s1 + $0x80] sm:$0xf]
  %v192 = vld [vmem:[%s1 + $0x84] sm:$0xf]
  %v193 = vld [vmem:[%s1 + $0x88] sm:$0xf]
  %v194 = vld [vmem:[%s1 + $0x8c] sm:$0xf]
  %v195 = vld [vmem:[%s1 + $0x90] sm:$0xf]
  %v196 = vld [vmem:[%s1 + $0x94] sm:$0xf]
  %v197 = vld [vmem:[%s1 + $0x98] sm:$0xf]
  %v198 = vld [vmem:[%s1 + $0x9c] sm:$0xf]
  %v199 = vld [vmem:[%s1 + $0xa0] sm:$0xf]
  %v200 = vld [vmem:[%s1 + $0xa4] sm:$0xf]
  %v201 = vld [vmem:[%s1 + $0xa8] sm:$0xf]
  %v202 = vld [vmem:[%s1 + $0xac] sm:$0xf]
  %v203 = vld [vmem:[%s1 + $0xb0] sm:$0xf]
  %v204 = vld [vmem:[%s1 + $0xb4] sm:$0xf]
  %v205 = vld [vmem:[%s1 + $0xb8] sm:$0xf]
  %v206 = vld [vmem:[%s1 + $0xbc] sm:$0xf]
  %v207 = vld [vmem:[%s1 + $0xc0] sm:$0xf]
  %v208 = vld [vmem:[%s1 + $0xc4] sm:$0xf]
  %v209 = vld [vmem:[%s1 + $0xc8] sm:$0xf]
  %v210 = vld [vmem:[%s1 + $0xcc] sm:$0xf]
  %v211 = vld [vmem:[%s1 + $0xd0] sm:$0xf]
  %v212 = vld [vmem:[%s1 + $0xd4] sm:$0xf]
  %v213 = vld [vmem:[%s1 + $0xd8] sm:$0xf]
  %v214 = vld [vmem:[%s1 + $0xdc] sm:$0xf]
  %v215 = vld [vmem:[%s1 + $0xe0] sm:$0xf]
  %v216 = vld [vmem:[%s1 + $0xe4] sm:$0xf]
  %v217 = vld [vmem:[%s1 + $0xe8] sm:$0xf]
  %v218 = vld [vmem:[%s1 + $0xec] sm:$0xf]
  %v219 = vld [vmem:[%s1 + $0xf0] sm:$0xf]
  %v220 = vld [vmem:[%s1 + $0xf4] sm:$0xf]
  %v221 = vld [vmem:[%s1 + $0xf8] sm:$0xf]
  %v222 = vld [vmem:[%s1 + $0xfc] sm:$0xf]
  %v223 = vld [vmem:[%s1 + $0x100] sm:$0xf]
  %v224 = vld [vmem:[%s1 + $0x104] sm:$0xf]
  %v225 = vld [vmem:[%s1 + $0x108] sm:$0xf]
  %v226 = vld [vmem:[%s1 + $0x10c] sm:$0xf]
  %v227 = vld [vmem:[%s1 + $0x110] sm:$0xf]
  %v228 = vld [vmem:[%s1 + $0x114] sm:$0xf]
  %v229 = vld [vmem:[%s1 + $0x118] sm:$0xf]
  %v230 = vld [vmem:[%s1 + $0x11c] sm:$0xf]
  %v231 = vld [vmem:[%s1 + $0x120] sm:$0xf]
  %v232 = vld [vmem:[%s1 + $0x124] sm:$0xf]
  %v233 = vld [vmem:[%s1 + $0x128] sm:$0xf]
  %v234 = vld [vmem:[%s1 + $0x12c] sm:$0xf]
  %v235 = vld [vmem:[%s1 + $0x130] sm:$0xf]
  %v236 = vld [vmem:[%s1 + $0x134] sm:$0xf]
  %v237 = vld [vmem:[%s1 + $0x138] sm:$0xf]
  %v238 = vld [vmem:[%s1 + $0x13c] sm:$0xf]
  %v239 = vld [vmem:[%s1 + $0x140] sm:$0xf]
  %v240 = vld [vmem:[%s1 + $0x144] sm:$0xf]
  %v241 = vld [vmem:[%s1 + $0x148] sm:$0xf]
  %v242 = vld [vmem:[%s1 + $0x14c] sm:$0xf]
  %v243 = vld [vmem:[%s1 + $0x150] sm:$0xf]
  %v244 = vld [vmem:[%s1 + $0x154] sm:$0xf]
  %v245 = vld [vmem:[%s1 + $0x158] sm:$0xf]
  %v246 = vld [vmem:[%s1 + $0x15c] sm:$0xf]
  %v247 = vld [vmem:[%s1 + $0x160] sm:$0xf]
  %v248 = vld [vmem:[%s1 + $0x164] sm:$0xf]
  %v249 = vld [vmem:[%s1 + $0x168] sm:$0xf]
  %v250 = vld [vmem:[%s1 + $0x16c] sm:$0xf]
  %v251 = vld [vmem:[%s1 + $0x170] sm:$0xf]
  %v252 = vld [vmem:[%s1 + $0x174] sm:$0xf]
  %v253 = vld [vmem:[%s1 + $0x178] sm:$0xf]
  %v254 = vld [vmem:[%s1 + $0x17c] sm:$0xf]
  %v255 = vld [vmem:[%s1 + $0x180] sm:$0xf]
  %v256 = vld [vmem:[%s1 + $0x184] sm:$0xf]
  %v257 = vld [vmem:[%s1 + $0x188] sm:$0xf]
  %v258 = vld [vmem:[%s1 + $0x18c] sm:$0xf]
  %v259 = vld [vmem:[%s1 + $0x190] sm:$0xf]
  %v260 = vld [vmem:[%s1 + $0x194] sm:$0xf]
  %v261 = vld [vmem:[%s1 + $0x198] sm:$0xf]
  %v262 = vld [vmem:[%s1 + $0x19c] sm:$0xf]
  %v263 = vld [vmem:[%s1 + $0x1a0] sm:$0xf]
  %v264 = vld [vmem:[%s1 + $0x1a4] sm:$0xf]
  %v265 = vld [vmem:[%s1 + $0x1a8] sm:$0xf]
  %v266 = vld [vmem:[%s1 + $0x1ac] sm:$0xf]
  %v267 = vld [vmem:[%s1 + $0x1b0] sm:$0xf]
  %v268 = vld [vmem:[%s1 + $0x1b4] sm:$0xf]
  %v269 = vld [vmem:[%s1 + $0x1b8] sm:$0xf]
  %v270 = vld [vmem:[%s1 + $0x1bc] sm:$0xf]
  %v271 = vld [vmem:[%s1 + $0x1c0] sm:$0xf]
  %v272 = vld [vmem:[%s1 + $0x1c4] sm:$0xf]
  %v273 = vld [vmem:[%s1 + $0x1c8] sm:$0xf]
  %v274 = vld [vmem:[%s1 + $0x1cc] sm:$0xf]
  %v275 = vld [vmem:[%s1 + $0x1d0] sm:$0xf]
  %v276 = vld [vmem:[%s1 + $0x1d4] sm:$0xf]
  %v277 = vld [vmem:[%s1 + $0x1d8] sm:$0xf]
  %v278 = vld [vmem:[%s1 + $0x1dc] sm:$0xf]
  %v279 = vld [vmem:[%s1 + $0x1e0] sm:$0xf]
  %v280 = vld [vmem:[%s1 + $0x1e4] sm:$0xf]
  %v281 = vld [vmem:[%s1 + $0x1e8] sm:$0xf]
  %v282 = vld [vmem:[%s1 + $0x1ec] sm:$0xf]
  %v283 = vld [vmem:[%s1 + $0x1f0] sm:$0xf]
  %v284 = vld [vmem:[%s1 + $0x1f4] sm:$0xf]
  %v285 = vld [vmem:[%s1 + $0x1f8] sm:$0xf]
  %v286 = vld [vmem:[%s1 + $0x1fc] sm:$0xf]
  %v287 = vld [vmem:[%s1 + $0x200] sm:$0xf]
  %v288 = vld [vmem:[%s1 + $0x204] sm:$0xf]
  %v289 = vld [vmem:[%s1 + $0x208] sm:$0xf]
  %v290 = vld [vmem:[%s1 + $0x20c] sm:$0xf]
  %v291 = vld [vmem:[%s1 + $0x210] sm:$0xf]
  %v292 = vld [vmem:[%s1 + $0x214] sm:$0xf]
  %v293 = vld [vmem:[%s1 + $0x218] sm:$0xf]
  %v294 = vld [vmem:[%s1 + $0x21c] sm:$0xf]
  %v295 = vld [vmem:[%s1 + $0x220] sm:$0xf]
  %v296 = vld [vmem:[%s1 + $0x224] sm:$0xf]
  %v297 = vld [vmem:[%s1 + $0x228] sm:$0xf]
  %v298 = vld [vmem:[%s1 + $0x22c] sm:$0xf]
  %v299 = vld [vmem:[%s1 + $0x230] sm:$0xf]
  %v300 = vld [vmem:[%s1 + $0x234] sm:$0xf]
  %v301 = vld [vmem:[%s1 + $0x238] sm:$0xf]
  %v302 = vld [vmem:[%s1 + $0x23c] sm:$0xf]
  %v303 = vld [vmem:[%s1 + $0x240] sm:$0xf]
  %v304 = vld [vmem:[%s1 + $0x244] sm:$0xf]
  %v305 = vld [vmem:[%s1 + $0x248] sm:$0xf]
  %v306 = vld [vmem:[%s1 + $0x24c] sm:$0xf]
  %v307 = vld [vmem:[%s1 + $0x250] sm:$0xf]
  %v308 = vld [vmem:[%s1 + $0x254] sm:$0xf]
  %v309 = vld [vmem:[%s1 + $0x258] sm:$0xf]
  %v310 = vld [vmem:[%s1 + $0x25c] sm:$0xf]
  %v311 = vld [vmem:[%s1 + $0x260] sm:$0xf]
  %v312 = vld [vmem:[%s1 + $0x264] sm:$0xf]
  %v313 = vld [vmem:[%s1 + $0x268] sm:$0xf]
  %v314 = vld [vmem:[%s1 + $0x26c] sm:$0xf]
  %v315 = vld [vmem:[%s1 + $0x270] sm:$0xf]
  %v316 = vld [vmem:[%s1 + $0x274] sm:$0xf]
  %v317 = vld [vmem:[%s1 + $0x278] sm:$0xf]
  %v318 = vld [vmem:[%s1 + $0x27c] sm:$0xf]
  %v319 = vld [vmem:[%s1 + $0x280] sm:$0xf]
  %v320 = vld [vmem:[%s1 + $0x284] sm:$0xf]
  %v321 = vld [vmem:[%s1 + $0x288] sm:$0xf]
  %v322 = vld [vmem:[%s1 + $0x28c] sm:$0xf]
  %v323 = vld [vmem:[%s1 + $0x290] sm:$0xf]
  %v324 = vld [vmem:[%s1 + $0x294] sm:$0xf]
  %v325 = vld [vmem:[%s1 + $0x298] sm:$0xf]
  %v326 = vld [vmem:[%s1 + $0x29c] sm:$0xf]
  %v327 = vld [vmem:[%s1 + $0x2a0] sm:$0xf]
  %v328 = vld [vmem:[%s1 + $0x2a4] sm:$0xf]
  %v329 = vld [vmem:[%s1 + $0x2a8] sm:$0xf]
  %v330 = vld [vmem:[%s1 + $0x2ac] sm:$0xf]
  %v331 = vld [vmem:[%s1 + $0x2b0] sm:$0xf]
  %v332 = vld [vmem:[%s1 + $0x2b4] sm:$0xf]
  %v333 = vld [vmem:[%s1 + $0x2b8] sm:$0xf]
  %v334 = vld [vmem:[%s1 + $0x2bc] sm:$0xf]
  %v335 = vld [vmem:[%s1 + $0x2c0] sm:$0xf]
  %v336 = vld [vmem:[%s1 + $0x2c4] sm:$0xf]
  %v337 = vld [vmem:[%s1 + $0x2c8] sm:$0xf]
  %v338 = vld [vmem:[%s1 + $0x2cc] sm:$0xf]
  %v339 = vld [vmem:[%s1 + $0x2d0] sm:$0xf]
  %v340 = vld [vmem:[%s1 + $0x2d4] sm:$0xf]
  %v341 = vld [vmem:[%s1 + $0x2d8] sm:$0xf]
  %v342 = vld [vmem:[%s1 + $0x2dc] sm:$0xf]
  %v343 = vld [vmem:[%s1 + $0x2e0] sm:$0xf]
  %v344 = vld [vmem:[%s1 + $0x2e4] sm:$0xf]
  %v345 = vld [vmem:[%s1 + $0x2e8] sm:$0xf]
  %v346 = vld [vmem:[%s1 + $0x2ec] sm:$0xf]
  %v347 = vld [vmem:[%s1 + $0x2f0] sm:$0xf]
  %v348 = vld [vmem:[%s1 + $0x2f4] sm:$0xf]
  %v349 = vld [vmem:[%s1 + $0x2f8] sm:$0xf]
  %v350 = vld [vmem:[%s1 + $0x2fc] sm:$0xf]
  %v351 = vld [vmem:[%s1 + $0x300] sm:$0xf]
  %v352 = vld [vmem:[%s1 + $0x304] sm:$0xf]
  %v353 = vld [vmem:[%s1 + $0x308] sm:$0xf]
  %v354 = vld [vmem:[%s1 + $0x30c] sm:$0xf]
  %v355 = vld [vmem:[%s1 + $0x310] sm:$0xf]
  %v356 = vld [vmem:[%s1 + $0x314] sm:$0xf]
  %v357 = vld [vmem:[%s1 + $0x318] sm:$0xf]
  %v358 = vld [vmem:[%s1 + $0x31c] sm:$0xf]
  %v367 = vunpack.c.l.b16 %v15
  %v368 = vunpack.c.l.b16 %v16
  %v369 = vunpack.c.l.b16 %v17
  %v370 = vunpack.c.l.b16 %v18
  %v371 = vunpack.c.l.b16 %v19
  %v372 = vunpack.c.l.b16 %v20
  %v373 = vunpack.c.l.b16 %v21
  %v374 = vunpack.c.l.b16 %v22
  %v375 = vpack.c.b16 %v368, %v367
  %v376 = vpack.c.b16 %v370, %v369
  %v377 = vpack.c.b16 %v372, %v371
  %v378 = vpack.c.b16 %v374, %v373
  %v383 = vunpack.c.l.b16 %v31
  %v384 = vunpack.c.l.b16 %v32
  %v385 = vunpack.c.l.b16 %v33
  %v386 = vunpack.c.l.b16 %v34
  %v387 = vpack.c.b16 %v384, %v383
  %v388 = vpack.c.b16 %v386, %v385
  %389 = vrot.lane.b32.xlu0 %v376, 64
  %v390 = vpop.permute.xlu0 %389
  %391 = vrot.lane.b32.xlu0 %v387, 64
  %v392 = vpop.permute.xlu0 %391
  %393 = vrot.lane.b32.xlu0 %v378, 64
  %v394 = vpop.permute.xlu0 %393
  %395 = vrot.lane.b32.xlu0 %v388, 64
  %v396 = vpop.permute.xlu0 %395
  %v401 = vunpack.c.l.b16 %v39
  %v402 = vunpack.c.l.b16 %v40
  %v403 = vunpack.c.l.b16 %v41
  %v404 = vunpack.c.l.b16 %v42
  %v405 = vpack.c.b16 %v402, %v401
  %v406 = vpack.c.b16 %v404, %v403
  %v411 = vunpack.c.l.b16 %v47
  %v412 = vunpack.c.l.b16 %v48
  %v413 = vunpack.c.l.b16 %v49
  %v414 = vunpack.c.l.b16 %v50
  %v415 = vpack.c.b16 %v412, %v411
  %v416 = vpack.c.b16 %v414, %v413
  %417 = vrot.lane.b32.xlu0 %v405, 64
  %v418 = vpop.permute.xlu0 %417
  %419 = vrot.lane.b32.xlu0 %v415, 64
  %v420 = vpop.permute.xlu0 %419
  %421 = vrot.lane.b32.xlu0 %v406, 64
  %v422 = vpop.permute.xlu0 %421
  %423 = vrot.lane.b32.xlu0 %v416, 64
  %v424 = vpop.permute.xlu0 %423
  %v429 = vunpack.c.l.b16 %v55
  %v430 = vunpack.c.l.b16 %v56
  %v431 = vunpack.c.l.b16 %v57
  %v432 = vunpack.c.l.b16 %v58
  %v433 = vpack.c.b16 %v430, %v429
  %v434 = vpack.c.b16 %v432, %v431
  %v443 = vunpack.c.l.b16 %v23
  %v444 = vunpack.c.l.b16 %v24
  %v445 = vunpack.c.l.b16 %v25
  %v446 = vunpack.c.l.b16 %v26
  %v447 = vunpack.c.l.b16 %v27
  %v448 = vunpack.c.l.b16 %v28
  %v449 = vunpack.c.l.b16 %v29
  %v450 = vunpack.c.l.b16 %v30
  %v451 = vpack.c.b16 %v444, %v443
  %v452 = vpack.c.b16 %v446, %v445
  %v453 = vpack.c.b16 %v448, %v447
  %v454 = vpack.c.b16 %v450, %v449
  %455 = vrot.lane.b32.xlu0 %v451, 64
  %v456 = vpop.permute.xlu0 %455
  %457 = vrot.lane.b32.xlu0 %v452, 64
  %v458 = vpop.permute.xlu0 %457
  %459 = vrot.lane.b32.xlu0 %v453, 64
  %v460 = vpop.permute.xlu0 %459
  %461 = vrot.lane.b32.xlu0 %v454, 64
  %v462 = vpop.permute.xlu0 %461
  %v467 = vunpack.c.l.b16 %v35
  %v468 = vunpack.c.l.b16 %v36
  %v469 = vunpack.c.l.b16 %v37
  %v470 = vunpack.c.l.b16 %v38
  %v471 = vpack.c.b16 %v468, %v467
  %v472 = vpack.c.b16 %v470, %v469
  %v477 = vunpack.c.l.b16 %v43
  %v478 = vunpack.c.l.b16 %v44
  %v479 = vunpack.c.l.b16 %v45
  %v480 = vunpack.c.l.b16 %v46
  %v481 = vpack.c.b16 %v478, %v477
  %v482 = vpack.c.b16 %v480, %v479
  %483 = vrot.lane.b32.xlu0 %v471, 64
  %v484 = vpop.permute.xlu0 %483
  %485 = vrot.lane.b32.xlu0 %v481, 64
  %v486 = vpop.permute.xlu0 %485
  %487 = vrot.lane.b32.xlu0 %v472, 64
  %v488 = vpop.permute.xlu0 %487
  %489 = vrot.lane.b32.xlu0 %v482, 64
  %v490 = vpop.permute.xlu0 %489
  %v495 = vunpack.c.l.b16 %v51
  %v496 = vunpack.c.l.b16 %v52
  %v497 = vunpack.c.l.b16 %v53
  %v498 = vunpack.c.l.b16 %v54
  %v499 = vpack.c.b16 %v496, %v495
  %v500 = vpack.c.b16 %v498, %v497
  %v505 = vunpack.c.l.b16 %v59
  %v506 = vunpack.c.l.b16 %v60
  %v507 = vunpack.c.l.b16 %v61
  %v508 = vunpack.c.l.b16 %v62
  %v509 = vpack.c.b16 %v506, %v505
  %v510 = vpack.c.b16 %v508, %v507
  %511 = vrot.lane.b32.xlu0 %v499, 64
  %v512 = vpop.permute.xlu0 %511
  %513 = vrot.lane.b32.xlu0 %v509, 64
  %v514 = vpop.permute.xlu0 %513
  %515 = vrot.lane.b32.xlu0 %v500, 64
  %v516 = vpop.permute.xlu0 %515
  %517 = vrot.lane.b32.xlu0 %v510, 64
  %v518 = vpop.permute.xlu0 %517
  %v527 = vunpack.c.l.b16 %v63
  %v528 = vunpack.c.l.b16 %v64
  %v529 = vunpack.c.l.b16 %v65
  %v530 = vunpack.c.l.b16 %v66
  %v531 = vunpack.c.l.b16 %v67
  %v532 = vunpack.c.l.b16 %v68
  %v533 = vunpack.c.l.b16 %v69
  %v534 = vunpack.c.l.b16 %v70
  %v535 = vpack.c.b16 %v528, %v527
  %v536 = vpack.c.b16 %v530, %v529
  %v537 = vpack.c.b16 %v532, %v531
  %v538 = vpack.c.b16 %v534, %v533
  %v543 = vunpack.c.l.b16 %v71
  %v544 = vunpack.c.l.b16 %v72
  %v545 = vunpack.c.l.b16 %v73
  %v546 = vunpack.c.l.b16 %v74
  %v547 = vpack.c.b16 %v544, %v543
  %v548 = vpack.c.b16 %v546, %v545
  %549 = vrot.lane.b32.xlu0 %v536, 64
  %v550 = vpop.permute.xlu0 %549
  %551 = vrot.lane.b32.xlu0 %v547, 64
  %v552 = vpop.permute.xlu0 %551
  %553 = vrot.lane.b32.xlu0 %v538, 64
  %v554 = vpop.permute.xlu0 %553
  %555 = vrot.lane.b32.xlu0 %v548, 64
  %v556 = vpop.permute.xlu0 %555
  %v561 = vunpack.c.l.b16 %v75
  %v562 = vunpack.c.l.b16 %v76
  %v563 = vunpack.c.l.b16 %v77
  %v564 = vunpack.c.l.b16 %v78
  %v565 = vpack.c.b16 %v562, %v561
  %v566 = vpack.c.b16 %v564, %v563
  %v571 = vunpack.c.l.b16 %v79
  %v572 = vunpack.c.l.b16 %v80
  %v573 = vunpack.c.l.b16 %v81
  %v574 = vunpack.c.l.b16 %v82
  %v575 = vpack.c.b16 %v572, %v571
  %v576 = vpack.c.b16 %v574, %v573
  %577 = vrot.lane.b32.xlu0 %v565, 64
  %v578 = vpop.permute.xlu0 %577
  %579 = vrot.lane.b32.xlu0 %v575, 64
  %v580 = vpop.permute.xlu0 %579
  %581 = vrot.lane.b32.xlu0 %v566, 64
  %v582 = vpop.permute.xlu0 %581
  %583 = vrot.lane.b32.xlu0 %v576, 64
  %v584 = vpop.permute.xlu0 %583
  %v589 = vunpack.c.l.b16 %v83
  %v590 = vunpack.c.l.b16 %v84
  %v591 = vunpack.c.l.b16 %v85
  %v592 = vunpack.c.l.b16 %v86
  %v593 = vpack.c.b16 %v590, %v589
  %v594 = vpack.c.b16 %v592, %v591
  %v603 = vunpack.c.l.b16 %v87
  %v604 = vunpack.c.l.b16 %v88
  %v605 = vunpack.c.l.b16 %v89
  %v606 = vunpack.c.l.b16 %v90
  %v607 = vunpack.c.l.b16 %v91
  %v608 = vunpack.c.l.b16 %v92
  %v609 = vunpack.c.l.b16 %v93
  %v610 = vunpack.c.l.b16 %v94
  %v611 = vpack.c.b16 %v604, %v603
  %v612 = vpack.c.b16 %v606, %v605
  %v613 = vpack.c.b16 %v608, %v607
  %v614 = vpack.c.b16 %v610, %v609
  %615 = vrot.lane.b32.xlu0 %v611, 64
  %v616 = vpop.permute.xlu0 %615
  %617 = vrot.lane.b32.xlu0 %v612, 64
  %v618 = vpop.permute.xlu0 %617
  %619 = vrot.lane.b32.xlu0 %v613, 64
  %v620 = vpop.permute.xlu0 %619
  %621 = vrot.lane.b32.xlu0 %v614, 64
  %v622 = vpop.permute.xlu0 %621
  %vm623 = vcmask 523264
  %v626 = vsel %vm623, %v375, %v390
  %v630 = vsel %vm623, %v376, %v392
  %v634 = vsel %vm623, %v377, %v394
  %v638 = vsel %vm623, %v378, %v396
  %v642 = vsel %vm623, %v387, %v418
  %v646 = vsel %vm623, %v405, %v420
  %v650 = vsel %vm623, %v388, %v422
  %v654 = vsel %vm623, %v406, %v424
  %v658 = vsel %vm623, %v415, %v456
  %v662 = vsel %vm623, %v433, %v458
  %v666 = vsel %vm623, %v416, %v460
  %v670 = vsel %vm623, %v434, %v462
  %v674 = vsel %vm623, %v452, %v484
  %v678 = vsel %vm623, %v471, %v486
  %v682 = vsel %vm623, %v454, %v488
  %v686 = vsel %vm623, %v472, %v490
  %v690 = vsel %vm623, %v481, %v512
  %v694 = vsel %vm623, %v499, %v514
  %v698 = vsel %vm623, %v482, %v516
  %v702 = vsel %vm623, %v500, %v518
  %v706 = vsel %vm623, %v535, %v550
  %v710 = vsel %vm623, %v536, %v552
  %v714 = vsel %vm623, %v537, %v554
  %v718 = vsel %vm623, %v538, %v556
  %v722 = vsel %vm623, %v547, %v578
  %v726 = vsel %vm623, %v565, %v580
  %v730 = vsel %vm623, %v548, %v582
  %v734 = vsel %vm623, %v566, %v584
  %v738 = vsel %vm623, %v575, %v616
  %v742 = vsel %vm623, %v593, %v618
  %v746 = vsel %vm623, %v576, %v620
  %v750 = vsel %vm623, %v594, %v622
  %v756 = vunpack.c.l.b16 %v95
  %v757 = vunpack.c.l.b16 %v96
  %v758 = vunpack.c.l.b16 %v97
  %v759 = vunpack.c.l.b16 %v98
  %v760 = vpack.c.b16 %v757, %v756
  %v761 = vpack.c.b16 %v759, %v758
  %v766 = vunpack.c.l.b16 %v99
  %v767 = vunpack.c.l.b16 %v100
  %v768 = vunpack.c.l.b16 %v101
  %v769 = vunpack.c.l.b16 %v102
  %v770 = vpack.c.b16 %v767, %v766
  %v771 = vpack.c.b16 %v769, %v768
  %772 = vrot.lane.b32.xlu0 %v760, 64
  %v773 = vpop.permute.xlu0 %772
  %774 = vrot.lane.b32.xlu0 %v770, 64
  %v775 = vpop.permute.xlu0 %774
  %776 = vrot.lane.b32.xlu0 %v761, 64
  %v777 = vpop.permute.xlu0 %776
  %778 = vrot.lane.b32.xlu0 %v771, 64
  %v779 = vpop.permute.xlu0 %778
  %v784 = vunpack.c.l.b16 %v103
  %v785 = vunpack.c.l.b16 %v104
  %v786 = vunpack.c.l.b16 %v105
  %v787 = vunpack.c.l.b16 %v106
  %v788 = vpack.c.b16 %v785, %v784
  %v789 = vpack.c.b16 %v787, %v786
  %v794 = vunpack.c.l.b16 %v107
  %v795 = vunpack.c.l.b16 %v108
  %v796 = vunpack.c.l.b16 %v109
  %v797 = vunpack.c.l.b16 %v110
  %v798 = vpack.c.b16 %v795, %v794
  %v799 = vpack.c.b16 %v797, %v796
  %800 = vrot.lane.b32.xlu0 %v788, 64
  %v801 = vpop.permute.xlu0 %800
  %802 = vrot.lane.b32.xlu0 %v798, 64
  %v803 = vpop.permute.xlu0 %802
  %804 = vrot.lane.b32.xlu0 %v789, 64
  %v805 = vpop.permute.xlu0 %804
  %806 = vrot.lane.b32.xlu0 %v799, 64
  %v807 = vpop.permute.xlu0 %806
  %v816 = vunpack.c.l.b16 %v111
  %v817 = vunpack.c.l.b16 %v112
  %v818 = vunpack.c.l.b16 %v113
  %v819 = vunpack.c.l.b16 %v114
  %v820 = vunpack.c.l.b16 %v115
  %v821 = vunpack.c.l.b16 %v116
  %v822 = vunpack.c.l.b16 %v117
  %v823 = vunpack.c.l.b16 %v118
  %v824 = vpack.c.b16 %v817, %v816
  %v825 = vpack.c.b16 %v819, %v818
  %v826 = vpack.c.b16 %v821, %v820
  %v827 = vpack.c.b16 %v823, %v822
  %v832 = vunpack.c.l.b16 %v119
  %v833 = vunpack.c.l.b16 %v120
  %v834 = vunpack.c.l.b16 %v121
  %v835 = vunpack.c.l.b16 %v122
  %v836 = vpack.c.b16 %v833, %v832
  %v837 = vpack.c.b16 %v835, %v834
  %838 = vrot.lane.b32.xlu0 %v825, 64
  %v839 = vpop.permute.xlu0 %838
  %840 = vrot.lane.b32.xlu0 %v836, 64
  %v841 = vpop.permute.xlu0 %840
  %842 = vrot.lane.b32.xlu0 %v827, 64
  %v843 = vpop.permute.xlu0 %842
  %844 = vrot.lane.b32.xlu0 %v837, 64
  %v845 = vpop.permute.xlu0 %844
  %v850 = vunpack.c.l.b16 %v123
  %v851 = vunpack.c.l.b16 %v124
  %v852 = vunpack.c.l.b16 %v125
  %v853 = vunpack.c.l.b16 %v126
  %v854 = vpack.c.b16 %v851, %v850
  %v855 = vpack.c.b16 %v853, %v852
  %v860 = vunpack.c.l.b16 %v127
  %v861 = vunpack.c.l.b16 %v128
  %v862 = vunpack.c.l.b16 %v129
  %v863 = vunpack.c.l.b16 %v130
  %v864 = vpack.c.b16 %v861, %v860
  %v865 = vpack.c.b16 %v863, %v862
  %866 = vrot.lane.b32.xlu0 %v854, 64
  %v867 = vpop.permute.xlu0 %866
  %868 = vrot.lane.b32.xlu0 %v864, 64
  %v869 = vpop.permute.xlu0 %868
  %870 = vrot.lane.b32.xlu0 %v855, 64
  %v871 = vpop.permute.xlu0 %870
  %872 = vrot.lane.b32.xlu0 %v865, 64
  %v873 = vpop.permute.xlu0 %872
  %v878 = vunpack.c.l.b16 %v131
  %v879 = vunpack.c.l.b16 %v132
  %v880 = vunpack.c.l.b16 %v133
  %v881 = vunpack.c.l.b16 %v134
  %v882 = vpack.c.b16 %v879, %v878
  %v883 = vpack.c.b16 %v881, %v880
  %v886 = vsel %vm623, %v612, %v773
  %v890 = vsel %vm623, %v760, %v775
  %v894 = vsel %vm623, %v614, %v777
  %v898 = vsel %vm623, %v761, %v779
  %v902 = vsel %vm623, %v770, %v801
  %v906 = vsel %vm623, %v788, %v803
  %v910 = vsel %vm623, %v771, %v805
  %v914 = vsel %vm623, %v789, %v807
  %v918 = vsel %vm623, %v824, %v839
  %v922 = vsel %vm623, %v825, %v841
  %v926 = vsel %vm623, %v826, %v843
  %v930 = vsel %vm623, %v827, %v845
  %v934 = vsel %vm623, %v836, %v867
  %v938 = vsel %vm623, %v854, %v869
  %v942 = vsel %vm623, %v837, %v871
  %v946 = vsel %vm623, %v855, %v873
  %v1148 = vunpack.c.l.b16 %v159
  %v1149 = vunpack.c.l.b16 %v160
  %v1150 = vunpack.c.l.b16 %v161
  %v1151 = vunpack.c.l.b16 %v162
  %v1152 = vunpack.c.l.b16 %v163
  %v1153 = vunpack.c.l.b16 %v164
  %v1154 = vunpack.c.l.b16 %v165
  %v1155 = vunpack.c.l.b16 %v166
  %v1156 = vunpack.c.l.b16 %v167
  %v1157 = vunpack.c.l.b16 %v168
  %v1158 = vunpack.c.l.b16 %v169
  %v1159 = vunpack.c.l.b16 %v170
  %v1160 = vunpack.c.l.b16 %v171
  %v1161 = vunpack.c.l.b16 %v172
  %v1162 = vunpack.c.l.b16 %v173
  %v1163 = vunpack.c.l.b16 %v174
  %v1164 = vunpack.c.l.b16 %v175
  %v1165 = vunpack.c.l.b16 %v176
  %v1166 = vunpack.c.l.b16 %v177
  %v1167 = vunpack.c.l.b16 %v178
  %v1168 = vunpack.c.l.b16 %v179
  %v1169 = vunpack.c.l.b16 %v180
  %v1170 = vunpack.c.l.b16 %v181
  %v1171 = vunpack.c.l.b16 %v182
  %v1172 = vunpack.c.l.b16 %v183
  %v1173 = vunpack.c.l.b16 %v184
  %v1174 = vunpack.c.l.b16 %v185
  %v1175 = vunpack.c.l.b16 %v186
  %v1176 = vunpack.c.l.b16 %v187
  %v1177 = vunpack.c.l.b16 %v188
  %v1178 = vunpack.c.l.b16 %v189
  %v1179 = vunpack.c.l.b16 %v190
  %v1180 = vunpack.c.l.b16 %v191
  %v1181 = vunpack.c.l.b16 %v192
  %v1182 = vunpack.c.l.b16 %v193
  %v1183 = vunpack.c.l.b16 %v194
  %v1184 = vunpack.c.l.b16 %v195
  %v1185 = vunpack.c.l.b16 %v196
  %v1186 = vunpack.c.l.b16 %v197
  %v1187 = vunpack.c.l.b16 %v198
  %v1188 = vunpack.c.l.b16 %v199
  %v1189 = vunpack.c.l.b16 %v200
  %v1190 = vunpack.c.l.b16 %v201
  %v1191 = vunpack.c.l.b16 %v202
  %v1192 = vunpack.c.l.b16 %v203
  %v1193 = vunpack.c.l.b16 %v204
  %v1194 = vunpack.c.l.b16 %v205
  %v1195 = vunpack.c.l.b16 %v206
  %v1196 = vunpack.c.l.b16 %v207
  %v1197 = vunpack.c.l.b16 %v208
  %v1198 = vunpack.c.l.b16 %v209
  %v1199 = vunpack.c.l.b16 %v210
  %v1200 = vunpack.c.l.b16 %v211
  %v1201 = vunpack.c.l.b16 %v212
  %v1202 = vunpack.c.l.b16 %v213
  %v1203 = vunpack.c.l.b16 %v214
  %v1204 = vunpack.c.l.b16 %v215
  %v1205 = vunpack.c.l.b16 %v216
  %v1206 = vunpack.c.l.b16 %v217
  %v1207 = vunpack.c.l.b16 %v218
  %v1208 = vunpack.c.l.b16 %v219
  %v1209 = vunpack.c.l.b16 %v220
  %v1210 = vunpack.c.l.b16 %v221
  %v1211 = vunpack.c.l.b16 %v222
  %v1212 = vunpack.c.l.b16 %v223
  %v1213 = vunpack.c.l.b16 %v224
  %v1214 = vunpack.c.l.b16 %v225
  %v1215 = vunpack.c.l.b16 %v226
  %v1216 = vunpack.c.l.b16 %v227
  %v1217 = vunpack.c.l.b16 %v228
  %v1218 = vunpack.c.l.b16 %v229
  %v1219 = vunpack.c.l.b16 %v230
  %v1220 = vunpack.c.l.b16 %v231
  %v1221 = vunpack.c.l.b16 %v232
  %v1222 = vunpack.c.l.b16 %v233
  %v1223 = vunpack.c.l.b16 %v234
  %v1224 = vunpack.c.l.b16 %v235
  %v1225 = vunpack.c.l.b16 %v236
  %v1226 = vunpack.c.l.b16 %v237
  %v1227 = vunpack.c.l.b16 %v238
  %v1228 = vunpack.c.l.b16 %v239
  %v1229 = vunpack.c.l.b16 %v240
  %v1230 = vunpack.c.l.b16 %v241
  %v1231 = vunpack.c.l.b16 %v242
  %v1232 = vunpack.c.l.b16 %v243
  %v1233 = vunpack.c.l.b16 %v244
  %v1234 = vunpack.c.l.b16 %v245
  %v1235 = vunpack.c.l.b16 %v246
  %v1236 = vunpack.c.l.b16 %v247
  %v1237 = vunpack.c.l.b16 %v248
  %v1238 = vunpack.c.l.b16 %v249
  %v1239 = vunpack.c.l.b16 %v250
  %v1240 = vunpack.c.l.b16 %v251
  %v1241 = vunpack.c.l.b16 %v252
  %v1242 = vunpack.c.l.b16 %v253
  %v1243 = vunpack.c.l.b16 %v254
  %v1244 = vunpack.c.l.b16 %v255
  %v1245 = vunpack.c.l.b16 %v256
  %v1246 = vunpack.c.l.b16 %v257
  %v1247 = vunpack.c.l.b16 %v258
  %v1248 = vunpack.c.l.b16 %v259
  %v1249 = vunpack.c.l.b16 %v260
  %v1250 = vunpack.c.l.b16 %v261
  %v1251 = vunpack.c.l.b16 %v262
  %v1252 = vunpack.c.l.b16 %v263
  %v1253 = vunpack.c.l.b16 %v264
  %v1254 = vunpack.c.l.b16 %v265
  %v1255 = vunpack.c.l.b16 %v266
  %v1256 = vunpack.c.l.b16 %v267
  %v1257 = vunpack.c.l.b16 %v268
  %v1258 = vunpack.c.l.b16 %v269
  %v1259 = vunpack.c.l.b16 %v270
  %v1260 = vunpack.c.l.b16 %v271
  %v1261 = vunpack.c.l.b16 %v272
  %v1262 = vunpack.c.l.b16 %v273
  %v1263 = vunpack.c.l.b16 %v274
  %v1264 = vunpack.c.l.b16 %v275
  %v1265 = vunpack.c.l.b16 %v276
  %v1266 = vunpack.c.l.b16 %v277
  %v1267 = vunpack.c.l.b16 %v278
  %v1268 = vunpack.c.l.b16 %v279
  %v1269 = vunpack.c.l.b16 %v280
  %v1270 = vunpack.c.l.b16 %v281
  %v1271 = vunpack.c.l.b16 %v282
  %v1272 = vunpack.c.l.b16 %v283
  %v1273 = vunpack.c.l.b16 %v284
  %v1274 = vunpack.c.l.b16 %v285
  %v1275 = vunpack.c.l.b16 %v286
  %v1276 = vunpack.c.l.b16 %v287
  %v1277 = vunpack.c.l.b16 %v288
  %v1278 = vunpack.c.l.b16 %v289
  %v1279 = vunpack.c.l.b16 %v290
  %v1280 = vunpack.c.l.b16 %v291
  %v1281 = vunpack.c.l.b16 %v292
  %v1282 = vunpack.c.l.b16 %v293
  %v1283 = vunpack.c.l.b16 %v294
  %v1284 = vunpack.c.l.b16 %v295
  %v1285 = vunpack.c.l.b16 %v296
  %v1286 = vunpack.c.l.b16 %v297
  %v1287 = vunpack.c.l.b16 %v298
  %v1288 = vunpack.c.l.b16 %v299
  %v1289 = vunpack.c.l.b16 %v300
  %v1290 = vunpack.c.l.b16 %v301
  %v1291 = vunpack.c.l.b16 %v302
  %v1292 = vunpack.c.l.b16 %v303
  %v1293 = vunpack.c.l.b16 %v304
  %v1294 = vunpack.c.l.b16 %v305
  %v1295 = vunpack.c.l.b16 %v306
  %v1296 = vunpack.c.l.b16 %v307
  %v1297 = vunpack.c.l.b16 %v308
  %v1298 = vunpack.c.l.b16 %v309
  %v1299 = vunpack.c.l.b16 %v310
  %v1300 = vunpack.c.l.b16 %v311
  %v1301 = vunpack.c.l.b16 %v312
  %v1302 = vunpack.c.l.b16 %v313
  %v1303 = vunpack.c.l.b16 %v314
  %v1304 = vunpack.c.l.b16 %v315
  %v1305 = vunpack.c.l.b16 %v316
  %v1306 = vunpack.c.l.b16 %v317
  %v1307 = vunpack.c.l.b16 %v318
  %v1308 = vunpack.c.l.b16 %v319
  %v1309 = vunpack.c.l.b16 %v320
  %v1310 = vunpack.c.l.b16 %v321
  %v1311 = vunpack.c.l.b16 %v322
  %v1312 = vunpack.c.l.b16 %v323
  %v1313 = vunpack.c.l.b16 %v324
  %v1314 = vunpack.c.l.b16 %v325
  %v1315 = vunpack.c.l.b16 %v326
  %v1316 = vunpack.c.l.b16 %v327
  %v1317 = vunpack.c.l.b16 %v328
  %v1318 = vunpack.c.l.b16 %v329
  %v1319 = vunpack.c.l.b16 %v330
  %v1320 = vunpack.c.l.b16 %v331
  %v1321 = vunpack.c.l.b16 %v332
  %v1322 = vunpack.c.l.b16 %v333
  %v1323 = vunpack.c.l.b16 %v334
  %v1324 = vunpack.c.l.b16 %v335
  %v1325 = vunpack.c.l.b16 %v336
  %v1326 = vunpack.c.l.b16 %v337
  %v1327 = vunpack.c.l.b16 %v338
  %v1328 = vunpack.c.l.b16 %v339
  %v1329 = vunpack.c.l.b16 %v340
  %v1330 = vunpack.c.l.b16 %v341
  %v1331 = vunpack.c.l.b16 %v342
  %v1332 = vunpack.c.l.b16 %v343
  %v1333 = vunpack.c.l.b16 %v344
  %v1334 = vunpack.c.l.b16 %v345
  %v1335 = vunpack.c.l.b16 %v346
  %v1336 = vunpack.c.l.b16 %v347
  %v1337 = vunpack.c.l.b16 %v348
  %v1338 = vunpack.c.l.b16 %v349
  %v1339 = vunpack.c.l.b16 %v350
  %v1340 = vunpack.c.l.b16 %v351
  %v1341 = vunpack.c.l.b16 %v352
  %v1342 = vunpack.c.l.b16 %v353
  %v1343 = vunpack.c.l.b16 %v354
  %v1344 = vunpack.c.l.b16 %v355
  %v1345 = vunpack.c.l.b16 %v356
  %v1346 = vunpack.c.l.b16 %v357
  %v1347 = vunpack.c.l.b16 %v358
  %v1348 = vpack.c.b16 %v1149, %v1148
  %v1349 = vpack.c.b16 %v1151, %v1150
  %v1350 = vpack.c.b16 %v1153, %v1152
  %v1351 = vpack.c.b16 %v1155, %v1154
  %v1352 = vpack.c.b16 %v1157, %v1156
  %v1353 = vpack.c.b16 %v1159, %v1158
  %v1354 = vpack.c.b16 %v1161, %v1160
  %v1355 = vpack.c.b16 %v1163, %v1162
  %v1356 = vpack.c.b16 %v1165, %v1164
  %v1357 = vpack.c.b16 %v1167, %v1166
  %v1358 = vpack.c.b16 %v1169, %v1168
  %v1359 = vpack.c.b16 %v1171, %v1170
  %v1360 = vpack.c.b16 %v1173, %v1172
  %v1361 = vpack.c.b16 %v1175, %v1174
  %v1362 = vpack.c.b16 %v1177, %v1176
  %v1363 = vpack.c.b16 %v1179, %v1178
  %v1364 = vpack.c.b16 %v1181, %v1180
  %v1365 = vpack.c.b16 %v1183, %v1182
  %v1366 = vpack.c.b16 %v1185, %v1184
  %v1367 = vpack.c.b16 %v1187, %v1186
  %v1368 = vpack.c.b16 %v1189, %v1188
  %v1369 = vpack.c.b16 %v1191, %v1190
  %v1370 = vpack.c.b16 %v1193, %v1192
  %v1371 = vpack.c.b16 %v1195, %v1194
  %v1372 = vpack.c.b16 %v1197, %v1196
  %v1373 = vpack.c.b16 %v1199, %v1198
  %v1374 = vpack.c.b16 %v1201, %v1200
  %v1375 = vpack.c.b16 %v1203, %v1202
  %v1376 = vpack.c.b16 %v1205, %v1204
  %v1377 = vpack.c.b16 %v1207, %v1206
  %v1378 = vpack.c.b16 %v1209, %v1208
  %v1379 = vpack.c.b16 %v1211, %v1210
  %v1380 = vpack.c.b16 %v1213, %v1212
  %v1381 = vpack.c.b16 %v1215, %v1214
  %v1382 = vpack.c.b16 %v1217, %v1216
  %v1383 = vpack.c.b16 %v1219, %v1218
  %v1384 = vpack.c.b16 %v1221, %v1220
  %v1385 = vpack.c.b16 %v1223, %v1222
  %v1386 = vpack.c.b16 %v1225, %v1224
  %v1387 = vpack.c.b16 %v1227, %v1226
  %v1388 = vpack.c.b16 %v1229, %v1228
  %v1389 = vpack.c.b16 %v1231, %v1230
  %v1390 = vpack.c.b16 %v1233, %v1232
  %v1391 = vpack.c.b16 %v1235, %v1234
  %v1392 = vpack.c.b16 %v1237, %v1236
  %v1393 = vpack.c.b16 %v1239, %v1238
  %v1394 = vpack.c.b16 %v1241, %v1240
  %v1395 = vpack.c.b16 %v1243, %v1242
  %v1396 = vpack.c.b16 %v1245, %v1244
  %v1397 = vpack.c.b16 %v1247, %v1246
  %v1398 = vpack.c.b16 %v1249, %v1248
  %v1399 = vpack.c.b16 %v1251, %v1250
  %v1400 = vpack.c.b16 %v1253, %v1252
  %v1401 = vpack.c.b16 %v1255, %v1254
  %v1402 = vpack.c.b16 %v1257, %v1256
  %v1403 = vpack.c.b16 %v1259, %v1258
  %v1404 = vpack.c.b16 %v1261, %v1260
  %v1405 = vpack.c.b16 %v1263, %v1262
  %v1406 = vpack.c.b16 %v1265, %v1264
  %v1407 = vpack.c.b16 %v1267, %v1266
  %v1408 = vpack.c.b16 %v1269, %v1268
  %v1409 = vpack.c.b16 %v1271, %v1270
  %v1410 = vpack.c.b16 %v1273, %v1272
  %v1411 = vpack.c.b16 %v1275, %v1274
  %v1412 = vpack.c.b16 %v1277, %v1276
  %v1413 = vpack.c.b16 %v1279, %v1278
  %v1414 = vpack.c.b16 %v1281, %v1280
  %v1415 = vpack.c.b16 %v1283, %v1282
  %v1416 = vpack.c.b16 %v1285, %v1284
  %v1417 = vpack.c.b16 %v1287, %v1286
  %v1418 = vpack.c.b16 %v1289, %v1288
  %v1419 = vpack.c.b16 %v1291, %v1290
  %v1420 = vpack.c.b16 %v1293, %v1292
  %v1421 = vpack.c.b16 %v1295, %v1294
  %v1422 = vpack.c.b16 %v1297, %v1296
  %v1423 = vpack.c.b16 %v1299, %v1298
  %v1424 = vpack.c.b16 %v1301, %v1300
  %v1425 = vpack.c.b16 %v1303, %v1302
  %v1426 = vpack.c.b16 %v1305, %v1304
  %v1427 = vpack.c.b16 %v1307, %v1306
  %v1428 = vpack.c.b16 %v1309, %v1308
  %v1429 = vpack.c.b16 %v1311, %v1310
  %v1430 = vpack.c.b16 %v1313, %v1312
  %v1431 = vpack.c.b16 %v1315, %v1314
  %v1432 = vpack.c.b16 %v1317, %v1316
  %v1433 = vpack.c.b16 %v1319, %v1318
  %v1434 = vpack.c.b16 %v1321, %v1320
  %v1435 = vpack.c.b16 %v1323, %v1322
  %v1436 = vpack.c.b16 %v1325, %v1324
  %v1437 = vpack.c.b16 %v1327, %v1326
  %v1438 = vpack.c.b16 %v1329, %v1328
  %v1439 = vpack.c.b16 %v1331, %v1330
  %v1440 = vpack.c.b16 %v1333, %v1332
  %v1441 = vpack.c.b16 %v1335, %v1334
  %v1442 = vpack.c.b16 %v1337, %v1336
  %v1443 = vpack.c.b16 %v1339, %v1338
  %v1444 = vpack.c.b16 %v1341, %v1340
  %v1445 = vpack.c.b16 %v1343, %v1342
  %v1446 = vpack.c.b16 %v1345, %v1344
  %v1447 = vpack.c.b16 %v1347, %v1346
  %v1549 = vsel %vm623, %v864, 0
  %v1552 = vsel %vm623, %v882, 0
  %v1555 = vsel %vm623, %v865, 0
  %v1558 = vsel %vm623, %v883, 0
  %1560 = vmatprep.subr.bf16.mxu0 0
  %1561 = vmatpush1.bf16.msra.mxu0 %v1348
  %1562 = vmatprep.subr.bf16.mxu0 0
  %1563 = vmatpush1.bf16.msra.mxu0 %v1349
  %1564 = vmatprep.subr.bf16.mxu0 0
  %1565 = vmatpush1.bf16.msra.mxu0 %v1350
  %1566 = vmatprep.subr.bf16.mxu0 0
  %1567 = vmatpush1.bf16.msra.mxu0 %v1351
  %1568 = vmatprep.subr.bf16.mxu0 0
  %1569 = vmatpush1.bf16.msra.mxu0 %v1352
  %1570 = vmatprep.subr.bf16.mxu0 0
  %1571 = vmatpush1.bf16.msra.mxu0 %v1353
  %1572 = vmatprep.subr.bf16.mxu0 0
  %1573 = vmatpush1.bf16.msra.mxu0 %v1354
  %1574 = vmatprep.subr.bf16.mxu0 0
  %1575 = vmatpush1.bf16.msra.mxu0 %v1355
  %1576 = vmatprep.subr.bf16.mxu0 0
  %1577 = vmatpush1.bf16.msra.mxu0 %v1356
  %1578 = vmatprep.subr.bf16.mxu0 0
  %1579 = vmatpush1.bf16.msra.mxu0 %v1357
  %1580 = vmatprep.subr.bf16.mxu0 0
  %1581 = vmatpush1.bf16.msra.mxu0 %v1358
  %1582 = vmatprep.subr.bf16.mxu0 0
  %1583 = vmatpush1.bf16.msra.mxu0 %v1359
  %1584 = vmatprep.subr.bf16.mxu0 0
  %1585 = vmatpush1.bf16.msra.mxu0 %v1360
  %1586 = vmatprep.subr.bf16.mxu0 0
  %1587 = vmatpush1.bf16.msra.mxu0 %v1361
  %1588 = vmatprep.subr.bf16.mxu0 0
  %1589 = vmatpush1.bf16.msra.mxu0 %v1362
  %1590 = vmatprep.subr.bf16.mxu0 0
  %1591 = vmatpush1.bf16.msra.mxu0 %v1363
  %1592 = vmatprep.mubr.bf16.mxu0 %v642
  %1593 = vmatmul.mubr.bf16.gmra.mrb[0].mxu0 %v626
  %v1594 = vpop.f32.mrb[0].mxu0
  %v1595 = vadd.f32 0.0, %v1594
  %v1596 = vpop.f32.mrb[0].mxu0
  %v1597 = vpop.f32.mrb[0].mxu0
  %v1598 = vadd.f32 0.0, %v1597
  %v1599 = vpop.f32.mrb[0].mxu0
  %1600 = vmatprep.mubr.bf16.mxu0 %v646
  %1601 = vmatmul.mubr.bf16.gmra.mrb[0].mxu0 %v630
  %v1602 = vpop.f32.mrb[0].mxu0
  %v1603 = vadd.f32 0.0, %v1602
  %v1604 = vpop.f32.mrb[0].mxu0
  %v1605 = vpop.f32.mrb[0].mxu0
  %v1606 = vadd.f32 0.0, %v1605
  %v1607 = vpop.f32.mrb[0].mxu0
  %1608 = vmatprep.mubr.bf16.mxu0 %v650
  %1609 = vmatmul.mubr.bf16.gmra.mrb[0].mxu0 %v634
  %v1610 = vpop.f32.mrb[0].mxu0
  %v1611 = vadd.f32 0.0, %v1610
  %v1612 = vpop.f32.mrb[0].mxu0
  %v1613 = vpop.f32.mrb[0].mxu0
  %v1614 = vadd.f32 0.0, %v1613
  %v1615 = vpop.f32.mrb[0].mxu0
  %1616 = vmatprep.mubr.bf16.mxu0 %v654
  %1617 = vmatmul.mubr.bf16.gmra.mrb[0].mxu0 %v638
  %v1618 = vpop.f32.mrb[0].mxu0
  %v1619 = vadd.f32 0.0, %v1618
  %v1620 = vpop.f32.mrb[0].mxu0
  %v1621 = vpop.f32.mrb[0].mxu0
  %v1622 = vadd.f32 0.0, %v1621
  %v1623 = vpop.f32.mrb[0].mxu0
  %1624 = vdwg.mxu0
  %1625 = vmatprep.subr.bf16.mxu0 0
  %1626 = vmatpush1.bf16.msra.mxu0 %v1364
  %1627 = vmatprep.subr.bf16.mxu0 0
  %1628 = vmatpush1.bf16.msra.mxu0 %v1365
  %1629 = vmatprep.subr.bf16.mxu0 0
  %1630 = vmatpush1.bf16.msra.mxu0 %v1366
  %1631 = vmatprep.subr.bf16.mxu0 0
  %1632 = vmatpush1.bf16.msra.mxu0 %v1367
  %1633 = vmatprep.subr.bf16.mxu0 0
  %1634 = vmatpush1.bf16.msra.mxu0 %v1368
  %1635 = vmatprep.subr.bf16.mxu0 0
  %1636 = vmatpush1.bf16.msra.mxu0 %v1369
  %1637 = vmatprep.subr.bf16.mxu0 0
  %1638 = vmatpush1.bf16.msra.mxu0 %v1370
  %1639 = vmatprep.subr.bf16.mxu0 0
  %1640 = vmatpush1.bf16.msra.mxu0 %v1371
  %1641 = vmatprep.subr.bf16.mxu0 0
  %1642 = vmatpush1.bf16.msra.mxu0 %v1372
  %1643 = vmatprep.subr.bf16.mxu0 0
  %1644 = vmatpush1.bf16.msra.mxu0 %v1373
  %1645 = vmatprep.subr.bf16.mxu0 0
  %1646 = vmatpush1.bf16.msra.mxu0 %v1374
  %1647 = vmatprep.subr.bf16.mxu0 0
  %1648 = vmatpush1.bf16.msra.mxu0 %v1375
  %1649 = vmatprep.subr.bf16.mxu0 0
  %1650 = vmatpush1.bf16.msra.mxu0 %v1376
  %1651 = vmatprep.subr.bf16.mxu0 0
  %1652 = vmatpush1.bf16.msra.mxu0 %v1377
  %1653 = vmatprep.subr.bf16.mxu0 0
  %1654 = vmatpush1.bf16.msra.mxu0 %v1378
  %1655 = vmatprep.subr.bf16.mxu0 0
  %1656 = vmatpush1.bf16.msra.mxu0 %v1379
  %1657 = vmatprep.mubr.bf16.mxu0 %v674
  %1658 = vmatmul.mubr.bf16.gmra.mrb[0].mxu0 %v658
  %v1659 = vpop.f32.mrb[0].mxu0
  %v1660 = vadd.f32 %v1595, %v1659
  %v1661 = vpop.f32.mrb[0].mxu0
  %v1662 = vpop.f32.mrb[0].mxu0
  %v1663 = vadd.f32 %v1598, %v1662
  %v1664 = vpop.f32.mrb[0].mxu0
  %1665 = vmatprep.mubr.bf16.mxu0 %v678
  %1666 = vmatmul.mubr.bf16.gmra.mrb[0].mxu0 %v662
  %v1667 = vpop.f32.mrb[0].mxu0
  %v1668 = vadd.f32 %v1603, %v1667
  %v1669 = vpop.f32.mrb[0].mxu0
  %v1670 = vpop.f32.mrb[0].mxu0
  %v1671 = vadd.f32 %v1606, %v1670
  %v1672 = vpop.f32.mrb[0].mxu0
  %1673 = vmatprep.mubr.bf16.mxu0 %v682
  %1674 = vmatmul.mubr.bf16.gmra.mrb[0].mxu0 %v666
  %v1675 = vpop.f32.mrb[0].mxu0
  %v1676 = vadd.f32 %v1611, %v1675
  %v1677 = vpop.f32.mrb[0].mxu0
  %v1678 = vpop.f32.mrb[0].mxu0
  %v1679 = vadd.f32 %v1614, %v1678
  %v1680 = vpop.f32.mrb[0].mxu0
  %1681 = vmatprep.mubr.bf16.mxu0 %v686
  %1682 = vmatmul.mubr.bf16.gmra.mrb[0].mxu0 %v670
  %v1683 = vpop.f32.mrb[0].mxu0
  %v1684 = vadd.f32 %v1619, %v1683
  %v1685 = vpop.f32.mrb[0].mxu0
  %v1686 = vpop.f32.mrb[0].mxu0
  %v1687 = vadd.f32 %v1622, %v1686
  %v1688 = vpop.f32.mrb[0].mxu0
  %1689 = vdwg.mxu0
  %1690 = vmatprep.subr.bf16.mxu0 0
  %1691 = vmatpush1.bf16.msra.mxu0 %v1380
  %1692 = vmatprep.subr.bf16.mxu0 0
  %1693 = vmatpush1.bf16.msra.mxu0 %v1381
  %1694 = vmatprep.subr.bf16.mxu0 0
  %1695 = vmatpush1.bf16.msra.mxu0 %v1382
  %1696 = vmatprep.subr.bf16.mxu0 0
  %1697 = vmatpush1.bf16.msra.mxu0 %v1383
  %1698 = vmatprep.subr.bf16.mxu0 0
  %1699 = vmatpush1.bf16.msra.mxu0 %v1384
  %1700 = vmatprep.subr.bf16.mxu0 0
  %1701 = vmatpush1.bf16.msra.mxu0 %v1385
  %1702 = vmatprep.subr.bf16.mxu0 0
  %1703 = vmatpush1.bf16.msra.mxu0 %v1386
  %1704 = vmatprep.subr.bf16.mxu0 0
  %1705 = vmatpush1.bf16.msra.mxu0 %v1387
  %1706 = vmatprep.subr.bf16.mxu0 0
  %1707 = vmatpush1.bf16.msra.mxu0 %v1388
  %1708 = vmatprep.subr.bf16.mxu0 0
  %1709 = vmatpush1.bf16.msra.mxu0 %v1389
  %1710 = vmatprep.subr.bf16.mxu0 0
  %1711 = vmatpush1.bf16.msra.mxu0 %v1390
  %1712 = vmatprep.subr.bf16.mxu0 0
  %1713 = vmatpush1.bf16.msra.mxu0 %v1391
  %1714 = vmatprep.subr.bf16.mxu0 0
  %1715 = vmatpush1.bf16.msra.mxu0 %v1392
  %1716 = vmatprep.subr.bf16.mxu0 0
  %1717 = vmatpush1.bf16.msra.mxu0 %v1393
  %1718 = vmatprep.subr.bf16.mxu0 0
  %1719 = vmatpush1.bf16.msra.mxu0 %v1394
  %1720 = vmatprep.subr.bf16.mxu0 0
  %1721 = vmatpush1.bf16.msra.mxu0 %v1395
  %1722 = vmatprep.mubr.bf16.mxu0 %v706
  %1723 = vmatmul.mubr.bf16.gmra.mrb[0].mxu0 %v690
  %v1724 = vpop.f32.mrb[0].mxu0
  %v1725 = vadd.f32 %v1660, %v1724
  %v1726 = vpop.f32.mrb[0].mxu0
  %v1727 = vpop.f32.mrb[0].mxu0
  %v1728 = vadd.f32 %v1663, %v1727
  %v1729 = vpop.f32.mrb[0].mxu0
  %1730 = vmatprep.mubr.bf16.mxu0 %v710
  %1731 = vmatmul.mubr.bf16.gmra.mrb[0].mxu0 %v694
  %v1732 = vpop.f32.mrb[0].mxu0
  %v1733 = vadd.f32 %v1668, %v1732
  %v1734 = vpop.f32.mrb[0].mxu0
  %v1735 = vpop.f32.mrb[0].mxu0
  %v1736 = vadd.f32 %v1671, %v1735
  %v1737 = vpop.f32.mrb[0].mxu0
  %1738 = vmatprep.mubr.bf16.mxu0 %v714
  %1739 = vmatmul.mubr.bf16.gmra.mrb[0].mxu0 %v698
  %v1740 = vpop.f32.mrb[0].mxu0
  %v1741 = vadd.f32 %v1676, %v1740
  %v1742 = vpop.f32.mrb[0].mxu0
  %v1743 = vpop.f32.mrb[0].mxu0
  %v1744 = vadd.f32 %v1679, %v1743
  %v1745 = vpop.f32.mrb[0].mxu0
  %1746 = vmatprep.mubr.bf16.mxu0 %v718
  %1747 = vmatmul.mubr.bf16.gmra.mrb[0].mxu0 %v702
  %v1748 = vpop.f32.mrb[0].mxu0
  %v1749 = vadd.f32 %v1684, %v1748
  %v1750 = vpop.f32.mrb[0].mxu0
  %v1751 = vpop.f32.mrb[0].mxu0
  %v1752 = vadd.f32 %v1687, %v1751
  %v1753 = vpop.f32.mrb[0].mxu0
  %1754 = vdwg.mxu0
  %1755 = vmatprep.subr.bf16.mxu0 0
  %1756 = vmatpush1.bf16.msra.mxu0 %v1396
  %1757 = vmatprep.subr.bf16.mxu0 0
  %1758 = vmatpush1.bf16.msra.mxu0 %v1397
  %1759 = vmatprep.subr.bf16.mxu0 0
  %1760 = vmatpush1.bf16.msra.mxu0 %v1398
  %1761 = vmatprep.subr.bf16.mxu0 0
  %1762 = vmatpush1.bf16.msra.mxu0 %v1399
  %1763 = vmatprep.subr.bf16.mxu0 0
  %1764 = vmatpush1.bf16.msra.mxu0 %v1400
  %1765 = vmatprep.subr.bf16.mxu0 0
  %1766 = vmatpush1.bf16.msra.mxu0 %v1401
  %1767 = vmatprep.subr.bf16.mxu0 0
  %1768 = vmatpush1.bf16.msra.mxu0 %v1402
  %1769 = vmatprep.subr.bf16.mxu0 0
  %1770 = vmatpush1.bf16.msra.mxu0 %v1403
  %1771 = vmatprep.subr.bf16.mxu0 0
  %1772 = vmatpush1.bf16.msra.mxu0 %v1404
  %1773 = vmatprep.subr.bf16.mxu0 0
  %1774 = vmatpush1.bf16.msra.mxu0 %v1405
  %1775 = vmatprep.subr.bf16.mxu0 0
  %1776 = vmatpush1.bf16.msra.mxu0 %v1406
  %1777 = vmatprep.subr.bf16.mxu0 0
  %1778 = vmatpush1.bf16.msra.mxu0 %v1407
  %1779 = vmatprep.subr.bf16.mxu0 0
  %1780 = vmatpush1.bf16.msra.mxu0 %v1408
  %1781 = vmatprep.subr.bf16.mxu0 0
  %1782 = vmatpush1.bf16.msra.mxu0 %v1409
  %1783 = vmatprep.subr.bf16.mxu0 0
  %1784 = vmatpush1.bf16.msra.mxu0 %v1410
  %1785 = vmatprep.subr.bf16.mxu0 0
  %1786 = vmatpush1.bf16.msra.mxu0 %v1411
  %1787 = vmatprep.mubr.bf16.mxu0 %v738
  %1788 = vmatmul.mubr.bf16.gmra.mrb[0].mxu0 %v722
  %v1789 = vpop.f32.mrb[0].mxu0
  %v1790 = vadd.f32 %v1725, %v1789
  %v1791 = vpop.f32.mrb[0].mxu0
  %v1792 = vpop.f32.mrb[0].mxu0
  %v1793 = vadd.f32 %v1728, %v1792
  %v1794 = vpop.f32.mrb[0].mxu0
  %1795 = vmatprep.mubr.bf16.mxu0 %v742
  %1796 = vmatmul.mubr.bf16.gmra.mrb[0].mxu0 %v726
  %v1797 = vpop.f32.mrb[0].mxu0
  %v1798 = vadd.f32 %v1733, %v1797
  %v1799 = vpop.f32.mrb[0].mxu0
  %v1800 = vpop.f32.mrb[0].mxu0
  %v1801 = vadd.f32 %v1736, %v1800
  %v1802 = vpop.f32.mrb[0].mxu0
  %1803 = vmatprep.mubr.bf16.mxu0 %v746
  %1804 = vmatmul.mubr.bf16.gmra.mrb[0].mxu0 %v730
  %v1805 = vpop.f32.mrb[0].mxu0
  %v1806 = vadd.f32 %v1741, %v1805
  %v1807 = vpop.f32.mrb[0].mxu0
  %v1808 = vpop.f32.mrb[0].mxu0
  %v1809 = vadd.f32 %v1744, %v1808
  %v1810 = vpop.f32.mrb[0].mxu0
  %1811 = vmatprep.mubr.bf16.mxu0 %v750
  %1812 = vmatmul.mubr.bf16.gmra.mrb[0].mxu0 %v734
  %v1813 = vpop.f32.mrb[0].mxu0
  %v1814 = vadd.f32 %v1749, %v1813
  %v1815 = vpop.f32.mrb[0].mxu0
  %v1816 = vpop.f32.mrb[0].mxu0
  %v1817 = vadd.f32 %v1752, %v1816
  %v1818 = vpop.f32.mrb[0].mxu0
  %1819 = vdwg.mxu0
  %1820 = vmatprep.subr.bf16.mxu0 0
  %1821 = vmatpush1.bf16.msra.mxu0 %v1412
  %1822 = vmatprep.subr.bf16.mxu0 0
  %1823 = vmatpush1.bf16.msra.mxu0 %v1413
  %1824 = vmatprep.subr.bf16.mxu0 0
  %1825 = vmatpush1.bf16.msra.mxu0 %v1414
  %1826 = vmatprep.subr.bf16.mxu0 0
  %1827 = vmatpush1.bf16.msra.mxu0 %v1415
  %1828 = vmatprep.subr.bf16.mxu0 0
  %1829 = vmatpush1.bf16.msra.mxu0 %v1416
  %1830 = vmatprep.subr.bf16.mxu0 0
  %1831 = vmatpush1.bf16.msra.mxu0 %v1417
  %1832 = vmatprep.subr.bf16.mxu0 0
  %1833 = vmatpush1.bf16.msra.mxu0 %v1418
  %1834 = vmatprep.subr.bf16.mxu0 0
  %1835 = vmatpush1.bf16.msra.mxu0 %v1419
  %1836 = vmatprep.subr.bf16.mxu0 0
  %1837 = vmatpush1.bf16.msra.mxu0 %v1420
  %1838 = vmatprep.subr.bf16.mxu0 0
  %1839 = vmatpush1.bf16.msra.mxu0 %v1421
  %1840 = vmatprep.subr.bf16.mxu0 0
  %1841 = vmatpush1.bf16.msra.mxu0 %v1422
  %1842 = vmatprep.subr.bf16.mxu0 0
  %1843 = vmatpush1.bf16.msra.mxu0 %v1423
  %1844 = vmatprep.subr.bf16.mxu0 0
  %1845 = vmatpush1.bf16.msra.mxu0 %v1424
  %1846 = vmatprep.subr.bf16.mxu0 0
  %1847 = vmatpush1.bf16.msra.mxu0 %v1425
  %1848 = vmatprep.subr.bf16.mxu0 0
  %1849 = vmatpush1.bf16.msra.mxu0 %v1426
  %1850 = vmatprep.subr.bf16.mxu0 0
  %1851 = vmatpush1.bf16.msra.mxu0 %v1427
  %1852 = vmatprep.mubr.bf16.mxu0 %v902
  %1853 = vmatmul.mubr.bf16.gmra.mrb[0].mxu0 %v886
  %v1854 = vpop.f32.mrb[0].mxu0
  %v1855 = vadd.f32 %v1790, %v1854
  %v1856 = vpop.f32.mrb[0].mxu0
  %v1857 = vpop.f32.mrb[0].mxu0
  %v1858 = vadd.f32 %v1793, %v1857
  %v1859 = vpop.f32.mrb[0].mxu0
  %1860 = vmatprep.mubr.bf16.mxu0 %v906
  %1861 = vmatmul.mubr.bf16.gmra.mrb[0].mxu0 %v890
  %v1862 = vpop.f32.mrb[0].mxu0
  %v1863 = vadd.f32 %v1798, %v1862
  %v1864 = vpop.f32.mrb[0].mxu0
  %v1865 = vpop.f32.mrb[0].mxu0
  %v1866 = vadd.f32 %v1801, %v1865
  %v1867 = vpop.f32.mrb[0].mxu0
  %1868 = vmatprep.mubr.bf16.mxu0 %v910
  %1869 = vmatmul.mubr.bf16.gmra.mrb[0].mxu0 %v894
  %v1870 = vpop.f32.mrb[0].mxu0
  %v1871 = vadd.f32 %v1806, %v1870
  %v1872 = vpop.f32.mrb[0].mxu0
  %v1873 = vpop.f32.mrb[0].mxu0
  %v1874 = vadd.f32 %v1809, %v1873
  %v1875 = vpop.f32.mrb[0].mxu0
  %1876 = vmatprep.mubr.bf16.mxu0 %v914
  %1877 = vmatmul.mubr.bf16.gmra.mrb[0].mxu0 %v898
  %v1878 = vpop.f32.mrb[0].mxu0
  %v1879 = vadd.f32 %v1814, %v1878
  %v1880 = vpop.f32.mrb[0].mxu0
  %v1881 = vpop.f32.mrb[0].mxu0
  %v1882 = vadd.f32 %v1817, %v1881
  %v1883 = vpop.f32.mrb[0].mxu0
  %1884 = vdwg.mxu0
  %1885 = vmatprep.subr.bf16.mxu0 0
  %1886 = vmatpush1.bf16.msra.mxu0 %v1428
  %1887 = vmatprep.subr.bf16.mxu0 0
  %1888 = vmatpush1.bf16.msra.mxu0 %v1429
  %1889 = vmatprep.subr.bf16.mxu0 0
  %1890 = vmatpush1.bf16.msra.mxu0 %v1430
  %1891 = vmatprep.subr.bf16.mxu0 0
  %1892 = vmatpush1.bf16.msra.mxu0 %v1431
  %1893 = vmatprep.subr.bf16.mxu0 0
  %1894 = vmatpush1.bf16.msra.mxu0 %v1432
  %1895 = vmatprep.subr.bf16.mxu0 0
  %1896 = vmatpush1.bf16.msra.mxu0 %v1433
  %1897 = vmatprep.subr.bf16.mxu0 0
  %1898 = vmatpush1.bf16.msra.mxu0 %v1434
  %1899 = vmatprep.subr.bf16.mxu0 0
  %1900 = vmatpush1.bf16.msra.mxu0 %v1435
  %1901 = vmatprep.subr.bf16.mxu0 0
  %1902 = vmatpush1.bf16.msra.mxu0 %v1436
  %1903 = vmatprep.subr.bf16.mxu0 0
  %1904 = vmatpush1.bf16.msra.mxu0 %v1437
  %1905 = vmatprep.subr.bf16.mxu0 0
  %1906 = vmatpush1.bf16.msra.mxu0 %v1438
  %1907 = vmatprep.subr.bf16.mxu0 0
  %1908 = vmatpush1.bf16.msra.mxu0 %v1439
  %1909 = vmatprep.subr.bf16.mxu0 0
  %1910 = vmatpush1.bf16.msra.mxu0 %v1440
  %1911 = vmatprep.subr.bf16.mxu0 0
  %1912 = vmatpush1.bf16.msra.mxu0 %v1441
  %1913 = vmatprep.subr.bf16.mxu0 0
  %1914 = vmatpush1.bf16.msra.mxu0 %v1442
  %1915 = vmatprep.subr.bf16.mxu0 0
  %1916 = vmatpush1.bf16.msra.mxu0 %v1443
  %1917 = vmatprep.mubr.bf16.mxu0 %v934
  %1918 = vmatmul.mubr.bf16.gmra.mrb[0].mxu0 %v918
  %v1919 = vpop.f32.mrb[0].mxu0
  %v1920 = vadd.f32 %v1855, %v1919
  %v1921 = vpop.f32.mrb[0].mxu0
  %v1922 = vpop.f32.mrb[0].mxu0
  %v1923 = vadd.f32 %v1858, %v1922
  %v1924 = vpop.f32.mrb[0].mxu0
  %1925 = vmatprep.mubr.bf16.mxu0 %v938
  %1926 = vmatmul.mubr.bf16.gmra.mrb[0].mxu0 %v922
  %v1927 = vpop.f32.mrb[0].mxu0
  %v1928 = vadd.f32 %v1863, %v1927
  %v1929 = vpop.f32.mrb[0].mxu0
  %v1930 = vpop.f32.mrb[0].mxu0
  %v1931 = vadd.f32 %v1866, %v1930
  %v1932 = vpop.f32.mrb[0].mxu0
  %1933 = vmatprep.mubr.bf16.mxu0 %v942
  %1934 = vmatmul.mubr.bf16.gmra.mrb[0].mxu0 %v926
  %v1935 = vpop.f32.mrb[0].mxu0
  %v1936 = vadd.f32 %v1871, %v1935
  %v1937 = vpop.f32.mrb[0].mxu0
  %v1938 = vpop.f32.mrb[0].mxu0
  %v1939 = vadd.f32 %v1874, %v1938
  %v1940 = vpop.f32.mrb[0].mxu0
  %1941 = vmatprep.mubr.bf16.mxu0 %v946
  %1942 = vmatmul.mubr.bf16.gmra.mrb[0].mxu0 %v930
  %v1943 = vpop.f32.mrb[0].mxu0
  %v1944 = vadd.f32 %v1879, %v1943
  %v1945 = vpop.f32.mrb[0].mxu0
  %v1946 = vpop.f32.mrb[0].mxu0
  %v1947 = vadd.f32 %v1882, %v1946
  %v1948 = vpop.f32.mrb[0].mxu0
  %1949 = vdwg.mxu0
  %1950 = vmatprep.subr.bf16.mxu0 0
  %1951 = vmatpush1.bf16.msra.mxu0 %v1444
  %1952 = vmatprep.subr.bf16.mxu0 0
  %1953 = vmatpush1.bf16.msra.mxu0 %v1445
  %1954 = vmatprep.subr.bf16.mxu0 0
  %1955 = vmatpush1.bf16.msra.mxu0 %v1446
  %1956 = vmatprep.subr.bf16.mxu0 0
  %1957 = vmatpush1.bf16.msra.mxu0 %v1447
  %1958 = vmatprep.subr.bf16.mxu0 0
  %1959 = vmatpush1.bf16.msra.mxu0 0
  %1960 = vmatprep.subr.bf16.mxu0 0
  %1961 = vmatpush1.bf16.msra.mxu0 0
  %1962 = vmatprep.subr.bf16.mxu0 0
  %1963 = vmatpush1.bf16.msra.mxu0 0
  %1964 = vmatprep.subr.bf16.mxu0 0
  %1965 = vmatpush1.bf16.msra.mxu0 0
  %1966 = vmatprep.subr.bf16.mxu0 0
  %1967 = vmatpush1.bf16.msra.mxu0 0
  %1968 = vmatprep.subr.bf16.mxu0 0
  %1969 = vmatpush1.bf16.msra.mxu0 0
  %1970 = vmatprep.subr.bf16.mxu0 0
  %1971 = vmatpush1.bf16.msra.mxu0 0
  %1972 = vmatprep.subr.bf16.mxu0 0
  %1973 = vmatpush1.bf16.msra.mxu0 0
  %1974 = vmatprep.subr.bf16.mxu0 0
  %1975 = vmatpush1.bf16.msra.mxu0 0
  %1976 = vmatprep.subr.bf16.mxu0 0
  %1977 = vmatpush1.bf16.msra.mxu0 0
  %1978 = vmatprep.subr.bf16.mxu0 0
  %1979 = vmatpush1.bf16.msra.mxu0 0
  %1980 = vmatprep.subr.bf16.mxu0 0
  %1981 = vmatpush1.bf16.msra.mxu0 0
  %1982 = vmatprep.mubr.bf16.mxu0 0
  %1983 = vmatmul.mubr.bf16.gmra.mrb[0].mxu0 %v1549
  %v1984 = vpop.f32.mrb[0].mxu0
  %v1985 = vadd.f32 %v1920, %v1984
  %v1986 = vpop.f32.mrb[0].mxu0
  %v1987 = vpop.f32.mrb[0].mxu0
  %v1988 = vadd.f32 %v1923, %v1987
  %v1989 = vpop.f32.mrb[0].mxu0
  %1990 = vmatprep.mubr.bf16.mxu0 0
  %1991 = vmatmul.mubr.bf16.gmra.mrb[0].mxu0 %v1552
  %v1992 = vpop.f32.mrb[0].mxu0
  %v1993 = vadd.f32 %v1928, %v1992
  %v1994 = vpop.f32.mrb[0].mxu0
  %v1995 = vpop.f32.mrb[0].mxu0
  %v1996 = vadd.f32 %v1931, %v1995
  %v1997 = vpop.f32.mrb[0].mxu0
  %1998 = vmatprep.mubr.bf16.mxu0 0
  %1999 = vmatmul.mubr.bf16.gmra.mrb[0].mxu0 %v1555
  %v2000 = vpop.f32.mrb[0].mxu0
  %v2001 = vadd.f32 %v1936, %v2000
  %v2002 = vpop.f32.mrb[0].mxu0
  %v2003 = vpop.f32.mrb[0].mxu0
  %v2004 = vadd.f32 %v1939, %v2003
  %v2005 = vpop.f32.mrb[0].mxu0
  %2006 = vmatprep.mubr.bf16.mxu0 0
  %2007 = vmatmul.mubr.bf16.gmra.mrb[0].mxu0 %v1558
  %v2008 = vpop.f32.mrb[0].mxu0
  %v2009 = vadd.f32 %v1944, %v2008
  %v2010 = vpop.f32.mrb[0].mxu0
  %v2011 = vpop.f32.mrb[0].mxu0
  %v2012 = vadd.f32 %v1947, %v2011
  %v2013 = vpop.f32.mrb[0].mxu0
  %2014 = vdwg.mxu0
  %2015 = vrot.lane.b32.xlu0 %v535, 64
  %v2016 = vpop.permute.xlu0 %2015
  %2017 = vrot.lane.b32.xlu0 %v537, 64
  %v2018 = vpop.permute.xlu0 %2017
  %2019 = vrot.lane.b32.xlu0 %v593, 64
  %v2020 = vpop.permute.xlu0 %2019
  %2021 = vrot.lane.b32.xlu0 %v594, 64
  %v2022 = vpop.permute.xlu0 %2021
  %2023 = vrot.lane.b32.xlu0 %v824, 64
  %v2024 = vpop.permute.xlu0 %2023
  %2025 = vrot.lane.b32.xlu0 %v826, 64
  %v2026 = vpop.permute.xlu0 %2025
  %v2028 = vsel %vm623, %v451, %v458
  %v2031 = vsel %vm623, %v453, %v462
  %v2034 = vsel %vm623, %v499, %v2016
  %v2037 = vsel %vm623, %v509, %v550
  %v2040 = vsel %vm623, %v500, %v2018
  %v2043 = vsel %vm623, %v510, %v554
  %v2046 = vsel %vm623, %v575, %v2020
  %v2049 = vsel %vm623, %v576, %v2022
  %v2052 = vsel %vm623, %v611, %v618
  %v2055 = vsel %vm623, %v613, %v622
  %v2058 = vsel %vm623, %v788, %v2024
  %v2061 = vsel %vm623, %v798, %v839
  %v2064 = vsel %vm623, %v789, %v2026
  %v2067 = vsel %vm623, %v799, %v843
  %2069 = vrot.lane.b32.xlu0 %v882, 64
  %v2070 = vpop.permute.xlu0 %2069
  %2071 = vrot.lane.b32.xlu0 %v883, 64
  %v2072 = vpop.permute.xlu0 %2071
  %v2081 = vunpack.c.l.b16 %v135
  %v2082 = vunpack.c.l.b16 %v136
  %v2083 = vunpack.c.l.b16 %v137
  %v2084 = vunpack.c.l.b16 %v138
  %v2085 = vunpack.c.l.b16 %v139
  %v2086 = vunpack.c.l.b16 %v140
  %v2087 = vunpack.c.l.b16 %v141
  %v2088 = vunpack.c.l.b16 %v142
  %v2089 = vpack.c.b16 %v2082, %v2081
  %v2090 = vpack.c.b16 %v2084, %v2083
  %v2091 = vpack.c.b16 %v2086, %v2085
  %v2092 = vpack.c.b16 %v2088, %v2087
  %v2097 = vunpack.c.l.b16 %v143
  %v2098 = vunpack.c.l.b16 %v144
  %v2099 = vunpack.c.l.b16 %v145
  %v2100 = vunpack.c.l.b16 %v146
  %v2101 = vpack.c.b16 %v2098, %v2097
  %v2102 = vpack.c.b16 %v2100, %v2099
  %2103 = vrot.lane.b32.xlu0 %v2090, 64
  %v2104 = vpop.permute.xlu0 %2103
  %2105 = vrot.lane.b32.xlu0 %v2101, 64
  %v2106 = vpop.permute.xlu0 %2105
  %2107 = vrot.lane.b32.xlu0 %v2092, 64
  %v2108 = vpop.permute.xlu0 %2107
  %2109 = vrot.lane.b32.xlu0 %v2102, 64
  %v2110 = vpop.permute.xlu0 %2109
  %v2115 = vunpack.c.l.b16 %v147
  %v2116 = vunpack.c.l.b16 %v148
  %v2117 = vunpack.c.l.b16 %v149
  %v2118 = vunpack.c.l.b16 %v150
  %v2119 = vpack.c.b16 %v2116, %v2115
  %v2120 = vpack.c.b16 %v2118, %v2117
  %v2125 = vunpack.c.l.b16 %v151
  %v2126 = vunpack.c.l.b16 %v152
  %v2127 = vunpack.c.l.b16 %v153
  %v2128 = vunpack.c.l.b16 %v154
  %v2129 = vpack.c.b16 %v2126, %v2125
  %v2130 = vpack.c.b16 %v2128, %v2127
  %2131 = vrot.lane.b32.xlu0 %v2119, 64
  %v2132 = vpop.permute.xlu0 %2131
  %2133 = vrot.lane.b32.xlu0 %v2129, 64
  %v2134 = vpop.permute.xlu0 %2133
  %2135 = vrot.lane.b32.xlu0 %v2120, 64
  %v2136 = vpop.permute.xlu0 %2135
  %2137 = vrot.lane.b32.xlu0 %v2130, 64
  %v2138 = vpop.permute.xlu0 %2137
  %v2143 = vunpack.c.l.b16 %v155
  %v2144 = vunpack.c.l.b16 %v156
  %v2145 = vunpack.c.l.b16 %v157
  %v2146 = vunpack.c.l.b16 %v158
  %v2147 = vpack.c.b16 %v2144, %v2143
  %v2148 = vpack.c.b16 %v2146, %v2145
  %v2150 = vsel %vm623, %v864, %v2070
  %v2153 = vsel %vm623, %v865, %v2072
  %v2157 = vsel %vm623, %v2089, %v2104
  %v2161 = vsel %vm623, %v2090, %v2106
  %v2165 = vsel %vm623, %v2091, %v2108
  %v2169 = vsel %vm623, %v2092, %v2110
  %v2173 = vsel %vm623, %v2101, %v2132
  %v2177 = vsel %vm623, %v2119, %v2134
  %v2181 = vsel %vm623, %v2102, %v2136
  %v2185 = vsel %vm623, %v2120, %v2138
  %v2188 = vsel %vm623, %v2129, 0
  %v2191 = vsel %vm623, %v2147, 0
  %v2194 = vsel %vm623, %v2130, 0
  %v2197 = vsel %vm623, %v2148, 0
  %2199 = vmatprep.subr.bf16.mxu0 0
  %2200 = vmatpush1.bf16.msra.mxu0 %v1348
  %2201 = vmatprep.subr.bf16.mxu0 0
  %2202 = vmatpush1.bf16.msra.mxu0 %v1349
  %2203 = vmatprep.subr.bf16.mxu0 0
  %2204 = vmatpush1.bf16.msra.mxu0 %v1350
  %2205 = vmatprep.subr.bf16.mxu0 0
  %2206 = vmatpush1.bf16.msra.mxu0 %v1351
  %2207 = vmatprep.subr.bf16.mxu0 0
  %2208 = vmatpush1.bf16.msra.mxu0 %v1352
  %2209 = vmatprep.subr.bf16.mxu0 0
  %2210 = vmatpush1.bf16.msra.mxu0 %v1353
  %2211 = vmatprep.subr.bf16.mxu0 0
  %2212 = vmatpush1.bf16.msra.mxu0 %v1354
  %2213 = vmatprep.subr.bf16.mxu0 0
  %2214 = vmatpush1.bf16.msra.mxu0 %v1355
  %2215 = vmatprep.subr.bf16.mxu0 0
  %2216 = vmatpush1.bf16.msra.mxu0 %v1356
  %2217 = vmatprep.subr.bf16.mxu0 0
  %2218 = vmatpush1.bf16.msra.mxu0 %v1357
  %2219 = vmatprep.subr.bf16.mxu0 0
  %2220 = vmatpush1.bf16.msra.mxu0 %v1358
  %2221 = vmatprep.subr.bf16.mxu0 0
  %2222 = vmatpush1.bf16.msra.mxu0 %v1359
  %2223 = vmatprep.subr.bf16.mxu0 0
  %2224 = vmatpush1.bf16.msra.mxu0 %v1360
  %2225 = vmatprep.subr.bf16.mxu0 0
  %2226 = vmatpush1.bf16.msra.mxu0 %v1361
  %2227 = vmatprep.subr.bf16.mxu0 0
  %2228 = vmatpush1.bf16.msra.mxu0 %v1362
  %2229 = vmatprep.subr.bf16.mxu0 0
  %2230 = vmatpush1.bf16.msra.mxu0 %v1363
  %2231 = vmatprep.mubr.bf16.mxu0 %v678
  %2232 = vmatmul.mubr.bf16.gmra.mrb[0].mxu0 %v2028
  %v2233 = vpop.f32.mrb[0].mxu0
  %v2234 = vadd.f32 0.0, %v2233
  %v2235 = vpop.f32.mrb[0].mxu0
  %v2236 = vpop.f32.mrb[0].mxu0
  %v2237 = vadd.f32 0.0, %v2236
  %v2238 = vpop.f32.mrb[0].mxu0
  %2239 = vmatprep.mubr.bf16.mxu0 %v690
  %2240 = vmatmul.mubr.bf16.gmra.mrb[0].mxu0 %v674
  %v2241 = vpop.f32.mrb[0].mxu0
  %v2242 = vadd.f32 0.0, %v2241
  %v2243 = vpop.f32.mrb[0].mxu0
  %v2244 = vpop.f32.mrb[0].mxu0
  %v2245 = vadd.f32 0.0, %v2244
  %v2246 = vpop.f32.mrb[0].mxu0
  %2247 = vmatprep.mubr.bf16.mxu0 %v686
  %2248 = vmatmul.mubr.bf16.gmra.mrb[0].mxu0 %v2031
  %v2249 = vpop.f32.mrb[0].mxu0
  %v2250 = vadd.f32 0.0, %v2249
  %v2251 = vpop.f32.mrb[0].mxu0
  %v2252 = vpop.f32.mrb[0].mxu0
  %v2253 = vadd.f32 0.0, %v2252
  %v2254 = vpop.f32.mrb[0].mxu0
  %2255 = vmatprep.mubr.bf16.mxu0 %v698
  %2256 = vmatmul.mubr.bf16.gmra.mrb[0].mxu0 %v682
  %v2257 = vpop.f32.mrb[0].mxu0
  %v2258 = vadd.f32 0.0, %v2257
  %v2259 = vpop.f32.mrb[0].mxu0
  %v2260 = vpop.f32.mrb[0].mxu0
  %v2261 = vadd.f32 0.0, %v2260
  %v2262 = vpop.f32.mrb[0].mxu0
  %2263 = vdwg.mxu0
  %2264 = vmatprep.subr.bf16.mxu0 0
  %2265 = vmatpush1.bf16.msra.mxu0 %v1364
  %2266 = vmatprep.subr.bf16.mxu0 0
  %2267 = vmatpush1.bf16.msra.mxu0 %v1365
  %2268 = vmatprep.subr.bf16.mxu0 0
  %2269 = vmatpush1.bf16.msra.mxu0 %v1366
  %2270 = vmatprep.subr.bf16.mxu0 0
  %2271 = vmatpush1.bf16.msra.mxu0 %v1367
  %2272 = vmatprep.subr.bf16.mxu0 0
  %2273 = vmatpush1.bf16.msra.mxu0 %v1368
  %2274 = vmatprep.subr.bf16.mxu0 0
  %2275 = vmatpush1.bf16.msra.mxu0 %v1369
  %2276 = vmatprep.subr.bf16.mxu0 0
  %2277 = vmatpush1.bf16.msra.mxu0 %v1370
  %2278 = vmatprep.subr.bf16.mxu0 0
  %2279 = vmatpush1.bf16.msra.mxu0 %v1371
  %2280 = vmatprep.subr.bf16.mxu0 0
  %2281 = vmatpush1.bf16.msra.mxu0 %v1372
  %2282 = vmatprep.subr.bf16.mxu0 0
  %2283 = vmatpush1.bf16.msra.mxu0 %v1373
  %2284 = vmatprep.subr.bf16.mxu0 0
  %2285 = vmatpush1.bf16.msra.mxu0 %v1374
  %2286 = vmatprep.subr.bf16.mxu0 0
  %2287 = vmatpush1.bf16.msra.mxu0 %v1375
  %2288 = vmatprep.subr.bf16.mxu0 0
  %2289 = vmatpush1.bf16.msra.mxu0 %v1376
  %2290 = vmatprep.subr.bf16.mxu0 0
  %2291 = vmatpush1.bf16.msra.mxu0 %v1377
  %2292 = vmatprep.subr.bf16.mxu0 0
  %2293 = vmatpush1.bf16.msra.mxu0 %v1378
  %2294 = vmatprep.subr.bf16.mxu0 0
  %2295 = vmatpush1.bf16.msra.mxu0 %v1379
  %2296 = vmatprep.mubr.bf16.mxu0 %v710
  %2297 = vmatmul.mubr.bf16.gmra.mrb[0].mxu0 %v2034
  %v2298 = vpop.f32.mrb[0].mxu0
  %v2299 = vadd.f32 %v2234, %v2298
  %v2300 = vpop.f32.mrb[0].mxu0
  %v2301 = vpop.f32.mrb[0].mxu0
  %v2302 = vadd.f32 %v2237, %v2301
  %v2303 = vpop.f32.mrb[0].mxu0
  %2304 = vmatprep.mubr.bf16.mxu0 %v722
  %2305 = vmatmul.mubr.bf16.gmra.mrb[0].mxu0 %v2037
  %v2306 = vpop.f32.mrb[0].mxu0
  %v2307 = vadd.f32 %v2242, %v2306
  %v2308 = vpop.f32.mrb[0].mxu0
  %v2309 = vpop.f32.mrb[0].mxu0
  %v2310 = vadd.f32 %v2245, %v2309
  %v2311 = vpop.f32.mrb[0].mxu0
  %2312 = vmatprep.mubr.bf16.mxu0 %v718
  %2313 = vmatmul.mubr.bf16.gmra.mrb[0].mxu0 %v2040
  %v2314 = vpop.f32.mrb[0].mxu0
  %v2315 = vadd.f32 %v2250, %v2314
  %v2316 = vpop.f32.mrb[0].mxu0
  %v2317 = vpop.f32.mrb[0].mxu0
  %v2318 = vadd.f32 %v2253, %v2317
  %v2319 = vpop.f32.mrb[0].mxu0
  %2320 = vmatprep.mubr.bf16.mxu0 %v730
  %2321 = vmatmul.mubr.bf16.gmra.mrb[0].mxu0 %v2043
  %v2322 = vpop.f32.mrb[0].mxu0
  %v2323 = vadd.f32 %v2258, %v2322
  %v2324 = vpop.f32.mrb[0].mxu0
  %v2325 = vpop.f32.mrb[0].mxu0
  %v2326 = vadd.f32 %v2261, %v2325
  %v2327 = vpop.f32.mrb[0].mxu0
  %2328 = vdwg.mxu0
  %2329 = vmatprep.subr.bf16.mxu0 0
  %2330 = vmatpush1.bf16.msra.mxu0 %v1380
  %2331 = vmatprep.subr.bf16.mxu0 0
  %2332 = vmatpush1.bf16.msra.mxu0 %v1381
  %2333 = vmatprep.subr.bf16.mxu0 0
  %2334 = vmatpush1.bf16.msra.mxu0 %v1382
  %2335 = vmatprep.subr.bf16.mxu0 0
  %2336 = vmatpush1.bf16.msra.mxu0 %v1383
  %2337 = vmatprep.subr.bf16.mxu0 0
  %2338 = vmatpush1.bf16.msra.mxu0 %v1384
  %2339 = vmatprep.subr.bf16.mxu0 0
  %2340 = vmatpush1.bf16.msra.mxu0 %v1385
  %2341 = vmatprep.subr.bf16.mxu0 0
  %2342 = vmatpush1.bf16.msra.mxu0 %v1386
  %2343 = vmatprep.subr.bf16.mxu0 0
  %2344 = vmatpush1.bf16.msra.mxu0 %v1387
  %2345 = vmatprep.subr.bf16.mxu0 0
  %2346 = vmatpush1.bf16.msra.mxu0 %v1388
  %2347 = vmatprep.subr.bf16.mxu0 0
  %2348 = vmatpush1.bf16.msra.mxu0 %v1389
  %2349 = vmatprep.subr.bf16.mxu0 0
  %2350 = vmatpush1.bf16.msra.mxu0 %v1390
  %2351 = vmatprep.subr.bf16.mxu0 0
  %2352 = vmatpush1.bf16.msra.mxu0 %v1391
  %2353 = vmatprep.subr.bf16.mxu0 0
  %2354 = vmatpush1.bf16.msra.mxu0 %v1392
  %2355 = vmatprep.subr.bf16.mxu0 0
  %2356 = vmatpush1.bf16.msra.mxu0 %v1393
  %2357 = vmatprep.subr.bf16.mxu0 0
  %2358 = vmatpush1.bf16.msra.mxu0 %v1394
  %2359 = vmatprep.subr.bf16.mxu0 0
  %2360 = vmatpush1.bf16.msra.mxu0 %v1395
  %2361 = vmatprep.mubr.bf16.mxu0 %v2052
  %2362 = vmatmul.mubr.bf16.gmra.mrb[0].mxu0 %v726
  %v2363 = vpop.f32.mrb[0].mxu0
  %v2364 = vadd.f32 %v2299, %v2363
  %v2365 = vpop.f32.mrb[0].mxu0
  %v2366 = vpop.f32.mrb[0].mxu0
  %v2367 = vadd.f32 %v2302, %v2366
  %v2368 = vpop.f32.mrb[0].mxu0
  %2369 = vmatprep.mubr.bf16.mxu0 %v886
  %2370 = vmatmul.mubr.bf16.gmra.mrb[0].mxu0 %v2046
  %v2371 = vpop.f32.mrb[0].mxu0
  %v2372 = vadd.f32 %v2307, %v2371
  %v2373 = vpop.f32.mrb[0].mxu0
  %v2374 = vpop.f32.mrb[0].mxu0
  %v2375 = vadd.f32 %v2310, %v2374
  %v2376 = vpop.f32.mrb[0].mxu0
  %2377 = vmatprep.mubr.bf16.mxu0 %v2055
  %2378 = vmatmul.mubr.bf16.gmra.mrb[0].mxu0 %v734
  %v2379 = vpop.f32.mrb[0].mxu0
  %v2380 = vadd.f32 %v2315, %v2379
  %v2381 = vpop.f32.mrb[0].mxu0
  %v2382 = vpop.f32.mrb[0].mxu0
  %v2383 = vadd.f32 %v2318, %v2382
  %v2384 = vpop.f32.mrb[0].mxu0
  %2385 = vmatprep.mubr.bf16.mxu0 %v894
  %2386 = vmatmul.mubr.bf16.gmra.mrb[0].mxu0 %v2049
  %v2387 = vpop.f32.mrb[0].mxu0
  %v2388 = vadd.f32 %v2323, %v2387
  %v2389 = vpop.f32.mrb[0].mxu0
  %v2390 = vpop.f32.mrb[0].mxu0
  %v2391 = vadd.f32 %v2326, %v2390
  %v2392 = vpop.f32.mrb[0].mxu0
  %2393 = vdwg.mxu0
  %2394 = vmatprep.subr.bf16.mxu0 0
  %2395 = vmatpush1.bf16.msra.mxu0 %v1396
  %2396 = vmatprep.subr.bf16.mxu0 0
  %2397 = vmatpush1.bf16.msra.mxu0 %v1397
  %2398 = vmatprep.subr.bf16.mxu0 0
  %2399 = vmatpush1.bf16.msra.mxu0 %v1398
  %2400 = vmatprep.subr.bf16.mxu0 0
  %2401 = vmatpush1.bf16.msra.mxu0 %v1399
  %2402 = vmatprep.subr.bf16.mxu0 0
  %2403 = vmatpush1.bf16.msra.mxu0 %v1400
  %2404 = vmatprep.subr.bf16.mxu0 0
  %2405 = vmatpush1.bf16.msra.mxu0 %v1401
  %2406 = vmatprep.subr.bf16.mxu0 0
  %2407 = vmatpush1.bf16.msra.mxu0 %v1402
  %2408 = vmatprep.subr.bf16.mxu0 0
  %2409 = vmatpush1.bf16.msra.mxu0 %v1403
  %2410 = vmatprep.subr.bf16.mxu0 0
  %2411 = vmatpush1.bf16.msra.mxu0 %v1404
  %2412 = vmatprep.subr.bf16.mxu0 0
  %2413 = vmatpush1.bf16.msra.mxu0 %v1405
  %2414 = vmatprep.subr.bf16.mxu0 0
  %2415 = vmatpush1.bf16.msra.mxu0 %v1406
  %2416 = vmatprep.subr.bf16.mxu0 0
  %2417 = vmatpush1.bf16.msra.mxu0 %v1407
  %2418 = vmatprep.subr.bf16.mxu0 0
  %2419 = vmatpush1.bf16.msra.mxu0 %v1408
  %2420 = vmatprep.subr.bf16.mxu0 0
  %2421 = vmatpush1.bf16.msra.mxu0 %v1409
  %2422 = vmatprep.subr.bf16.mxu0 0
  %2423 = vmatpush1.bf16.msra.mxu0 %v1410
  %2424 = vmatprep.subr.bf16.mxu0 0
  %2425 = vmatpush1.bf16.msra.mxu0 %v1411
  %2426 = vmatprep.mubr.bf16.mxu0 %v2058
  %2427 = vmatmul.mubr.bf16.gmra.mrb[0].mxu0 %v890
  %v2428 = vpop.f32.mrb[0].mxu0
  %v2429 = vadd.f32 %v2364, %v2428
  %v2430 = vpop.f32.mrb[0].mxu0
  %v2431 = vpop.f32.mrb[0].mxu0
  %v2432 = vadd.f32 %v2367, %v2431
  %v2433 = vpop.f32.mrb[0].mxu0
  %2434 = vmatprep.mubr.bf16.mxu0 %v2061
  %2435 = vmatmul.mubr.bf16.gmra.mrb[0].mxu0 %v902
  %v2436 = vpop.f32.mrb[0].mxu0
  %v2437 = vadd.f32 %v2372, %v2436
  %v2438 = vpop.f32.mrb[0].mxu0
  %v2439 = vpop.f32.mrb[0].mxu0
  %v2440 = vadd.f32 %v2375, %v2439
  %v2441 = vpop.f32.mrb[0].mxu0
  %2442 = vmatprep.mubr.bf16.mxu0 %v2064
  %2443 = vmatmul.mubr.bf16.gmra.mrb[0].mxu0 %v898
  %v2444 = vpop.f32.mrb[0].mxu0
  %v2445 = vadd.f32 %v2380, %v2444
  %v2446 = vpop.f32.mrb[0].mxu0
  %v2447 = vpop.f32.mrb[0].mxu0
  %v2448 = vadd.f32 %v2383, %v2447
  %v2449 = vpop.f32.mrb[0].mxu0
  %2450 = vmatprep.mubr.bf16.mxu0 %v2067
  %2451 = vmatmul.mubr.bf16.gmra.mrb[0].mxu0 %v910
  %v2452 = vpop.f32.mrb[0].mxu0
  %v2453 = vadd.f32 %v2388, %v2452
  %v2454 = vpop.f32.mrb[0].mxu0
  %v2455 = vpop.f32.mrb[0].mxu0
  %v2456 = vadd.f32 %v2391, %v2455
  %v2457 = vpop.f32.mrb[0].mxu0
  %2458 = vdwg.mxu0
  %2459 = vmatprep.subr.bf16.mxu0 0
  %2460 = vmatpush1.bf16.msra.mxu0 %v1412
  %2461 = vmatprep.subr.bf16.mxu0 0
  %2462 = vmatpush1.bf16.msra.mxu0 %v1413
  %2463 = vmatprep.subr.bf16.mxu0 0
  %2464 = vmatpush1.bf16.msra.mxu0 %v1414
  %2465 = vmatprep.subr.bf16.mxu0 0
  %2466 = vmatpush1.bf16.msra.mxu0 %v1415
  %2467 = vmatprep.subr.bf16.mxu0 0
  %2468 = vmatpush1.bf16.msra.mxu0 %v1416
  %2469 = vmatprep.subr.bf16.mxu0 0
  %2470 = vmatpush1.bf16.msra.mxu0 %v1417
  %2471 = vmatprep.subr.bf16.mxu0 0
  %2472 = vmatpush1.bf16.msra.mxu0 %v1418
  %2473 = vmatprep.subr.bf16.mxu0 0
  %2474 = vmatpush1.bf16.msra.mxu0 %v1419
  %2475 = vmatprep.subr.bf16.mxu0 0
  %2476 = vmatpush1.bf16.msra.mxu0 %v1420
  %2477 = vmatprep.subr.bf16.mxu0 0
  %2478 = vmatpush1.bf16.msra.mxu0 %v1421
  %2479 = vmatprep.subr.bf16.mxu0 0
  %2480 = vmatpush1.bf16.msra.mxu0 %v1422
  %2481 = vmatprep.subr.bf16.mxu0 0
  %2482 = vmatpush1.bf16.msra.mxu0 %v1423
  %2483 = vmatprep.subr.bf16.mxu0 0
  %2484 = vmatpush1.bf16.msra.mxu0 %v1424
  %2485 = vmatprep.subr.bf16.mxu0 0
  %2486 = vmatpush1.bf16.msra.mxu0 %v1425
  %2487 = vmatprep.subr.bf16.mxu0 0
  %2488 = vmatpush1.bf16.msra.mxu0 %v1426
  %2489 = vmatprep.subr.bf16.mxu0 0
  %2490 = vmatpush1.bf16.msra.mxu0 %v1427
  %2491 = vmatprep.mubr.bf16.mxu0 %v938
  %2492 = vmatmul.mubr.bf16.gmra.mrb[0].mxu0 %v922
  %v2493 = vpop.f32.mrb[0].mxu0
  %v2494 = vadd.f32 %v2429, %v2493
  %v2495 = vpop.f32.mrb[0].mxu0
  %v2496 = vpop.f32.mrb[0].mxu0
  %v2497 = vadd.f32 %v2432, %v2496
  %v2498 = vpop.f32.mrb[0].mxu0
  %2499 = vmatprep.mubr.bf16.mxu0 %v2150
  %2500 = vmatmul.mubr.bf16.gmra.mrb[0].mxu0 %v934
  %v2501 = vpop.f32.mrb[0].mxu0
  %v2502 = vadd.f32 %v2437, %v2501
  %v2503 = vpop.f32.mrb[0].mxu0
  %v2504 = vpop.f32.mrb[0].mxu0
  %v2505 = vadd.f32 %v2440, %v2504
  %v2506 = vpop.f32.mrb[0].mxu0
  %2507 = vmatprep.mubr.bf16.mxu0 %v946
  %2508 = vmatmul.mubr.bf16.gmra.mrb[0].mxu0 %v930
  %v2509 = vpop.f32.mrb[0].mxu0
  %v2510 = vadd.f32 %v2445, %v2509
  %v2511 = vpop.f32.mrb[0].mxu0
  %v2512 = vpop.f32.mrb[0].mxu0
  %v2513 = vadd.f32 %v2448, %v2512
  %v2514 = vpop.f32.mrb[0].mxu0
  %2515 = vmatprep.mubr.bf16.mxu0 %v2153
  %2516 = vmatmul.mubr.bf16.gmra.mrb[0].mxu0 %v942
  %v2517 = vpop.f32.mrb[0].mxu0
  %v2518 = vadd.f32 %v2453, %v2517
  %v2519 = vpop.f32.mrb[0].mxu0
  %v2520 = vpop.f32.mrb[0].mxu0
  %v2521 = vadd.f32 %v2456, %v2520
  %v2522 = vpop.f32.mrb[0].mxu0
  %2523 = vdwg.mxu0
  %2524 = vmatprep.subr.bf16.mxu0 0
  %2525 = vmatpush1.bf16.msra.mxu0 %v1428
  %2526 = vmatprep.subr.bf16.mxu0 0
  %2527 = vmatpush1.bf16.msra.mxu0 %v1429
  %2528 = vmatprep.subr.bf16.mxu0 0
  %2529 = vmatpush1.bf16.msra.mxu0 %v1430
  %2530 = vmatprep.subr.bf16.mxu0 0
  %2531 = vmatpush1.bf16.msra.mxu0 %v1431
  %2532 = vmatprep.subr.bf16.mxu0 0
  %2533 = vmatpush1.bf16.msra.mxu0 %v1432
  %2534 = vmatprep.subr.bf16.mxu0 0
  %2535 = vmatpush1.bf16.msra.mxu0 %v1433
  %2536 = vmatprep.subr.bf16.mxu0 0
  %2537 = vmatpush1.bf16.msra.mxu0 %v1434
  %2538 = vmatprep.subr.bf16.mxu0 0
  %2539 = vmatpush1.bf16.msra.mxu0 %v1435
  %2540 = vmatprep.subr.bf16.mxu0 0
  %2541 = vmatpush1.bf16.msra.mxu0 %v1436
  %2542 = vmatprep.subr.bf16.mxu0 0
  %2543 = vmatpush1.bf16.msra.mxu0 %v1437
  %2544 = vmatprep.subr.bf16.mxu0 0
  %2545 = vmatpush1.bf16.msra.mxu0 %v1438
  %2546 = vmatprep.subr.bf16.mxu0 0
  %2547 = vmatpush1.bf16.msra.mxu0 %v1439
  %2548 = vmatprep.subr.bf16.mxu0 0
  %2549 = vmatpush1.bf16.msra.mxu0 %v1440
  %2550 = vmatprep.subr.bf16.mxu0 0
  %2551 = vmatpush1.bf16.msra.mxu0 %v1441
  %2552 = vmatprep.subr.bf16.mxu0 0
  %2553 = vmatpush1.bf16.msra.mxu0 %v1442
  %2554 = vmatprep.subr.bf16.mxu0 0
  %2555 = vmatpush1.bf16.msra.mxu0 %v1443
  %2556 = vmatprep.mubr.bf16.mxu0 %v2173
  %2557 = vmatmul.mubr.bf16.gmra.mrb[0].mxu0 %v2157
  %v2558 = vpop.f32.mrb[0].mxu0
  %v2559 = vadd.f32 %v2494, %v2558
  %v2560 = vpop.f32.mrb[0].mxu0
  %v2561 = vpop.f32.mrb[0].mxu0
  %v2562 = vadd.f32 %v2497, %v2561
  %v2563 = vpop.f32.mrb[0].mxu0
  %2564 = vmatprep.mubr.bf16.mxu0 %v2177
  %2565 = vmatmul.mubr.bf16.gmra.mrb[0].mxu0 %v2161
  %v2566 = vpop.f32.mrb[0].mxu0
  %v2567 = vadd.f32 %v2502, %v2566
  %v2568 = vpop.f32.mrb[0].mxu0
  %v2569 = vpop.f32.mrb[0].mxu0
  %v2570 = vadd.f32 %v2505, %v2569
  %v2571 = vpop.f32.mrb[0].mxu0
  %2572 = vmatprep.mubr.bf16.mxu0 %v2181
  %2573 = vmatmul.mubr.bf16.gmra.mrb[0].mxu0 %v2165
  %v2574 = vpop.f32.mrb[0].mxu0
  %v2575 = vadd.f32 %v2510, %v2574
  %v2576 = vpop.f32.mrb[0].mxu0
  %v2577 = vpop.f32.mrb[0].mxu0
  %v2578 = vadd.f32 %v2513, %v2577
  %v2579 = vpop.f32.mrb[0].mxu0
  %2580 = vmatprep.mubr.bf16.mxu0 %v2185
  %2581 = vmatmul.mubr.bf16.gmra.mrb[0].mxu0 %v2169
  %v2582 = vpop.f32.mrb[0].mxu0
  %v2583 = vadd.f32 %v2518, %v2582
  %v2584 = vpop.f32.mrb[0].mxu0
  %v2585 = vpop.f32.mrb[0].mxu0
  %v2586 = vadd.f32 %v2521, %v2585
  %v2587 = vpop.f32.mrb[0].mxu0
  %2588 = vdwg.mxu0
  %2589 = vmatprep.subr.bf16.mxu0 0
  %2590 = vmatpush1.bf16.msra.mxu0 %v1444
  %2591 = vmatprep.subr.bf16.mxu0 0
  %2592 = vmatpush1.bf16.msra.mxu0 %v1445
  %2593 = vmatprep.subr.bf16.mxu0 0
  %2594 = vmatpush1.bf16.msra.mxu0 %v1446
  %2595 = vmatprep.subr.bf16.mxu0 0
  %2596 = vmatpush1.bf16.msra.mxu0 %v1447
  %2597 = vmatprep.subr.bf16.mxu0 0
  %2598 = vmatpush1.bf16.msra.mxu0 0
  %2599 = vmatprep.subr.bf16.mxu0 0
  %2600 = vmatpush1.bf16.msra.mxu0 0
  %2601 = vmatprep.subr.bf16.mxu0 0
  %2602 = vmatpush1.bf16.msra.mxu0 0
  %2603 = vmatprep.subr.bf16.mxu0 0
  %2604 = vmatpush1.bf16.msra.mxu0 0
  %2605 = vmatprep.subr.bf16.mxu0 0
  %2606 = vmatpush1.bf16.msra.mxu0 0
  %2607 = vmatprep.subr.bf16.mxu0 0
  %2608 = vmatpush1.bf16.msra.mxu0 0
  %2609 = vmatprep.subr.bf16.mxu0 0
  %2610 = vmatpush1.bf16.msra.mxu0 0
  %2611 = vmatprep.subr.bf16.mxu0 0
  %2612 = vmatpush1.bf16.msra.mxu0 0
  %2613 = vmatprep.subr.bf16.mxu0 0
  %2614 = vmatpush1.bf16.msra.mxu0 0
  %2615 = vmatprep.subr.bf16.mxu0 0
  %2616 = vmatpush1.bf16.msra.mxu0 0
  %2617 = vmatprep.subr.bf16.mxu0 0
  %2618 = vmatpush1.bf16.msra.mxu0 0
  %2619 = vmatprep.subr.bf16.mxu0 0
  %2620 = vmatpush1.bf16.msra.mxu0 0
  %2621 = vmatprep.mubr.bf16.mxu0 0
  %2622 = vmatmul.mubr.bf16.gmra.mrb[0].mxu0 %v2188
  %v2623 = vpop.f32.mrb[0].mxu0
  %v2624 = vadd.f32 %v2559, %v2623
  %v2625 = vpop.f32.mrb[0].mxu0
  %v2626 = vpop.f32.mrb[0].mxu0
  %v2627 = vadd.f32 %v2562, %v2626
  %v2628 = vpop.f32.mrb[0].mxu0
  %2629 = vmatprep.mubr.bf16.mxu0 0
  %2630 = vmatmul.mubr.bf16.gmra.mrb[0].mxu0 %v2191
  %v2631 = vpop.f32.mrb[0].mxu0
  %v2632 = vadd.f32 %v2567, %v2631
  %v2633 = vpop.f32.mrb[0].mxu0
  %v2634 = vpop.f32.mrb[0].mxu0
  %v2635 = vadd.f32 %v2570, %v2634
  %v2636 = vpop.f32.mrb[0].mxu0
  %2637 = vmatprep.mubr.bf16.mxu0 0
  %2638 = vmatmul.mubr.bf16.gmra.mrb[0].mxu0 %v2194
  %v2639 = vpop.f32.mrb[0].mxu0
  %v2640 = vadd.f32 %v2575, %v2639
  %v2641 = vpop.f32.mrb[0].mxu0
  %v2642 = vpop.f32.mrb[0].mxu0
  %v2643 = vadd.f32 %v2578, %v2642
  %v2644 = vpop.f32.mrb[0].mxu0
  %2645 = vmatprep.mubr.bf16.mxu0 0
  %2646 = vmatmul.mubr.bf16.gmra.mrb[0].mxu0 %v2197
  %v2647 = vpop.f32.mrb[0].mxu0
  %v2648 = vadd.f32 %v2583, %v2647
  %v2649 = vpop.f32.mrb[0].mxu0
  %v2650 = vpop.f32.mrb[0].mxu0
  %v2651 = vadd.f32 %v2586, %v2650
  %v2652 = vpop.f32.mrb[0].mxu0
  %2653 = vdwg.mxu0
  %v2654 = vmax.f32 %v1985, %v2624
  %v2655 = vmax.f32 %v1988, %v2627
  %v2656 = vmax.f32 %v1993, %v2632
  %v2657 = vmax.f32 %v1996, %v2635
  %v2658 = vmax.f32 %v2001, %v2640
  %v2659 = vmax.f32 %v2004, %v2643
  %v2660 = vmax.f32 %v2009, %v2648
  %v2661 = vmax.f32 %v2012, %v2651
  %v2662 = vmax.f32 %v2654, %v2656
  %v2663 = vmax.f32 %v2655, %v2657
  %v2664 = vmax.f32 %v2658, %v2660
  %v2665 = vmax.f32 %v2659, %v2661
  %v2666 = vld [vmem:[%s2] sm:$0x1]
  %v2668 = vlaneseq
  %v2669 = vshrl.u32 %v2668, 7
  %v2670 = vsub.s32 0, %v2669
  %v2671 = vrot.slane %v2666, %v2670
  %v2673 = vadd.f32 %v2662, %v2671
  %v2674 = vadd.f32 %v2663, %v2671
  %v2675 = vadd.f32 %v2664, %v2671
  %v2676 = vadd.f32 %v2665, %v2671
  %v2677 = vmax.f32 %v2673, 0.0
  %v2678 = vmax.f32 %v2674, 0.0
  %v2679 = vmax.f32 %v2675, 0.0
  %v2680 = vmax.f32 %v2676, 0.0
  %v2681 = vpack.c.bf16 %v2678, %v2677
  %v2682 = vpack.c.bf16 %v2680, %v2679
  %v2685 = vunpack.c.l.b16 %v2681
  %v2686 = vunpack.c.h.b16 %v2681
  %v2687 = vunpack.c.l.b16 %v2682
  %v2688 = vunpack.c.h.b16 %v2682
  %v2689 = vpack.c.b16 %v2685, %v2685
  %v2690 = vpack.c.b16 %v2686, %v2686
  %v2691 = vpack.c.b16 %v2687, %v2687
  %v2692 = vpack.c.b16 %v2688, %v2688
  %vm2697 = vcmask 519168
  %2698 = vst.msk [vmem:[%s3] sm:$0xf] %vm2697, %v2689
  %2699 = vst.msk [vmem:[%s3 + $0x4] sm:$0xf] %vm2697, %v2690
  %2700 = vst.msk [vmem:[%s3 + $0x8] sm:$0xf] %vm2697, %v2691
  %2701 = vst.msk [vmem:[%s3 + $0xc] sm:$0xf] %vm2697, %v2692
  // Predicated region
  $region14: #{lenet_forward.4} parent=0 // pred_check
    _
  $region15: #{lenet_forward.4} parent=0 // pred_check_branch
    %2703 = sbr.rel (0) target = $region17
  $region16: #{lenet_forward.4} parent=0 // pred_region
    _
  $region17: #{lenet_forward.4} parent=0 // pred_fallthru
    _
  // Predicated region
  $region18: #{lenet_forward.4} parent=0 // pred_check
    _
  $region19: #{lenet_forward.4} parent=0 // pred_check_branch
    %2705 = sbr.rel (0) target = $region21
  $region20: #{lenet_forward.4} parent=0 // pred_region
    _
  $region21: #{lenet_forward.4} parent=0 // pred_fallthru
    _

// kernel: lenet_forward.5
$region0: #{lenet_forward.5}
  #allocation0 [shape = 'u32[]', space=smem, size = 0x4, offset = 0x4, fixed_abs, tag = 'smem constant byte address 0x4 - core index']
  #allocation1 [shape = 'u32[144,128]{1,0:T(1,128)}', space=vmem, size = 0x12000, scoped, tag = 'internal scratch']
  %s0 = inlined_call_operand.vmem [shape: bf16[8,1024], index: 0, kind: input, shape index: {}]
  %s1 = inlined_call_operand.vmem [shape: bf16[1024,1024], index: 1, kind: input, shape index: {}]
  %s2 = inlined_call_operand.vmem [shape: f32[1,1024], index: 2, kind: input, shape index: {}]
  %s3 = inlined_call_operand.vmem [shape: bf16[1024,128], index: 3, kind: input, shape index: {}]
  %s4 = inlined_call_operand.vmem [shape: f32[1,128], index: 4, kind: input, shape index: {}]
  %s5 = inlined_call_operand.vmem [shape: f32[8,128], index: 5, kind: output, shape index: {}]
  %s6 = sld [smem:[#allocation0]]
  $region30: #{lenet_forward.5} parent=0
    _
  %s8 = ssub.s32 1, %s6
  %s9 = scalar_select 0, %s8, %s6
  // Predicated region
  $region2: #{lenet_forward.5} parent=0 // pred_check
    _
  $region3: #{lenet_forward.5} parent=0 // pred_check_branch
    %11 = sbr.rel (0) target = $region5
  $region4: #{lenet_forward.5} parent=0 // pred_region
    _
  $region5: #{lenet_forward.5} parent=0 // pred_fallthru
    _
  // Predicated region
  $region6: #{lenet_forward.5} parent=0 // pred_check
    _
  $region7: #{lenet_forward.5} parent=0 // pred_check_branch
    %13 = sbr.rel (0) target = $region9
  $region8: #{lenet_forward.5} parent=0 // pred_region
    _
  $region9: #{lenet_forward.5} parent=0 // pred_fallthru
    _
  // Predicated region
  $region10: #{lenet_forward.5} parent=0 // pred_check
    _
  $region11: #{lenet_forward.5} parent=0 // pred_check_branch
    %15 = sbr.rel (0) target = $region13
  $region12: #{lenet_forward.5} parent=0 // pred_region
    _
  $region13: #{lenet_forward.5} parent=0 // pred_fallthru
    _
  // Predicated region
  $region14: #{lenet_forward.5} parent=0 // pred_check
    _
  $region15: #{lenet_forward.5} parent=0 // pred_check_branch
    %17 = sbr.rel (0) target = $region17
  $region16: #{lenet_forward.5} parent=0 // pred_region
    _
  $region17: #{lenet_forward.5} parent=0 // pred_fallthru
    _
  // Predicated region
  $region18: #{lenet_forward.5} parent=0 // pred_check
    _
  $region19: #{lenet_forward.5} parent=0 // pred_check_branch
    %19 = sbr.rel (0) target = $region21
  $region20: #{lenet_forward.5} parent=0 // pred_region
    _
  $region21: #{lenet_forward.5} parent=0 // pred_fallthru
    _
  %v21 = vld [vmem:[%s0] sm:$0xff]
  %v22 = vld [vmem:[%s0 + $0x8] sm:$0xff]
  %v23 = vld [vmem:[%s0 + $0x10] sm:$0xff]
  %v24 = vld [vmem:[%s0 + $0x18] sm:$0xff]
  %v25 = vld [vmem:[%s1] sm:$0xff]
  %v26 = vld [vmem:[%s1 + $0x8] sm:$0xff]
  %v27 = vld [vmem:[%s1 + $0x10] sm:$0xff]
  %v28 = vld [vmem:[%s1 + $0x18] sm:$0xff]
  %v29 = vld [vmem:[%s1 + $0x20] sm:$0xff]
  %v30 = vld [vmem:[%s1 + $0x28] sm:$0xff]
  %v31 = vld [vmem:[%s1 + $0x30] sm:$0xff]
  %v32 = vld [vmem:[%s1 + $0x38] sm:$0xff]
  %v33 = vld [vmem:[%s1 + $0x40] sm:$0xff]
  %v34 = vld [vmem:[%s1 + $0x48] sm:$0xff]
  %v35 = vld [vmem:[%s1 + $0x50] sm:$0xff]
  %v36 = vld [vmem:[%s1 + $0x58] sm:$0xff]
  %v37 = vld [vmem:[%s1 + $0x60] sm:$0xff]
  %v38 = vld [vmem:[%s1 + $0x68] sm:$0xff]
  %v39 = vld [vmem:[%s1 + $0x70] sm:$0xff]
  %v40 = vld [vmem:[%s1 + $0x78] sm:$0xff]
  %v41 = vld [vmem:[%s1 + $0x80] sm:$0xff]
  %v42 = vld [vmem:[%s1 + $0x88] sm:$0xff]
  %v43 = vld [vmem:[%s1 + $0x90] sm:$0xff]
  %v44 = vld [vmem:[%s1 + $0x98] sm:$0xff]
  %v45 = vld [vmem:[%s1 + $0xa0] sm:$0xff]
  %v46 = vld [vmem:[%s1 + $0xa8] sm:$0xff]
  %v47 = vld [vmem:[%s1 + $0xb0] sm:$0xff]
  %v48 = vld [vmem:[%s1 + $0xb8] sm:$0xff]
  %v49 = vld [vmem:[%s1 + $0xc0] sm:$0xff]
  %v50 = vld [vmem:[%s1 + $0xc8] sm:$0xff]
  %v51 = vld [vmem:[%s1 + $0xd0] sm:$0xff]
  %v52 = vld [vmem:[%s1 + $0xd8] sm:$0xff]
  %v53 = vld [vmem:[%s1 + $0xe0] sm:$0xff]
  %v54 = vld [vmem:[%s1 + $0xe8] sm:$0xff]
  %v55 = vld [vmem:[%s1 + $0xf0] sm:$0xff]
  %v56 = vld [vmem:[%s1 + $0xf8] sm:$0xff]
  %v57 = vld [vmem:[%s1 + $0x100] sm:$0xff]
  %v58 = vld [vmem:[%s1 + $0x108] sm:$0xff]
  %v59 = vld [vmem:[%s1 + $0x110] sm:$0xff]
  %v60 = vld [vmem:[%s1 + $0x118] sm:$0xff]
  %v61 = vld [vmem:[%s1 + $0x120] sm:$0xff]
  %v62 = vld [vmem:[%s1 + $0x128] sm:$0xff]
  %v63 = vld [vmem:[%s1 + $0x130] sm:$0xff]
  %v64 = vld [vmem:[%s1 + $0x138] sm:$0xff]
  %v65 = vld [vmem:[%s1 + $0x140] sm:$0xff]
  %v66 = vld [vmem:[%s1 + $0x148] sm:$0xff]
  %v67 = vld [vmem:[%s1 + $0x150] sm:$0xff]
  %v68 = vld [vmem:[%s1 + $0x158] sm:$0xff]
  %v69 = vld [vmem:[%s1 + $0x160] sm:$0xff]
  %v70 = vld [vmem:[%s1 + $0x168] sm:$0xff]
  %v71 = vld [vmem:[%s1 + $0x170] sm:$0xff]
  %v72 = vld [vmem:[%s1 + $0x178] sm:$0xff]
  %v73 = vld [vmem:[%s1 + $0x180] sm:$0xff]
  %v74 = vld [vmem:[%s1 + $0x188] sm:$0xff]
  %v75 = vld [vmem:[%s1 + $0x190] sm:$0xff]
  %v76 = vld [vmem:[%s1 + $0x198] sm:$0xff]
  %v77 = vld [vmem:[%s1 + $0x1a0] sm:$0xff]
  %v78 = vld [vmem:[%s1 + $0x1a8] sm:$0xff]
  %v79 = vld [vmem:[%s1 + $0x1b0] sm:$0xff]
  %v80 = vld [vmem:[%s1 + $0x1b8] sm:$0xff]
  %v81 = vld [vmem:[%s1 + $0x1c0] sm:$0xff]
  %v82 = vld [vmem:[%s1 + $0x1c8] sm:$0xff]
  %v83 = vld [vmem:[%s1 + $0x1d0] sm:$0xff]
  %v84 = vld [vmem:[%s1 + $0x1d8] sm:$0xff]
  %v85 = vld [vmem:[%s1 + $0x1e0] sm:$0xff]
  %v86 = vld [vmem:[%s1 + $0x1e8] sm:$0xff]
  %v87 = vld [vmem:[%s1 + $0x1f0] sm:$0xff]
  %v88 = vld [vmem:[%s1 + $0x1f8] sm:$0xff]
  %v89 = vld [vmem:[%s1 + $0x200] sm:$0xff]
  %v90 = vld [vmem:[%s1 + $0x208] sm:$0xff]
  %v91 = vld [vmem:[%s1 + $0x210] sm:$0xff]
  %v92 = vld [vmem:[%s1 + $0x218] sm:$0xff]
  %v93 = vld [vmem:[%s1 + $0x220] sm:$0xff]
  %v94 = vld [vmem:[%s1 + $0x228] sm:$0xff]
  %v95 = vld [vmem:[%s1 + $0x230] sm:$0xff]
  %v96 = vld [vmem:[%s1 + $0x238] sm:$0xff]
  %v97 = vld [vmem:[%s1 + $0x240] sm:$0xff]
  %v98 = vld [vmem:[%s1 + $0x248] sm:$0xff]
  %v99 = vld [vmem:[%s1 + $0x250] sm:$0xff]
  %v100 = vld [vmem:[%s1 + $0x258] sm:$0xff]
  %v101 = vld [vmem:[%s1 + $0x260] sm:$0xff]
  %v102 = vld [vmem:[%s1 + $0x268] sm:$0xff]
  %v103 = vld [vmem:[%s1 + $0x270] sm:$0xff]
  %v104 = vld [vmem:[%s1 + $0x278] sm:$0xff]
  %v105 = vld [vmem:[%s1 + $0x280] sm:$0xff]
  %v106 = vld [vmem:[%s1 + $0x288] sm:$0xff]
  %v107 = vld [vmem:[%s1 + $0x290] sm:$0xff]
  %v108 = vld [vmem:[%s1 + $0x298] sm:$0xff]
  %v109 = vld [vmem:[%s1 + $0x2a0] sm:$0xff]
  %v110 = vld [vmem:[%s1 + $0x2a8] sm:$0xff]
  %v111 = vld [vmem:[%s1 + $0x2b0] sm:$0xff]
  %v112 = vld [vmem:[%s1 + $0x2b8] sm:$0xff]
  %v113 = vld [vmem:[%s1 + $0x2c0] sm:$0xff]
  %v114 = vld [vmem:[%s1 + $0x2c8] sm:$0xff]
  %v115 = vld [vmem:[%s1 + $0x2d0] sm:$0xff]
  %v116 = vld [vmem:[%s1 + $0x2d8] sm:$0xff]
  %v117 = vld [vmem:[%s1 + $0x2e0] sm:$0xff]
  %v118 = vld [vmem:[%s1 + $0x2e8] sm:$0xff]
  %v119 = vld [vmem:[%s1 + $0x2f0] sm:$0xff]
  %v120 = vld [vmem:[%s1 + $0x2f8] sm:$0xff]
  %v121 = vld [vmem:[%s1 + $0x300] sm:$0xff]
  %v122 = vld [vmem:[%s1 + $0x308] sm:$0xff]
  %v123 = vld [vmem:[%s1 + $0x310] sm:$0xff]
  %v124 = vld [vmem:[%s1 + $0x318] sm:$0xff]
  %v125 = vld [vmem:[%s1 + $0x320] sm:$0xff]
  %v126 = vld [vmem:[%s1 + $0x328] sm:$0xff]
  %v127 = vld [vmem:[%s1 + $0x330] sm:$0xff]
  %v128 = vld [vmem:[%s1 + $0x338] sm:$0xff]
  %v129 = vld [vmem:[%s1 + $0x340] sm:$0xff]
  %v130 = vld [vmem:[%s1 + $0x348] sm:$0xff]
  %v131 = vld [vmem:[%s1 + $0x350] sm:$0xff]
  %v132 = vld [vmem:[%s1 + $0x358] sm:$0xff]
  %v133 = vld [vmem:[%s1 + $0x360] sm:$0xff]
  %v134 = vld [vmem:[%s1 + $0x368] sm:$0xff]
  %v135 = vld [vmem:[%s1 + $0x370] sm:$0xff]
  %v136 = vld [vmem:[%s1 + $0x378] sm:$0xff]
  %v137 = vld [vmem:[%s1 + $0x380] sm:$0xff]
  %v138 = vld [vmem:[%s1 + $0x388] sm:$0xff]
  %v139 = vld [vmem:[%s1 + $0x390] sm:$0xff]
  %v140 = vld [vmem:[%s1 + $0x398] sm:$0xff]
  %v141 = vld [vmem:[%s1 + $0x3a0] sm:$0xff]
  %v142 = vld [vmem:[%s1 + $0x3a8] sm:$0xff]
  %v143 = vld [vmem:[%s1 + $0x3b0] sm:$0xff]
  %v144 = vld [vmem:[%s1 + $0x3b8] sm:$0xff]
  %v145 = vld [vmem:[%s1 + $0x3c0] sm:$0xff]
  %v146 = vld [vmem:[%s1 + $0x3c8] sm:$0xff]
  %v147 = vld [vmem:[%s1 + $0x3d0] sm:$0xff]
  %v148 = vld [vmem:[%s1 + $0x3d8] sm:$0xff]
  %v149 = vld [vmem:[%s1 + $0x3e0] sm:$0xff]
  %v150 = vld [vmem:[%s1 + $0x3e8] sm:$0xff]
  %v151 = vld [vmem:[%s1 + $0x3f0] sm:$0xff]
  %v152 = vld [vmem:[%s1 + $0x3f8] sm:$0xff]
  %v153 = vld [vmem:[%s1 + $0x400] sm:$0xff]
  %v154 = vld [vmem:[%s1 + $0x408] sm:$0xff]
  %v155 = vld [vmem:[%s1 + $0x410] sm:$0xff]
  %v156 = vld [vmem:[%s1 + $0x418] sm:$0xff]
  %v157 = vld [vmem:[%s1 + $0x420] sm:$0xff]
  %v158 = vld [vmem:[%s1 + $0x428] sm:$0xff]
  %v159 = vld [vmem:[%s1 + $0x430] sm:$0xff]
  %v160 = vld [vmem:[%s1 + $0x438] sm:$0xff]
  %v161 = vld [vmem:[%s1 + $0x440] sm:$0xff]
  %v162 = vld [vmem:[%s1 + $0x448] sm:$0xff]
  %v163 = vld [vmem:[%s1 + $0x450] sm:$0xff]
  %v164 = vld [vmem:[%s1 + $0x458] sm:$0xff]
  %v165 = vld [vmem:[%s1 + $0x460] sm:$0xff]
  %v166 = vld [vmem:[%s1 + $0x468] sm:$0xff]
  %v167 = vld [vmem:[%s1 + $0x470] sm:$0xff]
  %v168 = vld [vmem:[%s1 + $0x478] sm:$0xff]
  %v169 = vld [vmem:[%s1 + $0x480] sm:$0xff]
  %v170 = vld [vmem:[%s1 + $0x488] sm:$0xff]
  %v171 = vld [vmem:[%s1 + $0x490] sm:$0xff]
  %v172 = vld [vmem:[%s1 + $0x498] sm:$0xff]
  %v173 = vld [vmem:[%s1 + $0x4a0] sm:$0xff]
  %v174 = vld [vmem:[%s1 + $0x4a8] sm:$0xff]
  %v175 = vld [vmem:[%s1 + $0x4b0] sm:$0xff]
  %v176 = vld [vmem:[%s1 + $0x4b8] sm:$0xff]
  %v177 = vld [vmem:[%s1 + $0x4c0] sm:$0xff]
  %v178 = vld [vmem:[%s1 + $0x4c8] sm:$0xff]
  %v179 = vld [vmem:[%s1 + $0x4d0] sm:$0xff]
  %v180 = vld [vmem:[%s1 + $0x4d8] sm:$0xff]
  %v181 = vld [vmem:[%s1 + $0x4e0] sm:$0xff]
  %v182 = vld [vmem:[%s1 + $0x4e8] sm:$0xff]
  %v183 = vld [vmem:[%s1 + $0x4f0] sm:$0xff]
  %v184 = vld [vmem:[%s1 + $0x4f8] sm:$0xff]
  %v185 = vld [vmem:[%s1 + $0x500] sm:$0xff]
  %v186 = vld [vmem:[%s1 + $0x508] sm:$0xff]
  %v187 = vld [vmem:[%s1 + $0x510] sm:$0xff]
  %v188 = vld [vmem:[%s1 + $0x518] sm:$0xff]
  %v189 = vld [vmem:[%s1 + $0x520] sm:$0xff]
  %v190 = vld [vmem:[%s1 + $0x528] sm:$0xff]
  %v191 = vld [vmem:[%s1 + $0x530] sm:$0xff]
  %v192 = vld [vmem:[%s1 + $0x538] sm:$0xff]
  %v193 = vld [vmem:[%s1 + $0x540] sm:$0xff]
  %v194 = vld [vmem:[%s1 + $0x548] sm:$0xff]
  %v195 = vld [vmem:[%s1 + $0x550] sm:$0xff]
  %v196 = vld [vmem:[%s1 + $0x558] sm:$0xff]
  %v197 = vld [vmem:[%s1 + $0x560] sm:$0xff]
  %v198 = vld [vmem:[%s1 + $0x568] sm:$0xff]
  %v199 = vld [vmem:[%s1 + $0x570] sm:$0xff]
  %v200 = vld [vmem:[%s1 + $0x578] sm:$0xff]
  %v201 = vld [vmem:[%s1 + $0x580] sm:$0xff]
  %v202 = vld [vmem:[%s1 + $0x588] sm:$0xff]
  %v203 = vld [vmem:[%s1 + $0x590] sm:$0xff]
  %v204 = vld [vmem:[%s1 + $0x598] sm:$0xff]
  %v205 = vld [vmem:[%s1 + $0x5a0] sm:$0xff]
  %v206 = vld [vmem:[%s1 + $0x5a8] sm:$0xff]
  %v207 = vld [vmem:[%s1 + $0x5b0] sm:$0xff]
  %v208 = vld [vmem:[%s1 + $0x5b8] sm:$0xff]
  %v209 = vld [vmem:[%s1 + $0x5c0] sm:$0xff]
  %v210 = vld [vmem:[%s1 + $0x5c8] sm:$0xff]
  %v211 = vld [vmem:[%s1 + $0x5d0] sm:$0xff]
  %v212 = vld [vmem:[%s1 + $0x5d8] sm:$0xff]
  %v213 = vld [vmem:[%s1 + $0x5e0] sm:$0xff]
  %v214 = vld [vmem:[%s1 + $0x5e8] sm:$0xff]
  %v215 = vld [vmem:[%s1 + $0x5f0] sm:$0xff]
  %v216 = vld [vmem:[%s1 + $0x5f8] sm:$0xff]
  %v217 = vld [vmem:[%s1 + $0x600] sm:$0xff]
  %v218 = vld [vmem:[%s1 + $0x608] sm:$0xff]
  %v219 = vld [vmem:[%s1 + $0x610] sm:$0xff]
  %v220 = vld [vmem:[%s1 + $0x618] sm:$0xff]
  %v221 = vld [vmem:[%s1 + $0x620] sm:$0xff]
  %v222 = vld [vmem:[%s1 + $0x628] sm:$0xff]
  %v223 = vld [vmem:[%s1 + $0x630] sm:$0xff]
  %v224 = vld [vmem:[%s1 + $0x638] sm:$0xff]
  %v225 = vld [vmem:[%s1 + $0x640] sm:$0xff]
  %v226 = vld [vmem:[%s1 + $0x648] sm:$0xff]
  %v227 = vld [vmem:[%s1 + $0x650] sm:$0xff]
  %v228 = vld [vmem:[%s1 + $0x658] sm:$0xff]
  %v229 = vld [vmem:[%s1 + $0x660] sm:$0xff]
  %v230 = vld [vmem:[%s1 + $0x668] sm:$0xff]
  %v231 = vld [vmem:[%s1 + $0x670] sm:$0xff]
  %v232 = vld [vmem:[%s1 + $0x678] sm:$0xff]
  %v233 = vld [vmem:[%s1 + $0x680] sm:$0xff]
  %v234 = vld [vmem:[%s1 + $0x688] sm:$0xff]
  %v235 = vld [vmem:[%s1 + $0x690] sm:$0xff]
  %v236 = vld [vmem:[%s1 + $0x698] sm:$0xff]
  %v237 = vld [vmem:[%s1 + $0x6a0] sm:$0xff]
  %v238 = vld [vmem:[%s1 + $0x6a8] sm:$0xff]
  %v239 = vld [vmem:[%s1 + $0x6b0] sm:$0xff]
  %v240 = vld [vmem:[%s1 + $0x6b8] sm:$0xff]
  %v241 = vld [vmem:[%s1 + $0x6c0] sm:$0xff]
  %v242 = vld [vmem:[%s1 + $0x6c8] sm:$0xff]
  %v243 = vld [vmem:[%s1 + $0x6d0] sm:$0xff]
  %v244 = vld [vmem:[%s1 + $0x6d8] sm:$0xff]
  %v245 = vld [vmem:[%s1 + $0x6e0] sm:$0xff]
  %v246 = vld [vmem:[%s1 + $0x6e8] sm:$0xff]
  %v247 = vld [vmem:[%s1 + $0x6f0] sm:$0xff]
  %v248 = vld [vmem:[%s1 + $0x6f8] sm:$0xff]
  %v249 = vld [vmem:[%s1 + $0x700] sm:$0xff]
  %v250 = vld [vmem:[%s1 + $0x708] sm:$0xff]
  %v251 = vld [vmem:[%s1 + $0x710] sm:$0xff]
  %v252 = vld [vmem:[%s1 + $0x718] sm:$0xff]
  %v253 = vld [vmem:[%s1 + $0x720] sm:$0xff]
  %v254 = vld [vmem:[%s1 + $0x728] sm:$0xff]
  %v255 = vld [vmem:[%s1 + $0x730] sm:$0xff]
  %v256 = vld [vmem:[%s1 + $0x738] sm:$0xff]
  %v257 = vld [vmem:[%s1 + $0x740] sm:$0xff]
  %v258 = vld [vmem:[%s1 + $0x748] sm:$0xff]
  %v259 = vld [vmem:[%s1 + $0x750] sm:$0xff]
  %v260 = vld [vmem:[%s1 + $0x758] sm:$0xff]
  %v261 = vld [vmem:[%s1 + $0x760] sm:$0xff]
  %v262 = vld [vmem:[%s1 + $0x768] sm:$0xff]
  %v263 = vld [vmem:[%s1 + $0x770] sm:$0xff]
  %v264 = vld [vmem:[%s1 + $0x778] sm:$0xff]
  %v265 = vld [vmem:[%s1 + $0x780] sm:$0xff]
  %v266 = vld [vmem:[%s1 + $0x788] sm:$0xff]
  %v267 = vld [vmem:[%s1 + $0x790] sm:$0xff]
  %v268 = vld [vmem:[%s1 + $0x798] sm:$0xff]
  %v269 = vld [vmem:[%s1 + $0x7a0] sm:$0xff]
  %v270 = vld [vmem:[%s1 + $0x7a8] sm:$0xff]
  %v271 = vld [vmem:[%s1 + $0x7b0] sm:$0xff]
  %v272 = vld [vmem:[%s1 + $0x7b8] sm:$0xff]
  %v273 = vld [vmem:[%s1 + $0x7c0] sm:$0xff]
  %v274 = vld [vmem:[%s1 + $0x7c8] sm:$0xff]
  %v275 = vld [vmem:[%s1 + $0x7d0] sm:$0xff]
  %v276 = vld [vmem:[%s1 + $0x7d8] sm:$0xff]
  %v277 = vld [vmem:[%s1 + $0x7e0] sm:$0xff]
  %v278 = vld [vmem:[%s1 + $0x7e8] sm:$0xff]
  %v279 = vld [vmem:[%s1 + $0x7f0] sm:$0xff]
  %v280 = vld [vmem:[%s1 + $0x7f8] sm:$0xff]
  %v281 = vld [vmem:[%s1 + $0x800] sm:$0xff]
  %v282 = vld [vmem:[%s1 + $0x808] sm:$0xff]
  %v283 = vld [vmem:[%s1 + $0x810] sm:$0xff]
  %v284 = vld [vmem:[%s1 + $0x818] sm:$0xff]
  %v285 = vld [vmem:[%s1 + $0x820] sm:$0xff]
  %v286 = vld [vmem:[%s1 + $0x828] sm:$0xff]
  %v287 = vld [vmem:[%s1 + $0x830] sm:$0xff]
  %v288 = vld [vmem:[%s1 + $0x838] sm:$0xff]
  %v289 = vld [vmem:[%s1 + $0x840] sm:$0xff]
  %v290 = vld [vmem:[%s1 + $0x848] sm:$0xff]
  %v291 = vld [vmem:[%s1 + $0x850] sm:$0xff]
  %v292 = vld [vmem:[%s1 + $0x858] sm:$0xff]
  %v293 = vld [vmem:[%s1 + $0x860] sm:$0xff]
  %v294 = vld [vmem:[%s1 + $0x868] sm:$0xff]
  %v295 = vld [vmem:[%s1 + $0x870] sm:$0xff]
  %v296 = vld [vmem:[%s1 + $0x878] sm:$0xff]
  %v297 = vld [vmem:[%s1 + $0x880] sm:$0xff]
  %v298 = vld [vmem:[%s1 + $0x888] sm:$0xff]
  %v299 = vld [vmem:[%s1 + $0x890] sm:$0xff]
  %v300 = vld [vmem:[%s1 + $0x898] sm:$0xff]
  %v301 = vld [vmem:[%s1 + $0x8a0] sm:$0xff]
  %v302 = vld [vmem:[%s1 + $0x8a8] sm:$0xff]
  %v303 = vld [vmem:[%s1 + $0x8b0] sm:$0xff]
  %v304 = vld [vmem:[%s1 + $0x8b8] sm:$0xff]
  %v305 = vld [vmem:[%s1 + $0x8c0] sm:$0xff]
  %v306 = vld [vmem:[%s1 + $0x8c8] sm:$0xff]
  %v307 = vld [vmem:[%s1 + $0x8d0] sm:$0xff]
  %v308 = vld [vmem:[%s1 + $0x8d8] sm:$0xff]
  %v309 = vld [vmem:[%s1 + $0x8e0] sm:$0xff]
  %v310 = vld [vmem:[%s1 + $0x8e8] sm:$0xff]
  %v311 = vld [vmem:[%s1 + $0x8f0] sm:$0xff]
  %v312 = vld [vmem:[%s1 + $0x8f8] sm:$0xff]
  %v313 = vld [vmem:[%s1 + $0x900] sm:$0xff]
  %v314 = vld [vmem:[%s1 + $0x908] sm:$0xff]
  %v315 = vld [vmem:[%s1 + $0x910] sm:$0xff]
  %v316 = vld [vmem:[%s1 + $0x918] sm:$0xff]
  %v317 = vld [vmem:[%s1 + $0x920] sm:$0xff]
  %v318 = vld [vmem:[%s1 + $0x928] sm:$0xff]
  %v319 = vld [vmem:[%s1 + $0x930] sm:$0xff]
  %v320 = vld [vmem:[%s1 + $0x938] sm:$0xff]
  %v321 = vld [vmem:[%s1 + $0x940] sm:$0xff]
  %v322 = vld [vmem:[%s1 + $0x948] sm:$0xff]
  %v323 = vld [vmem:[%s1 + $0x950] sm:$0xff]
  %v324 = vld [vmem:[%s1 + $0x958] sm:$0xff]
  %v325 = vld [vmem:[%s1 + $0x960] sm:$0xff]
  %v326 = vld [vmem:[%s1 + $0x968] sm:$0xff]
  %v327 = vld [vmem:[%s1 + $0x970] sm:$0xff]
  %v328 = vld [vmem:[%s1 + $0x978] sm:$0xff]
  %v329 = vld [vmem:[%s1 + $0x980] sm:$0xff]
  %v330 = vld [vmem:[%s1 + $0x988] sm:$0xff]
  %v331 = vld [vmem:[%s1 + $0x990] sm:$0xff]
  %v332 = vld [vmem:[%s1 + $0x998] sm:$0xff]
  %v333 = vld [vmem:[%s1 + $0x9a0] sm:$0xff]
  %v334 = vld [vmem:[%s1 + $0x9a8] sm:$0xff]
  %v335 = vld [vmem:[%s1 + $0x9b0] sm:$0xff]
  %v336 = vld [vmem:[%s1 + $0x9b8] sm:$0xff]
  %v337 = vld [vmem:[%s1 + $0x9c0] sm:$0xff]
  %v338 = vld [vmem:[%s1 + $0x9c8] sm:$0xff]
  %v339 = vld [vmem:[%s1 + $0x9d0] sm:$0xff]
  %v340 = vld [vmem:[%s1 + $0x9d8] sm:$0xff]
  %v341 = vld [vmem:[%s1 + $0x9e0] sm:$0xff]
  %v342 = vld [vmem:[%s1 + $0x9e8] sm:$0xff]
  %v343 = vld [vmem:[%s1 + $0x9f0] sm:$0xff]
  %v344 = vld [vmem:[%s1 + $0x9f8] sm:$0xff]
  %v345 = vld [vmem:[%s1 + $0xa00] sm:$0xff]
  %v346 = vld [vmem:[%s1 + $0xa08] sm:$0xff]
  %v347 = vld [vmem:[%s1 + $0xa10] sm:$0xff]
  %v348 = vld [vmem:[%s1 + $0xa18] sm:$0xff]
  %v349 = vld [vmem:[%s1 + $0xa20] sm:$0xff]
  %v350 = vld [vmem:[%s1 + $0xa28] sm:$0xff]
  %v351 = vld [vmem:[%s1 + $0xa30] sm:$0xff]
  %v352 = vld [vmem:[%s1 + $0xa38] sm:$0xff]
  %v353 = vld [vmem:[%s1 + $0xa40] sm:$0xff]
  %v354 = vld [vmem:[%s1 + $0xa48] sm:$0xff]
  %v355 = vld [vmem:[%s1 + $0xa50] sm:$0xff]
  %v356 = vld [vmem:[%s1 + $0xa58] sm:$0xff]
  %v357 = vld [vmem:[%s1 + $0xa60] sm:$0xff]
  %v358 = vld [vmem:[%s1 + $0xa68] sm:$0xff]
  %v359 = vld [vmem:[%s1 + $0xa70] sm:$0xff]
  %v360 = vld [vmem:[%s1 + $0xa78] sm:$0xff]
  %v361 = vld [vmem:[%s1 + $0xa80] sm:$0xff]
  %v362 = vld [vmem:[%s1 + $0xa88] sm:$0xff]
  %v363 = vld [vmem:[%s1 + $0xa90] sm:$0xff]
  %v364 = vld [vmem:[%s1 + $0xa98] sm:$0xff]
  %v365 = vld [vmem:[%s1 + $0xaa0] sm:$0xff]
  %v366 = vld [vmem:[%s1 + $0xaa8] sm:$0xff]
  %v367 = vld [vmem:[%s1 + $0xab0] sm:$0xff]
  %v368 = vld [vmem:[%s1 + $0xab8] sm:$0xff]
  %v369 = vld [vmem:[%s1 + $0xac0] sm:$0xff]
  %v370 = vld [vmem:[%s1 + $0xac8] sm:$0xff]
  %v371 = vld [vmem:[%s1 + $0xad0] sm:$0xff]
  %v372 = vld [vmem:[%s1 + $0xad8] sm:$0xff]
  %v373 = vld [vmem:[%s1 + $0xae0] sm:$0xff]
  %v374 = vld [vmem:[%s1 + $0xae8] sm:$0xff]
  %v375 = vld [vmem:[%s1 + $0xaf0] sm:$0xff]
  %v376 = vld [vmem:[%s1 + $0xaf8] sm:$0xff]
  %v377 = vld [vmem:[%s1 + $0xb00] sm:$0xff]
  %v378 = vld [vmem:[%s1 + $0xb08] sm:$0xff]
  %v379 = vld [vmem:[%s1 + $0xb10] sm:$0xff]
  %v380 = vld [vmem:[%s1 + $0xb18] sm:$0xff]
  %v381 = vld [vmem:[%s1 + $0xb20] sm:$0xff]
  %v382 = vld [vmem:[%s1 + $0xb28] sm:$0xff]
  %v383 = vld [vmem:[%s1 + $0xb30] sm:$0xff]
  %v384 = vld [vmem:[%s1 + $0xb38] sm:$0xff]
  %v385 = vld [vmem:[%s1 + $0xb40] sm:$0xff]
  %v386 = vld [vmem:[%s1 + $0xb48] sm:$0xff]
  %v387 = vld [vmem:[%s1 + $0xb50] sm:$0xff]
  %v388 = vld [vmem:[%s1 + $0xb58] sm:$0xff]
  %v389 = vld [vmem:[%s1 + $0xb60] sm:$0xff]
  %v390 = vld [vmem:[%s1 + $0xb68] sm:$0xff]
  %v391 = vld [vmem:[%s1 + $0xb70] sm:$0xff]
  %v392 = vld [vmem:[%s1 + $0xb78] sm:$0xff]
  %v393 = vld [vmem:[%s1 + $0xb80] sm:$0xff]
  %v394 = vld [vmem:[%s1 + $0xb88] sm:$0xff]
  %v395 = vld [vmem:[%s1 + $0xb90] sm:$0xff]
  %v396 = vld [vmem:[%s1 + $0xb98] sm:$0xff]
  %v397 = vld [vmem:[%s1 + $0xba0] sm:$0xff]
  %v398 = vld [vmem:[%s1 + $0xba8] sm:$0xff]
  %v399 = vld [vmem:[%s1 + $0xbb0] sm:$0xff]
  %v400 = vld [vmem:[%s1 + $0xbb8] sm:$0xff]
  %v401 = vld [vmem:[%s1 + $0xbc0] sm:$0xff]
  %v402 = vld [vmem:[%s1 + $0xbc8] sm:$0xff]
  %v403 = vld [vmem:[%s1 + $0xbd0] sm:$0xff]
  %v404 = vld [vmem:[%s1 + $0xbd8] sm:$0xff]
  %v405 = vld [vmem:[%s1 + $0xbe0] sm:$0xff]
  %v406 = vld [vmem:[%s1 + $0xbe8] sm:$0xff]
  %v407 = vld [vmem:[%s1 + $0xbf0] sm:$0xff]
  %v408 = vld [vmem:[%s1 + $0xbf8] sm:$0xff]
  %v409 = vld [vmem:[%s1 + $0xc00] sm:$0xff]
  %v410 = vld [vmem:[%s1 + $0xc08] sm:$0xff]
  %v411 = vld [vmem:[%s1 + $0xc10] sm:$0xff]
  %v412 = vld [vmem:[%s1 + $0xc18] sm:$0xff]
  %v413 = vld [vmem:[%s1 + $0xc20] sm:$0xff]
  %v414 = vld [vmem:[%s1 + $0xc28] sm:$0xff]
  %v415 = vld [vmem:[%s1 + $0xc30] sm:$0xff]
  %v416 = vld [vmem:[%s1 + $0xc38] sm:$0xff]
  %v417 = vld [vmem:[%s1 + $0xc40] sm:$0xff]
  %v418 = vld [vmem:[%s1 + $0xc48] sm:$0xff]
  %v419 = vld [vmem:[%s1 + $0xc50] sm:$0xff]
  %v420 = vld [vmem:[%s1 + $0xc58] sm:$0xff]
  %v421 = vld [vmem:[%s1 + $0xc60] sm:$0xff]
  %v422 = vld [vmem:[%s1 + $0xc68] sm:$0xff]
  %v423 = vld [vmem:[%s1 + $0xc70] sm:$0xff]
  %v424 = vld [vmem:[%s1 + $0xc78] sm:$0xff]
  %v425 = vld [vmem:[%s1 + $0xc80] sm:$0xff]
  %v426 = vld [vmem:[%s1 + $0xc88] sm:$0xff]
  %v427 = vld [vmem:[%s1 + $0xc90] sm:$0xff]
  %v428 = vld [vmem:[%s1 + $0xc98] sm:$0xff]
  %v429 = vld [vmem:[%s1 + $0xca0] sm:$0xff]
  %v430 = vld [vmem:[%s1 + $0xca8] sm:$0xff]
  %v431 = vld [vmem:[%s1 + $0xcb0] sm:$0xff]
  %v432 = vld [vmem:[%s1 + $0xcb8] sm:$0xff]
  %v433 = vld [vmem:[%s1 + $0xcc0] sm:$0xff]
  %v434 = vld [vmem:[%s1 + $0xcc8] sm:$0xff]
  %v435 = vld [vmem:[%s1 + $0xcd0] sm:$0xff]
  %v436 = vld [vmem:[%s1 + $0xcd8] sm:$0xff]
  %v437 = vld [vmem:[%s1 + $0xce0] sm:$0xff]
  %v438 = vld [vmem:[%s1 + $0xce8] sm:$0xff]
  %v439 = vld [vmem:[%s1 + $0xcf0] sm:$0xff]
  %v440 = vld [vmem:[%s1 + $0xcf8] sm:$0xff]
  %v441 = vld [vmem:[%s1 + $0xd00] sm:$0xff]
  %v442 = vld [vmem:[%s1 + $0xd08] sm:$0xff]
  %v443 = vld [vmem:[%s1 + $0xd10] sm:$0xff]
  %v444 = vld [vmem:[%s1 + $0xd18] sm:$0xff]
  %v445 = vld [vmem:[%s1 + $0xd20] sm:$0xff]
  %v446 = vld [vmem:[%s1 + $0xd28] sm:$0xff]
  %v447 = vld [vmem:[%s1 + $0xd30] sm:$0xff]
  %v448 = vld [vmem:[%s1 + $0xd38] sm:$0xff]
  %v449 = vld [vmem:[%s1 + $0xd40] sm:$0xff]
  %v450 = vld [vmem:[%s1 + $0xd48] sm:$0xff]
  %v451 = vld [vmem:[%s1 + $0xd50] sm:$0xff]
  %v452 = vld [vmem:[%s1 + $0xd58] sm:$0xff]
  %v453 = vld [vmem:[%s1 + $0xd60] sm:$0xff]
  %v454 = vld [vmem:[%s1 + $0xd68] sm:$0xff]
  %v455 = vld [vmem:[%s1 + $0xd70] sm:$0xff]
  %v456 = vld [vmem:[%s1 + $0xd78] sm:$0xff]
  %v457 = vld [vmem:[%s1 + $0xd80] sm:$0xff]
  %v458 = vld [vmem:[%s1 + $0xd88] sm:$0xff]
  %v459 = vld [vmem:[%s1 + $0xd90] sm:$0xff]
  %v460 = vld [vmem:[%s1 + $0xd98] sm:$0xff]
  %v461 = vld [vmem:[%s1 + $0xda0] sm:$0xff]
  %v462 = vld [vmem:[%s1 + $0xda8] sm:$0xff]
  %v463 = vld [vmem:[%s1 + $0xdb0] sm:$0xff]
  %v464 = vld [vmem:[%s1 + $0xdb8] sm:$0xff]
  %v465 = vld [vmem:[%s1 + $0xdc0] sm:$0xff]
  %v466 = vld [vmem:[%s1 + $0xdc8] sm:$0xff]
  %v467 = vld [vmem:[%s1 + $0xdd0] sm:$0xff]
  %v468 = vld [vmem:[%s1 + $0xdd8] sm:$0xff]
  %v469 = vld [vmem:[%s1 + $0xde0] sm:$0xff]
  %v470 = vld [vmem:[%s1 + $0xde8] sm:$0xff]
  %v471 = vld [vmem:[%s1 + $0xdf0] sm:$0xff]
  %v472 = vld [vmem:[%s1 + $0xdf8] sm:$0xff]
  %v473 = vld [vmem:[%s1 + $0xe00] sm:$0xff]
  %v474 = vld [vmem:[%s1 + $0xe08] sm:$0xff]
  %v475 = vld [vmem:[%s1 + $0xe10] sm:$0xff]
  %v476 = vld [vmem:[%s1 + $0xe18] sm:$0xff]
  %v477 = vld [vmem:[%s1 + $0xe20] sm:$0xff]
  %v478 = vld [vmem:[%s1 + $0xe28] sm:$0xff]
  %v479 = vld [vmem:[%s1 + $0xe30] sm:$0xff]
  %v480 = vld [vmem:[%s1 + $0xe38] sm:$0xff]
  %v481 = vld [vmem:[%s1 + $0xe40] sm:$0xff]
  %v482 = vld [vmem:[%s1 + $0xe48] sm:$0xff]
  %v483 = vld [vmem:[%s1 + $0xe50] sm:$0xff]
  %v484 = vld [vmem:[%s1 + $0xe58] sm:$0xff]
  %v485 = vld [vmem:[%s1 + $0xe60] sm:$0xff]
  %v486 = vld [vmem:[%s1 + $0xe68] sm:$0xff]
  %v487 = vld [vmem:[%s1 + $0xe70] sm:$0xff]
  %v488 = vld [vmem:[%s1 + $0xe78] sm:$0xff]
  %v489 = vld [vmem:[%s1 + $0xe80] sm:$0xff]
  %v490 = vld [vmem:[%s1 + $0xe88] sm:$0xff]
  %v491 = vld [vmem:[%s1 + $0xe90] sm:$0xff]
  %v492 = vld [vmem:[%s1 + $0xe98] sm:$0xff]
  %v493 = vld [vmem:[%s1 + $0xea0] sm:$0xff]
  %v494 = vld [vmem:[%s1 + $0xea8] sm:$0xff]
  %v495 = vld [vmem:[%s1 + $0xeb0] sm:$0xff]
  %v496 = vld [vmem:[%s1 + $0xeb8] sm:$0xff]
  %v497 = vld [vmem:[%s1 + $0xec0] sm:$0xff]
  %v498 = vld [vmem:[%s1 + $0xec8] sm:$0xff]
  %v499 = vld [vmem:[%s1 + $0xed0] sm:$0xff]
  %v500 = vld [vmem:[%s1 + $0xed8] sm:$0xff]
  %v501 = vld [vmem:[%s1 + $0xee0] sm:$0xff]
  %v502 = vld [vmem:[%s1 + $0xee8] sm:$0xff]
  %v503 = vld [vmem:[%s1 + $0xef0] sm:$0xff]
  %v504 = vld [vmem:[%s1 + $0xef8] sm:$0xff]
  %v505 = vld [vmem:[%s1 + $0xf00] sm:$0xff]
  %v506 = vld [vmem:[%s1 + $0xf08] sm:$0xff]
  %v507 = vld [vmem:[%s1 + $0xf10] sm:$0xff]
  %v508 = vld [vmem:[%s1 + $0xf18] sm:$0xff]
  %v509 = vld [vmem:[%s1 + $0xf20] sm:$0xff]
  %v510 = vld [vmem:[%s1 + $0xf28] sm:$0xff]
  %v511 = vld [vmem:[%s1 + $0xf30] sm:$0xff]
  %v512 = vld [vmem:[%s1 + $0xf38] sm:$0xff]
  %v513 = vld [vmem:[%s1 + $0xf40] sm:$0xff]
  %v514 = vld [vmem:[%s1 + $0xf48] sm:$0xff]
  %v515 = vld [vmem:[%s1 + $0xf50] sm:$0xff]
  %v516 = vld [vmem:[%s1 + $0xf58] sm:$0xff]
  %v517 = vld [vmem:[%s1 + $0xf60] sm:$0xff]
  %v518 = vld [vmem:[%s1 + $0xf68] sm:$0xff]
  %v519 = vld [vmem:[%s1 + $0xf70] sm:$0xff]
  %v520 = vld [vmem:[%s1 + $0xf78] sm:$0xff]
  %v521 = vld [vmem:[%s1 + $0xf80] sm:$0xff]
  %v522 = vld [vmem:[%s1 + $0xf88] sm:$0xff]
  %v523 = vld [vmem:[%s1 + $0xf90] sm:$0xff]
  %v524 = vld [vmem:[%s1 + $0xf98] sm:$0xff]
  %v525 = vld [vmem:[%s1 + $0xfa0] sm:$0xff]
  %v526 = vld [vmem:[%s1 + $0xfa8] sm:$0xff]
  %v527 = vld [vmem:[%s1 + $0xfb0] sm:$0xff]
  %v528 = vld [vmem:[%s1 + $0xfb8] sm:$0xff]
  %v529 = vld [vmem:[%s1 + $0xfc0] sm:$0xff]
  %v530 = vld [vmem:[%s1 + $0xfc8] sm:$0xff]
  %v531 = vld [vmem:[%s1 + $0xfd0] sm:$0xff]
  %v532 = vld [vmem:[%s1 + $0xfd8] sm:$0xff]
  %v533 = vld [vmem:[%s1 + $0xfe0] sm:$0xff]
  %v534 = vld [vmem:[%s1 + $0xfe8] sm:$0xff]
  %v535 = vld [vmem:[%s1 + $0xff0] sm:$0xff]
  %v536 = vld [vmem:[%s1 + $0xff8] sm:$0xff]
  %v537 = vld [vmem:[%s2] sm:$0xff]
  %v539 = vlaneseq
  %v540 = vshrl.u32 %v539, 7
  %v541 = vsub.s32 0, %v540
  %v542 = vrot.slane %v537, %v541
  %v543 = vlaneseq
  %v544 = vshrl.u32 %v543, 7
  %v545 = vsub.s32 1, %v544
  %v546 = vrot.slane %v537, %v545
  %v547 = vlaneseq
  %v548 = vshrl.u32 %v547, 7
  %v549 = vsub.s32 2, %v548
  %v550 = vrot.slane %v537, %v549
  %v551 = vlaneseq
  %v552 = vshrl.u32 %v551, 7
  %v553 = vsub.s32 3, %v552
  %v554 = vrot.slane %v537, %v553
  %v555 = vlaneseq
  %v556 = vshrl.u32 %v555, 7
  %v557 = vsub.s32 4, %v556
  %v558 = vrot.slane %v537, %v557
  %v559 = vlaneseq
  %v560 = vshrl.u32 %v559, 7
  %v561 = vsub.s32 5, %v560
  %v562 = vrot.slane %v537, %v561
  %v563 = vlaneseq
  %v564 = vshrl.u32 %v563, 7
  %v565 = vsub.s32 6, %v564
  %v566 = vrot.slane %v537, %v565
  %v567 = vlaneseq
  %v568 = vshrl.u32 %v567, 7
  %v569 = vsub.s32 7, %v568
  %v570 = vrot.slane %v537, %v569
  %v583 = vunpack.c.l.b16 %v21
  %v584 = vunpack.c.h.b16 %v21
  %v585 = vunpack.c.l.b16 %v22
  %v586 = vunpack.c.h.b16 %v22
  %v587 = vunpack.c.l.b16 %v23
  %v588 = vunpack.c.h.b16 %v23
  %v589 = vunpack.c.l.b16 %v24
  %v590 = vunpack.c.h.b16 %v24
  %v591 = vpack.c.b16 %v583, %v583
  %v592 = vpack.c.b16 %v584, %v584
  %v593 = vpack.c.b16 %v585, %v585
  %v594 = vpack.c.b16 %v586, %v586
  %v595 = vpack.c.b16 %v587, %v587
  %v596 = vpack.c.b16 %v588, %v588
  %v597 = vpack.c.b16 %v589, %v589
  %v598 = vpack.c.b16 %v590, %v590
  %v1119 = vunpack.c.l.b16 %v25
  %v1120 = vunpack.c.h.b16 %v25
  %v1121 = vunpack.c.l.b16 %v26
  %v1122 = vunpack.c.h.b16 %v26
  %v1123 = vunpack.c.l.b16 %v27
  %v1124 = vunpack.c.h.b16 %v27
  %v1125 = vunpack.c.l.b16 %v28
  %v1126 = vunpack.c.h.b16 %v28
  %v1127 = vunpack.c.l.b16 %v29
  %v1128 = vunpack.c.h.b16 %v29
  %v1129 = vunpack.c.l.b16 %v30
  %v1130 = vunpack.c.h.b16 %v30
  %v1131 = vunpack.c.l.b16 %v31
  %v1132 = vunpack.c.h.b16 %v31
  %v1133 = vunpack.c.l.b16 %v32
  %v1134 = vunpack.c.h.b16 %v32
  %v1135 = vunpack.c.l.b16 %v33
  %v1136 = vunpack.c.h.b16 %v33
  %v1137 = vunpack.c.l.b16 %v34
  %v1138 = vunpack.c.h.b16 %v34
  %v1139 = vunpack.c.l.b16 %v35
  %v1140 = vunpack.c.h.b16 %v35
  %v1141 = vunpack.c.l.b16 %v36
  %v1142 = vunpack.c.h.b16 %v36
  %v1143 = vunpack.c.l.b16 %v37
  %v1144 = vunpack.c.h.b16 %v37
  %v1145 = vunpack.c.l.b16 %v38
  %v1146 = vunpack.c.h.b16 %v38
  %v1147 = vunpack.c.l.b16 %v39
  %v1148 = vunpack.c.h.b16 %v39
  %v1149 = vunpack.c.l.b16 %v40
  %v1150 = vunpack.c.h.b16 %v40
  %v1151 = vunpack.c.l.b16 %v41
  %v1152 = vunpack.c.h.b16 %v41
  %v1153 = vunpack.c.l.b16 %v42
  %v1154 = vunpack.c.h.b16 %v42
  %v1155 = vunpack.c.l.b16 %v43
  %v1156 = vunpack.c.h.b16 %v43
  %v1157 = vunpack.c.l.b16 %v44
  %v1158 = vunpack.c.h.b16 %v44
  %v1159 = vunpack.c.l.b16 %v45
  %v1160 = vunpack.c.h.b16 %v45
  %v1161 = vunpack.c.l.b16 %v46
  %v1162 = vunpack.c.h.b16 %v46
  %v1163 = vunpack.c.l.b16 %v47
  %v1164 = vunpack.c.h.b16 %v47
  %v1165 = vunpack.c.l.b16 %v48
  %v1166 = vunpack.c.h.b16 %v48
  %v1167 = vunpack.c.l.b16 %v49
  %v1168 = vunpack.c.h.b16 %v49
  %v1169 = vunpack.c.l.b16 %v50
  %v1170 = vunpack.c.h.b16 %v50
  %v1171 = vunpack.c.l.b16 %v51
  %v1172 = vunpack.c.h.b16 %v51
  %v1173 = vunpack.c.l.b16 %v52
  %v1174 = vunpack.c.h.b16 %v52
  %v1175 = vunpack.c.l.b16 %v53
  %v1176 = vunpack.c.h.b16 %v53
  %v1177 = vunpack.c.l.b16 %v54
  %v1178 = vunpack.c.h.b16 %v54
  %v1179 = vunpack.c.l.b16 %v55
  %v1180 = vunpack.c.h.b16 %v55
  %v1181 = vunpack.c.l.b16 %v56
  %v1182 = vunpack.c.h.b16 %v56
  %v1183 = vunpack.c.l.b16 %v57
  %v1184 = vunpack.c.h.b16 %v57
  %v1185 = vunpack.c.l.b16 %v58
  %v1186 = vunpack.c.h.b16 %v58
  %v1187 = vunpack.c.l.b16 %v59
  %v1188 = vunpack.c.h.b16 %v59
  %v1189 = vunpack.c.l.b16 %v60
  %v1190 = vunpack.c.h.b16 %v60
  %v1191 = vunpack.c.l.b16 %v61
  %v1192 = vunpack.c.h.b16 %v61
  %v1193 = vunpack.c.l.b16 %v62
  %v1194 = vunpack.c.h.b16 %v62
  %v1195 = vunpack.c.l.b16 %v63
  %v1196 = vunpack.c.h.b16 %v63
  %v1197 = vunpack.c.l.b16 %v64
  %v1198 = vunpack.c.h.b16 %v64
  %v1199 = vunpack.c.l.b16 %v65
  %v1200 = vunpack.c.h.b16 %v65
  %v1201 = vunpack.c.l.b16 %v66
  %v1202 = vunpack.c.h.b16 %v66
  %v1203 = vunpack.c.l.b16 %v67
  %v1204 = vunpack.c.h.b16 %v67
  %v1205 = vunpack.c.l.b16 %v68
  %v1206 = vunpack.c.h.b16 %v68
  %v1207 = vunpack.c.l.b16 %v69
  %v1208 = vunpack.c.h.b16 %v69
  %v1209 = vunpack.c.l.b16 %v70
  %v1210 = vunpack.c.h.b16 %v70
  %v1211 = vunpack.c.l.b16 %v71
  %v1212 = vunpack.c.h.b16 %v71
  %v1213 = vunpack.c.l.b16 %v72
  %v1214 = vunpack.c.h.b16 %v72
  %v1215 = vunpack.c.l.b16 %v73
  %v1216 = vunpack.c.h.b16 %v73
  %v1217 = vunpack.c.l.b16 %v74
  %v1218 = vunpack.c.h.b16 %v74
  %v1219 = vunpack.c.l.b16 %v75
  %v1220 = vunpack.c.h.b16 %v75
  %v1221 = vunpack.c.l.b16 %v76
  %v1222 = vunpack.c.h.b16 %v76
  %v1223 = vunpack.c.l.b16 %v77
  %v1224 = vunpack.c.h.b16 %v77
  %v1225 = vunpack.c.l.b16 %v78
  %v1226 = vunpack.c.h.b16 %v78
  %v1227 = vunpack.c.l.b16 %v79
  %v1228 = vunpack.c.h.b16 %v79
  %v1229 = vunpack.c.l.b16 %v80
  %v1230 = vunpack.c.h.b16 %v80
  %v1231 = vunpack.c.l.b16 %v81
  %v1232 = vunpack.c.h.b16 %v81
  %v1233 = vunpack.c.l.b16 %v82
  %v1234 = vunpack.c.h.b16 %v82
  %v1235 = vunpack.c.l.b16 %v83
  %v1236 = vunpack.c.h.b16 %v83
  %v1237 = vunpack.c.l.b16 %v84
  %v1238 = vunpack.c.h.b16 %v84
  %v1239 = vunpack.c.l.b16 %v85
  %v1240 = vunpack.c.h.b16 %v85
  %v1241 = vunpack.c.l.b16 %v86
  %v1242 = vunpack.c.h.b16 %v86
  %v1243 = vunpack.c.l.b16 %v87
  %v1244 = vunpack.c.h.b16 %v87
  %v1245 = vunpack.c.l.b16 %v88
  %v1246 = vunpack.c.h.b16 %v88
  %v1247 = vunpack.c.l.b16 %v89
  %v1248 = vunpack.c.h.b16 %v89
  %v1249 = vunpack.c.l.b16 %v90
  %v1250 = vunpack.c.h.b16 %v90
  %v1251 = vunpack.c.l.b16 %v91
  %v1252 = vunpack.c.h.b16 %v91
  %v1253 = vunpack.c.l.b16 %v92
  %v1254 = vunpack.c.h.b16 %v92
  %v1255 = vunpack.c.l.b16 %v93
  %v1256 = vunpack.c.h.b16 %v93
  %v1257 = vunpack.c.l.b16 %v94
  %v1258 = vunpack.c.h.b16 %v94
  %v1259 = vunpack.c.l.b16 %v95
  %v1260 = vunpack.c.h.b16 %v95
  %v1261 = vunpack.c.l.b16 %v96
  %v1262 = vunpack.c.h.b16 %v96
  %v1263 = vunpack.c.l.b16 %v97
  %v1264 = vunpack.c.h.b16 %v97
  %v1265 = vunpack.c.l.b16 %v98
  %v1266 = vunpack.c.h.b16 %v98
  %v1267 = vunpack.c.l.b16 %v99
  %v1268 = vunpack.c.h.b16 %v99
  %v1269 = vunpack.c.l.b16 %v100
  %v1270 = vunpack.c.h.b16 %v100
  %v1271 = vunpack.c.l.b16 %v101
  %v1272 = vunpack.c.h.b16 %v101
  %v1273 = vunpack.c.l.b16 %v102
  %v1274 = vunpack.c.h.b16 %v102
  %v1275 = vunpack.c.l.b16 %v103
  %v1276 = vunpack.c.h.b16 %v103
  %v1277 = vunpack.c.l.b16 %v104
  %v1278 = vunpack.c.h.b16 %v104
  %v1279 = vunpack.c.l.b16 %v105
  %v1280 = vunpack.c.h.b16 %v105
  %v1281 = vunpack.c.l.b16 %v106
  %v1282 = vunpack.c.h.b16 %v106
  %v1283 = vunpack.c.l.b16 %v107
  %v1284 = vunpack.c.h.b16 %v107
  %v1285 = vunpack.c.l.b16 %v108
  %v1286 = vunpack.c.h.b16 %v108
  %v1287 = vunpack.c.l.b16 %v109
  %v1288 = vunpack.c.h.b16 %v109
  %v1289 = vunpack.c.l.b16 %v110
  %v1290 = vunpack.c.h.b16 %v110
  %v1291 = vunpack.c.l.b16 %v111
  %v1292 = vunpack.c.h.b16 %v111
  %v1293 = vunpack.c.l.b16 %v112
  %v1294 = vunpack.c.h.b16 %v112
  %v1295 = vunpack.c.l.b16 %v113
  %v1296 = vunpack.c.h.b16 %v113
  %v1297 = vunpack.c.l.b16 %v114
  %v1298 = vunpack.c.h.b16 %v114
  %v1299 = vunpack.c.l.b16 %v115
  %v1300 = vunpack.c.h.b16 %v115
  %v1301 = vunpack.c.l.b16 %v116
  %v1302 = vunpack.c.h.b16 %v116
  %v1303 = vunpack.c.l.b16 %v117
  %v1304 = vunpack.c.h.b16 %v117
  %v1305 = vunpack.c.l.b16 %v118
  %v1306 = vunpack.c.h.b16 %v118
  %v1307 = vunpack.c.l.b16 %v119
  %v1308 = vunpack.c.h.b16 %v119
  %v1309 = vunpack.c.l.b16 %v120
  %v1310 = vunpack.c.h.b16 %v120
  %v1311 = vunpack.c.l.b16 %v121
  %v1312 = vunpack.c.h.b16 %v121
  %v1313 = vunpack.c.l.b16 %v122
  %v1314 = vunpack.c.h.b16 %v122
  %v1315 = vunpack.c.l.b16 %v123
  %v1316 = vunpack.c.h.b16 %v123
  %v1317 = vunpack.c.l.b16 %v124
  %v1318 = vunpack.c.h.b16 %v124
  %v1319 = vunpack.c.l.b16 %v125
  %v1320 = vunpack.c.h.b16 %v125
  %v1321 = vunpack.c.l.b16 %v126
  %v1322 = vunpack.c.h.b16 %v126
  %v1323 = vunpack.c.l.b16 %v127
  %v1324 = vunpack.c.h.b16 %v127
  %v1325 = vunpack.c.l.b16 %v128
  %v1326 = vunpack.c.h.b16 %v128
  %v1327 = vunpack.c.l.b16 %v129
  %v1328 = vunpack.c.h.b16 %v129
  %v1329 = vunpack.c.l.b16 %v130
  %v1330 = vunpack.c.h.b16 %v130
  %v1331 = vunpack.c.l.b16 %v131
  %v1332 = vunpack.c.h.b16 %v131
  %v1333 = vunpack.c.l.b16 %v132
  %v1334 = vunpack.c.h.b16 %v132
  %v1335 = vunpack.c.l.b16 %v133
  %v1336 = vunpack.c.h.b16 %v133
  %v1337 = vunpack.c.l.b16 %v134
  %v1338 = vunpack.c.h.b16 %v134
  %v1339 = vunpack.c.l.b16 %v135
  %v1340 = vunpack.c.h.b16 %v135
  %v1341 = vunpack.c.l.b16 %v136
  %v1342 = vunpack.c.h.b16 %v136
  %v1343 = vunpack.c.l.b16 %v137
  %v1344 = vunpack.c.h.b16 %v137
  %v1345 = vunpack.c.l.b16 %v138
  %v1346 = vunpack.c.h.b16 %v138
  %v1347 = vunpack.c.l.b16 %v139
  %v1348 = vunpack.c.h.b16 %v139
  %v1349 = vunpack.c.l.b16 %v140
  %v1350 = vunpack.c.h.b16 %v140
  %v1351 = vunpack.c.l.b16 %v141
  %v1352 = vunpack.c.h.b16 %v141
  %v1353 = vunpack.c.l.b16 %v142
  %v1354 = vunpack.c.h.b16 %v142
  %v1355 = vunpack.c.l.b16 %v143
  %v1356 = vunpack.c.h.b16 %v143
  %v1357 = vunpack.c.l.b16 %v144
  %v1358 = vunpack.c.h.b16 %v144
  %v1359 = vunpack.c.l.b16 %v145
  %v1360 = vunpack.c.h.b16 %v145
  %v1361 = vunpack.c.l.b16 %v146
  %v1362 = vunpack.c.h.b16 %v146
  %v1363 = vunpack.c.l.b16 %v147
  %v1364 = vunpack.c.h.b16 %v147
  %v1365 = vunpack.c.l.b16 %v148
  %v1366 = vunpack.c.h.b16 %v148
  %v1367 = vunpack.c.l.b16 %v149
  %v1368 = vunpack.c.h.b16 %v149
  %v1369 = vunpack.c.l.b16 %v150
  %v1370 = vunpack.c.h.b16 %v150
  %v1371 = vunpack.c.l.b16 %v151
  %v1372 = vunpack.c.h.b16 %v151
  %v1373 = vunpack.c.l.b16 %v152
  %v1374 = vunpack.c.h.b16 %v152
  %v1375 = vunpack.c.l.b16 %v153
  %v1376 = vunpack.c.h.b16 %v153
  %v1377 = vunpack.c.l.b16 %v154
  %v1378 = vunpack.c.h.b16 %v154
  %v1379 = vunpack.c.l.b16 %v155
  %v1380 = vunpack.c.h.b16 %v155
  %v1381 = vunpack.c.l.b16 %v156
  %v1382 = vunpack.c.h.b16 %v156
  %v1383 = vunpack.c.l.b16 %v157
  %v1384 = vunpack.c.h.b16 %v157
  %v1385 = vunpack.c.l.b16 %v158
  %v1386 = vunpack.c.h.b16 %v158
  %v1387 = vunpack.c.l.b16 %v159
  %v1388 = vunpack.c.h.b16 %v159
  %v1389 = vunpack.c.l.b16 %v160
  %v1390 = vunpack.c.h.b16 %v160
  %v1391 = vunpack.c.l.b16 %v161
  %v1392 = vunpack.c.h.b16 %v161
  %v1393 = vunpack.c.l.b16 %v162
  %v1394 = vunpack.c.h.b16 %v162
  %v1395 = vunpack.c.l.b16 %v163
  %v1396 = vunpack.c.h.b16 %v163
  %v1397 = vunpack.c.l.b16 %v164
  %v1398 = vunpack.c.h.b16 %v164
  %v1399 = vunpack.c.l.b16 %v165
  %v1400 = vunpack.c.h.b16 %v165
  %v1401 = vunpack.c.l.b16 %v166
  %v1402 = vunpack.c.h.b16 %v166
  %v1403 = vunpack.c.l.b16 %v167
  %v1404 = vunpack.c.h.b16 %v167
  %v1405 = vunpack.c.l.b16 %v168
  %v1406 = vunpack.c.h.b16 %v168
  %v1407 = vunpack.c.l.b16 %v169
  %v1408 = vunpack.c.h.b16 %v169
  %v1409 = vunpack.c.l.b16 %v170
  %v1410 = vunpack.c.h.b16 %v170
  %v1411 = vunpack.c.l.b16 %v171
  %v1412 = vunpack.c.h.b16 %v171
  %v1413 = vunpack.c.l.b16 %v172
  %v1414 = vunpack.c.h.b16 %v172
  %v1415 = vunpack.c.l.b16 %v173
  %v1416 = vunpack.c.h.b16 %v173
  %v1417 = vunpack.c.l.b16 %v174
  %v1418 = vunpack.c.h.b16 %v174
  %v1419 = vunpack.c.l.b16 %v175
  %v1420 = vunpack.c.h.b16 %v175
  %v1421 = vunpack.c.l.b16 %v176
  %v1422 = vunpack.c.h.b16 %v176
  %v1423 = vunpack.c.l.b16 %v177
  %v1424 = vunpack.c.h.b16 %v177
  %v1425 = vunpack.c.l.b16 %v178
  %v1426 = vunpack.c.h.b16 %v178
  %v1427 = vunpack.c.l.b16 %v179
  %v1428 = vunpack.c.h.b16 %v179
  %v1429 = vunpack.c.l.b16 %v180
  %v1430 = vunpack.c.h.b16 %v180
  %v1431 = vunpack.c.l.b16 %v181
  %v1432 = vunpack.c.h.b16 %v181
  %v1433 = vunpack.c.l.b16 %v182
  %v1434 = vunpack.c.h.b16 %v182
  %v1435 = vunpack.c.l.b16 %v183
  %v1436 = vunpack.c.h.b16 %v183
  %v1437 = vunpack.c.l.b16 %v184
  %v1438 = vunpack.c.h.b16 %v184
  %v1439 = vunpack.c.l.b16 %v185
  %v1440 = vunpack.c.h.b16 %v185
  %v1441 = vunpack.c.l.b16 %v186
  %v1442 = vunpack.c.h.b16 %v186
  %v1443 = vunpack.c.l.b16 %v187
  %v1444 = vunpack.c.h.b16 %v187
  %v1445 = vunpack.c.l.b16 %v188
  %v1446 = vunpack.c.h.b16 %v188
  %v1447 = vunpack.c.l.b16 %v189
  %v1448 = vunpack.c.h.b16 %v189
  %v1449 = vunpack.c.l.b16 %v190
  %v1450 = vunpack.c.h.b16 %v190
  %v1451 = vunpack.c.l.b16 %v191
  %v1452 = vunpack.c.h.b16 %v191
  %v1453 = vunpack.c.l.b16 %v192
  %v1454 = vunpack.c.h.b16 %v192
  %v1455 = vunpack.c.l.b16 %v193
  %v1456 = vunpack.c.h.b16 %v193
  %v1457 = vunpack.c.l.b16 %v194
  %v1458 = vunpack.c.h.b16 %v194
  %v1459 = vunpack.c.l.b16 %v195
  %v1460 = vunpack.c.h.b16 %v195
  %v1461 = vunpack.c.l.b16 %v196
  %v1462 = vunpack.c.h.b16 %v196
  %v1463 = vunpack.c.l.b16 %v197
  %v1464 = vunpack.c.h.b16 %v197
  %v1465 = vunpack.c.l.b16 %v198
  %v1466 = vunpack.c.h.b16 %v198
  %v1467 = vunpack.c.l.b16 %v199
  %v1468 = vunpack.c.h.b16 %v199
  %v1469 = vunpack.c.l.b16 %v200
  %v1470 = vunpack.c.h.b16 %v200
  %v1471 = vunpack.c.l.b16 %v201
  %v1472 = vunpack.c.h.b16 %v201
  %v1473 = vunpack.c.l.b16 %v202
  %v1474 = vunpack.c.h.b16 %v202
  %v1475 = vunpack.c.l.b16 %v203
  %v1476 = vunpack.c.h.b16 %v203
  %v1477 = vunpack.c.l.b16 %v204
  %v1478 = vunpack.c.h.b16 %v204
  %v1479 = vunpack.c.l.b16 %v205
  %v1480 = vunpack.c.h.b16 %v205
  %v1481 = vunpack.c.l.b16 %v206
  %v1482 = vunpack.c.h.b16 %v206
  %v1483 = vunpack.c.l.b16 %v207
  %v1484 = vunpack.c.h.b16 %v207
  %v1485 = vunpack.c.l.b16 %v208
  %v1486 = vunpack.c.h.b16 %v208
  %v1487 = vunpack.c.l.b16 %v209
  %v1488 = vunpack.c.h.b16 %v209
  %v1489 = vunpack.c.l.b16 %v210
  %v1490 = vunpack.c.h.b16 %v210
  %v1491 = vunpack.c.l.b16 %v211
  %v1492 = vunpack.c.h.b16 %v211
  %v1493 = vunpack.c.l.b16 %v212
  %v1494 = vunpack.c.h.b16 %v212
  %v1495 = vunpack.c.l.b16 %v213
  %v1496 = vunpack.c.h.b16 %v213
  %v1497 = vunpack.c.l.b16 %v214
  %v1498 = vunpack.c.h.b16 %v214
  %v1499 = vunpack.c.l.b16 %v215
  %v1500 = vunpack.c.h.b16 %v215
  %v1501 = vunpack.c.l.b16 %v216
  %v1502 = vunpack.c.h.b16 %v216
  %v1503 = vunpack.c.l.b16 %v217
  %v1504 = vunpack.c.h.b16 %v217
  %v1505 = vunpack.c.l.b16 %v218
  %v1506 = vunpack.c.h.b16 %v218
  %v1507 = vunpack.c.l.b16 %v219
  %v1508 = vunpack.c.h.b16 %v219
  %v1509 = vunpack.c.l.b16 %v220
  %v1510 = vunpack.c.h.b16 %v220
  %v1511 = vunpack.c.l.b16 %v221
  %v1512 = vunpack.c.h.b16 %v221
  %v1513 = vunpack.c.l.b16 %v222
  %v1514 = vunpack.c.h.b16 %v222
  %v1515 = vunpack.c.l.b16 %v223
  %v1516 = vunpack.c.h.b16 %v223
  %v1517 = vunpack.c.l.b16 %v224
  %v1518 = vunpack.c.h.b16 %v224
  %v1519 = vunpack.c.l.b16 %v225
  %v1520 = vunpack.c.h.b16 %v225
  %v1521 = vunpack.c.l.b16 %v226
  %v1522 = vunpack.c.h.b16 %v226
  %v1523 = vunpack.c.l.b16 %v227
  %v1524 = vunpack.c.h.b16 %v227
  %v1525 = vunpack.c.l.b16 %v228
  %v1526 = vunpack.c.h.b16 %v228
  %v1527 = vunpack.c.l.b16 %v229
  %v1528 = vunpack.c.h.b16 %v229
  %v1529 = vunpack.c.l.b16 %v230
  %v1530 = vunpack.c.h.b16 %v230
  %v1531 = vunpack.c.l.b16 %v231
  %v1532 = vunpack.c.h.b16 %v231
  %v1533 = vunpack.c.l.b16 %v232
  %v1534 = vunpack.c.h.b16 %v232
  %v1535 = vunpack.c.l.b16 %v233
  %v1536 = vunpack.c.h.b16 %v233
  %v1537 = vunpack.c.l.b16 %v234
  %v1538 = vunpack.c.h.b16 %v234
  %v1539 = vunpack.c.l.b16 %v235
  %v1540 = vunpack.c.h.b16 %v235
  %v1541 = vunpack.c.l.b16 %v236
  %v1542 = vunpack.c.h.b16 %v236
  %v1543 = vunpack.c.l.b16 %v237
  %v1544 = vunpack.c.h.b16 %v237
  %v1545 = vunpack.c.l.b16 %v238
  %v1546 = vunpack.c.h.b16 %v238
  %v1547 = vunpack.c.l.b16 %v239
  %v1548 = vunpack.c.h.b16 %v239
  %v1549 = vunpack.c.l.b16 %v240
  %v1550 = vunpack.c.h.b16 %v240
  %v1551 = vunpack.c.l.b16 %v241
  %v1552 = vunpack.c.h.b16 %v241
  %v1553 = vunpack.c.l.b16 %v242
  %v1554 = vunpack.c.h.b16 %v242
  %v1555 = vunpack.c.l.b16 %v243
  %v1556 = vunpack.c.h.b16 %v243
  %v1557 = vunpack.c.l.b16 %v244
  %v1558 = vunpack.c.h.b16 %v244
  %v1559 = vunpack.c.l.b16 %v245
  %v1560 = vunpack.c.h.b16 %v245
  %v1561 = vunpack.c.l.b16 %v246
  %v1562 = vunpack.c.h.b16 %v246
  %v1563 = vunpack.c.l.b16 %v247
  %v1564 = vunpack.c.h.b16 %v247
  %v1565 = vunpack.c.l.b16 %v248
  %v1566 = vunpack.c.h.b16 %v248
  %v1567 = vunpack.c.l.b16 %v249
  %v1568 = vunpack.c.h.b16 %v249
  %v1569 = vunpack.c.l.b16 %v250
  %v1570 = vunpack.c.h.b16 %v250
  %v1571 = vunpack.c.l.b16 %v251
  %v1572 = vunpack.c.h.b16 %v251
  %v1573 = vunpack.c.l.b16 %v252
  %v1574 = vunpack.c.h.b16 %v252
  %v1575 = vunpack.c.l.b16 %v253
  %v1576 = vunpack.c.h.b16 %v253
  %v1577 = vunpack.c.l.b16 %v254
  %v1578 = vunpack.c.h.b16 %v254
  %v1579 = vunpack.c.l.b16 %v255
  %v1580 = vunpack.c.h.b16 %v255
  %v1581 = vunpack.c.l.b16 %v256
  %v1582 = vunpack.c.h.b16 %v256
  %v1583 = vunpack.c.l.b16 %v257
  %v1584 = vunpack.c.h.b16 %v257
  %v1585 = vunpack.c.l.b16 %v258
  %v1586 = vunpack.c.h.b16 %v258
  %v1587 = vunpack.c.l.b16 %v259
  %v1588 = vunpack.c.h.b16 %v259
  %v1589 = vunpack.c.l.b16 %v260
  %v1590 = vunpack.c.h.b16 %v260
  %v1591 = vunpack.c.l.b16 %v261
  %v1592 = vunpack.c.h.b16 %v261
  %v1593 = vunpack.c.l.b16 %v262
  %v1594 = vunpack.c.h.b16 %v262
  %v1595 = vunpack.c.l.b16 %v263
  %v1596 = vunpack.c.h.b16 %v263
  %v1597 = vunpack.c.l.b16 %v264
  %v1598 = vunpack.c.h.b16 %v264
  %v1599 = vunpack.c.l.b16 %v265
  %v1600 = vunpack.c.h.b16 %v265
  %v1601 = vunpack.c.l.b16 %v266
  %v1602 = vunpack.c.h.b16 %v266
  %v1603 = vunpack.c.l.b16 %v267
  %v1604 = vunpack.c.h.b16 %v267
  %v1605 = vunpack.c.l.b16 %v268
  %v1606 = vunpack.c.h.b16 %v268
  %v1607 = vunpack.c.l.b16 %v269
  %v1608 = vunpack.c.h.b16 %v269
  %v1609 = vunpack.c.l.b16 %v270
  %v1610 = vunpack.c.h.b16 %v270
  %v1611 = vunpack.c.l.b16 %v271
  %v1612 = vunpack.c.h.b16 %v271
  %v1613 = vunpack.c.l.b16 %v272
  %v1614 = vunpack.c.h.b16 %v272
  %v1615 = vunpack.c.l.b16 %v273
  %v1616 = vunpack.c.h.b16 %v273
  %v1617 = vunpack.c.l.b16 %v274
  %v1618 = vunpack.c.h.b16 %v274
  %v1619 = vunpack.c.l.b16 %v275
  %v1620 = vunpack.c.h.b16 %v275
  %v1621 = vunpack.c.l.b16 %v276
  %v1622 = vunpack.c.h.b16 %v276
  %v1623 = vunpack.c.l.b16 %v277
  %v1624 = vunpack.c.h.b16 %v277
  %v1625 = vunpack.c.l.b16 %v278
  %v1626 = vunpack.c.h.b16 %v278
  %v1627 = vunpack.c.l.b16 %v279
  %v1628 = vunpack.c.h.b16 %v279
  %v1629 = vunpack.c.l.b16 %v280
  %v1630 = vunpack.c.h.b16 %v280
  %v1631 = vunpack.c.l.b16 %v281
  %v1632 = vunpack.c.h.b16 %v281
  %v1633 = vunpack.c.l.b16 %v282
  %v1634 = vunpack.c.h.b16 %v282
  %v1635 = vunpack.c.l.b16 %v283
  %v1636 = vunpack.c.h.b16 %v283
  %v1637 = vunpack.c.l.b16 %v284
  %v1638 = vunpack.c.h.b16 %v284
  %v1639 = vunpack.c.l.b16 %v285
  %v1640 = vunpack.c.h.b16 %v285
  %v1641 = vunpack.c.l.b16 %v286
  %v1642 = vunpack.c.h.b16 %v286
  %v1643 = vunpack.c.l.b16 %v287
  %v1644 = vunpack.c.h.b16 %v287
  %v1645 = vunpack.c.l.b16 %v288
  %v1646 = vunpack.c.h.b16 %v288
  %v1647 = vunpack.c.l.b16 %v289
  %v1648 = vunpack.c.h.b16 %v289
  %v1649 = vunpack.c.l.b16 %v290
  %v1650 = vunpack.c.h.b16 %v290
  %v1651 = vunpack.c.l.b16 %v291
  %v1652 = vunpack.c.h.b16 %v291
  %v1653 = vunpack.c.l.b16 %v292
  %v1654 = vunpack.c.h.b16 %v292
  %v1655 = vunpack.c.l.b16 %v293
  %v1656 = vunpack.c.h.b16 %v293
  %v1657 = vunpack.c.l.b16 %v294
  %v1658 = vunpack.c.h.b16 %v294
  %v1659 = vunpack.c.l.b16 %v295
  %v1660 = vunpack.c.h.b16 %v295
  %v1661 = vunpack.c.l.b16 %v296
  %v1662 = vunpack.c.h.b16 %v296
  %v1663 = vunpack.c.l.b16 %v297
  %v1664 = vunpack.c.h.b16 %v297
  %v1665 = vunpack.c.l.b16 %v298
  %v1666 = vunpack.c.h.b16 %v298
  %v1667 = vunpack.c.l.b16 %v299
  %v1668 = vunpack.c.h.b16 %v299
  %v1669 = vunpack.c.l.b16 %v300
  %v1670 = vunpack.c.h.b16 %v300
  %v1671 = vunpack.c.l.b16 %v301
  %v1672 = vunpack.c.h.b16 %v301
  %v1673 = vunpack.c.l.b16 %v302
  %v1674 = vunpack.c.h.b16 %v302
  %v1675 = vunpack.c.l.b16 %v303
  %v1676 = vunpack.c.h.b16 %v303
  %v1677 = vunpack.c.l.b16 %v304
  %v1678 = vunpack.c.h.b16 %v304
  %v1679 = vunpack.c.l.b16 %v305
  %v1680 = vunpack.c.h.b16 %v305
  %v1681 = vunpack.c.l.b16 %v306
  %v1682 = vunpack.c.h.b16 %v306
  %v1683 = vunpack.c.l.b16 %v307
  %v1684 = vunpack.c.h.b16 %v307
  %v1685 = vunpack.c.l.b16 %v308
  %v1686 = vunpack.c.h.b16 %v308
  %v1687 = vunpack.c.l.b16 %v309
  %v1688 = vunpack.c.h.b16 %v309
  %v1689 = vunpack.c.l.b16 %v310
  %v1690 = vunpack.c.h.b16 %v310
  %v1691 = vunpack.c.l.b16 %v311
  %v1692 = vunpack.c.h.b16 %v311
  %v1693 = vunpack.c.l.b16 %v312
  %v1694 = vunpack.c.h.b16 %v312
  %v1695 = vunpack.c.l.b16 %v313
  %v1696 = vunpack.c.h.b16 %v313
  %v1697 = vunpack.c.l.b16 %v314
  %v1698 = vunpack.c.h.b16 %v314
  %v1699 = vunpack.c.l.b16 %v315
  %v1700 = vunpack.c.h.b16 %v315
  %v1701 = vunpack.c.l.b16 %v316
  %v1702 = vunpack.c.h.b16 %v316
  %v1703 = vunpack.c.l.b16 %v317
  %v1704 = vunpack.c.h.b16 %v317
  %v1705 = vunpack.c.l.b16 %v318
  %v1706 = vunpack.c.h.b16 %v318
  %v1707 = vunpack.c.l.b16 %v319
  %v1708 = vunpack.c.h.b16 %v319
  %v1709 = vunpack.c.l.b16 %v320
  %v1710 = vunpack.c.h.b16 %v320
  %v1711 = vunpack.c.l.b16 %v321
  %v1712 = vunpack.c.h.b16 %v321
  %v1713 = vunpack.c.l.b16 %v322
  %v1714 = vunpack.c.h.b16 %v322
  %v1715 = vunpack.c.l.b16 %v323
  %v1716 = vunpack.c.h.b16 %v323
  %v1717 = vunpack.c.l.b16 %v324
  %v1718 = vunpack.c.h.b16 %v324
  %v1719 = vunpack.c.l.b16 %v325
  %v1720 = vunpack.c.h.b16 %v325
  %v1721 = vunpack.c.l.b16 %v326
  %v1722 = vunpack.c.h.b16 %v326
  %v1723 = vunpack.c.l.b16 %v327
  %v1724 = vunpack.c.h.b16 %v327
  %v1725 = vunpack.c.l.b16 %v328
  %v1726 = vunpack.c.h.b16 %v328
  %v1727 = vunpack.c.l.b16 %v329
  %v1728 = vunpack.c.h.b16 %v329
  %v1729 = vunpack.c.l.b16 %v330
  %v1730 = vunpack.c.h.b16 %v330
  %v1731 = vunpack.c.l.b16 %v331
  %v1732 = vunpack.c.h.b16 %v331
  %v1733 = vunpack.c.l.b16 %v332
  %v1734 = vunpack.c.h.b16 %v332
  %v1735 = vunpack.c.l.b16 %v333
  %v1736 = vunpack.c.h.b16 %v333
  %v1737 = vunpack.c.l.b16 %v334
  %v1738 = vunpack.c.h.b16 %v334
  %v1739 = vunpack.c.l.b16 %v335
  %v1740 = vunpack.c.h.b16 %v335
  %v1741 = vunpack.c.l.b16 %v336
  %v1742 = vunpack.c.h.b16 %v336
  %v1743 = vunpack.c.l.b16 %v337
  %v1744 = vunpack.c.h.b16 %v337
  %v1745 = vunpack.c.l.b16 %v338
  %v1746 = vunpack.c.h.b16 %v338
  %v1747 = vunpack.c.l.b16 %v339
  %v1748 = vunpack.c.h.b16 %v339
  %v1749 = vunpack.c.l.b16 %v340
  %v1750 = vunpack.c.h.b16 %v340
  %v1751 = vunpack.c.l.b16 %v341
  %v1752 = vunpack.c.h.b16 %v341
  %v1753 = vunpack.c.l.b16 %v342
  %v1754 = vunpack.c.h.b16 %v342
  %v1755 = vunpack.c.l.b16 %v343
  %v1756 = vunpack.c.h.b16 %v343
  %v1757 = vunpack.c.l.b16 %v344
  %v1758 = vunpack.c.h.b16 %v344
  %v1759 = vunpack.c.l.b16 %v345
  %v1760 = vunpack.c.h.b16 %v345
  %v1761 = vunpack.c.l.b16 %v346
  %v1762 = vunpack.c.h.b16 %v346
  %v1763 = vunpack.c.l.b16 %v347
  %v1764 = vunpack.c.h.b16 %v347
  %v1765 = vunpack.c.l.b16 %v348
  %v1766 = vunpack.c.h.b16 %v348
  %v1767 = vunpack.c.l.b16 %v349
  %v1768 = vunpack.c.h.b16 %v349
  %v1769 = vunpack.c.l.b16 %v350
  %v1770 = vunpack.c.h.b16 %v350
  %v1771 = vunpack.c.l.b16 %v351
  %v1772 = vunpack.c.h.b16 %v351
  %v1773 = vunpack.c.l.b16 %v352
  %v1774 = vunpack.c.h.b16 %v352
  %v1775 = vunpack.c.l.b16 %v353
  %v1776 = vunpack.c.h.b16 %v353
  %v1777 = vunpack.c.l.b16 %v354
  %v1778 = vunpack.c.h.b16 %v354
  %v1779 = vunpack.c.l.b16 %v355
  %v1780 = vunpack.c.h.b16 %v355
  %v1781 = vunpack.c.l.b16 %v356
  %v1782 = vunpack.c.h.b16 %v356
  %v1783 = vunpack.c.l.b16 %v357
  %v1784 = vunpack.c.h.b16 %v357
  %v1785 = vunpack.c.l.b16 %v358
  %v1786 = vunpack.c.h.b16 %v358
  %v1787 = vunpack.c.l.b16 %v359
  %v1788 = vunpack.c.h.b16 %v359
  %v1789 = vunpack.c.l.b16 %v360
  %v1790 = vunpack.c.h.b16 %v360
  %v1791 = vunpack.c.l.b16 %v361
  %v1792 = vunpack.c.h.b16 %v361
  %v1793 = vunpack.c.l.b16 %v362
  %v1794 = vunpack.c.h.b16 %v362
  %v1795 = vunpack.c.l.b16 %v363
  %v1796 = vunpack.c.h.b16 %v363
  %v1797 = vunpack.c.l.b16 %v364
  %v1798 = vunpack.c.h.b16 %v364
  %v1799 = vunpack.c.l.b16 %v365
  %v1800 = vunpack.c.h.b16 %v365
  %v1801 = vunpack.c.l.b16 %v366
  %v1802 = vunpack.c.h.b16 %v366
  %v1803 = vunpack.c.l.b16 %v367
  %v1804 = vunpack.c.h.b16 %v367
  %v1805 = vunpack.c.l.b16 %v368
  %v1806 = vunpack.c.h.b16 %v368
  %v1807 = vunpack.c.l.b16 %v369
  %v1808 = vunpack.c.h.b16 %v369
  %v1809 = vunpack.c.l.b16 %v370
  %v1810 = vunpack.c.h.b16 %v370
  %v1811 = vunpack.c.l.b16 %v371
  %v1812 = vunpack.c.h.b16 %v371
  %v1813 = vunpack.c.l.b16 %v372
  %v1814 = vunpack.c.h.b16 %v372
  %v1815 = vunpack.c.l.b16 %v373
  %v1816 = vunpack.c.h.b16 %v373
  %v1817 = vunpack.c.l.b16 %v374
  %v1818 = vunpack.c.h.b16 %v374
  %v1819 = vunpack.c.l.b16 %v375
  %v1820 = vunpack.c.h.b16 %v375
  %v1821 = vunpack.c.l.b16 %v376
  %v1822 = vunpack.c.h.b16 %v376
  %v1823 = vunpack.c.l.b16 %v377
  %v1824 = vunpack.c.h.b16 %v377
  %v1825 = vunpack.c.l.b16 %v378
  %v1826 = vunpack.c.h.b16 %v378
  %v1827 = vunpack.c.l.b16 %v379
  %v1828 = vunpack.c.h.b16 %v379
  %v1829 = vunpack.c.l.b16 %v380
  %v1830 = vunpack.c.h.b16 %v380
  %v1831 = vunpack.c.l.b16 %v381
  %v1832 = vunpack.c.h.b16 %v381
  %v1833 = vunpack.c.l.b16 %v382
  %v1834 = vunpack.c.h.b16 %v382
  %v1835 = vunpack.c.l.b16 %v383
  %v1836 = vunpack.c.h.b16 %v383
  %v1837 = vunpack.c.l.b16 %v384
  %v1838 = vunpack.c.h.b16 %v384
  %v1839 = vunpack.c.l.b16 %v385
  %v1840 = vunpack.c.h.b16 %v385
  %v1841 = vunpack.c.l.b16 %v386
  %v1842 = vunpack.c.h.b16 %v386
  %v1843 = vunpack.c.l.b16 %v387
  %v1844 = vunpack.c.h.b16 %v387
  %v1845 = vunpack.c.l.b16 %v388
  %v1846 = vunpack.c.h.b16 %v388
  %v1847 = vunpack.c.l.b16 %v389
  %v1848 = vunpack.c.h.b16 %v389
  %v1849 = vunpack.c.l.b16 %v390
  %v1850 = vunpack.c.h.b16 %v390
  %v1851 = vunpack.c.l.b16 %v391
  %v1852 = vunpack.c.h.b16 %v391
  %v1853 = vunpack.c.l.b16 %v392
  %v1854 = vunpack.c.h.b16 %v392
  %v1855 = vunpack.c.l.b16 %v393
  %v1856 = vunpack.c.h.b16 %v393
  %v1857 = vunpack.c.l.b16 %v394
  %v1858 = vunpack.c.h.b16 %v394
  %v1859 = vunpack.c.l.b16 %v395
  %v1860 = vunpack.c.h.b16 %v395
  %v1861 = vunpack.c.l.b16 %v396
  %v1862 = vunpack.c.h.b16 %v396
  %v1863 = vunpack.c.l.b16 %v397
  %v1864 = vunpack.c.h.b16 %v397
  %v1865 = vunpack.c.l.b16 %v398
  %v1866 = vunpack.c.h.b16 %v398
  %v1867 = vunpack.c.l.b16 %v399
  %v1868 = vunpack.c.h.b16 %v399
  %v1869 = vunpack.c.l.b16 %v400
  %v1870 = vunpack.c.h.b16 %v400
  %v1871 = vunpack.c.l.b16 %v401
  %v1872 = vunpack.c.h.b16 %v401
  %v1873 = vunpack.c.l.b16 %v402
  %v1874 = vunpack.c.h.b16 %v402
  %v1875 = vunpack.c.l.b16 %v403
  %v1876 = vunpack.c.h.b16 %v403
  %v1877 = vunpack.c.l.b16 %v404
  %v1878 = vunpack.c.h.b16 %v404
  %v1879 = vunpack.c.l.b16 %v405
  %v1880 = vunpack.c.h.b16 %v405
  %v1881 = vunpack.c.l.b16 %v406
  %v1882 = vunpack.c.h.b16 %v406
  %v1883 = vunpack.c.l.b16 %v407
  %v1884 = vunpack.c.h.b16 %v407
  %v1885 = vunpack.c.l.b16 %v408
  %v1886 = vunpack.c.h.b16 %v408
  %v1887 = vunpack.c.l.b16 %v409
  %v1888 = vunpack.c.h.b16 %v409
  %v1889 = vunpack.c.l.b16 %v410
  %v1890 = vunpack.c.h.b16 %v410
  %v1891 = vunpack.c.l.b16 %v411
  %v1892 = vunpack.c.h.b16 %v411
  %v1893 = vunpack.c.l.b16 %v412
  %v1894 = vunpack.c.h.b16 %v412
  %v1895 = vunpack.c.l.b16 %v413
  %v1896 = vunpack.c.h.b16 %v413
  %v1897 = vunpack.c.l.b16 %v414
  %v1898 = vunpack.c.h.b16 %v414
  %v1899 = vunpack.c.l.b16 %v415
  %v1900 = vunpack.c.h.b16 %v415
  %v1901 = vunpack.c.l.b16 %v416
  %v1902 = vunpack.c.h.b16 %v416
  %v1903 = vunpack.c.l.b16 %v417
  %v1904 = vunpack.c.h.b16 %v417
  %v1905 = vunpack.c.l.b16 %v418
  %v1906 = vunpack.c.h.b16 %v418
  %v1907 = vunpack.c.l.b16 %v419
  %v1908 = vunpack.c.h.b16 %v419
  %v1909 = vunpack.c.l.b16 %v420
  %v1910 = vunpack.c.h.b16 %v420
  %v1911 = vunpack.c.l.b16 %v421
  %v1912 = vunpack.c.h.b16 %v421
  %v1913 = vunpack.c.l.b16 %v422
  %v1914 = vunpack.c.h.b16 %v422
  %v1915 = vunpack.c.l.b16 %v423
  %v1916 = vunpack.c.h.b16 %v423
  %v1917 = vunpack.c.l.b16 %v424
  %v1918 = vunpack.c.h.b16 %v424
  %v1919 = vunpack.c.l.b16 %v425
  %v1920 = vunpack.c.h.b16 %v425
  %v1921 = vunpack.c.l.b16 %v426
  %v1922 = vunpack.c.h.b16 %v426
  %v1923 = vunpack.c.l.b16 %v427
  %v1924 = vunpack.c.h.b16 %v427
  %v1925 = vunpack.c.l.b16 %v428
  %v1926 = vunpack.c.h.b16 %v428
  %v1927 = vunpack.c.l.b16 %v429
  %v1928 = vunpack.c.h.b16 %v429
  %v1929 = vunpack.c.l.b16 %v430
  %v1930 = vunpack.c.h.b16 %v430
  %v1931 = vunpack.c.l.b16 %v431
  %v1932 = vunpack.c.h.b16 %v431
  %v1933 = vunpack.c.l.b16 %v432
  %v1934 = vunpack.c.h.b16 %v432
  %v1935 = vunpack.c.l.b16 %v433
  %v1936 = vunpack.c.h.b16 %v433
  %v1937 = vunpack.c.l.b16 %v434
  %v1938 = vunpack.c.h.b16 %v434
  %v1939 = vunpack.c.l.b16 %v435
  %v1940 = vunpack.c.h.b16 %v435
  %v1941 = vunpack.c.l.b16 %v436
  %v1942 = vunpack.c.h.b16 %v436
  %v1943 = vunpack.c.l.b16 %v437
  %v1944 = vunpack.c.h.b16 %v437
  %v1945 = vunpack.c.l.b16 %v438
  %v1946 = vunpack.c.h.b16 %v438
  %v1947 = vunpack.c.l.b16 %v439
  %v1948 = vunpack.c.h.b16 %v439
  %v1949 = vunpack.c.l.b16 %v440
  %v1950 = vunpack.c.h.b16 %v440
  %v1951 = vunpack.c.l.b16 %v441
  %v1952 = vunpack.c.h.b16 %v441
  %v1953 = vunpack.c.l.b16 %v442
  %v1954 = vunpack.c.h.b16 %v442
  %v1955 = vunpack.c.l.b16 %v443
  %v1956 = vunpack.c.h.b16 %v443
  %v1957 = vunpack.c.l.b16 %v444
  %v1958 = vunpack.c.h.b16 %v444
  %v1959 = vunpack.c.l.b16 %v445
  %v1960 = vunpack.c.h.b16 %v445
  %v1961 = vunpack.c.l.b16 %v446
  %v1962 = vunpack.c.h.b16 %v446
  %v1963 = vunpack.c.l.b16 %v447
  %v1964 = vunpack.c.h.b16 %v447
  %v1965 = vunpack.c.l.b16 %v448
  %v1966 = vunpack.c.h.b16 %v448
  %v1967 = vunpack.c.l.b16 %v449
  %v1968 = vunpack.c.h.b16 %v449
  %v1969 = vunpack.c.l.b16 %v450
  %v1970 = vunpack.c.h.b16 %v450
  %v1971 = vunpack.c.l.b16 %v451
  %v1972 = vunpack.c.h.b16 %v451
  %v1973 = vunpack.c.l.b16 %v452
  %v1974 = vunpack.c.h.b16 %v452
  %v1975 = vunpack.c.l.b16 %v453
  %v1976 = vunpack.c.h.b16 %v453
  %v1977 = vunpack.c.l.b16 %v454
  %v1978 = vunpack.c.h.b16 %v454
  %v1979 = vunpack.c.l.b16 %v455
  %v1980 = vunpack.c.h.b16 %v455
  %v1981 = vunpack.c.l.b16 %v456
  %v1982 = vunpack.c.h.b16 %v456
  %v1983 = vunpack.c.l.b16 %v457
  %v1984 = vunpack.c.h.b16 %v457
  %v1985 = vunpack.c.l.b16 %v458
  %v1986 = vunpack.c.h.b16 %v458
  %v1987 = vunpack.c.l.b16 %v459
  %v1988 = vunpack.c.h.b16 %v459
  %v1989 = vunpack.c.l.b16 %v460
  %v1990 = vunpack.c.h.b16 %v460
  %v1991 = vunpack.c.l.b16 %v461
  %v1992 = vunpack.c.h.b16 %v461
  %v1993 = vunpack.c.l.b16 %v462
  %v1994 = vunpack.c.h.b16 %v462
  %v1995 = vunpack.c.l.b16 %v463
  %v1996 = vunpack.c.h.b16 %v463
  %v1997 = vunpack.c.l.b16 %v464
  %v1998 = vunpack.c.h.b16 %v464
  %v1999 = vunpack.c.l.b16 %v465
  %v2000 = vunpack.c.h.b16 %v465
  %v2001 = vunpack.c.l.b16 %v466
  %v2002 = vunpack.c.h.b16 %v466
  %v2003 = vunpack.c.l.b16 %v467
  %v2004 = vunpack.c.h.b16 %v467
  %v2005 = vunpack.c.l.b16 %v468
  %v2006 = vunpack.c.h.b16 %v468
  %v2007 = vunpack.c.l.b16 %v469
  %v2008 = vunpack.c.h.b16 %v469
  %v2009 = vunpack.c.l.b16 %v470
  %v2010 = vunpack.c.h.b16 %v470
  %v2011 = vunpack.c.l.b16 %v471
  %v2012 = vunpack.c.h.b16 %v471
  %v2013 = vunpack.c.l.b16 %v472
  %v2014 = vunpack.c.h.b16 %v472
  %v2015 = vunpack.c.l.b16 %v473
  %v2016 = vunpack.c.h.b16 %v473
  %v2017 = vunpack.c.l.b16 %v474
  %v2018 = vunpack.c.h.b16 %v474
  %v2019 = vunpack.c.l.b16 %v475
  %v2020 = vunpack.c.h.b16 %v475
  %v2021 = vunpack.c.l.b16 %v476
  %v2022 = vunpack.c.h.b16 %v476
  %v2023 = vunpack.c.l.b16 %v477
  %v2024 = vunpack.c.h.b16 %v477
  %v2025 = vunpack.c.l.b16 %v478
  %v2026 = vunpack.c.h.b16 %v478
  %v2027 = vunpack.c.l.b16 %v479
  %v2028 = vunpack.c.h.b16 %v479
  %v2029 = vunpack.c.l.b16 %v480
  %v2030 = vunpack.c.h.b16 %v480
  %v2031 = vunpack.c.l.b16 %v481
  %v2032 = vunpack.c.h.b16 %v481
  %v2033 = vunpack.c.l.b16 %v482
  %v2034 = vunpack.c.h.b16 %v482
  %v2035 = vunpack.c.l.b16 %v483
  %v2036 = vunpack.c.h.b16 %v483
  %v2037 = vunpack.c.l.b16 %v484
  %v2038 = vunpack.c.h.b16 %v484
  %v2039 = vunpack.c.l.b16 %v485
  %v2040 = vunpack.c.h.b16 %v485
  %v2041 = vunpack.c.l.b16 %v486
  %v2042 = vunpack.c.h.b16 %v486
  %v2043 = vunpack.c.l.b16 %v487
  %v2044 = vunpack.c.h.b16 %v487
  %v2045 = vunpack.c.l.b16 %v488
  %v2046 = vunpack.c.h.b16 %v488
  %v2047 = vunpack.c.l.b16 %v489
  %v2048 = vunpack.c.h.b16 %v489
  %v2049 = vunpack.c.l.b16 %v490
  %v2050 = vunpack.c.h.b16 %v490
  %v2051 = vunpack.c.l.b16 %v491
  %v2052 = vunpack.c.h.b16 %v491
  %v2053 = vunpack.c.l.b16 %v492
  %v2054 = vunpack.c.h.b16 %v492
  %v2055 = vunpack.c.l.b16 %v493
  %v2056 = vunpack.c.h.b16 %v493
  %v2057 = vunpack.c.l.b16 %v494
  %v2058 = vunpack.c.h.b16 %v494
  %v2059 = vunpack.c.l.b16 %v495
  %v2060 = vunpack.c.h.b16 %v495
  %v2061 = vunpack.c.l.b16 %v496
  %v2062 = vunpack.c.h.b16 %v496
  %v2063 = vunpack.c.l.b16 %v497
  %v2064 = vunpack.c.h.b16 %v497
  %v2065 = vunpack.c.l.b16 %v498
  %v2066 = vunpack.c.h.b16 %v498
  %v2067 = vunpack.c.l.b16 %v499
  %v2068 = vunpack.c.h.b16 %v499
  %v2069 = vunpack.c.l.b16 %v500
  %v2070 = vunpack.c.h.b16 %v500
  %v2071 = vunpack.c.l.b16 %v501
  %v2072 = vunpack.c.h.b16 %v501
  %v2073 = vunpack.c.l.b16 %v502
  %v2074 = vunpack.c.h.b16 %v502
  %v2075 = vunpack.c.l.b16 %v503
  %v2076 = vunpack.c.h.b16 %v503
  %v2077 = vunpack.c.l.b16 %v504
  %v2078 = vunpack.c.h.b16 %v504
  %v2079 = vunpack.c.l.b16 %v505
  %v2080 = vunpack.c.h.b16 %v505
  %v2081 = vunpack.c.l.b16 %v506
  %v2082 = vunpack.c.h.b16 %v506
  %v2083 = vunpack.c.l.b16 %v507
  %v2084 = vunpack.c.h.b16 %v507
  %v2085 = vunpack.c.l.b16 %v508
  %v2086 = vunpack.c.h.b16 %v508
  %v2087 = vunpack.c.l.b16 %v509
  %v2088 = vunpack.c.h.b16 %v509
  %v2089 = vunpack.c.l.b16 %v510
  %v2090 = vunpack.c.h.b16 %v510
  %v2091 = vunpack.c.l.b16 %v511
  %v2092 = vunpack.c.h.b16 %v511
  %v2093 = vunpack.c.l.b16 %v512
  %v2094 = vunpack.c.h.b16 %v512
  %v2095 = vunpack.c.l.b16 %v513
  %v2096 = vunpack.c.h.b16 %v513
  %v2097 = vunpack.c.l.b16 %v514
  %v2098 = vunpack.c.h.b16 %v514
  %v2099 = vunpack.c.l.b16 %v515
  %v2100 = vunpack.c.h.b16 %v515
  %v2101 = vunpack.c.l.b16 %v516
  %v2102 = vunpack.c.h.b16 %v516
  %v2103 = vunpack.c.l.b16 %v517
  %v2104 = vunpack.c.h.b16 %v517
  %v2105 = vunpack.c.l.b16 %v518
  %v2106 = vunpack.c.h.b16 %v518
  %v2107 = vunpack.c.l.b16 %v519
  %v2108 = vunpack.c.h.b16 %v519
  %v2109 = vunpack.c.l.b16 %v520
  %v2110 = vunpack.c.h.b16 %v520
  %v2111 = vunpack.c.l.b16 %v521
  %v2112 = vunpack.c.h.b16 %v521
  %v2113 = vunpack.c.l.b16 %v522
  %v2114 = vunpack.c.h.b16 %v522
  %v2115 = vunpack.c.l.b16 %v523
  %v2116 = vunpack.c.h.b16 %v523
  %v2117 = vunpack.c.l.b16 %v524
  %v2118 = vunpack.c.h.b16 %v524
  %v2119 = vunpack.c.l.b16 %v525
  %v2120 = vunpack.c.h.b16 %v525
  %v2121 = vunpack.c.l.b16 %v526
  %v2122 = vunpack.c.h.b16 %v526
  %v2123 = vunpack.c.l.b16 %v527
  %v2124 = vunpack.c.h.b16 %v527
  %v2125 = vunpack.c.l.b16 %v528
  %v2126 = vunpack.c.h.b16 %v528
  %v2127 = vunpack.c.l.b16 %v529
  %v2128 = vunpack.c.h.b16 %v529
  %v2129 = vunpack.c.l.b16 %v530
  %v2130 = vunpack.c.h.b16 %v530
  %v2131 = vunpack.c.l.b16 %v531
  %v2132 = vunpack.c.h.b16 %v531
  %v2133 = vunpack.c.l.b16 %v532
  %v2134 = vunpack.c.h.b16 %v532
  %v2135 = vunpack.c.l.b16 %v533
  %v2136 = vunpack.c.h.b16 %v533
  %v2137 = vunpack.c.l.b16 %v534
  %v2138 = vunpack.c.h.b16 %v534
  %v2139 = vunpack.c.l.b16 %v535
  %v2140 = vunpack.c.h.b16 %v535
  %v2141 = vunpack.c.l.b16 %v536
  %v2142 = vunpack.c.h.b16 %v536
  %v2143 = vpack.c.b16 %v1127, %v1119
  %v2144 = vpack.c.b16 %v1128, %v1120
  %v2145 = vpack.c.b16 %v1129, %v1121
  %v2146 = vpack.c.b16 %v1130, %v1122
  %v2147 = vpack.c.b16 %v1131, %v1123
  %v2148 = vpack.c.b16 %v1132, %v1124
  %v2149 = vpack.c.b16 %v1133, %v1125
  %v2150 = vpack.c.b16 %v1134, %v1126
  %v2151 = vpack.c.b16 %v1143, %v1135
  %v2152 = vpack.c.b16 %v1144, %v1136
  %v2153 = vpack.c.b16 %v1145, %v1137
  %v2154 = vpack.c.b16 %v1146, %v1138
  %v2155 = vpack.c.b16 %v1147, %v1139
  %v2156 = vpack.c.b16 %v1148, %v1140
  %v2157 = vpack.c.b16 %v1149, %v1141
  %v2158 = vpack.c.b16 %v1150, %v1142
  %v2159 = vpack.c.b16 %v1159, %v1151
  %v2160 = vpack.c.b16 %v1160, %v1152
  %v2161 = vpack.c.b16 %v1161, %v1153
  %v2162 = vpack.c.b16 %v1162, %v1154
  %v2163 = vpack.c.b16 %v1163, %v1155
  %v2164 = vpack.c.b16 %v1164, %v1156
  %v2165 = vpack.c.b16 %v1165, %v1157
  %v2166 = vpack.c.b16 %v1166, %v1158
  %v2167 = vpack.c.b16 %v1175, %v1167
  %v2168 = vpack.c.b16 %v1176, %v1168
  %v2169 = vpack.c.b16 %v1177, %v1169
  %v2170 = vpack.c.b16 %v1178, %v1170
  %v2171 = vpack.c.b16 %v1179, %v1171
  %v2172 = vpack.c.b16 %v1180, %v1172
  %v2173 = vpack.c.b16 %v1181, %v1173
  %v2174 = vpack.c.b16 %v1182, %v1174
  %v2175 = vpack.c.b16 %v1191, %v1183
  %v2176 = vpack.c.b16 %v1192, %v1184
  %v2177 = vpack.c.b16 %v1193, %v1185
  %v2178 = vpack.c.b16 %v1194, %v1186
  %v2179 = vpack.c.b16 %v1195, %v1187
  %v2180 = vpack.c.b16 %v1196, %v1188
  %v2181 = vpack.c.b16 %v1197, %v1189
  %v2182 = vpack.c.b16 %v1198, %v1190
  %v2183 = vpack.c.b16 %v1207, %v1199
  %v2184 = vpack.c.b16 %v1208, %v1200
  %v2185 = vpack.c.b16 %v1209, %v1201
  %v2186 = vpack.c.b16 %v1210, %v1202
  %v2187 = vpack.c.b16 %v1211, %v1203
  %v2188 = vpack.c.b16 %v1212, %v1204
  %v2189 = vpack.c.b16 %v1213, %v1205
  %v2190 = vpack.c.b16 %v1214, %v1206
  %v2191 = vpack.c.b16 %v1223, %v1215
  %v2192 = vpack.c.b16 %v1224, %v1216
  %v2193 = vpack.c.b16 %v1225, %v1217
  %v2194 = vpack.c.b16 %v1226, %v1218
  %v2195 = vpack.c.b16 %v1227, %v1219
  %v2196 = vpack.c.b16 %v1228, %v1220
  %v2197 = vpack.c.b16 %v1229, %v1221
  %v2198 = vpack.c.b16 %v1230, %v1222
  %v2199 = vpack.c.b16 %v1239, %v1231
  %v2200 = vpack.c.b16 %v1240, %v1232
  %v2201 = vpack.c.b16 %v1241, %v1233
  %v2202 = vpack.c.b16 %v1242, %v1234
  %v2203 = vpack.c.b16 %v1243, %v1235
  %v2204 = vpack.c.b16 %v1244, %v1236
  %v2205 = vpack.c.b16 %v1245, %v1237
  %v2206 = vpack.c.b16 %v1246, %v1238
  %v2207 = vpack.c.b16 %v1255, %v1247
  %v2208 = vpack.c.b16 %v1256, %v1248
  %v2209 = vpack.c.b16 %v1257, %v1249
  %v2210 = vpack.c.b16 %v1258, %v1250
  %v2211 = vpack.c.b16 %v1259, %v1251
  %v2212 = vpack.c.b16 %v1260, %v1252
  %v2213 = vpack.c.b16 %v1261, %v1253
  %v2214 = vpack.c.b16 %v1262, %v1254
  %v2215 = vpack.c.b16 %v1271, %v1263
  %v2216 = vpack.c.b16 %v1272, %v1264
  %v2217 = vpack.c.b16 %v1273, %v1265
  %v2218 = vpack.c.b16 %v1274, %v1266
  %v2219 = vpack.c.b16 %v1275, %v1267
  %v2220 = vpack.c.b16 %v1276, %v1268
  %v2221 = vpack.c.b16 %v1277, %v1269
  %v2222 = vpack.c.b16 %v1278, %v1270
  %v2223 = vpack.c.b16 %v1287, %v1279
  %v2224 = vpack.c.b16 %v1288, %v1280
  %v2225 = vpack.c.b16 %v1289, %v1281
  %v2226 = vpack.c.b16 %v1290, %v1282
  %v2227 = vpack.c.b16 %v1291, %v1283
  %v2228 = vpack.c.b16 %v1292, %v1284
  %v2229 = vpack.c.b16 %v1293, %v1285
  %v2230 = vpack.c.b16 %v1294, %v1286
  %v2231 = vpack.c.b16 %v1303, %v1295
  %v2232 = vpack.c.b16 %v1304, %v1296
  %v2233 = vpack.c.b16 %v1305, %v1297
  %v2234 = vpack.c.b16 %v1306, %v1298
  %v2235 = vpack.c.b16 %v1307, %v1299
  %v2236 = vpack.c.b16 %v1308, %v1300
  %v2237 = vpack.c.b16 %v1309, %v1301
  %v2238 = vpack.c.b16 %v1310, %v1302
  %v2239 = vpack.c.b16 %v1319, %v1311
  %v2240 = vpack.c.b16 %v1320, %v1312
  %v2241 = vpack.c.b16 %v1321, %v1313
  %v2242 = vpack.c.b16 %v1322, %v1314
  %v2243 = vpack.c.b16 %v1323, %v1315
  %v2244 = vpack.c.b16 %v1324, %v1316
  %v2245 = vpack.c.b16 %v1325, %v1317
  %v2246 = vpack.c.b16 %v1326, %v1318
  %v2247 = vpack.c.b16 %v1335, %v1327
  %v2248 = vpack.c.b16 %v1336, %v1328
  %v2249 = vpack.c.b16 %v1337, %v1329
  %v2250 = vpack.c.b16 %v1338, %v1330
  %v2251 = vpack.c.b16 %v1339, %v1331
  %v2252 = vpack.c.b16 %v1340, %v1332
  %v2253 = vpack.c.b16 %v1341, %v1333
  %v2254 = vpack.c.b16 %v1342, %v1334
  %v2255 = vpack.c.b16 %v1351, %v1343
  %v2256 = vpack.c.b16 %v1352, %v1344
  %v2257 = vpack.c.b16 %v1353, %v1345
  %v2258 = vpack.c.b16 %v1354, %v1346
  %v2259 = vpack.c.b16 %v1355, %v1347
  %v2260 = vpack.c.b16 %v1356, %v1348
  %v2261 = vpack.c.b16 %v1357, %v1349
  %v2262 = vpack.c.b16 %v1358, %v1350
  %v2263 = vpack.c.b16 %v1367, %v1359
  %v2264 = vpack.c.b16 %v1368, %v1360
  %v2265 = vpack.c.b16 %v1369, %v1361
  %v2266 = vpack.c.b16 %v1370, %v1362
  %v2267 = vpack.c.b16 %v1371, %v1363
  %v2268 = vpack.c.b16 %v1372, %v1364
  %v2269 = vpack.c.b16 %v1373, %v1365
  %v2270 = vpack.c.b16 %v1374, %v1366
  %v2271 = vpack.c.b16 %v1383, %v1375
  %v2272 = vpack.c.b16 %v1384, %v1376
  %v2273 = vpack.c.b16 %v1385, %v1377
  %v2274 = vpack.c.b16 %v1386, %v1378
  %v2275 = vpack.c.b16 %v1387, %v1379
  %v2276 = vpack.c.b16 %v1388, %v1380
  %v2277 = vpack.c.b16 %v1389, %v1381
  %v2278 = vpack.c.b16 %v1390, %v1382
  %v2279 = vpack.c.b16 %v1399, %v1391
  %v2280 = vpack.c.b16 %v1400, %v1392
  %v2281 = vpack.c.b16 %v1401, %v1393
  %v2282 = vpack.c.b16 %v1402, %v1394
  %v2283 = vpack.c.b16 %v1403, %v1395
  %v2284 = vpack.c.b16 %v1404, %v1396
  %v2285 = vpack.c.b16 %v1405, %v1397
  %v2286 = vpack.c.b16 %v1406, %v1398
  %v2287 = vpack.c.b16 %v1415, %v1407
  %v2288 = vpack.c.b16 %v1416, %v1408
  %v2289 = vpack.c.b16 %v1417, %v1409
  %v2290 = vpack.c.b16 %v1418, %v1410
  %v2291 = vpack.c.b16 %v1419, %v1411
  %v2292 = vpack.c.b16 %v1420, %v1412
  %v2293 = vpack.c.b16 %v1421, %v1413
  %v2294 = vpack.c.b16 %v1422, %v1414
  %v2295 = vpack.c.b16 %v1431, %v1423
  %v2296 = vpack.c.b16 %v1432, %v1424
  %v2297 = vpack.c.b16 %v1433, %v1425
  %v2298 = vpack.c.b16 %v1434, %v1426
  %v2299 = vpack.c.b16 %v1435, %v1427
  %v2300 = vpack.c.b16 %v1436, %v1428
  %v2301 = vpack.c.b16 %v1437, %v1429
  %v2302 = vpack.c.b16 %v1438, %v1430
  %v2303 = vpack.c.b16 %v1447, %v1439
  %v2304 = vpack.c.b16 %v1448, %v1440
  %v2305 = vpack.c.b16 %v1449, %v1441
  %v2306 = vpack.c.b16 %v1450, %v1442
  %v2307 = vpack.c.b16 %v1451, %v1443
  %v2308 = vpack.c.b16 %v1452, %v1444
  %v2309 = vpack.c.b16 %v1453, %v1445
  %v2310 = vpack.c.b16 %v1454, %v1446
  %v2311 = vpack.c.b16 %v1463, %v1455
  %v2312 = vpack.c.b16 %v1464, %v1456
  %v2313 = vpack.c.b16 %v1465, %v1457
  %v2314 = vpack.c.b16 %v1466, %v1458
  %v2315 = vpack.c.b16 %v1467, %v1459
  %v2316 = vpack.c.b16 %v1468, %v1460
  %v2317 = vpack.c.b16 %v1469, %v1461
  %v2318 = vpack.c.b16 %v1470, %v1462
  %v2319 = vpack.c.b16 %v1479, %v1471
  %v2320 = vpack.c.b16 %v1480, %v1472
  %v2321 = vpack.c.b16 %v1481, %v1473
  %v2322 = vpack.c.b16 %v1482, %v1474
  %v2323 = vpack.c.b16 %v1483, %v1475
  %v2324 = vpack.c.b16 %v1484, %v1476
  %v2325 = vpack.c.b16 %v1485, %v1477
  %v2326 = vpack.c.b16 %v1486, %v1478
  %v2327 = vpack.c.b16 %v1495, %v1487
  %v2328 = vpack.c.b16 %v1496, %v1488
  %v2329 = vpack.c.b16 %v1497, %v1489
  %v2330 = vpack.c.b16 %v1498, %v1490
  %v2331 = vpack.c.b16 %v1499, %v1491
  %v2332 = vpack.c.b16 %v1500, %v1492
  %v2333 = vpack.c.b16 %v1501, %v1493
  %v2334 = vpack.c.b16 %v1502, %v1494
  %v2335 = vpack.c.b16 %v1511, %v1503
  %v2336 = vpack.c.b16 %v1512, %v1504
  %v2337 = vpack.c.b16 %v1513, %v1505
  %v2338 = vpack.c.b16 %v1514, %v1506
  %v2339 = vpack.c.b16 %v1515, %v1507
  %v2340 = vpack.c.b16 %v1516, %v1508
  %v2341 = vpack.c.b16 %v1517, %v1509
  %v2342 = vpack.c.b16 %v1518, %v1510
  %v2343 = vpack.c.b16 %v1527, %v1519
  %v2344 = vpack.c.b16 %v1528, %v1520
  %v2345 = vpack.c.b16 %v1529, %v1521
  %v2346 = vpack.c.b16 %v1530, %v1522
  %v2347 = vpack.c.b16 %v1531, %v1523
  %v2348 = vpack.c.b16 %v1532, %v1524
  %v2349 = vpack.c.b16 %v1533, %v1525
  %v2350 = vpack.c.b16 %v1534, %v1526
  %v2351 = vpack.c.b16 %v1543, %v1535
  %v2352 = vpack.c.b16 %v1544, %v1536
  %v2353 = vpack.c.b16 %v1545, %v1537
  %v2354 = vpack.c.b16 %v1546, %v1538
  %v2355 = vpack.c.b16 %v1547, %v1539
  %v2356 = vpack.c.b16 %v1548, %v1540
  %v2357 = vpack.c.b16 %v1549, %v1541
  %v2358 = vpack.c.b16 %v1550, %v1542
  %v2359 = vpack.c.b16 %v1559, %v1551
  %v2360 = vpack.c.b16 %v1560, %v1552
  %v2361 = vpack.c.b16 %v1561, %v1553
  %v2362 = vpack.c.b16 %v1562, %v1554
  %v2363 = vpack.c.b16 %v1563, %v1555
  %v2364 = vpack.c.b16 %v1564, %v1556
  %v2365 = vpack.c.b16 %v1565, %v1557
  %v2366 = vpack.c.b16 %v1566, %v1558
  %v2367 = vpack.c.b16 %v1575, %v1567
  %v2368 = vpack.c.b16 %v1576, %v1568
  %v2369 = vpack.c.b16 %v1577, %v1569
  %v2370 = vpack.c.b16 %v1578, %v1570
  %v2371 = vpack.c.b16 %v1579, %v1571
  %v2372 = vpack.c.b16 %v1580, %v1572
  %v2373 = vpack.c.b16 %v1581, %v1573
  %v2374 = vpack.c.b16 %v1582, %v1574
  %v2375 = vpack.c.b16 %v1591, %v1583
  %v2376 = vpack.c.b16 %v1592, %v1584
  %v2377 = vpack.c.b16 %v1593, %v1585
  %v2378 = vpack.c.b16 %v1594, %v1586
  %v2379 = vpack.c.b16 %v1595, %v1587
  %v2380 = vpack.c.b16 %v1596, %v1588
  %v2381 = vpack.c.b16 %v1597, %v1589
  %v2382 = vpack.c.b16 %v1598, %v1590
  %v2383 = vpack.c.b16 %v1607, %v1599
  %v2384 = vpack.c.b16 %v1608, %v1600
  %v2385 = vpack.c.b16 %v1609, %v1601
  %v2386 = vpack.c.b16 %v1610, %v1602
  %v2387 = vpack.c.b16 %v1611, %v1603
  %v2388 = vpack.c.b16 %v1612, %v1604
  %v2389 = vpack.c.b16 %v1613, %v1605
  %v2390 = vpack.c.b16 %v1614, %v1606
  %v2391 = vpack.c.b16 %v1623, %v1615
  %v2392 = vpack.c.b16 %v1624, %v1616
  %v2393 = vpack.c.b16 %v1625, %v1617
  %v2394 = vpack.c.b16 %v1626, %v1618
  %v2395 = vpack.c.b16 %v1627, %v1619
  %v2396 = vpack.c.b16 %v1628, %v1620
  %v2397 = vpack.c.b16 %v1629, %v1621
  %v2398 = vpack.c.b16 %v1630, %v1622
  %v2399 = vpack.c.b16 %v1639, %v1631
  %v2400 = vpack.c.b16 %v1640, %v1632
  %v2401 = vpack.c.b16 %v1641, %v1633
  %v2402 = vpack.c.b16 %v1642, %v1634
  %v2403 = vpack.c.b16 %v1643, %v1635
  %v2404 = vpack.c.b16 %v1644, %v1636
  %v2405 = vpack.c.b16 %v1645, %v1637
  %v2406 = vpack.c.b16 %v1646, %v1638
  %v2407 = vpack.c.b16 %v1655, %v1647
  %v2408 = vpack.c.b16 %v1656, %v1648
  %v2409 = vpack.c.b16 %v1657, %v1649
  %v2410 = vpack.c.b16 %v1658, %v1650
  %v2411 = vpack.c.b16 %v1659, %v1651
  %v2412 = vpack.c.b16 %v1660, %v1652
  %v2413 = vpack.c.b16 %v1661, %v1653
  %v2414 = vpack.c.b16 %v1662, %v1654
  %v2415 = vpack.c.b16 %v1671, %v1663
  %v2416 = vpack.c.b16 %v1672, %v1664
  %v2417 = vpack.c.b16 %v1673, %v1665
  %v2418 = vpack.c.b16 %v1674, %v1666
  %v2419 = vpack.c.b16 %v1675, %v1667
  %v2420 = vpack.c.b16 %v1676, %v1668
  %v2421 = vpack.c.b16 %v1677, %v1669
  %v2422 = vpack.c.b16 %v1678, %v1670
  %v2423 = vpack.c.b16 %v1687, %v1679
  %v2424 = vpack.c.b16 %v1688, %v1680
  %v2425 = vpack.c.b16 %v1689, %v1681
  %v2426 = vpack.c.b16 %v1690, %v1682
  %v2427 = vpack.c.b16 %v1691, %v1683
  %v2428 = vpack.c.b16 %v1692, %v1684
  %v2429 = vpack.c.b16 %v1693, %v1685
  %v2430 = vpack.c.b16 %v1694, %v1686
  %v2431 = vpack.c.b16 %v1703, %v1695
  %v2432 = vpack.c.b16 %v1704, %v1696
  %v2433 = vpack.c.b16 %v1705, %v1697
  %v2434 = vpack.c.b16 %v1706, %v1698
  %v2435 = vpack.c.b16 %v1707, %v1699
  %v2436 = vpack.c.b16 %v1708, %v1700
  %v2437 = vpack.c.b16 %v1709, %v1701
  %v2438 = vpack.c.b16 %v1710, %v1702
  %v2439 = vpack.c.b16 %v1719, %v1711
  %v2440 = vpack.c.b16 %v1720, %v1712
  %v2441 = vpack.c.b16 %v1721, %v1713
  %v2442 = vpack.c.b16 %v1722, %v1714
  %v2443 = vpack.c.b16 %v1723, %v1715
  %v2444 = vpack.c.b16 %v1724, %v1716
  %v2445 = vpack.c.b16 %v1725, %v1717
  %v2446 = vpack.c.b16 %v1726, %v1718
  %v2447 = vpack.c.b16 %v1735, %v1727
  %v2448 = vpack.c.b16 %v1736, %v1728
  %v2449 = vpack.c.b16 %v1737, %v1729
  %v2450 = vpack.c.b16 %v1738, %v1730
  %v2451 = vpack.c.b16 %v1739, %v1731
  %v2452 = vpack.c.b16 %v1740, %v1732
  %v2453 = vpack.c.b16 %v1741, %v1733
  %v2454 = vpack.c.b16 %v1742, %v1734
  %v2455 = vpack.c.b16 %v1751, %v1743
  %v2456 = vpack.c.b16 %v1752, %v1744
  %v2457 = vpack.c.b16 %v1753, %v1745
  %v2458 = vpack.c.b16 %v1754, %v1746
  %v2459 = vpack.c.b16 %v1755, %v1747
  %v2460 = vpack.c.b16 %v1756, %v1748
  %v2461 = vpack.c.b16 %v1757, %v1749
  %v2462 = vpack.c.b16 %v1758, %v1750
  %v2463 = vpack.c.b16 %v1767, %v1759
  %v2464 = vpack.c.b16 %v1768, %v1760
  %v2465 = vpack.c.b16 %v1769, %v1761
  %v2466 = vpack.c.b16 %v1770, %v1762
  %v2467 = vpack.c.b16 %v1771, %v1763
  %v2468 = vpack.c.b16 %v1772, %v1764
  %v2469 = vpack.c.b16 %v1773, %v1765
  %v2470 = vpack.c.b16 %v1774, %v1766
  %v2471 = vpack.c.b16 %v1783, %v1775
  %v2472 = vpack.c.b16 %v1784, %v1776
  %v2473 = vpack.c.b16 %v1785, %v1777
  %v2474 = vpack.c.b16 %v1786, %v1778
  %v2475 = vpack.c.b16 %v1787, %v1779
  %v2476 = vpack.c.b16 %v1788, %v1780
  %v2477 = vpack.c.b16 %v1789, %v1781
  %v2478 = vpack.c.b16 %v1790, %v1782
  %v2479 = vpack.c.b16 %v1799, %v1791
  %v2480 = vpack.c.b16 %v1800, %v1792
  %v2481 = vpack.c.b16 %v1801, %v1793
  %v2482 = vpack.c.b16 %v1802, %v1794
  %v2483 = vpack.c.b16 %v1803, %v1795
  %v2484 = vpack.c.b16 %v1804, %v1796
  %v2485 = vpack.c.b16 %v1805, %v1797
  %v2486 = vpack.c.b16 %v1806, %v1798
  %v2487 = vpack.c.b16 %v1815, %v1807
  %v2488 = vpack.c.b16 %v1816, %v1808
  %v2489 = vpack.c.b16 %v1817, %v1809
  %v2490 = vpack.c.b16 %v1818, %v1810
  %v2491 = vpack.c.b16 %v1819, %v1811
  %v2492 = vpack.c.b16 %v1820, %v1812
  %v2493 = vpack.c.b16 %v1821, %v1813
  %v2494 = vpack.c.b16 %v1822, %v1814
  %v2495 = vpack.c.b16 %v1831, %v1823
  %v2496 = vpack.c.b16 %v1832, %v1824
  %v2497 = vpack.c.b16 %v1833, %v1825
  %v2498 = vpack.c.b16 %v1834, %v1826
  %v2499 = vpack.c.b16 %v1835, %v1827
  %v2500 = vpack.c.b16 %v1836, %v1828
  %v2501 = vpack.c.b16 %v1837, %v1829
  %v2502 = vpack.c.b16 %v1838, %v1830
  %v2503 = vpack.c.b16 %v1847, %v1839
  %v2504 = vpack.c.b16 %v1848, %v1840
  %v2505 = vpack.c.b16 %v1849, %v1841
  %v2506 = vpack.c.b16 %v1850, %v1842
  %v2507 = vpack.c.b16 %v1851, %v1843
  %v2508 = vpack.c.b16 %v1852, %v1844
  %v2509 = vpack.c.b16 %v1853, %v1845
  %v2510 = vpack.c.b16 %v1854, %v1846
  %v2511 = vpack.c.b16 %v1863, %v1855
  %v2512 = vpack.c.b16 %v1864, %v1856
  %v2513 = vpack.c.b16 %v1865, %v1857
  %v2514 = vpack.c.b16 %v1866, %v1858
  %v2515 = vpack.c.b16 %v1867, %v1859
  %v2516 = vpack.c.b16 %v1868, %v1860
  %v2517 = vpack.c.b16 %v1869, %v1861
  %v2518 = vpack.c.b16 %v1870, %v1862
  %v2519 = vpack.c.b16 %v1879, %v1871
  %v2520 = vpack.c.b16 %v1880, %v1872
  %v2521 = vpack.c.b16 %v1881, %v1873
  %v2522 = vpack.c.b16 %v1882, %v1874
  %v2523 = vpack.c.b16 %v1883, %v1875
  %v2524 = vpack.c.b16 %v1884, %v1876
  %v2525 = vpack.c.b16 %v1885, %v1877
  %v2526 = vpack.c.b16 %v1886, %v1878
  %v2527 = vpack.c.b16 %v1895, %v1887
  %v2528 = vpack.c.b16 %v1896, %v1888
  %v2529 = vpack.c.b16 %v1897, %v1889
  %v2530 = vpack.c.b16 %v1898, %v1890
  %v2531 = vpack.c.b16 %v1899, %v1891
  %v2532 = vpack.c.b16 %v1900, %v1892
  %v2533 = vpack.c.b16 %v1901, %v1893
  %v2534 = vpack.c.b16 %v1902, %v1894
  %v2535 = vpack.c.b16 %v1911, %v1903
  %v2536 = vpack.c.b16 %v1912, %v1904
  %v2537 = vpack.c.b16 %v1913, %v1905
  %v2538 = vpack.c.b16 %v1914, %v1906
  %v2539 = vpack.c.b16 %v1915, %v1907
  %v2540 = vpack.c.b16 %v1916, %v1908
  %v2541 = vpack.c.b16 %v1917, %v1909
  %v2542 = vpack.c.b16 %v1918, %v1910
  %v2543 = vpack.c.b16 %v1927, %v1919
  %v2544 = vpack.c.b16 %v1928, %v1920
  %v2545 = vpack.c.b16 %v1929, %v1921
  %v2546 = vpack.c.b16 %v1930, %v1922
  %v2547 = vpack.c.b16 %v1931, %v1923
  %v2548 = vpack.c.b16 %v1932, %v1924
  %v2549 = vpack.c.b16 %v1933, %v1925
  %v2550 = vpack.c.b16 %v1934, %v1926
  %v2551 = vpack.c.b16 %v1943, %v1935
  %v2552 = vpack.c.b16 %v1944, %v1936
  %v2553 = vpack.c.b16 %v1945, %v1937
  %v2554 = vpack.c.b16 %v1946, %v1938
  %v2555 = vpack.c.b16 %v1947, %v1939
  %v2556 = vpack.c.b16 %v1948, %v1940
  %v2557 = vpack.c.b16 %v1949, %v1941
  %v2558 = vpack.c.b16 %v1950, %v1942
  %v2559 = vpack.c.b16 %v1959, %v1951
  %v2560 = vpack.c.b16 %v1960, %v1952
  %v2561 = vpack.c.b16 %v1961, %v1953
  %v2562 = vpack.c.b16 %v1962, %v1954
  %v2563 = vpack.c.b16 %v1963, %v1955
  %v2564 = vpack.c.b16 %v1964, %v1956
  %v2565 = vpack.c.b16 %v1965, %v1957
  %v2566 = vpack.c.b16 %v1966, %v1958
  %v2567 = vpack.c.b16 %v1975, %v1967
  %v2568 = vpack.c.b16 %v1976, %v1968
  %v2569 = vpack.c.b16 %v1977, %v1969
  %v2570 = vpack.c.b16 %v1978, %v1970
  %v2571 = vpack.c.b16 %v1979, %v1971
  %v2572 = vpack.c.b16 %v1980, %v1972
  %v2573 = vpack.c.b16 %v1981, %v1973
  %v2574 = vpack.c.b16 %v1982, %v1974
  %v2575 = vpack.c.b16 %v1991, %v1983
  %v2576 = vpack.c.b16 %v1992, %v1984
  %v2577 = vpack.c.b16 %v1993, %v1985
  %v2578 = vpack.c.b16 %v1994, %v1986
  %v2579 = vpack.c.b16 %v1995, %v1987
  %v2580 = vpack.c.b16 %v1996, %v1988
  %v2581 = vpack.c.b16 %v1997, %v1989
  %v2582 = vpack.c.b16 %v1998, %v1990
  %v2583 = vpack.c.b16 %v2007, %v1999
  %v2584 = vpack.c.b16 %v2008, %v2000
  %v2585 = vpack.c.b16 %v2009, %v2001
  %v2586 = vpack.c.b16 %v2010, %v2002
  %v2587 = vpack.c.b16 %v2011, %v2003
  %v2588 = vpack.c.b16 %v2012, %v2004
  %v2589 = vpack.c.b16 %v2013, %v2005
  %v2590 = vpack.c.b16 %v2014, %v2006
  %v2591 = vpack.c.b16 %v2023, %v2015
  %v2592 = vpack.c.b16 %v2024, %v2016
  %v2593 = vpack.c.b16 %v2025, %v2017
  %v2594 = vpack.c.b16 %v2026, %v2018
  %v2595 = vpack.c.b16 %v2027, %v2019
  %v2596 = vpack.c.b16 %v2028, %v2020
  %v2597 = vpack.c.b16 %v2029, %v2021
  %v2598 = vpack.c.b16 %v2030, %v2022
  %v2599 = vpack.c.b16 %v2039, %v2031
  %v2600 = vpack.c.b16 %v2040, %v2032
  %v2601 = vpack.c.b16 %v2041, %v2033
  %v2602 = vpack.c.b16 %v2042, %v2034
  %v2603 = vpack.c.b16 %v2043, %v2035
  %v2604 = vpack.c.b16 %v2044, %v2036
  %v2605 = vpack.c.b16 %v2045, %v2037
  %v2606 = vpack.c.b16 %v2046, %v2038
  %v2607 = vpack.c.b16 %v2055, %v2047
  %v2608 = vpack.c.b16 %v2056, %v2048
  %v2609 = vpack.c.b16 %v2057, %v2049
  %v2610 = vpack.c.b16 %v2058, %v2050
  %v2611 = vpack.c.b16 %v2059, %v2051
  %v2612 = vpack.c.b16 %v2060, %v2052
  %v2613 = vpack.c.b16 %v2061, %v2053
  %v2614 = vpack.c.b16 %v2062, %v2054
  %v2615 = vpack.c.b16 %v2071, %v2063
  %v2616 = vpack.c.b16 %v2072, %v2064
  %v2617 = vpack.c.b16 %v2073, %v2065
  %v2618 = vpack.c.b16 %v2074, %v2066
  %v2619 = vpack.c.b16 %v2075, %v2067
  %v2620 = vpack.c.b16 %v2076, %v2068
  %v2621 = vpack.c.b16 %v2077, %v2069
  %v2622 = vpack.c.b16 %v2078, %v2070
  %v2623 = vpack.c.b16 %v2087, %v2079
  %v2624 = vpack.c.b16 %v2088, %v2080
  %v2625 = vpack.c.b16 %v2089, %v2081
  %v2626 = vpack.c.b16 %v2090, %v2082
  %v2627 = vpack.c.b16 %v2091, %v2083
  %v2628 = vpack.c.b16 %v2092, %v2084
  %v2629 = vpack.c.b16 %v2093, %v2085
  %v2630 = vpack.c.b16 %v2094, %v2086
  %v2631 = vpack.c.b16 %v2103, %v2095
  %v2632 = vpack.c.b16 %v2104, %v2096
  %v2633 = vpack.c.b16 %v2105, %v2097
  %v2634 = vpack.c.b16 %v2106, %v2098
  %v2635 = vpack.c.b16 %v2107, %v2099
  %v2636 = vpack.c.b16 %v2108, %v2100
  %v2637 = vpack.c.b16 %v2109, %v2101
  %v2638 = vpack.c.b16 %v2110, %v2102
  %v2639 = vpack.c.b16 %v2119, %v2111
  %v2640 = vpack.c.b16 %v2120, %v2112
  %v2641 = vpack.c.b16 %v2121, %v2113
  %v2642 = vpack.c.b16 %v2122, %v2114
  %v2643 = vpack.c.b16 %v2123, %v2115
  %v2644 = vpack.c.b16 %v2124, %v2116
  %v2645 = vpack.c.b16 %v2125, %v2117
  %v2646 = vpack.c.b16 %v2126, %v2118
  %v2647 = vpack.c.b16 %v2135, %v2127
  %v2648 = vpack.c.b16 %v2136, %v2128
  %v2649 = vpack.c.b16 %v2137, %v2129
  %v2650 = vpack.c.b16 %v2138, %v2130
  %v2651 = vpack.c.b16 %v2139, %v2131
  %v2652 = vpack.c.b16 %v2140, %v2132
  %v2653 = vpack.c.b16 %v2141, %v2133
  %v2654 = vpack.c.b16 %v2142, %v2134
  %3167 = vmatprep.subr.bf16.mxu0 %v2144
  %3168 = vmatpush1.bf16.msra.mxu0 %v2143
  %3169 = vmatprep.subr.bf16.mxu0 %v2152
  %3170 = vmatpush1.bf16.msra.mxu0 %v2151
  %3171 = vmatprep.subr.bf16.mxu0 %v2160
  %3172 = vmatpush1.bf16.msra.mxu0 %v2159
  %3173 = vmatprep.subr.bf16.mxu0 %v2168
  %3174 = vmatpush1.bf16.msra.mxu0 %v2167
  %3175 = vmatprep.subr.bf16.mxu0 %v2176
  %3176 = vmatpush1.bf16.msra.mxu0 %v2175
  %3177 = vmatprep.subr.bf16.mxu0 %v2184
  %3178 = vmatpush1.bf16.msra.mxu0 %v2183
  %3179 = vmatprep.subr.bf16.mxu0 %v2192
  %3180 = vmatpush1.bf16.msra.mxu0 %v2191
  %3181 = vmatprep.subr.bf16.mxu0 %v2200
  %3182 = vmatpush1.bf16.msra.mxu0 %v2199
  %3183 = vmatprep.subr.bf16.mxu0 %v2208
  %3184 = vmatpush1.bf16.msra.mxu0 %v2207
  %3185 = vmatprep.subr.bf16.mxu0 %v2216
  %3186 = vmatpush1.bf16.msra.mxu0 %v2215
  %3187 = vmatprep.subr.bf16.mxu0 %v2224
  %3188 = vmatpush1.bf16.msra.mxu0 %v2223
  %3189 = vmatprep.subr.bf16.mxu0 %v2232
  %3190 = vmatpush1.bf16.msra.mxu0 %v2231
  %3191 = vmatprep.subr.bf16.mxu0 %v2240
  %3192 = vmatpush1.bf16.msra.mxu0 %v2239
  %3193 = vmatprep.subr.bf16.mxu0 %v2248
  %3194 = vmatpush1.bf16.msra.mxu0 %v2247
  %3195 = vmatprep.subr.bf16.mxu0 %v2256
  %3196 = vmatpush1.bf16.msra.mxu0 %v2255
  %3197 = vmatprep.subr.bf16.mxu0 %v2264
  %3198 = vmatpush1.bf16.msra.mxu0 %v2263
  %3199 = vmatprep.mubr.bf16.mxu0 %v592
  %3200 = vmatmul.mubr.bf16.gmra.mrb[0].mxu0 %v591
  %v3201 = vpop.f32.mrb[0].mxu0
  %v3202 = vadd.f32 %v542, %v3201
  %v3203 = vpop.f32.mrb[0].mxu0
  %v3204 = vadd.f32 %v546, %v3203
  %v3205 = vpop.f32.mrb[0].mxu0
  %v3206 = vpop.f32.mrb[0].mxu0
  %3207 = vdwg.mxu0
  %3208 = vmatprep.subr.bf16.mxu0 %v2272
  %3209 = vmatpush1.bf16.msra.mxu0 %v2271
  %3210 = vmatprep.subr.bf16.mxu0 %v2280
  %3211 = vmatpush1.bf16.msra.mxu0 %v2279
  %3212 = vmatprep.subr.bf16.mxu0 %v2288
  %3213 = vmatpush1.bf16.msra.mxu0 %v2287
  %3214 = vmatprep.subr.bf16.mxu0 %v2296
  %3215 = vmatpush1.bf16.msra.mxu0 %v2295
  %3216 = vmatprep.subr.bf16.mxu0 %v2304
  %3217 = vmatpush1.bf16.msra.mxu0 %v2303
  %3218 = vmatprep.subr.bf16.mxu0 %v2312
  %3219 = vmatpush1.bf16.msra.mxu0 %v2311
  %3220 = vmatprep.subr.bf16.mxu0 %v2320
  %3221 = vmatpush1.bf16.msra.mxu0 %v2319
  %3222 = vmatprep.subr.bf16.mxu0 %v2328
  %3223 = vmatpush1.bf16.msra.mxu0 %v2327
  %3224 = vmatprep.subr.bf16.mxu0 %v2336
  %3225 = vmatpush1.bf16.msra.mxu0 %v2335
  %3226 = vmatprep.subr.bf16.mxu0 %v2344
  %3227 = vmatpush1.bf16.msra.mxu0 %v2343
  %3228 = vmatprep.subr.bf16.mxu0 %v2352
  %3229 = vmatpush1.bf16.msra.mxu0 %v2351
  %3230 = vmatprep.subr.bf16.mxu0 %v2360
  %3231 = vmatpush1.bf16.msra.mxu0 %v2359
  %3232 = vmatprep.subr.bf16.mxu0 %v2368
  %3233 = vmatpush1.bf16.msra.mxu0 %v2367
  %3234 = vmatprep.subr.bf16.mxu0 %v2376
  %3235 = vmatpush1.bf16.msra.mxu0 %v2375
  %3236 = vmatprep.subr.bf16.mxu0 %v2384
  %3237 = vmatpush1.bf16.msra.mxu0 %v2383
  %3238 = vmatprep.subr.bf16.mxu0 %v2392
  %3239 = vmatpush1.bf16.msra.mxu0 %v2391
  %3240 = vmatprep.mubr.bf16.mxu0 %v594
  %3241 = vmatmul.mubr.bf16.gmra.mrb[0].mxu0 %v593
  %v3242 = vpop.f32.mrb[0].mxu0
  %v3243 = vadd.f32 %v3202, %v3242
  %v3244 = vpop.f32.mrb[0].mxu0
  %v3245 = vadd.f32 %v3204, %v3244
  %v3246 = vpop.f32.mrb[0].mxu0
  %v3247 = vpop.f32.mrb[0].mxu0
  %3248 = vdwg.mxu0
  %3249 = vmatprep.subr.bf16.mxu0 %v2400
  %3250 = vmatpush1.bf16.msra.mxu0 %v2399
  %3251 = vmatprep.subr.bf16.mxu0 %v2408
  %3252 = vmatpush1.bf16.msra.mxu0 %v2407
  %3253 = vmatprep.subr.bf16.mxu0 %v2416
  %3254 = vmatpush1.bf16.msra.mxu0 %v2415
  %3255 = vmatprep.subr.bf16.mxu0 %v2424
  %3256 = vmatpush1.bf16.msra.mxu0 %v2423
  %3257 = vmatprep.subr.bf16.mxu0 %v2432
  %3258 = vmatpush1.bf16.msra.mxu0 %v2431
  %3259 = vmatprep.subr.bf16.mxu0 %v2440
  %3260 = vmatpush1.bf16.msra.mxu0 %v2439
  %3261 = vmatprep.subr.bf16.mxu0 %v2448
  %3262 = vmatpush1.bf16.msra.mxu0 %v2447
  %3263 = vmatprep.subr.bf16.mxu0 %v2456
  %3264 = vmatpush1.bf16.msra.mxu0 %v2455
  %3265 = vmatprep.subr.bf16.mxu0 %v2464
  %3266 = vmatpush1.bf16.msra.mxu0 %v2463
  %3267 = vmatprep.subr.bf16.mxu0 %v2472
  %3268 = vmatpush1.bf16.msra.mxu0 %v2471
  %3269 = vmatprep.subr.bf16.mxu0 %v2480
  %3270 = vmatpush1.bf16.msra.mxu0 %v2479
  %3271 = vmatprep.subr.bf16.mxu0 %v2488
  %3272 = vmatpush1.bf16.msra.mxu0 %v2487
  %3273 = vmatprep.subr.bf16.mxu0 %v2496
  %3274 = vmatpush1.bf16.msra.mxu0 %v2495
  %3275 = vmatprep.subr.bf16.mxu0 %v2504
  %3276 = vmatpush1.bf16.msra.mxu0 %v2503
  %3277 = vmatprep.subr.bf16.mxu0 %v2512
  %3278 = vmatpush1.bf16.msra.mxu0 %v2511
  %3279 = vmatprep.subr.bf16.mxu0 %v2520
  %3280 = vmatpush1.bf16.msra.mxu0 %v2519
  %3281 = vmatprep.mubr.bf16.mxu0 %v596
  %3282 = vmatmul.mubr.bf16.gmra.mrb[0].mxu0 %v595
  %v3283 = vpop.f32.mrb[0].mxu0
  %v3284 = vadd.f32 %v3243, %v3283
  %v3285 = vpop.f32.mrb[0].mxu0
  %v3286 = vadd.f32 %v3245, %v3285
  %v3287 = vpop.f32.mrb[0].mxu0
  %v3288 = vpop.f32.mrb[0].mxu0
  %3289 = vdwg.mxu0
  %3290 = vmatprep.subr.bf16.mxu0 %v2528
  %3291 = vmatpush1.bf16.msra.mxu0 %v2527
  %3292 = vmatprep.subr.bf16.mxu0 %v2536
  %3293 = vmatpush1.bf16.msra.mxu0 %v2535
  %3294 = vmatprep.subr.bf16.mxu0 %v2544
  %3295 = vmatpush1.bf16.msra.mxu0 %v2543
  %3296 = vmatprep.subr.bf16.mxu0 %v2552
  %3297 = vmatpush1.bf16.msra.mxu0 %v2551
  %3298 = vmatprep.subr.bf16.mxu0 %v2560
  %3299 = vmatpush1.bf16.msra.mxu0 %v2559
  %3300 = vmatprep.subr.bf16.mxu0 %v2568
  %3301 = vmatpush1.bf16.msra.mxu0 %v2567
  %3302 = vmatprep.subr.bf16.mxu0 %v2576
  %3303 = vmatpush1.bf16.msra.mxu0 %v2575
  %3304 = vmatprep.subr.bf16.mxu0 %v2584
  %3305 = vmatpush1.bf16.msra.mxu0 %v2583
  %3306 = vmatprep.subr.bf16.mxu0 %v2592
  %3307 = vmatpush1.bf16.msra.mxu0 %v2591
  %3308 = vmatprep.subr.bf16.mxu0 %v2600
  %3309 = vmatpush1.bf16.msra.mxu0 %v2599
  %3310 = vmatprep.subr.bf16.mxu0 %v2608
  %3311 = vmatpush1.bf16.msra.mxu0 %v2607
  %3312 = vmatprep.subr.bf16.mxu0 %v2616
  %3313 = vmatpush1.bf16.msra.mxu0 %v2615
  %3314 = vmatprep.subr.bf16.mxu0 %v2624
  %3315 = vmatpush1.bf16.msra.mxu0 %v2623
  %3316 = vmatprep.subr.bf16.mxu0 %v2632
  %3317 = vmatpush1.bf16.msra.mxu0 %v2631
  %3318 = vmatprep.subr.bf16.mxu0 %v2640
  %3319 = vmatpush1.bf16.msra.mxu0 %v2639
  %3320 = vmatprep.subr.bf16.mxu0 %v2648
  %3321 = vmatpush1.bf16.msra.mxu0 %v2647
  %3322 = vmatprep.mubr.bf16.mxu0 %v598
  %3323 = vmatmul.mubr.bf16.gmra.mrb[0].mxu0 %v597
  %v3324 = vpop.f32.mrb[0].mxu0
  %v3325 = vadd.f32 %v3284, %v3324
  %v3326 = vpop.f32.mrb[0].mxu0
  %v3327 = vadd.f32 %v3286, %v3326
  %v3328 = vpop.f32.mrb[0].mxu0
  %v3329 = vpop.f32.mrb[0].mxu0
  %3330 = vdwg.mxu0
  %3331 = vmatprep.subr.bf16.mxu0 %v2146
  %3332 = vmatpush1.bf16.msra.mxu0 %v2145
  %3333 = vmatprep.subr.bf16.mxu0 %v2154
  %3334 = vmatpush1.bf16.msra.mxu0 %v2153
  %3335 = vmatprep.subr.bf16.mxu0 %v2162
  %3336 = vmatpush1.bf16.msra.mxu0 %v2161
  %3337 = vmatprep.subr.bf16.mxu0 %v2170
  %3338 = vmatpush1.bf16.msra.mxu0 %v2169
  %3339 = vmatprep.subr.bf16.mxu0 %v2178
  %3340 = vmatpush1.bf16.msra.mxu0 %v2177
  %3341 = vmatprep.subr.bf16.mxu0 %v2186
  %3342 = vmatpush1.bf16.msra.mxu0 %v2185
  %3343 = vmatprep.subr.bf16.mxu0 %v2194
  %3344 = vmatpush1.bf16.msra.mxu0 %v2193
  %3345 = vmatprep.subr.bf16.mxu0 %v2202
  %3346 = vmatpush1.bf16.msra.mxu0 %v2201
  %3347 = vmatprep.subr.bf16.mxu0 %v2210
  %3348 = vmatpush1.bf16.msra.mxu0 %v2209
  %3349 = vmatprep.subr.bf16.mxu0 %v2218
  %3350 = vmatpush1.bf16.msra.mxu0 %v2217
  %3351 = vmatprep.subr.bf16.mxu0 %v2226
  %3352 = vmatpush1.bf16.msra.mxu0 %v2225
  %3353 = vmatprep.subr.bf16.mxu0 %v2234
  %3354 = vmatpush1.bf16.msra.mxu0 %v2233
  %3355 = vmatprep.subr.bf16.mxu0 %v2242
  %3356 = vmatpush1.bf16.msra.mxu0 %v2241
  %3357 = vmatprep.subr.bf16.mxu0 %v2250
  %3358 = vmatpush1.bf16.msra.mxu0 %v2249
  %3359 = vmatprep.subr.bf16.mxu0 %v2258
  %3360 = vmatpush1.bf16.msra.mxu0 %v2257
  %3361 = vmatprep.subr.bf16.mxu0 %v2266
  %3362 = vmatpush1.bf16.msra.mxu0 %v2265
  %3363 = vmatprep.mubr.bf16.mxu0 %v592
  %3364 = vmatmul.mubr.bf16.gmra.mrb[0].mxu0 %v591
  %v3365 = vpop.f32.mrb[0].mxu0
  %v3366 = vadd.f32 %v550, %v3365
  %v3367 = vpop.f32.mrb[0].mxu0
  %v3368 = vadd.f32 %v554, %v3367
  %v3369 = vpop.f32.mrb[0].mxu0
  %v3370 = vpop.f32.mrb[0].mxu0
  %3371 = vdwg.mxu0
  %3372 = vmatprep.subr.bf16.mxu0 %v2274
  %3373 = vmatpush1.bf16.msra.mxu0 %v2273
  %3374 = vmatprep.subr.bf16.mxu0 %v2282
  %3375 = vmatpush1.bf16.msra.mxu0 %v2281
  %3376 = vmatprep.subr.bf16.mxu0 %v2290
  %3377 = vmatpush1.bf16.msra.mxu0 %v2289
  %3378 = vmatprep.subr.bf16.mxu0 %v2298
  %3379 = vmatpush1.bf16.msra.mxu0 %v2297
  %3380 = vmatprep.subr.bf16.mxu0 %v2306
  %3381 = vmatpush1.bf16.msra.mxu0 %v2305
  %3382 = vmatprep.subr.bf16.mxu0 %v2314
  %3383 = vmatpush1.bf16.msra.mxu0 %v2313
  %3384 = vmatprep.subr.bf16.mxu0 %v2322
  %3385 = vmatpush1.bf16.msra.mxu0 %v2321
  %3386 = vmatprep.subr.bf16.mxu0 %v2330
  %3387 = vmatpush1.bf16.msra.mxu0 %v2329
  %3388 = vmatprep.subr.bf16.mxu0 %v2338
  %3389 = vmatpush1.bf16.msra.mxu0 %v2337
  %3390 = vmatprep.subr.bf16.mxu0 %v2346
  %3391 = vmatpush1.bf16.msra.mxu0 %v2345
  %3392 = vmatprep.subr.bf16.mxu0 %v2354
  %3393 = vmatpush1.bf16.msra.mxu0 %v2353
  %3394 = vmatprep.subr.bf16.mxu0 %v2362
  %3395 = vmatpush1.bf16.msra.mxu0 %v2361
  %3396 = vmatprep.subr.bf16.mxu0 %v2370
  %3397 = vmatpush1.bf16.msra.mxu0 %v2369
  %3398 = vmatprep.subr.bf16.mxu0 %v2378
  %3399 = vmatpush1.bf16.msra.mxu0 %v2377
  %3400 = vmatprep.subr.bf16.mxu0 %v2386
  %3401 = vmatpush1.bf16.msra.mxu0 %v2385
  %3402 = vmatprep.subr.bf16.mxu0 %v2394
  %3403 = vmatpush1.bf16.msra.mxu0 %v2393
  %3404 = vmatprep.mubr.bf16.mxu0 %v594
  %3405 = vmatmul.mubr.bf16.gmra.mrb[0].mxu0 %v593
  %v3406 = vpop.f32.mrb[0].mxu0
  %v3407 = vadd.f32 %v3366, %v3406
  %v3408 = vpop.f32.mrb[0].mxu0
  %v3409 = vadd.f32 %v3368, %v3408
  %v3410 = vpop.f32.mrb[0].mxu0
  %v3411 = vpop.f32.mrb[0].mxu0
  %3412 = vdwg.mxu0
  %3413 = vmatprep.subr.bf16.mxu0 %v2402
  %3414 = vmatpush1.bf16.msra.mxu0 %v2401
  %3415 = vmatprep.subr.bf16.mxu0 %v2410
  %3416 = vmatpush1.bf16.msra.mxu0 %v2409
  %3417 = vmatprep.subr.bf16.mxu0 %v2418
  %3418 = vmatpush1.bf16.msra.mxu0 %v2417
  %3419 = vmatprep.subr.bf16.mxu0 %v2426
  %3420 = vmatpush1.bf16.msra.mxu0 %v2425
  %3421 = vmatprep.subr.bf16.mxu0 %v2434
  %3422 = vmatpush1.bf16.msra.mxu0 %v2433
  %3423 = vmatprep.subr.bf16.mxu0 %v2442
  %3424 = vmatpush1.bf16.msra.mxu0 %v2441
  %3425 = vmatprep.subr.bf16.mxu0 %v2450
  %3426 = vmatpush1.bf16.msra.mxu0 %v2449
  %3427 = vmatprep.subr.bf16.mxu0 %v2458
  %3428 = vmatpush1.bf16.msra.mxu0 %v2457
  %3429 = vmatprep.subr.bf16.mxu0 %v2466
  %3430 = vmatpush1.bf16.msra.mxu0 %v2465
  %3431 = vmatprep.subr.bf16.mxu0 %v2474
  %3432 = vmatpush1.bf16.msra.mxu0 %v2473
  %3433 = vmatprep.subr.bf16.mxu0 %v2482
  %3434 = vmatpush1.bf16.msra.mxu0 %v2481
  %3435 = vmatprep.subr.bf16.mxu0 %v2490
  %3436 = vmatpush1.bf16.msra.mxu0 %v2489
  %3437 = vmatprep.subr.bf16.mxu0 %v2498
  %3438 = vmatpush1.bf16.msra.mxu0 %v2497
  %3439 = vmatprep.subr.bf16.mxu0 %v2506
  %3440 = vmatpush1.bf16.msra.mxu0 %v2505
  %3441 = vmatprep.subr.bf16.mxu0 %v2514
  %3442 = vmatpush1.bf16.msra.mxu0 %v2513
  %3443 = vmatprep.subr.bf16.mxu0 %v2522
  %3444 = vmatpush1.bf16.msra.mxu0 %v2521
  %3445 = vmatprep.mubr.bf16.mxu0 %v596
  %3446 = vmatmul.mubr.bf16.gmra.mrb[0].mxu0 %v595
  %v3447 = vpop.f32.mrb[0].mxu0
  %v3448 = vadd.f32 %v3407, %v3447
  %v3449 = vpop.f32.mrb[0].mxu0
  %v3450 = vadd.f32 %v3409, %v3449
  %v3451 = vpop.f32.mrb[0].mxu0
  %v3452 = vpop.f32.mrb[0].mxu0
  %3453 = vdwg.mxu0
  %3454 = vmatprep.subr.bf16.mxu0 %v2530
  %3455 = vmatpush1.bf16.msra.mxu0 %v2529
  %3456 = vmatprep.subr.bf16.mxu0 %v2538
  %3457 = vmatpush1.bf16.msra.mxu0 %v2537
  %3458 = vmatprep.subr.bf16.mxu0 %v2546
  %3459 = vmatpush1.bf16.msra.mxu0 %v2545
  %3460 = vmatprep.subr.bf16.mxu0 %v2554
  %3461 = vmatpush1.bf16.msra.mxu0 %v2553
  %3462 = vmatprep.subr.bf16.mxu0 %v2562
  %3463 = vmatpush1.bf16.msra.mxu0 %v2561
  %3464 = vmatprep.subr.bf16.mxu0 %v2570
  %3465 = vmatpush1.bf16.msra.mxu0 %v2569
  %3466 = vmatprep.subr.bf16.mxu0 %v2578
  %3467 = vmatpush1.bf16.msra.mxu0 %v2577
  %3468 = vmatprep.subr.bf16.mxu0 %v2586
  %3469 = vmatpush1.bf16.msra.mxu0 %v2585
  %3470 = vmatprep.subr.bf16.mxu0 %v2594
  %3471 = vmatpush1.bf16.msra.mxu0 %v2593
  %3472 = vmatprep.subr.bf16.mxu0 %v2602
  %3473 = vmatpush1.bf16.msra.mxu0 %v2601
  %3474 = vmatprep.subr.bf16.mxu0 %v2610
  %3475 = vmatpush1.bf16.msra.mxu0 %v2609
  %3476 = vmatprep.subr.bf16.mxu0 %v2618
  %3477 = vmatpush1.bf16.msra.mxu0 %v2617
  %3478 = vmatprep.subr.bf16.mxu0 %v2626
  %3479 = vmatpush1.bf16.msra.mxu0 %v2625
  %3480 = vmatprep.subr.bf16.mxu0 %v2634
  %3481 = vmatpush1.bf16.msra.mxu0 %v2633
  %3482 = vmatprep.subr.bf16.mxu0 %v2642
  %3483 = vmatpush1.bf16.msra.mxu0 %v2641
  %3484 = vmatprep.subr.bf16.mxu0 %v2650
  %3485 = vmatpush1.bf16.msra.mxu0 %v2649
  %3486 = vmatprep.mubr.bf16.mxu0 %v598
  %3487 = vmatmul.mubr.bf16.gmra.mrb[0].mxu0 %v597
  %v3488 = vpop.f32.mrb[0].mxu0
  %v3489 = vadd.f32 %v3448, %v3488
  %v3490 = vpop.f32.mrb[0].mxu0
  %v3491 = vadd.f32 %v3450, %v3490
  %v3492 = vpop.f32.mrb[0].mxu0
  %v3493 = vpop.f32.mrb[0].mxu0
  %3494 = vdwg.mxu0
  %3495 = vmatprep.subr.bf16.mxu0 %v2148
  %3496 = vmatpush1.bf16.msra.mxu0 %v2147
  %3497 = vmatprep.subr.bf16.mxu0 %v2156
  %3498 = vmatpush1.bf16.msra.mxu0 %v2155
  %3499 = vmatprep.subr.bf16.mxu0 %v2164
  %3500 = vmatpush1.bf16.msra.mxu0 %v2163
  %3501 = vmatprep.subr.bf16.mxu0 %v2172
  %3502 = vmatpush1.bf16.msra.mxu0 %v2171
  %3503 = vmatprep.subr.bf16.mxu0 %v2180
  %3504 = vmatpush1.bf16.msra.mxu0 %v2179
  %3505 = vmatprep.subr.bf16.mxu0 %v2188
  %3506 = vmatpush1.bf16.msra.mxu0 %v2187
  %3507 = vmatprep.subr.bf16.mxu0 %v2196
  %3508 = vmatpush1.bf16.msra.mxu0 %v2195
  %3509 = vmatprep.subr.bf16.mxu0 %v2204
  %3510 = vmatpush1.bf16.msra.mxu0 %v2203
  %3511 = vmatprep.subr.bf16.mxu0 %v2212
  %3512 = vmatpush1.bf16.msra.mxu0 %v2211
  %3513 = vmatprep.subr.bf16.mxu0 %v2220
  %3514 = vmatpush1.bf16.msra.mxu0 %v2219
  %3515 = vmatprep.subr.bf16.mxu0 %v2228
  %3516 = vmatpush1.bf16.msra.mxu0 %v2227
  %3517 = vmatprep.subr.bf16.mxu0 %v2236
  %3518 = vmatpush1.bf16.msra.mxu0 %v2235
  %3519 = vmatprep.subr.bf16.mxu0 %v2244
  %3520 = vmatpush1.bf16.msra.mxu0 %v2243
  %3521 = vmatprep.subr.bf16.mxu0 %v2252
  %3522 = vmatpush1.bf16.msra.mxu0 %v2251
  %3523 = vmatprep.subr.bf16.mxu0 %v2260
  %3524 = vmatpush1.bf16.msra.mxu0 %v2259
  %3525 = vmatprep.subr.bf16.mxu0 %v2268
  %3526 = vmatpush1.bf16.msra.mxu0 %v2267
  %3527 = vmatprep.mubr.bf16.mxu0 %v592
  %3528 = vmatmul.mubr.bf16.gmra.mrb[0].mxu0 %v591
  %v3529 = vpop.f32.mrb[0].mxu0
  %v3530 = vadd.f32 %v558, %v3529
  %v3531 = vpop.f32.mrb[0].mxu0
  %v3532 = vadd.f32 %v562, %v3531
  %v3533 = vpop.f32.mrb[0].mxu0
  %v3534 = vpop.f32.mrb[0].mxu0
  %3535 = vdwg.mxu0
  %3536 = vmatprep.subr.bf16.mxu0 %v2276
  %3537 = vmatpush1.bf16.msra.mxu0 %v2275
  %3538 = vmatprep.subr.bf16.mxu0 %v2284
  %3539 = vmatpush1.bf16.msra.mxu0 %v2283
  %3540 = vmatprep.subr.bf16.mxu0 %v2292
  %3541 = vmatpush1.bf16.msra.mxu0 %v2291
  %3542 = vmatprep.subr.bf16.mxu0 %v2300
  %3543 = vmatpush1.bf16.msra.mxu0 %v2299
  %3544 = vmatprep.subr.bf16.mxu0 %v2308
  %3545 = vmatpush1.bf16.msra.mxu0 %v2307
  %3546 = vmatprep.subr.bf16.mxu0 %v2316
  %3547 = vmatpush1.bf16.msra.mxu0 %v2315
  %3548 = vmatprep.subr.bf16.mxu0 %v2324
  %3549 = vmatpush1.bf16.msra.mxu0 %v2323
  %3550 = vmatprep.subr.bf16.mxu0 %v2332
  %3551 = vmatpush1.bf16.msra.mxu0 %v2331
  %3552 = vmatprep.subr.bf16.mxu0 %v2340
  %3553 = vmatpush1.bf16.msra.mxu0 %v2339
  %3554 = vmatprep.subr.bf16.mxu0 %v2348
  %3555 = vmatpush1.bf16.msra.mxu0 %v2347
  %3556 = vmatprep.subr.bf16.mxu0 %v2356
  %3557 = vmatpush1.bf16.msra.mxu0 %v2355
  %3558 = vmatprep.subr.bf16.mxu0 %v2364
  %3559 = vmatpush1.bf16.msra.mxu0 %v2363
  %3560 = vmatprep.subr.bf16.mxu0 %v2372
  %3561 = vmatpush1.bf16.msra.mxu0 %v2371
  %3562 = vmatprep.subr.bf16.mxu0 %v2380
  %3563 = vmatpush1.bf16.msra.mxu0 %v2379
  %3564 = vmatprep.subr.bf16.mxu0 %v2388
  %3565 = vmatpush1.bf16.msra.mxu0 %v2387
  %3566 = vmatprep.subr.bf16.mxu0 %v2396
  %3567 = vmatpush1.bf16.msra.mxu0 %v2395
  %3568 = vmatprep.mubr.bf16.mxu0 %v594
  %3569 = vmatmul.mubr.bf16.gmra.mrb[0].mxu0 %v593
  %v3570 = vpop.f32.mrb[0].mxu0
  %v3571 = vadd.f32 %v3530, %v3570
  %v3572 = vpop.f32.mrb[0].mxu0
  %v3573 = vadd.f32 %v3532, %v3572
  %v3574 = vpop.f32.mrb[0].mxu0
  %v3575 = vpop.f32.mrb[0].mxu0
  %3576 = vdwg.mxu0
  %3577 = vmatprep.subr.bf16.mxu0 %v2404
  %3578 = vmatpush1.bf16.msra.mxu0 %v2403
  %3579 = vmatprep.subr.bf16.mxu0 %v2412
  %3580 = vmatpush1.bf16.msra.mxu0 %v2411
  %3581 = vmatprep.subr.bf16.mxu0 %v2420
  %3582 = vmatpush1.bf16.msra.mxu0 %v2419
  %3583 = vmatprep.subr.bf16.mxu0 %v2428
  %3584 = vmatpush1.bf16.msra.mxu0 %v2427
  %3585 = vmatprep.subr.bf16.mxu0 %v2436
  %3586 = vmatpush1.bf16.msra.mxu0 %v2435
  %3587 = vmatprep.subr.bf16.mxu0 %v2444
  %3588 = vmatpush1.bf16.msra.mxu0 %v2443
  %3589 = vmatprep.subr.bf16.mxu0 %v2452
  %3590 = vmatpush1.bf16.msra.mxu0 %v2451
  %3591 = vmatprep.subr.bf16.mxu0 %v2460
  %3592 = vmatpush1.bf16.msra.mxu0 %v2459
  %3593 = vmatprep.subr.bf16.mxu0 %v2468
  %3594 = vmatpush1.bf16.msra.mxu0 %v2467
  %3595 = vmatprep.subr.bf16.mxu0 %v2476
  %3596 = vmatpush1.bf16.msra.mxu0 %v2475
  %3597 = vmatprep.subr.bf16.mxu0 %v2484
  %3598 = vmatpush1.bf16.msra.mxu0 %v2483
  %3599 = vmatprep.subr.bf16.mxu0 %v2492
  %3600 = vmatpush1.bf16.msra.mxu0 %v2491
  %3601 = vmatprep.subr.bf16.mxu0 %v2500
  %3602 = vmatpush1.bf16.msra.mxu0 %v2499
  %3603 = vmatprep.subr.bf16.mxu0 %v2508
  %3604 = vmatpush1.bf16.msra.mxu0 %v2507
  %3605 = vmatprep.subr.bf16.mxu0 %v2516
  %3606 = vmatpush1.bf16.msra.mxu0 %v2515
  %3607 = vmatprep.subr.bf16.mxu0 %v2524
  %3608 = vmatpush1.bf16.msra.mxu0 %v2523
  %3609 = vmatprep.mubr.bf16.mxu0 %v596
  %3610 = vmatmul.mubr.bf16.gmra.mrb[0].mxu0 %v595
  %v3611 = vpop.f32.mrb[0].mxu0
  %v3612 = vadd.f32 %v3571, %v3611
  %v3613 = vpop.f32.mrb[0].mxu0
  %v3614 = vadd.f32 %v3573, %v3613
  %v3615 = vpop.f32.mrb[0].mxu0
  %v3616 = vpop.f32.mrb[0].mxu0
  %3617 = vdwg.mxu0
  %3618 = vmatprep.subr.bf16.mxu0 %v2532
  %3619 = vmatpush1.bf16.msra.mxu0 %v2531
  %3620 = vmatprep.subr.bf16.mxu0 %v2540
  %3621 = vmatpush1.bf16.msra.mxu0 %v2539
  %3622 = vmatprep.subr.bf16.mxu0 %v2548
  %3623 = vmatpush1.bf16.msra.mxu0 %v2547
  %3624 = vmatprep.subr.bf16.mxu0 %v2556
  %3625 = vmatpush1.bf16.msra.mxu0 %v2555
  %3626 = vmatprep.subr.bf16.mxu0 %v2564
  %3627 = vmatpush1.bf16.msra.mxu0 %v2563
  %3628 = vmatprep.subr.bf16.mxu0 %v2572
  %3629 = vmatpush1.bf16.msra.mxu0 %v2571
  %3630 = vmatprep.subr.bf16.mxu0 %v2580
  %3631 = vmatpush1.bf16.msra.mxu0 %v2579
  %3632 = vmatprep.subr.bf16.mxu0 %v2588
  %3633 = vmatpush1.bf16.msra.mxu0 %v2587
  %3634 = vmatprep.subr.bf16.mxu0 %v2596
  %3635 = vmatpush1.bf16.msra.mxu0 %v2595
  %3636 = vmatprep.subr.bf16.mxu0 %v2604
  %3637 = vmatpush1.bf16.msra.mxu0 %v2603
  %3638 = vmatprep.subr.bf16.mxu0 %v2612
  %3639 = vmatpush1.bf16.msra.mxu0 %v2611
  %3640 = vmatprep.subr.bf16.mxu0 %v2620
  %3641 = vmatpush1.bf16.msra.mxu0 %v2619
  %3642 = vmatprep.subr.bf16.mxu0 %v2628
  %3643 = vmatpush1.bf16.msra.mxu0 %v2627
  %3644 = vmatprep.subr.bf16.mxu0 %v2636
  %3645 = vmatpush1.bf16.msra.mxu0 %v2635
  %3646 = vmatprep.subr.bf16.mxu0 %v2644
  %3647 = vmatpush1.bf16.msra.mxu0 %v2643
  %3648 = vmatprep.subr.bf16.mxu0 %v2652
  %3649 = vmatpush1.bf16.msra.mxu0 %v2651
  %3650 = vmatprep.mubr.bf16.mxu0 %v598
  %3651 = vmatmul.mubr.bf16.gmra.mrb[0].mxu0 %v597
  %v3652 = vpop.f32.mrb[0].mxu0
  %v3653 = vadd.f32 %v3612, %v3652
  %v3654 = vpop.f32.mrb[0].mxu0
  %v3655 = vadd.f32 %v3614, %v3654
  %v3656 = vpop.f32.mrb[0].mxu0
  %v3657 = vpop.f32.mrb[0].mxu0
  %3658 = vdwg.mxu0
  %3659 = vmatprep.subr.bf16.mxu0 %v2150
  %3660 = vmatpush1.bf16.msra.mxu0 %v2149
  %3661 = vmatprep.subr.bf16.mxu0 %v2158
  %3662 = vmatpush1.bf16.msra.mxu0 %v2157
  %3663 = vmatprep.subr.bf16.mxu0 %v2166
  %3664 = vmatpush1.bf16.msra.mxu0 %v2165
  %3665 = vmatprep.subr.bf16.mxu0 %v2174
  %3666 = vmatpush1.bf16.msra.mxu0 %v2173
  %3667 = vmatprep.subr.bf16.mxu0 %v2182
  %3668 = vmatpush1.bf16.msra.mxu0 %v2181
  %3669 = vmatprep.subr.bf16.mxu0 %v2190
  %3670 = vmatpush1.bf16.msra.mxu0 %v2189
  %3671 = vmatprep.subr.bf16.mxu0 %v2198
  %3672 = vmatpush1.bf16.msra.mxu0 %v2197
  %3673 = vmatprep.subr.bf16.mxu0 %v2206
  %3674 = vmatpush1.bf16.msra.mxu0 %v2205
  %3675 = vmatprep.subr.bf16.mxu0 %v2214
  %3676 = vmatpush1.bf16.msra.mxu0 %v2213
  %3677 = vmatprep.subr.bf16.mxu0 %v2222
  %3678 = vmatpush1.bf16.msra.mxu0 %v2221
  %3679 = vmatprep.subr.bf16.mxu0 %v2230
  %3680 = vmatpush1.bf16.msra.mxu0 %v2229
  %3681 = vmatprep.subr.bf16.mxu0 %v2238
  %3682 = vmatpush1.bf16.msra.mxu0 %v2237
  %3683 = vmatprep.subr.bf16.mxu0 %v2246
  %3684 = vmatpush1.bf16.msra.mxu0 %v2245
  %3685 = vmatprep.subr.bf16.mxu0 %v2254
  %3686 = vmatpush1.bf16.msra.mxu0 %v2253
  %3687 = vmatprep.subr.bf16.mxu0 %v2262
  %3688 = vmatpush1.bf16.msra.mxu0 %v2261
  %3689 = vmatprep.subr.bf16.mxu0 %v2270
  %3690 = vmatpush1.bf16.msra.mxu0 %v2269
  %3691 = vmatprep.mubr.bf16.mxu0 %v592
  %3692 = vmatmul.mubr.bf16.gmra.mrb[0].mxu0 %v591
  %v3693 = vpop.f32.mrb[0].mxu0
  %v3694 = vadd.f32 %v566, %v3693
  %v3695 = vpop.f32.mrb[0].mxu0
  %v3696 = vadd.f32 %v570, %v3695
  %v3697 = vpop.f32.mrb[0].mxu0
  %v3698 = vpop.f32.mrb[0].mxu0
  %3699 = vdwg.mxu0
  %3700 = vmatprep.subr.bf16.mxu0 %v2278
  %3701 = vmatpush1.bf16.msra.mxu0 %v2277
  %3702 = vmatprep.subr.bf16.mxu0 %v2286
  %3703 = vmatpush1.bf16.msra.mxu0 %v2285
  %3704 = vmatprep.subr.bf16.mxu0 %v2294
  %3705 = vmatpush1.bf16.msra.mxu0 %v2293
  %3706 = vmatprep.subr.bf16.mxu0 %v2302
  %3707 = vmatpush1.bf16.msra.mxu0 %v2301
  %3708 = vmatprep.subr.bf16.mxu0 %v2310
  %3709 = vmatpush1.bf16.msra.mxu0 %v2309
  %3710 = vmatprep.subr.bf16.mxu0 %v2318
  %3711 = vmatpush1.bf16.msra.mxu0 %v2317
  %3712 = vmatprep.subr.bf16.mxu0 %v2326
  %3713 = vmatpush1.bf16.msra.mxu0 %v2325
  %3714 = vmatprep.subr.bf16.mxu0 %v2334
  %3715 = vmatpush1.bf16.msra.mxu0 %v2333
  %3716 = vmatprep.subr.bf16.mxu0 %v2342
  %3717 = vmatpush1.bf16.msra.mxu0 %v2341
  %3718 = vmatprep.subr.bf16.mxu0 %v2350
  %3719 = vmatpush1.bf16.msra.mxu0 %v2349
  %3720 = vmatprep.subr.bf16.mxu0 %v2358
  %3721 = vmatpush1.bf16.msra.mxu0 %v2357
  %3722 = vmatprep.subr.bf16.mxu0 %v2366
  %3723 = vmatpush1.bf16.msra.mxu0 %v2365
  %3724 = vmatprep.subr.bf16.mxu0 %v2374
  %3725 = vmatpush1.bf16.msra.mxu0 %v2373
  %3726 = vmatprep.subr.bf16.mxu0 %v2382
  %3727 = vmatpush1.bf16.msra.mxu0 %v2381
  %3728 = vmatprep.subr.bf16.mxu0 %v2390
  %3729 = vmatpush1.bf16.msra.mxu0 %v2389
  %3730 = vmatprep.subr.bf16.mxu0 %v2398
  %3731 = vmatpush1.bf16.msra.mxu0 %v2397
  %3732 = vmatprep.mubr.bf16.mxu0 %v594
  %3733 = vmatmul.mubr.bf16.gmra.mrb[0].mxu0 %v593
  %v3734 = vpop.f32.mrb[0].mxu0
  %v3735 = vadd.f32 %v3694, %v3734
  %v3736 = vpop.f32.mrb[0].mxu0
  %v3737 = vadd.f32 %v3696, %v3736
  %v3738 = vpop.f32.mrb[0].mxu0
  %v3739 = vpop.f32.mrb[0].mxu0
  %3740 = vdwg.mxu0
  %3741 = vmatprep.subr.bf16.mxu0 %v2406
  %3742 = vmatpush1.bf16.msra.mxu0 %v2405
  %3743 = vmatprep.subr.bf16.mxu0 %v2414
  %3744 = vmatpush1.bf16.msra.mxu0 %v2413
  %3745 = vmatprep.subr.bf16.mxu0 %v2422
  %3746 = vmatpush1.bf16.msra.mxu0 %v2421
  %3747 = vmatprep.subr.bf16.mxu0 %v2430
  %3748 = vmatpush1.bf16.msra.mxu0 %v2429
  %3749 = vmatprep.subr.bf16.mxu0 %v2438
  %3750 = vmatpush1.bf16.msra.mxu0 %v2437
  %3751 = vmatprep.subr.bf16.mxu0 %v2446
  %3752 = vmatpush1.bf16.msra.mxu0 %v2445
  %3753 = vmatprep.subr.bf16.mxu0 %v2454
  %3754 = vmatpush1.bf16.msra.mxu0 %v2453
  %3755 = vmatprep.subr.bf16.mxu0 %v2462
  %3756 = vmatpush1.bf16.msra.mxu0 %v2461
  %3757 = vmatprep.subr.bf16.mxu0 %v2470
  %3758 = vmatpush1.bf16.msra.mxu0 %v2469
  %3759 = vmatprep.subr.bf16.mxu0 %v2478
  %3760 = vmatpush1.bf16.msra.mxu0 %v2477
  %3761 = vmatprep.subr.bf16.mxu0 %v2486
  %3762 = vmatpush1.bf16.msra.mxu0 %v2485
  %3763 = vmatprep.subr.bf16.mxu0 %v2494
  %3764 = vmatpush1.bf16.msra.mxu0 %v2493
  %3765 = vmatprep.subr.bf16.mxu0 %v2502
  %3766 = vmatpush1.bf16.msra.mxu0 %v2501
  %3767 = vmatprep.subr.bf16.mxu0 %v2510
  %3768 = vmatpush1.bf16.msra.mxu0 %v2509
  %3769 = vmatprep.subr.bf16.mxu0 %v2518
  %3770 = vmatpush1.bf16.msra.mxu0 %v2517
  %3771 = vmatprep.subr.bf16.mxu0 %v2526
  %3772 = vmatpush1.bf16.msra.mxu0 %v2525
  %3773 = vmatprep.mubr.bf16.mxu0 %v596
  %3774 = vmatmul.mubr.bf16.gmra.mrb[0].mxu0 %v595
  %v3775 = vpop.f32.mrb[0].mxu0
  %v3776 = vadd.f32 %v3735, %v3775
  %v3777 = vpop.f32.mrb[0].mxu0
  %v3778 = vadd.f32 %v3737, %v3777
  %v3779 = vpop.f32.mrb[0].mxu0
  %v3780 = vpop.f32.mrb[0].mxu0
  %3781 = vdwg.mxu0
  %3782 = vmatprep.subr.bf16.mxu0 %v2534
  %3783 = vmatpush1.bf16.msra.mxu0 %v2533
  %3784 = vmatprep.subr.bf16.mxu0 %v2542
  %3785 = vmatpush1.bf16.msra.mxu0 %v2541
  %3786 = vmatprep.subr.bf16.mxu0 %v2550
  %3787 = vmatpush1.bf16.msra.mxu0 %v2549
  %3788 = vmatprep.subr.bf16.mxu0 %v2558
  %3789 = vmatpush1.bf16.msra.mxu0 %v2557
  %3790 = vmatprep.subr.bf16.mxu0 %v2566
  %3791 = vmatpush1.bf16.msra.mxu0 %v2565
  %3792 = vmatprep.subr.bf16.mxu0 %v2574
  %3793 = vmatpush1.bf16.msra.mxu0 %v2573
  %3794 = vmatprep.subr.bf16.mxu0 %v2582
  %3795 = vmatpush1.bf16.msra.mxu0 %v2581
  %3796 = vmatprep.subr.bf16.mxu0 %v2590
  %3797 = vmatpush1.bf16.msra.mxu0 %v2589
  %3798 = vmatprep.subr.bf16.mxu0 %v2598
  %3799 = vmatpush1.bf16.msra.mxu0 %v2597
  %3800 = vmatprep.subr.bf16.mxu0 %v2606
  %3801 = vmatpush1.bf16.msra.mxu0 %v2605
  %3802 = vmatprep.subr.bf16.mxu0 %v2614
  %3803 = vmatpush1.bf16.msra.mxu0 %v2613
  %3804 = vmatprep.subr.bf16.mxu0 %v2622
  %3805 = vmatpush1.bf16.msra.mxu0 %v2621
  %3806 = vmatprep.subr.bf16.mxu0 %v2630
  %3807 = vmatpush1.bf16.msra.mxu0 %v2629
  %3808 = vmatprep.subr.bf16.mxu0 %v2638
  %3809 = vmatpush1.bf16.msra.mxu0 %v2637
  %3810 = vmatprep.subr.bf16.mxu0 %v2646
  %3811 = vmatpush1.bf16.msra.mxu0 %v2645
  %3812 = vmatprep.subr.bf16.mxu0 %v2654
  %3813 = vmatpush1.bf16.msra.mxu0 %v2653
  %3814 = vmatprep.mubr.bf16.mxu0 %v598
  %3815 = vmatmul.mubr.bf16.gmra.mrb[0].mxu0 %v597
  %v3816 = vpop.f32.mrb[0].mxu0
  %v3817 = vadd.f32 %v3776, %v3816
  %v3818 = vpop.f32.mrb[0].mxu0
  %v3819 = vadd.f32 %v3778, %v3818
  %v3820 = vpop.f32.mrb[0].mxu0
  %v3821 = vpop.f32.mrb[0].mxu0
  %3822 = vdwg.mxu0
  %v3823 = vmax.f32 %v3325, 0.0
  %v3824 = vmax.f32 %v3327, 0.0
  %v3825 = vmax.f32 %v3489, 0.0
  %v3826 = vmax.f32 %v3491, 0.0
  %v3827 = vmax.f32 %v3653, 0.0
  %v3828 = vmax.f32 %v3655, 0.0
  %v3829 = vmax.f32 %v3817, 0.0
  %v3830 = vmax.f32 %v3819, 0.0
  %v3831 = vpack.c.bf16 %v3823, %v3823
  %v3832 = vpack.c.bf16 %v3824, %v3824
  %v3833 = vpack.c.bf16 %v3825, %v3825
  %v3834 = vpack.c.bf16 %v3826, %v3826
  %v3835 = vpack.c.bf16 %v3827, %v3827
  %v3836 = vpack.c.bf16 %v3828, %v3828
  %v3837 = vpack.c.bf16 %v3829, %v3829
  %v3838 = vpack.c.bf16 %v3830, %v3830
  %v3839 = vld [vmem:[%s3] sm:$0xf]
  %v3840 = vld [vmem:[%s3 + $0x4] sm:$0xf]
  %v3841 = vld [vmem:[%s3 + $0x8] sm:$0xf]
  %v3842 = vld [vmem:[%s3 + $0xc] sm:$0xf]
  %v3843 = vld [vmem:[%s3 + $0x10] sm:$0xf]
  %v3844 = vld [vmem:[%s3 + $0x14] sm:$0xf]
  %v3845 = vld [vmem:[%s3 + $0x18] sm:$0xf]
  %v3846 = vld [vmem:[%s3 + $0x1c] sm:$0xf]
  %v3847 = vld [vmem:[%s3 + $0x20] sm:$0xf]
  %v3848 = vld [vmem:[%s3 + $0x24] sm:$0xf]
  %v3849 = vld [vmem:[%s3 + $0x28] sm:$0xf]
  %v3850 = vld [vmem:[%s3 + $0x2c] sm:$0xf]
  %v3851 = vld [vmem:[%s3 + $0x30] sm:$0xf]
  %v3852 = vld [vmem:[%s3 + $0x34] sm:$0xf]
  %v3853 = vld [vmem:[%s3 + $0x38] sm:$0xf]
  %v3854 = vld [vmem:[%s3 + $0x3c] sm:$0xf]
  %v3855 = vld [vmem:[%s3 + $0x40] sm:$0xf]
  %v3856 = vld [vmem:[%s3 + $0x44] sm:$0xf]
  %v3857 = vld [vmem:[%s3 + $0x48] sm:$0xf]
  %v3858 = vld [vmem:[%s3 + $0x4c] sm:$0xf]
  %v3859 = vld [vmem:[%s3 + $0x50] sm:$0xf]
  %v3860 = vld [vmem:[%s3 + $0x54] sm:$0xf]
  %v3861 = vld [vmem:[%s3 + $0x58] sm:$0xf]
  %v3862 = vld [vmem:[%s3 + $0x5c] sm:$0xf]
  %v3863 = vld [vmem:[%s3 + $0x60] sm:$0xf]
  %v3864 = vld [vmem:[%s3 + $0x64] sm:$0xf]
  %v3865 = vld [vmem:[%s3 + $0x68] sm:$0xf]
  %v3866 = vld [vmem:[%s3 + $0x6c] sm:$0xf]
  %v3867 = vld [vmem:[%s3 + $0x70] sm:$0xf]
  %v3868 = vld [vmem:[%s3 + $0x74] sm:$0xf]
  %v3869 = vld [vmem:[%s3 + $0x78] sm:$0xf]
  %v3870 = vld [vmem:[%s3 + $0x7c] sm:$0xf]
  %v3871 = vld [vmem:[%s3 + $0x80] sm:$0xf]
  %v3872 = vld [vmem:[%s3 + $0x84] sm:$0xf]
  %v3873 = vld [vmem:[%s3 + $0x88] sm:$0xf]
  %v3874 = vld [vmem:[%s3 + $0x8c] sm:$0xf]
  %v3875 = vld [vmem:[%s3 + $0x90] sm:$0xf]
  %v3876 = vld [vmem:[%s3 + $0x94] sm:$0xf]
  %v3877 = vld [vmem:[%s3 + $0x98] sm:$0xf]
  %v3878 = vld [vmem:[%s3 + $0x9c] sm:$0xf]
  %v3879 = vld [vmem:[%s3 + $0xa0] sm:$0xf]
  %v3880 = vld [vmem:[%s3 + $0xa4] sm:$0xf]
  %v3881 = vld [vmem:[%s3 + $0xa8] sm:$0xf]
  %v3882 = vld [vmem:[%s3 + $0xac] sm:$0xf]
  %v3883 = vld [vmem:[%s3 + $0xb0] sm:$0xf]
  %v3884 = vld [vmem:[%s3 + $0xb4] sm:$0xf]
  %v3885 = vld [vmem:[%s3 + $0xb8] sm:$0xf]
  %v3886 = vld [vmem:[%s3 + $0xbc] sm:$0xf]
  %v3887 = vld [vmem:[%s3 + $0xc0] sm:$0xf]
  %v3888 = vld [vmem:[%s3 + $0xc4] sm:$0xf]
  %v3889 = vld [vmem:[%s3 + $0xc8] sm:$0xf]
  %v3890 = vld [vmem:[%s3 + $0xcc] sm:$0xf]
  %v3891 = vld [vmem:[%s3 + $0xd0] sm:$0xf]
  %v3892 = vld [vmem:[%s3 + $0xd4] sm:$0xf]
  %v3893 = vld [vmem:[%s3 + $0xd8] sm:$0xf]
  %v3894 = vld [vmem:[%s3 + $0xdc] sm:$0xf]
  %v3895 = vld [vmem:[%s3 + $0xe0] sm:$0xf]
  %v3896 = vld [vmem:[%s3 + $0xe4] sm:$0xf]
  %v3897 = vld [vmem:[%s3 + $0xe8] sm:$0xf]
  %v3898 = vld [vmem:[%s3 + $0xec] sm:$0xf]
  %v3899 = vld [vmem:[%s3 + $0xf0] sm:$0xf]
  %v3900 = vld [vmem:[%s3 + $0xf4] sm:$0xf]
  %v3901 = vld [vmem:[%s3 + $0xf8] sm:$0xf]
  %v3902 = vld [vmem:[%s3 + $0xfc] sm:$0xf]
  %v3903 = vld [vmem:[%s3 + $0x100] sm:$0xf]
  %v3904 = vld [vmem:[%s3 + $0x104] sm:$0xf]
  %v3905 = vld [vmem:[%s3 + $0x108] sm:$0xf]
  %v3906 = vld [vmem:[%s3 + $0x10c] sm:$0xf]
  %v3907 = vld [vmem:[%s3 + $0x110] sm:$0xf]
  %v3908 = vld [vmem:[%s3 + $0x114] sm:$0xf]
  %v3909 = vld [vmem:[%s3 + $0x118] sm:$0xf]
  %v3910 = vld [vmem:[%s3 + $0x11c] sm:$0xf]
  %v3911 = vld [vmem:[%s3 + $0x120] sm:$0xf]
  %v3912 = vld [vmem:[%s3 + $0x124] sm:$0xf]
  %v3913 = vld [vmem:[%s3 + $0x128] sm:$0xf]
  %v3914 = vld [vmem:[%s3 + $0x12c] sm:$0xf]
  %v3915 = vld [vmem:[%s3 + $0x130] sm:$0xf]
  %v3916 = vld [vmem:[%s3 + $0x134] sm:$0xf]
  %v3917 = vld [vmem:[%s3 + $0x138] sm:$0xf]
  %v3918 = vld [vmem:[%s3 + $0x13c] sm:$0xf]
  %v3919 = vld [vmem:[%s3 + $0x140] sm:$0xf]
  %v3920 = vld [vmem:[%s3 + $0x144] sm:$0xf]
  %v3921 = vld [vmem:[%s3 + $0x148] sm:$0xf]
  %v3922 = vld [vmem:[%s3 + $0x14c] sm:$0xf]
  %v3923 = vld [vmem:[%s3 + $0x150] sm:$0xf]
  %v3924 = vld [vmem:[%s3 + $0x154] sm:$0xf]
  %v3925 = vld [vmem:[%s3 + $0x158] sm:$0xf]
  %v3926 = vld [vmem:[%s3 + $0x15c] sm:$0xf]
  %v3927 = vld [vmem:[%s3 + $0x160] sm:$0xf]
  %v3928 = vld [vmem:[%s3 + $0x164] sm:$0xf]
  %v3929 = vld [vmem:[%s3 + $0x168] sm:$0xf]
  %v3930 = vld [vmem:[%s3 + $0x16c] sm:$0xf]
  %v3931 = vld [vmem:[%s3 + $0x170] sm:$0xf]
  %v3932 = vld [vmem:[%s3 + $0x174] sm:$0xf]
  %v3933 = vld [vmem:[%s3 + $0x178] sm:$0xf]
  %v3934 = vld [vmem:[%s3 + $0x17c] sm:$0xf]
  %v3935 = vld [vmem:[%s3 + $0x180] sm:$0xf]
  %v3936 = vld [vmem:[%s3 + $0x184] sm:$0xf]
  %v3937 = vld [vmem:[%s3 + $0x188] sm:$0xf]
  %v3938 = vld [vmem:[%s3 + $0x18c] sm:$0xf]
  %v3939 = vld [vmem:[%s3 + $0x190] sm:$0xf]
  %v3940 = vld [vmem:[%s3 + $0x194] sm:$0xf]
  %v3941 = vld [vmem:[%s3 + $0x198] sm:$0xf]
  %v3942 = vld [vmem:[%s3 + $0x19c] sm:$0xf]
  %v3943 = vld [vmem:[%s3 + $0x1a0] sm:$0xf]
  %v3944 = vld [vmem:[%s3 + $0x1a4] sm:$0xf]
  %v3945 = vld [vmem:[%s3 + $0x1a8] sm:$0xf]
  %v3946 = vld [vmem:[%s3 + $0x1ac] sm:$0xf]
  %v3947 = vld [vmem:[%s3 + $0x1b0] sm:$0xf]
  %v3948 = vld [vmem:[%s3 + $0x1b4] sm:$0xf]
  %v3949 = vld [vmem:[%s3 + $0x1b8] sm:$0xf]
  %v3950 = vld [vmem:[%s3 + $0x1bc] sm:$0xf]
  %v3951 = vld [vmem:[%s3 + $0x1c0] sm:$0xf]
  %v3952 = vld [vmem:[%s3 + $0x1c4] sm:$0xf]
  %v3953 = vld [vmem:[%s3 + $0x1c8] sm:$0xf]
  %v3954 = vld [vmem:[%s3 + $0x1cc] sm:$0xf]
  %v3955 = vld [vmem:[%s3 + $0x1d0] sm:$0xf]
  %v3956 = vld [vmem:[%s3 + $0x1d4] sm:$0xf]
  %v3957 = vld [vmem:[%s3 + $0x1d8] sm:$0xf]
  %v3958 = vld [vmem:[%s3 + $0x1dc] sm:$0xf]
  %v3959 = vld [vmem:[%s3 + $0x1e0] sm:$0xf]
  %v3960 = vld [vmem:[%s3 + $0x1e4] sm:$0xf]
  %v3961 = vld [vmem:[%s3 + $0x1e8] sm:$0xf]
  %v3962 = vld [vmem:[%s3 + $0x1ec] sm:$0xf]
  %v3963 = vld [vmem:[%s3 + $0x1f0] sm:$0xf]
  %v3964 = vld [vmem:[%s3 + $0x1f4] sm:$0xf]
  %v3965 = vld [vmem:[%s3 + $0x1f8] sm:$0xf]
  %v3966 = vld [vmem:[%s3 + $0x1fc] sm:$0xf]
  %v3967 = vld [vmem:[%s4] sm:$0x1]
  %v3969 = vlaneseq
  %v3970 = vshrl.u32 %v3969, 7
  %v3971 = vsub.s32 0, %v3970
  %v3972 = vrot.slane %v3967, %v3971
  %v4102 = vunpack.c.l.b16 %v3839
  %v4103 = vunpack.c.l.b16 %v3840
  %v4104 = vunpack.c.l.b16 %v3841
  %v4105 = vunpack.c.l.b16 %v3842
  %v4106 = vunpack.c.l.b16 %v3843
  %v4107 = vunpack.c.l.b16 %v3844
  %v4108 = vunpack.c.l.b16 %v3845
  %v4109 = vunpack.c.l.b16 %v3846
  %v4110 = vunpack.c.l.b16 %v3847
  %v4111 = vunpack.c.l.b16 %v3848
  %v4112 = vunpack.c.l.b16 %v3849
  %v4113 = vunpack.c.l.b16 %v3850
  %v4114 = vunpack.c.l.b16 %v3851
  %v4115 = vunpack.c.l.b16 %v3852
  %v4116 = vunpack.c.l.b16 %v3853
  %v4117 = vunpack.c.l.b16 %v3854
  %v4118 = vunpack.c.l.b16 %v3855
  %v4119 = vunpack.c.l.b16 %v3856
  %v4120 = vunpack.c.l.b16 %v3857
  %v4121 = vunpack.c.l.b16 %v3858
  %v4122 = vunpack.c.l.b16 %v3859
  %v4123 = vunpack.c.l.b16 %v3860
  %v4124 = vunpack.c.l.b16 %v3861
  %v4125 = vunpack.c.l.b16 %v3862
  %v4126 = vunpack.c.l.b16 %v3863
  %v4127 = vunpack.c.l.b16 %v3864
  %v4128 = vunpack.c.l.b16 %v3865
  %v4129 = vunpack.c.l.b16 %v3866
  %v4130 = vunpack.c.l.b16 %v3867
  %v4131 = vunpack.c.l.b16 %v3868
  %v4132 = vunpack.c.l.b16 %v3869
  %v4133 = vunpack.c.l.b16 %v3870
  %v4134 = vunpack.c.l.b16 %v3871
  %v4135 = vunpack.c.l.b16 %v3872
  %v4136 = vunpack.c.l.b16 %v3873
  %v4137 = vunpack.c.l.b16 %v3874
  %v4138 = vunpack.c.l.b16 %v3875
  %v4139 = vunpack.c.l.b16 %v3876
  %v4140 = vunpack.c.l.b16 %v3877
  %v4141 = vunpack.c.l.b16 %v3878
  %v4142 = vunpack.c.l.b16 %v3879
  %v4143 = vunpack.c.l.b16 %v3880
  %v4144 = vunpack.c.l.b16 %v3881
  %v4145 = vunpack.c.l.b16 %v3882
  %v4146 = vunpack.c.l.b16 %v3883
  %v4147 = vunpack.c.l.b16 %v3884
  %v4148 = vunpack.c.l.b16 %v3885
  %v4149 = vunpack.c.l.b16 %v3886
  %v4150 = vunpack.c.l.b16 %v3887
  %v4151 = vunpack.c.l.b16 %v3888
  %v4152 = vunpack.c.l.b16 %v3889
  %v4153 = vunpack.c.l.b16 %v3890
  %v4154 = vunpack.c.l.b16 %v3891
  %v4155 = vunpack.c.l.b16 %v3892
  %v4156 = vunpack.c.l.b16 %v3893
  %v4157 = vunpack.c.l.b16 %v3894
  %v4158 = vunpack.c.l.b16 %v3895
  %v4159 = vunpack.c.l.b16 %v3896
  %v4160 = vunpack.c.l.b16 %v3897
  %v4161 = vunpack.c.l.b16 %v3898
  %v4162 = vunpack.c.l.b16 %v3899
  %v4163 = vunpack.c.l.b16 %v3900
  %v4164 = vunpack.c.l.b16 %v3901
  %v4165 = vunpack.c.l.b16 %v3902
  %v4166 = vunpack.c.l.b16 %v3903
  %v4167 = vunpack.c.l.b16 %v3904
  %v4168 = vunpack.c.l.b16 %v3905
  %v4169 = vunpack.c.l.b16 %v3906
  %v4170 = vunpack.c.l.b16 %v3907
  %v4171 = vunpack.c.l.b16 %v3908
  %v4172 = vunpack.c.l.b16 %v3909
  %v4173 = vunpack.c.l.b16 %v3910
  %v4174 = vunpack.c.l.b16 %v3911
  %v4175 = vunpack.c.l.b16 %v3912
  %v4176 = vunpack.c.l.b16 %v3913
  %v4177 = vunpack.c.l.b16 %v3914
  %v4178 = vunpack.c.l.b16 %v3915
  %v4179 = vunpack.c.l.b16 %v3916
  %v4180 = vunpack.c.l.b16 %v3917
  %v4181 = vunpack.c.l.b16 %v3918
  %v4182 = vunpack.c.l.b16 %v3919
  %v4183 = vunpack.c.l.b16 %v3920
  %v4184 = vunpack.c.l.b16 %v3921
  %v4185 = vunpack.c.l.b16 %v3922
  %v4186 = vunpack.c.l.b16 %v3923
  %v4187 = vunpack.c.l.b16 %v3924
  %v4188 = vunpack.c.l.b16 %v3925
  %v4189 = vunpack.c.l.b16 %v3926
  %v4190 = vunpack.c.l.b16 %v3927
  %v4191 = vunpack.c.l.b16 %v3928
  %v4192 = vunpack.c.l.b16 %v3929
  %v4193 = vunpack.c.l.b16 %v3930
  %v4194 = vunpack.c.l.b16 %v3931
  %v4195 = vunpack.c.l.b16 %v3932
  %v4196 = vunpack.c.l.b16 %v3933
  %v4197 = vunpack.c.l.b16 %v3934
  %v4198 = vunpack.c.l.b16 %v3935
  %v4199 = vunpack.c.l.b16 %v3936
  %v4200 = vunpack.c.l.b16 %v3937
  %v4201 = vunpack.c.l.b16 %v3938
  %v4202 = vunpack.c.l.b16 %v3939
  %v4203 = vunpack.c.l.b16 %v3940
  %v4204 = vunpack.c.l.b16 %v3941
  %v4205 = vunpack.c.l.b16 %v3942
  %v4206 = vunpack.c.l.b16 %v3943
  %v4207 = vunpack.c.l.b16 %v3944
  %v4208 = vunpack.c.l.b16 %v3945
  %v4209 = vunpack.c.l.b16 %v3946
  %v4210 = vunpack.c.l.b16 %v3947
  %v4211 = vunpack.c.l.b16 %v3948
  %v4212 = vunpack.c.l.b16 %v3949
  %v4213 = vunpack.c.l.b16 %v3950
  %v4214 = vunpack.c.l.b16 %v3951
  %v4215 = vunpack.c.l.b16 %v3952
  %v4216 = vunpack.c.l.b16 %v3953
  %v4217 = vunpack.c.l.b16 %v3954
  %v4218 = vunpack.c.l.b16 %v3955
  %v4219 = vunpack.c.l.b16 %v3956
  %v4220 = vunpack.c.l.b16 %v3957
  %v4221 = vunpack.c.l.b16 %v3958
  %v4222 = vunpack.c.l.b16 %v3959
  %v4223 = vunpack.c.l.b16 %v3960
  %v4224 = vunpack.c.l.b16 %v3961
  %v4225 = vunpack.c.l.b16 %v3962
  %v4226 = vunpack.c.l.b16 %v3963
  %v4227 = vunpack.c.l.b16 %v3964
  %v4228 = vunpack.c.l.b16 %v3965
  %v4229 = vunpack.c.l.b16 %v3966
  %v4230 = vpack.c.b16 %v4103, %v4102
  %v4231 = vpack.c.b16 %v4105, %v4104
  %v4232 = vpack.c.b16 %v4107, %v4106
  %v4233 = vpack.c.b16 %v4109, %v4108
  %v4234 = vpack.c.b16 %v4111, %v4110
  %v4235 = vpack.c.b16 %v4113, %v4112
  %v4236 = vpack.c.b16 %v4115, %v4114
  %v4237 = vpack.c.b16 %v4117, %v4116
  %v4238 = vpack.c.b16 %v4119, %v4118
  %v4239 = vpack.c.b16 %v4121, %v4120
  %v4240 = vpack.c.b16 %v4123, %v4122
  %v4241 = vpack.c.b16 %v4125, %v4124
  %v4242 = vpack.c.b16 %v4127, %v4126
  %v4243 = vpack.c.b16 %v4129, %v4128
  %v4244 = vpack.c.b16 %v4131, %v4130
  %v4245 = vpack.c.b16 %v4133, %v4132
  %v4246 = vpack.c.b16 %v4135, %v4134
  %v4247 = vpack.c.b16 %v4137, %v4136
  %v4248 = vpack.c.b16 %v4139, %v4138
  %v4249 = vpack.c.b16 %v4141, %v4140
  %v4250 = vpack.c.b16 %v4143, %v4142
  %v4251 = vpack.c.b16 %v4145, %v4144
  %v4252 = vpack.c.b16 %v4147, %v4146
  %v4253 = vpack.c.b16 %v4149, %v4148
  %v4254 = vpack.c.b16 %v4151, %v4150
  %v4255 = vpack.c.b16 %v4153, %v4152
  %v4256 = vpack.c.b16 %v4155, %v4154
  %v4257 = vpack.c.b16 %v4157, %v4156
  %v4258 = vpack.c.b16 %v4159, %v4158
  %v4259 = vpack.c.b16 %v4161, %v4160
  %v4260 = vpack.c.b16 %v4163, %v4162
  %v4261 = vpack.c.b16 %v4165, %v4164
  %v4262 = vpack.c.b16 %v4167, %v4166
  %v4263 = vpack.c.b16 %v4169, %v4168
  %v4264 = vpack.c.b16 %v4171, %v4170
  %v4265 = vpack.c.b16 %v4173, %v4172
  %v4266 = vpack.c.b16 %v4175, %v4174
  %v4267 = vpack.c.b16 %v4177, %v4176
  %v4268 = vpack.c.b16 %v4179, %v4178
  %v4269 = vpack.c.b16 %v4181, %v4180
  %v4270 = vpack.c.b16 %v4183, %v4182
  %v4271 = vpack.c.b16 %v4185, %v4184
  %v4272 = vpack.c.b16 %v4187, %v4186
  %v4273 = vpack.c.b16 %v4189, %v4188
  %v4274 = vpack.c.b16 %v4191, %v4190
  %v4275 = vpack.c.b16 %v4193, %v4192
  %v4276 = vpack.c.b16 %v4195, %v4194
  %v4277 = vpack.c.b16 %v4197, %v4196
  %v4278 = vpack.c.b16 %v4199, %v4198
  %v4279 = vpack.c.b16 %v4201, %v4200
  %v4280 = vpack.c.b16 %v4203, %v4202
  %v4281 = vpack.c.b16 %v4205, %v4204
  %v4282 = vpack.c.b16 %v4207, %v4206
  %v4283 = vpack.c.b16 %v4209, %v4208
  %v4284 = vpack.c.b16 %v4211, %v4210
  %v4285 = vpack.c.b16 %v4213, %v4212
  %v4286 = vpack.c.b16 %v4215, %v4214
  %v4287 = vpack.c.b16 %v4217, %v4216
  %v4288 = vpack.c.b16 %v4219, %v4218
  %v4289 = vpack.c.b16 %v4221, %v4220
  %v4290 = vpack.c.b16 %v4223, %v4222
  %v4291 = vpack.c.b16 %v4225, %v4224
  %v4292 = vpack.c.b16 %v4227, %v4226
  %v4293 = vpack.c.b16 %v4229, %v4228
  %4358 = vmatprep.subr.bf16.mxu0 0
  %4359 = vmatpush1.bf16.msra.mxu0 %v4230
  %4360 = vmatprep.subr.bf16.mxu0 0
  %4361 = vmatpush1.bf16.msra.mxu0 %v4231
  %4362 = vmatprep.subr.bf16.mxu0 0
  %4363 = vmatpush1.bf16.msra.mxu0 %v4232
  %4364 = vmatprep.subr.bf16.mxu0 0
  %4365 = vmatpush1.bf16.msra.mxu0 %v4233
  %4366 = vmatprep.subr.bf16.mxu0 0
  %4367 = vmatpush1.bf16.msra.mxu0 %v4234
  %4368 = vmatprep.subr.bf16.mxu0 0
  %4369 = vmatpush1.bf16.msra.mxu0 %v4235
  %4370 = vmatprep.subr.bf16.mxu0 0
  %4371 = vmatpush1.bf16.msra.mxu0 %v4236
  %4372 = vmatprep.subr.bf16.mxu0 0
  %4373 = vmatpush1.bf16.msra.mxu0 %v4237
  %4374 = vmatprep.subr.bf16.mxu0 0
  %4375 = vmatpush1.bf16.msra.mxu0 %v4238
  %4376 = vmatprep.subr.bf16.mxu0 0
  %4377 = vmatpush1.bf16.msra.mxu0 %v4239
  %4378 = vmatprep.subr.bf16.mxu0 0
  %4379 = vmatpush1.bf16.msra.mxu0 %v4240
  %4380 = vmatprep.subr.bf16.mxu0 0
  %4381 = vmatpush1.bf16.msra.mxu0 %v4241
  %4382 = vmatprep.subr.bf16.mxu0 0
  %4383 = vmatpush1.bf16.msra.mxu0 %v4242
  %4384 = vmatprep.subr.bf16.mxu0 0
  %4385 = vmatpush1.bf16.msra.mxu0 %v4243
  %4386 = vmatprep.subr.bf16.mxu0 0
  %4387 = vmatpush1.bf16.msra.mxu0 %v4244
  %4388 = vmatprep.subr.bf16.mxu0 0
  %4389 = vmatpush1.bf16.msra.mxu0 %v4245
  %4390 = vmatprep.mubr.bf16.mxu0 %v3832
  %4391 = vmatmul.mubr.bf16.gmra.mrb[0].mxu0 %v3831
  %v4392 = vpop.f32.mrb[0].mxu0
  %v4393 = vadd.f32 %v3972, %v4392
  %v4394 = vpop.f32.mrb[0].mxu0
  %v4395 = vpop.f32.mrb[0].mxu0
  %v4396 = vpop.f32.mrb[0].mxu0
  %4397 = vdwg.mxu0
  %4398 = vmatprep.subr.bf16.mxu0 0
  %4399 = vmatpush1.bf16.msra.mxu0 %v4246
  %4400 = vmatprep.subr.bf16.mxu0 0
  %4401 = vmatpush1.bf16.msra.mxu0 %v4247
  %4402 = vmatprep.subr.bf16.mxu0 0
  %4403 = vmatpush1.bf16.msra.mxu0 %v4248
  %4404 = vmatprep.subr.bf16.mxu0 0
  %4405 = vmatpush1.bf16.msra.mxu0 %v4249
  %4406 = vmatprep.subr.bf16.mxu0 0
  %4407 = vmatpush1.bf16.msra.mxu0 %v4250
  %4408 = vmatprep.subr.bf16.mxu0 0
  %4409 = vmatpush1.bf16.msra.mxu0 %v4251
  %4410 = vmatprep.subr.bf16.mxu0 0
  %4411 = vmatpush1.bf16.msra.mxu0 %v4252
  %4412 = vmatprep.subr.bf16.mxu0 0
  %4413 = vmatpush1.bf16.msra.mxu0 %v4253
  %4414 = vmatprep.subr.bf16.mxu0 0
  %4415 = vmatpush1.bf16.msra.mxu0 %v4254
  %4416 = vmatprep.subr.bf16.mxu0 0
  %4417 = vmatpush1.bf16.msra.mxu0 %v4255
  %4418 = vmatprep.subr.bf16.mxu0 0
  %4419 = vmatpush1.bf16.msra.mxu0 %v4256
  %4420 = vmatprep.subr.bf16.mxu0 0
  %4421 = vmatpush1.bf16.msra.mxu0 %v4257
  %4422 = vmatprep.subr.bf16.mxu0 0
  %4423 = vmatpush1.bf16.msra.mxu0 %v4258
  %4424 = vmatprep.subr.bf16.mxu0 0
  %4425 = vmatpush1.bf16.msra.mxu0 %v4259
  %4426 = vmatprep.subr.bf16.mxu0 0
  %4427 = vmatpush1.bf16.msra.mxu0 %v4260
  %4428 = vmatprep.subr.bf16.mxu0 0
  %4429 = vmatpush1.bf16.msra.mxu0 %v4261
  %4430 = vmatprep.mubr.bf16.mxu0 %v3834
  %4431 = vmatmul.mubr.bf16.gmra.mrb[0].mxu0 %v3833
  %v4432 = vpop.f32.mrb[0].mxu0
  %v4433 = vadd.f32 %v4393, %v4432
  %v4434 = vpop.f32.mrb[0].mxu0
  %v4435 = vpop.f32.mrb[0].mxu0
  %v4436 = vpop.f32.mrb[0].mxu0
  %4437 = vdwg.mxu0
  %4438 = vmatprep.subr.bf16.mxu0 0
  %4439 = vmatpush1.bf16.msra.mxu0 %v4262
  %4440 = vmatprep.subr.bf16.mxu0 0
  %4441 = vmatpush1.bf16.msra.mxu0 %v4263
  %4442 = vmatprep.subr.bf16.mxu0 0
  %4443 = vmatpush1.bf16.msra.mxu0 %v4264
  %4444 = vmatprep.subr.bf16.mxu0 0
  %4445 = vmatpush1.bf16.msra.mxu0 %v4265
  %4446 = vmatprep.subr.bf16.mxu0 0
  %4447 = vmatpush1.bf16.msra.mxu0 %v4266
  %4448 = vmatprep.subr.bf16.mxu0 0
  %4449 = vmatpush1.bf16.msra.mxu0 %v4267
  %4450 = vmatprep.subr.bf16.mxu0 0
  %4451 = vmatpush1.bf16.msra.mxu0 %v4268
  %4452 = vmatprep.subr.bf16.mxu0 0
  %4453 = vmatpush1.bf16.msra.mxu0 %v4269
  %4454 = vmatprep.subr.bf16.mxu0 0
  %4455 = vmatpush1.bf16.msra.mxu0 %v4270
  %4456 = vmatprep.subr.bf16.mxu0 0
  %4457 = vmatpush1.bf16.msra.mxu0 %v4271
  %4458 = vmatprep.subr.bf16.mxu0 0
  %4459 = vmatpush1.bf16.msra.mxu0 %v4272
  %4460 = vmatprep.subr.bf16.mxu0 0
  %4461 = vmatpush1.bf16.msra.mxu0 %v4273
  %4462 = vmatprep.subr.bf16.mxu0 0
  %4463 = vmatpush1.bf16.msra.mxu0 %v4274
  %4464 = vmatprep.subr.bf16.mxu0 0
  %4465 = vmatpush1.bf16.msra.mxu0 %v4275
  %4466 = vmatprep.subr.bf16.mxu0 0
  %4467 = vmatpush1.bf16.msra.mxu0 %v4276
  %4468 = vmatprep.subr.bf16.mxu0 0
  %4469 = vmatpush1.bf16.msra.mxu0 %v4277
  %4470 = vmatprep.mubr.bf16.mxu0 %v3836
  %4471 = vmatmul.mubr.bf16.gmra.mrb[0].mxu0 %v3835
  %v4472 = vpop.f32.mrb[0].mxu0
  %v4473 = vadd.f32 %v4433, %v4472
  %v4474 = vpop.f32.mrb[0].mxu0
  %v4475 = vpop.f32.mrb[0].mxu0
  %v4476 = vpop.f32.mrb[0].mxu0
  %4477 = vdwg.mxu0
  %4478 = vmatprep.subr.bf16.mxu0 0
  %4479 = vmatpush1.bf16.msra.mxu0 %v4278
  %4480 = vmatprep.subr.bf16.mxu0 0
  %4481 = vmatpush1.bf16.msra.mxu0 %v4279
  %4482 = vmatprep.subr.bf16.mxu0 0
  %4483 = vmatpush1.bf16.msra.mxu0 %v4280
  %4484 = vmatprep.subr.bf16.mxu0 0
  %4485 = vmatpush1.bf16.msra.mxu0 %v4281
  %4486 = vmatprep.subr.bf16.mxu0 0
  %4487 = vmatpush1.bf16.msra.mxu0 %v4282
  %4488 = vmatprep.subr.bf16.mxu0 0
  %4489 = vmatpush1.bf16.msra.mxu0 %v4283
  %4490 = vmatprep.subr.bf16.mxu0 0
  %4491 = vmatpush1.bf16.msra.mxu0 %v4284
  %4492 = vmatprep.subr.bf16.mxu0 0
  %4493 = vmatpush1.bf16.msra.mxu0 %v4285
  %4494 = vmatprep.subr.bf16.mxu0 0
  %4495 = vmatpush1.bf16.msra.mxu0 %v4286
  %4496 = vmatprep.subr.bf16.mxu0 0
  %4497 = vmatpush1.bf16.msra.mxu0 %v4287
  %4498 = vmatprep.subr.bf16.mxu0 0
  %4499 = vmatpush1.bf16.msra.mxu0 %v4288
  %4500 = vmatprep.subr.bf16.mxu0 0
  %4501 = vmatpush1.bf16.msra.mxu0 %v4289
  %4502 = vmatprep.subr.bf16.mxu0 0
  %4503 = vmatpush1.bf16.msra.mxu0 %v4290
  %4504 = vmatprep.subr.bf16.mxu0 0
  %4505 = vmatpush1.bf16.msra.mxu0 %v4291
  %4506 = vmatprep.subr.bf16.mxu0 0
  %4507 = vmatpush1.bf16.msra.mxu0 %v4292
  %4508 = vmatprep.subr.bf16.mxu0 0
  %4509 = vmatpush1.bf16.msra.mxu0 %v4293
  %4510 = vmatprep.mubr.bf16.mxu0 %v3838
  %4511 = vmatmul.mubr.bf16.gmra.mrb[0].mxu0 %v3837
  %v4512 = vpop.f32.mrb[0].mxu0
  %v4513 = vadd.f32 %v4473, %v4512
  %v4514 = vpop.f32.mrb[0].mxu0
  %v4515 = vpop.f32.mrb[0].mxu0
  %v4516 = vpop.f32.mrb[0].mxu0
  %4517 = vdwg.mxu0
  %4518 = vst [vmem:[%s5] sm:$0xff] %v4513
  // Predicated region
  $region22: #{lenet_forward.5} parent=0 // pred_check
    _
  $region23: #{lenet_forward.5} parent=0 // pred_check_branch
    %4520 = sbr.rel (0) target = $region25
  $region24: #{lenet_forward.5} parent=0 // pred_region
    _
  $region25: #{lenet_forward.5} parent=0 // pred_fallthru
    _
  // Predicated region
  $region26: #{lenet_forward.5} parent=0 // pred_check
    _
  $region27: #{lenet_forward.5} parent=0 // pred_check_branch
    %4522 = sbr.rel (0) target = $region29
  $region28: #{lenet_forward.5} parent=0 // pred_region
    _
  $region29: #{lenet_forward.5} parent=0 // pred_fallthru
    _

</llo_original>
